<compile_context>
chip_gen: v7x
topology: tpu7x:2x2x1
jax: 0.10.0
libtpu: 0.0.40
codegen_flags: <defaults>
</compile_context>

<pallas_src>
import functools

import jax
import jax.numpy as jnp
from jax import lax
from jax.experimental import pallas as pl
from jax.experimental.pallas import tpu as pltpu


# ----------------------------------------------------------------------------
# Pallas kernel: one block of B_tile images per grid step.
# ----------------------------------------------------------------------------
def _bottleneck_kernel(x_ref, mask_ref, w1_ref, b1_ref, w2_ref, b2_ref,
                       w3_ref, b3_ref, out_ref, h1_ref, *, Wp, PAD):
    M = out_ref.shape[0]                                        # B_tile*Hp*Wp

    x = x_ref[...]                                              # (M, Cin) bf16

    # ---- conv1x1 (BN1 scale folded into w1) + bias + ReLU -------------------
    # The mask zeroes the padded border rows/cols so the 3x3 stage sees true
    # zero padding (border positions would otherwise be relu(b1)).
    h1 = jnp.dot(x, w1_ref[...], preferred_element_type=jnp.float32)
    h1 = jnp.maximum(h1 + b1_ref[...], 0.0) * mask_ref[...]     # (M, Cm) f32

    # Single aligned, full-width store into the shift scratch.  The margins of
    # h1_ref are never read when producing valid (interior) outputs, so they
    # need no initialisation and no per-step zeroing.
    h1_ref[PAD:PAD + M, :] = h1

    # ---- conv3x3 (stride 1, pad 1) as 9 shifted matmuls ---------------------
    # Output row j (padded layout) gets tap (ky, kx) from h1 row
    # j + (ky-1)*Wp + (kx-1); each window is one contiguous 2-D slice.
    acc = jnp.zeros((M, h1.shape[1]), jnp.float32)
    for ky in range(3):
        for kx in range(3):
            start = PAD + (ky - 1) * Wp + (kx - 1)              # static offset
            win = h1_ref[start:start + M, :].astype(jnp.bfloat16)
            acc = acc + jnp.dot(win, w2_ref[3 * ky + kx],
                                preferred_element_type=jnp.float32)
    h2 = jnp.maximum(acc + b2_ref[...], 0.0)                    # (M, Cm) f32

    # ---- conv1x1 expansion (BN3 scale folded) + bias + residual + ReLU ------
    h3 = jnp.dot(h2.astype(jnp.bfloat16), w3_ref[...],
                 preferred_element_type=jnp.float32)
    h3 = h3 + b3_ref[...] + x.astype(jnp.float32)
    out_ref[...] = jnp.maximum(h3, 0.0).astype(out_ref.dtype)


def _pick_batch_tile(n, rows_per_image, max_rows=4096):
    """Largest divisor of n keeping the matmul M dim below max_rows."""
    bt = 1
    for cand in range(1, n + 1):
        if n % cand == 0 and cand * rows_per_image <= max_rows:
            bt = cand
    return bt


# ----------------------------------------------------------------------------
# Wrapper: layout plumbing, BN folding, pallas_call.
# ----------------------------------------------------------------------------
def bottleneck_forward(x_nchw, params):
    """Bottleneck forward.  x_nchw: (N, Cin, H, W) with Cin == 4 * channels."""
    (w1, s1, b1, w2, s2, b2, w3, s3, b3) = params
    N, Cin, H, W = x_nchw.shape
    Cm = w1.shape[1]
    Cout = 4 * Cm
    assert Cin == Cout, "identity residual path requires in_channels == 4*channels"
    # TODO(synk): stride>1, dilation>1 and the downsample branch are not
    # implemented (module defaults: stride=1, dilation=1, downsample=None).

    Hp = H + 2
    Wp = ((W + 2 + 7) // 8) * 8          # padded row stride, 8-sublane aligned
    rows = Hp * Wp

    # ---- NCHW -> padded NHWC, flattened to (N*Hp*Wp, C), bf16 for matmuls ----
    x_nhwc = jnp.transpose(x_nchw, (0, 2, 3, 1))
    x_pad = jnp.pad(x_nhwc, ((0, 0), (1, 1), (1, Wp - W - 1), (0, 0)))
    x_flat = x_pad.reshape(N * rows, Cin).astype(jnp.bfloat16)

    # interior mask: 1 inside the image, 0 on the zero-padding ring and the
    # lane/sublane alignment columns.
    row_ok = (jnp.arange(Hp) >= 1) & (jnp.arange(Hp) <= H)
    col_ok = (jnp.arange(Wp) >= 1) & (jnp.arange(Wp) <= W)
    mask = (row_ok[:, None] & col_ok[None, :]).astype(jnp.float32)
    mask = jnp.tile(mask.reshape(rows, 1), (N, 1))              # (N*rows, 1)

    # ---- fold BN scale into conv weights (wrapper-side); bf16 weights --------
    w1s = (w1 * s1[None, :]).astype(jnp.bfloat16)                       # (Cin, Cm)
    w2s = (w2 * s2[None, None, None, :]).reshape(9, Cm, Cm).astype(jnp.bfloat16)
    w3s = (w3 * s3[None, :]).astype(jnp.bfloat16)                       # (Cm, Cout)
    b1r = b1.reshape(1, Cm).astype(jnp.float32)
    b2r = b2.reshape(1, Cm).astype(jnp.float32)
    b3r = b3.reshape(1, Cout).astype(jnp.float32)

    # ---- batch blocking: pack images per grid step when H*W is small --------
    B_tile = _pick_batch_tile(N, rows)
    Mb = B_tile * rows
    PAD = Wp + 8                         # sublane-aligned margin >= Wp + 1

    kernel = functools.partial(_bottleneck_kernel, Wp=Wp, PAD=PAD)

    # advisory cost estimate for the XLA scheduler
    flops = 2 * N * rows * (Cin * Cm + 9 * Cm * Cm + Cm * Cout)
    bytes_accessed = int(x_flat.size * 2 + mask.size * 4 + N * rows * Cout * 4
                         + (w1s.size + w2s.size + w3s.size) * 2
                         + (b1r.size + b2r.size + b3r.size) * 4)
    cost = pl.CostEstimate(flops=int(flops), transcendentals=0,
                           bytes_accessed=bytes_accessed)

    # explicit scoped-VMEM budget: double-buffered in/out blocks + weights +
    # shift scratch + rough bound on live f32 intermediates.
    blk_bytes = Mb * (Cin * 2 + 4) + Mb * Cout * 4
    w_bytes = int((w1s.size + w2s.size + w3s.size) * 2 + (2 * Cm + Cout) * 4)
    scratch_bytes = (Mb + 2 * PAD) * Cm * 4
    interm_bytes = Mb * (16 * Cm + 8 * Cout + 4 * Cin)
    vmem_limit = int(min(max(2 * (blk_bytes + w_bytes) + scratch_bytes
                             + interm_bytes, 16 * 2**20), 56 * 2**20))

    out = pl.pallas_call(
        kernel,
        out_shape=jax.ShapeDtypeStruct((N * rows, Cout), jnp.float32),
        grid_spec=pltpu.PrefetchScalarGridSpec(
            num_scalar_prefetch=0,
            grid=(N // B_tile,),
            in_specs=[
                pl.BlockSpec((Mb, Cin), lambda i: (i, 0)),       # x (bf16)
                pl.BlockSpec((Mb, 1), lambda i: (i, 0)),         # border mask
                pl.BlockSpec((Cin, Cm), lambda i: (0, 0)),       # w1 * s1
                pl.BlockSpec((1, Cm), lambda i: (0, 0)),         # b1
                pl.BlockSpec((9, Cm, Cm), lambda i: (0, 0, 0)),  # w2 * s2
                pl.BlockSpec((1, Cm), lambda i: (0, 0)),         # b2
                pl.BlockSpec((Cm, Cout), lambda i: (0, 0)),      # w3 * s3
                pl.BlockSpec((1, Cout), lambda i: (0, 0)),       # b3
            ],
            out_specs=pl.BlockSpec((Mb, Cout), lambda i: (i, 0)),
            scratch_shapes=[pltpu.VMEM((Mb + 2 * PAD, Cm), jnp.float32)],
        ),
        compiler_params=pltpu.CompilerParams(
            dimension_semantics=("parallel",),
            vmem_limit_bytes=vmem_limit),
        cost_estimate=cost,
    )(x_flat, mask, w1s, b1r, w2s, b2r, w3s, b3r)

    out = out.reshape(N, Hp, Wp, Cout)[:, 1:H + 1, 1:W + 1, :]
    return jnp.transpose(out, (0, 3, 1, 2))


# ----------------------------------------------------------------------------
# Deterministic synthetic parameters (no checkpoint load)
# ----------------------------------------------------------------------------
def make_params(key, in_channels, channels):
    Cm, Cout = channels, 4 * channels
    eps = 1e-5
    ks = jax.random.split(key, 15)

    def bn_fold(kg, kb, km, kv, c):
        gamma = jax.random.uniform(kg, (c,), jnp.float32, 0.5, 1.5)
        beta = 0.1 * jax.random.normal(kb, (c,), jnp.float32)
        mean = 0.1 * jax.random.normal(km, (c,), jnp.float32)
        var = jax.random.uniform(kv, (c,), jnp.float32, 0.5, 1.5)
        # TODO(synk): BatchNorm is inference (running-stat) mode only; training
        # mode batch statistics are not computed.
        scale = gamma / jnp.sqrt(var + eps)
        bias = beta - mean * scale
        return scale, bias

    w1 = 0.1 * jax.random.normal(ks[0], (in_channels, Cm), jnp.float32)
    s1, b1 = bn_fold(ks[1], ks[2], ks[3], ks[4], Cm)
    w2 = 0.1 * jax.random.normal(ks[5], (3, 3, Cm, Cm), jnp.float32)
    s2, b2 = bn_fold(ks[6], ks[7], ks[8], ks[9], Cm)
    w3 = 0.1 * jax.random.normal(ks[10], (Cm, Cout), jnp.float32)
    s3, b3 = bn_fold(ks[11], ks[12], ks[13], ks[14], Cout)
    return (w1, s1, b1, w2, s2, b2, w3, s3, b3)


# ----------------------------------------------------------------------------
# Pure-JAX f32 reference (NCHW, lax.conv) for correctness checking
# ----------------------------------------------------------------------------
def _ref_forward(x, params):
    (w1, s1, b1, w2, s2, b2, w3, s3, b3) = params

    def conv1x1(x, w):                                 # w: (Cin, Cout)
        k = jnp.transpose(w, (1, 0))[:, :, None, None]            # OIHW
        return lax.conv_general_dilated(
            x, k, (1, 1), 'VALID', dimension_numbers=('NCHW', 'OIHW', 'NCHW'))

    def conv3x3(x, w):                                 # w: (3, 3, Cin, Cout)
        k = jnp.transpose(w, (3, 2, 0, 1))                         # OIHW
        return lax.conv_general_dilated(
            x, k, (1, 1), ((1, 1), (1, 1)),
            dimension_numbers=('NCHW', 'OIHW', 'NCHW'))

    def bn(x, s, b):
        return x * s[None, :, None, None] + b[None, :, None, None]

    h = jax.nn.relu(bn(conv1x1(x, w1), s1, b1))
    h = jax.nn.relu(bn(conv3x3(h, w2), s2, b2))
    h = bn(conv1x1(h, w3), s3, b3)
    return jax.nn.relu(h + x)


if __name__ == "__main__":
    # Small but TPU-friendly shapes: batch=2, channels=32 (expansion 4 ->
    # in/out channels = 128, lane-dense), 16x16 spatial.
    N, channels, H, W = 2, 32, 16, 16
    in_channels = 4 * channels           # identity residual (downsample=None)

    key = jax.random.PRNGKey(0)
    kx, kp = jax.random.split(key)
    x = jax.random.normal(kx, (N, in_channels, H, W), jnp.float32)
    params = make_params(kp, in_channels, channels)

    out = jax.block_until_ready(bottleneck_forward(x, params))
    ref = jax.block_until_ready(_ref_forward(x, params))

    assert out.shape == ref.shape == (N, in_channels, H, W)
    err = float(jnp.max(jnp.abs(out - ref)))
    # Matmul operands are bf16 (f32 accumulation), so tolerance is looser than
    # a pure-f32 comparison; structural errors (wrong tap/shift/weight) would
    # produce O(1) mismatches and still fail this check.
    assert jnp.allclose(out, ref, atol=5e-2, rtol=1e-1), f"max abs err {err}"
    print("KERNEL_OK")
</pallas_src>

<mosaic_0001>
module attributes {stable_mosaic.version = 11 : i64} {
  func.func @_bottleneck_kernel(%arg0: i32, %arg1: memref<864x128xbf16, #tpu.memory_space<vmem>>, %arg2: memref<864x1xf32, #tpu.memory_space<vmem>>, %arg3: memref<128x32xbf16, #tpu.memory_space<vmem>>, %arg4: memref<1x32xf32, #tpu.memory_space<vmem>>, %arg5: memref<9x32x32xbf16, #tpu.memory_space<vmem>>, %arg6: memref<1x32xf32, #tpu.memory_space<vmem>>, %arg7: memref<32x128xbf16, #tpu.memory_space<vmem>>, %arg8: memref<1x128xf32, #tpu.memory_space<vmem>>, %arg9: memref<864x128xf32, #tpu.memory_space<vmem>>, %arg10: memref<928x32xf32, #tpu.memory_space<vmem>>) attributes {dimension_semantics = [#tpu.dimension_semantics<parallel>], iteration_bounds = array<i64: 1>, scalar_prefetch = 0 : i64, scratch_operands = 1 : i64, tpu.core_type = #tpu.core_type<tc>, window_params = [{transform_indices = @transform_0, window_bounds = array<i64: 864, 128>}, {transform_indices = @transform_1, window_bounds = array<i64: 864, 1>}, {pipeline_mode = #tpu.pipeline_mode<synchronous>, transform_indices = @transform_2, window_bounds = array<i64: 128, 32>}, {pipeline_mode = #tpu.pipeline_mode<synchronous>, transform_indices = @transform_3, window_bounds = array<i64: 1, 32>}, {pipeline_mode = #tpu.pipeline_mode<synchronous>, transform_indices = @transform_4, window_bounds = array<i64: 9, 32, 32>}, {pipeline_mode = #tpu.pipeline_mode<synchronous>, transform_indices = @transform_5, window_bounds = array<i64: 1, 32>}, {pipeline_mode = #tpu.pipeline_mode<synchronous>, transform_indices = @transform_6, window_bounds = array<i64: 32, 128>}, {pipeline_mode = #tpu.pipeline_mode<synchronous>, transform_indices = @transform_7, window_bounds = array<i64: 1, 128>}, {transform_indices = @transform_8, window_bounds = array<i64: 864, 128>}]} {
    %c0 = arith.constant 0 : index
    %c0_0 = arith.constant 0 : index
    %0 = vector.load %arg1[%c0, %c0_0] : memref<864x128xbf16, #tpu.memory_space<vmem>>, vector<864x128xbf16>
    %c0_1 = arith.constant 0 : index
    %c0_2 = arith.constant 0 : index
    %1 = vector.load %arg3[%c0_1, %c0_2] : memref<128x32xbf16, #tpu.memory_space<vmem>>, vector<128x32xbf16>
    %cst = arith.constant dense<0.000000e+00> : vector<864x32xf32>
    %2 = tpu.matmul %0, %1, %cst {dimension_numbers = #tpu.dot_dimension_numbers<[1], [0], [0], [1], [0, 0, 1, 1], [], []>} : vector<864x128xbf16>, vector<128x32xbf16>, vector<864x32xf32> -> vector<864x32xf32>
    %c0_3 = arith.constant 0 : index
    %c0_4 = arith.constant 0 : index
    %3 = vector.load %arg4[%c0_3, %c0_4] : memref<1x32xf32, #tpu.memory_space<vmem>>, vector<1x32xf32>
    %4 = vector.broadcast %3 : vector<1x32xf32> to vector<864x32xf32>
    %5 = arith.addf %2, %4 : vector<864x32xf32>
    %cst_5 = arith.constant 0.000000e+00 : f32
    %6 = vector.broadcast %cst_5 : f32 to vector<864x32xf32>
    %7 = arith.maximumf %5, %6 : vector<864x32xf32>
    %c0_6 = arith.constant 0 : index
    %c0_7 = arith.constant 0 : index
    %8 = vector.load %arg2[%c0_6, %c0_7] : memref<864x1xf32, #tpu.memory_space<vmem>>, vector<864x1xf32>
    %9 = vector.broadcast %8 : vector<864x1xf32> to vector<864x32xf32>
    %10 = arith.mulf %7, %9 : vector<864x32xf32>
    %c32 = arith.constant 32 : index
    %c0_8 = arith.constant 0 : index
    %11 = vector.load %arg10[%c32, %c0_8] : memref<928x32xf32, #tpu.memory_space<vmem>>, vector<864x32xf32>
    tpu.vector_store %arg10[%c32, %c0_8], %10 {strides = array<i32>} : memref<928x32xf32, #tpu.memory_space<vmem>>, vector<864x32xf32>,
    %cst_9 = arith.constant 0.000000e+00 : f32
    %12 = vector.broadcast %cst_9 : f32 to vector<864x32xf32>
    %c7 = arith.constant 7 : index
    %c0_10 = arith.constant 0 : index
    %13 = vector.load %arg10[%c7, %c0_10] : memref<928x32xf32, #tpu.memory_space<vmem>>, vector<864x32xf32>
    %14 = arith.truncf %13 : vector<864x32xf32> to vector<864x32xbf16>
    %c0_11 = arith.constant 0 : index
    %c0_12 = arith.constant 0 : index
    %c0_13 = arith.constant 0 : index
    %15 = vector.load %arg5[%c0_11, %c0_12, %c0_13] : memref<9x32x32xbf16, #tpu.memory_space<vmem>>, vector<1x32x32xbf16>
    %16 = vector.shape_cast %15 : vector<1x32x32xbf16> to vector<32x32xbf16>
    %cst_14 = arith.constant dense<0.000000e+00> : vector<864x32xf32>
    %17 = tpu.matmul %14, %16, %cst_14 {dimension_numbers = #tpu.dot_dimension_numbers<[1], [0], [0], [1], [0, 0, 1, 1], [], []>} : vector<864x32xbf16>, vector<32x32xbf16>, vector<864x32xf32> -> vector<864x32xf32>
    %18 = arith.addf %12, %17 : vector<864x32xf32>
    %c8 = arith.constant 8 : index
    %c0_15 = arith.constant 0 : index
    %19 = vector.load %arg10[%c8, %c0_15] : memref<928x32xf32, #tpu.memory_space<vmem>>, vector<864x32xf32>
    %20 = arith.truncf %19 : vector<864x32xf32> to vector<864x32xbf16>
    %c1 = arith.constant 1 : index
    %c0_16 = arith.constant 0 : index
    %c0_17 = arith.constant 0 : index
    %21 = vector.load %arg5[%c1, %c0_16, %c0_17] : memref<9x32x32xbf16, #tpu.memory_space<vmem>>, vector<1x32x32xbf16>
    %22 = vector.shape_cast %21 : vector<1x32x32xbf16> to vector<32x32xbf16>
    %cst_18 = arith.constant dense<0.000000e+00> : vector<864x32xf32>
    %23 = tpu.matmul %20, %22, %cst_18 {dimension_numbers = #tpu.dot_dimension_numbers<[1], [0], [0], [1], [0, 0, 1, 1], [], []>} : vector<864x32xbf16>, vector<32x32xbf16>, vector<864x32xf32> -> vector<864x32xf32>
    %24 = arith.addf %18, %23 : vector<864x32xf32>
    %c9 = arith.constant 9 : index
    %c0_19 = arith.constant 0 : index
    %25 = vector.load %arg10[%c9, %c0_19] : memref<928x32xf32, #tpu.memory_space<vmem>>, vector<864x32xf32>
    %26 = arith.truncf %25 : vector<864x32xf32> to vector<864x32xbf16>
    %c2 = arith.constant 2 : index
    %c0_20 = arith.constant 0 : index
    %c0_21 = arith.constant 0 : index
    %27 = vector.load %arg5[%c2, %c0_20, %c0_21] : memref<9x32x32xbf16, #tpu.memory_space<vmem>>, vector<1x32x32xbf16>
    %28 = vector.shape_cast %27 : vector<1x32x32xbf16> to vector<32x32xbf16>
    %cst_22 = arith.constant dense<0.000000e+00> : vector<864x32xf32>
    %29 = tpu.matmul %26, %28, %cst_22 {dimension_numbers = #tpu.dot_dimension_numbers<[1], [0], [0], [1], [0, 0, 1, 1], [], []>} : vector<864x32xbf16>, vector<32x32xbf16>, vector<864x32xf32> -> vector<864x32xf32>
    %30 = arith.addf %24, %29 : vector<864x32xf32>
    %c31 = arith.constant 31 : index
    %c0_23 = arith.constant 0 : index
    %31 = vector.load %arg10[%c31, %c0_23] : memref<928x32xf32, #tpu.memory_space<vmem>>, vector<864x32xf32>
    %32 = arith.truncf %31 : vector<864x32xf32> to vector<864x32xbf16>
    %c3 = arith.constant 3 : index
    %c0_24 = arith.constant 0 : index
    %c0_25 = arith.constant 0 : index
    %33 = vector.load %arg5[%c3, %c0_24, %c0_25] : memref<9x32x32xbf16, #tpu.memory_space<vmem>>, vector<1x32x32xbf16>
    %34 = vector.shape_cast %33 : vector<1x32x32xbf16> to vector<32x32xbf16>
    %cst_26 = arith.constant dense<0.000000e+00> : vector<864x32xf32>
    %35 = tpu.matmul %32, %34, %cst_26 {dimension_numbers = #tpu.dot_dimension_numbers<[1], [0], [0], [1], [0, 0, 1, 1], [], []>} : vector<864x32xbf16>, vector<32x32xbf16>, vector<864x32xf32> -> vector<864x32xf32>
    %36 = arith.addf %30, %35 : vector<864x32xf32>
    %c32_27 = arith.constant 32 : index
    %c0_28 = arith.constant 0 : index
    %37 = vector.load %arg10[%c32_27, %c0_28] : memref<928x32xf32, #tpu.memory_space<vmem>>, vector<864x32xf32>
    %38 = arith.truncf %37 : vector<864x32xf32> to vector<864x32xbf16>
    %c4 = arith.constant 4 : index
    %c0_29 = arith.constant 0 : index
    %c0_30 = arith.constant 0 : index
    %39 = vector.load %arg5[%c4, %c0_29, %c0_30] : memref<9x32x32xbf16, #tpu.memory_space<vmem>>, vector<1x32x32xbf16>
    %40 = vector.shape_cast %39 : vector<1x32x32xbf16> to vector<32x32xbf16>
    %cst_31 = arith.constant dense<0.000000e+00> : vector<864x32xf32>
    %41 = tpu.matmul %38, %40, %cst_31 {dimension_numbers = #tpu.dot_dimension_numbers<[1], [0], [0], [1], [0, 0, 1, 1], [], []>} : vector<864x32xbf16>, vector<32x32xbf16>, vector<864x32xf32> -> vector<864x32xf32>
    %42 = arith.addf %36, %41 : vector<864x32xf32>
    %c33 = arith.constant 33 : index
    %c0_32 = arith.constant 0 : index
    %43 = vector.load %arg10[%c33, %c0_32] : memref<928x32xf32, #tpu.memory_space<vmem>>, vector<864x32xf32>
    %44 = arith.truncf %43 : vector<864x32xf32> to vector<864x32xbf16>
    %c5 = arith.constant 5 : index
    %c0_33 = arith.constant 0 : index
    %c0_34 = arith.constant 0 : index
    %45 = vector.load %arg5[%c5, %c0_33, %c0_34] : memref<9x32x32xbf16, #tpu.memory_space<vmem>>, vector<1x32x32xbf16>
    %46 = vector.shape_cast %45 : vector<1x32x32xbf16> to vector<32x32xbf16>
    %cst_35 = arith.constant dense<0.000000e+00> : vector<864x32xf32>
    %47 = tpu.matmul %44, %46, %cst_35 {dimension_numbers = #tpu.dot_dimension_numbers<[1], [0], [0], [1], [0, 0, 1, 1], [], []>} : vector<864x32xbf16>, vector<32x32xbf16>, vector<864x32xf32> -> vector<864x32xf32>
    %48 = arith.addf %42, %47 : vector<864x32xf32>
    %c55 = arith.constant 55 : index
    %c0_36 = arith.constant 0 : index
    %49 = vector.load %arg10[%c55, %c0_36] : memref<928x32xf32, #tpu.memory_space<vmem>>, vector<864x32xf32>
    %50 = arith.truncf %49 : vector<864x32xf32> to vector<864x32xbf16>
    %c6 = arith.constant 6 : index
    %c0_37 = arith.constant 0 : index
    %c0_38 = arith.constant 0 : index
    %51 = vector.load %arg5[%c6, %c0_37, %c0_38] : memref<9x32x32xbf16, #tpu.memory_space<vmem>>, vector<1x32x32xbf16>
    %52 = vector.shape_cast %51 : vector<1x32x32xbf16> to vector<32x32xbf16>
    %cst_39 = arith.constant dense<0.000000e+00> : vector<864x32xf32>
    %53 = tpu.matmul %50, %52, %cst_39 {dimension_numbers = #tpu.dot_dimension_numbers<[1], [0], [0], [1], [0, 0, 1, 1], [], []>} : vector<864x32xbf16>, vector<32x32xbf16>, vector<864x32xf32> -> vector<864x32xf32>
    %54 = arith.addf %48, %53 : vector<864x32xf32>
    %c56 = arith.constant 56 : index
    %c0_40 = arith.constant 0 : index
    %55 = vector.load %arg10[%c56, %c0_40] : memref<928x32xf32, #tpu.memory_space<vmem>>, vector<864x32xf32>
    %56 = arith.truncf %55 : vector<864x32xf32> to vector<864x32xbf16>
    %c7_41 = arith.constant 7 : index
    %c0_42 = arith.constant 0 : index
    %c0_43 = arith.constant 0 : index
    %57 = vector.load %arg5[%c7_41, %c0_42, %c0_43] : memref<9x32x32xbf16, #tpu.memory_space<vmem>>, vector<1x32x32xbf16>
    %58 = vector.shape_cast %57 : vector<1x32x32xbf16> to vector<32x32xbf16>
    %cst_44 = arith.constant dense<0.000000e+00> : vector<864x32xf32>
    %59 = tpu.matmul %56, %58, %cst_44 {dimension_numbers = #tpu.dot_dimension_numbers<[1], [0], [0], [1], [0, 0, 1, 1], [], []>} : vector<864x32xbf16>, vector<32x32xbf16>, vector<864x32xf32> -> vector<864x32xf32>
    %60 = arith.addf %54, %59 : vector<864x32xf32>
    %c57 = arith.constant 57 : index
    %c0_45 = arith.constant 0 : index
    %61 = vector.load %arg10[%c57, %c0_45] : memref<928x32xf32, #tpu.memory_space<vmem>>, vector<864x32xf32>
    %62 = arith.truncf %61 : vector<864x32xf32> to vector<864x32xbf16>
    %c8_46 = arith.constant 8 : index
    %c0_47 = arith.constant 0 : index
    %c0_48 = arith.constant 0 : index
    %63 = vector.load %arg5[%c8_46, %c0_47, %c0_48] : memref<9x32x32xbf16, #tpu.memory_space<vmem>>, vector<1x32x32xbf16>
    %64 = vector.shape_cast %63 : vector<1x32x32xbf16> to vector<32x32xbf16>
    %cst_49 = arith.constant dense<0.000000e+00> : vector<864x32xf32>
    %65 = tpu.matmul %62, %64, %cst_49 {dimension_numbers = #tpu.dot_dimension_numbers<[1], [0], [0], [1], [0, 0, 1, 1], [], []>} : vector<864x32xbf16>, vector<32x32xbf16>, vector<864x32xf32> -> vector<864x32xf32>
    %66 = arith.addf %60, %65 : vector<864x32xf32>
    %c0_50 = arith.constant 0 : index
    %c0_51 = arith.constant 0 : index
    %67 = vector.load %arg6[%c0_50, %c0_51] : memref<1x32xf32, #tpu.memory_space<vmem>>, vector<1x32xf32>
    %68 = vector.broadcast %67 : vector<1x32xf32> to vector<864x32xf32>
    %69 = arith.addf %66, %68 : vector<864x32xf32>
    %cst_52 = arith.constant 0.000000e+00 : f32
    %70 = vector.broadcast %cst_52 : f32 to vector<864x32xf32>
    %71 = arith.maximumf %69, %70 : vector<864x32xf32>
    %72 = arith.truncf %71 : vector<864x32xf32> to vector<864x32xbf16>
    %c0_53 = arith.constant 0 : index
    %c0_54 = arith.constant 0 : index
    %73 = vector.load %arg7[%c0_53, %c0_54] : memref<32x128xbf16, #tpu.memory_space<vmem>>, vector<32x128xbf16>
    %cst_55 = arith.constant dense<0.000000e+00> : vector<864x128xf32>
    %74 = tpu.matmul %72, %73, %cst_55 {dimension_numbers = #tpu.dot_dimension_numbers<[1], [0], [0], [1], [0, 0, 1, 1], [], []>} : vector<864x32xbf16>, vector<32x128xbf16>, vector<864x128xf32> -> vector<864x128xf32>
    %c0_56 = arith.constant 0 : index
    %c0_57 = arith.constant 0 : index
    %75 = vector.load %arg8[%c0_56, %c0_57] : memref<1x128xf32, #tpu.memory_space<vmem>>, vector<1x128xf32>
    %76 = vector.broadcast %75 : vector<1x128xf32> to vector<864x128xf32>
    %77 = arith.addf %74, %76 : vector<864x128xf32>
    %78 = arith.extf %0 : vector<864x128xbf16> to vector<864x128xf32>
    %79 = arith.addf %77, %78 : vector<864x128xf32>
    %cst_58 = arith.constant 0.000000e+00 : f32
    %80 = vector.broadcast %cst_58 : f32 to vector<864x128xf32>
    %81 = arith.maximumf %79, %80 : vector<864x128xf32>
    %c0_59 = arith.constant 0 : index
    %c0_60 = arith.constant 0 : index
    %82 = vector.load %arg9[%c0_59, %c0_60] : memref<864x128xf32, #tpu.memory_space<vmem>>, vector<864x128xf32>
    tpu.vector_store %arg9[%c0_59, %c0_60], %81 {strides = array<i32>} : memref<864x128xf32, #tpu.memory_space<vmem>>, vector<864x128xf32>,
    return
  }
  func.func @transform_0(%arg0: i32) -> (i32, i32) {
    %c0_i32 = arith.constant 0 : i32
    %c0_i32_0 = arith.constant 0 : i32
    return %arg0, %c0_i32 : i32, i32
  }
  func.func @transform_1(%arg0: i32) -> (i32, i32) {
    %c0_i32 = arith.constant 0 : i32
    %c0_i32_0 = arith.constant 0 : i32
    return %arg0, %c0_i32 : i32, i32
  }
  func.func @transform_2(%arg0: i32) -> (i32, i32) {
    %c0_i32 = arith.constant 0 : i32
    %c0_i32_0 = arith.constant 0 : i32
    %c0_i32_1 = arith.constant 0 : i32
    return %c0_i32, %c0_i32_0 : i32, i32
  }
  func.func @transform_3(%arg0: i32) -> (i32, i32) {
    %c0_i32 = arith.constant 0 : i32
    %c0_i32_0 = arith.constant 0 : i32
    %c0_i32_1 = arith.constant 0 : i32
    return %c0_i32, %c0_i32_0 : i32, i32
  }
  func.func @transform_4(%arg0: i32) -> (i32, i32, i32) {
    %c0_i32 = arith.constant 0 : i32
    %c0_i32_0 = arith.constant 0 : i32
    %c0_i32_1 = arith.constant 0 : i32
    %c0_i32_2 = arith.constant 0 : i32
    return %c0_i32, %c0_i32_0, %c0_i32_1 : i32, i32, i32
  }
  func.func @transform_5(%arg0: i32) -> (i32, i32) {
    %c0_i32 = arith.constant 0 : i32
    %c0_i32_0 = arith.constant 0 : i32
    %c0_i32_1 = arith.constant 0 : i32
    return %c0_i32, %c0_i32_0 : i32, i32
  }
  func.func @transform_6(%arg0: i32) -> (i32, i32) {
    %c0_i32 = arith.constant 0 : i32
    %c0_i32_0 = arith.constant 0 : i32
    %c0_i32_1 = arith.constant 0 : i32
    return %c0_i32, %c0_i32_0 : i32, i32
  }
  func.func @transform_7(%arg0: i32) -> (i32, i32) {
    %c0_i32 = arith.constant 0 : i32
    %c0_i32_0 = arith.constant 0 : i32
    %c0_i32_1 = arith.constant 0 : i32
    return %c0_i32, %c0_i32_0 : i32, i32
  }
  func.func @transform_8(%arg0: i32) -> (i32, i32) {
    %c0_i32 = arith.constant 0 : i32
    %c0_i32_0 = arith.constant 0 : i32
    return %arg0, %c0_i32 : i32, i32
  }
}

</mosaic_0001>

<llo_original>
// kernel: tpu_custom_call.1
$region0: #{tpu_custom_call.1}
  #allocation0 [shape = 'u32[]', space=smem, size = 0x4, offset = 0x4, fixed_abs, tag = 'smem constant byte address 0x4 - core index']
  #allocation1 [shape = 'u32[144,128]{1,0:T(1,128)}', space=vmem, size = 0x12000, scoped, tag = 'internal scratch']
  #allocation2 [shape = 'f32[928,32]{1,0:T(8,128)}', space=vmem, size = 0x74000, scoped, tag = 'scratch operand']
  %s0 = inlined_call_operand.vmem [shape: bf16[864,128], index: 0, kind: input, shape index: {}]
  %s1 = inlined_call_operand.vmem [shape: f32[864,1], index: 1, kind: input, shape index: {}]
  %s2 = inlined_call_operand.vmem [shape: bf16[128,32], index: 2, kind: input, shape index: {}]
  %s3 = inlined_call_operand.vmem [shape: f32[1,32], index: 3, kind: input, shape index: {}]
  %s4 = inlined_call_operand.vmem [shape: bf16[9,32,32], index: 4, kind: input, shape index: {}]
  %s5 = inlined_call_operand.vmem [shape: f32[1,32], index: 5, kind: input, shape index: {}]
  %s6 = inlined_call_operand.vmem [shape: bf16[32,128], index: 6, kind: input, shape index: {}]
  %s7 = inlined_call_operand.vmem [shape: f32[1,128], index: 7, kind: input, shape index: {}]
  %s8 = inlined_call_operand.hbm [shape: f32[864,128], index: 8, kind: output, shape index: {}]
  %s9 = sld [smem:[#allocation0]]
  $region42: #{tpu_custom_call.1} parent=0
    _
  %s11 = ssub.s32 1, %s9
  %s12 = scalar_select 0, %s11, %s9
  $region1: #{tpu_custom_call.1} parent=0
    #allocation3 [shape = 'u8[442368]{0}', space=vmem, size = 0x6c000, scoped, tag = 'output window, operand 0, single buffered']
    #allocation4 [shape = 's32[1]{0}', space=sflag, size = 0x4, scoped, tag = 'scoped memory for tpu_custom_call.1']
    %13 = vsyncpa [#allocation4], 0
    // Predicated region
    $region2: #{tpu_custom_call.1} parent=1 // pred_check
      _
    $region3: #{tpu_custom_call.1} parent=1 // pred_check_branch
      %15 = sbr.rel (0) target = $region5
    $region4: #{tpu_custom_call.1} parent=1 // pred_region
      _
    $region5: #{tpu_custom_call.1} parent=1 // pred_fallthru
      _
    // Predicated region
    $region6: #{tpu_custom_call.1} parent=1 // pred_check
      _
    $region7: #{tpu_custom_call.1} parent=1 // pred_check_branch
      %17 = sbr.rel (0) target = $region9
    $region8: #{tpu_custom_call.1} parent=1 // pred_region
      _
    $region9: #{tpu_custom_call.1} parent=1 // pred_fallthru
      _
    // Predicated region
    $region10: #{tpu_custom_call.1} parent=1 // pred_check
      _
    $region11: #{tpu_custom_call.1} parent=1 // pred_check_branch
      %19 = sbr.rel (0) target = $region13
    $region12: #{tpu_custom_call.1} parent=1 // pred_region
      _
    $region13: #{tpu_custom_call.1} parent=1 // pred_fallthru
      _
    // Predicated region
    $region14: #{tpu_custom_call.1} parent=1 // pred_check
      _
    $region15: #{tpu_custom_call.1} parent=1 // pred_check_branch
      %21 = sbr.rel (0) target = $region17
    $region16: #{tpu_custom_call.1} parent=1 // pred_region
      _
    $region17: #{tpu_custom_call.1} parent=1 // pred_fallthru
      _
    // Predicated region
    $region18: #{tpu_custom_call.1} parent=1 // pred_check
      _
    $region19: #{tpu_custom_call.1} parent=1 // pred_check_branch
      %23 = sbr.rel (0) target = $region21
    $region20: #{tpu_custom_call.1} parent=1 // pred_region
      _
    $region21: #{tpu_custom_call.1} parent=1 // pred_fallthru
      _
    // Predicated region
    $region22: #{tpu_custom_call.1} parent=1 // pred_check
      _
    $region23: #{tpu_custom_call.1} parent=1 // pred_check_branch
      %25 = sbr.rel (0) target = $region25
    $region24: #{tpu_custom_call.1} parent=1 // pred_region
      _
    $region25: #{tpu_custom_call.1} parent=1 // pred_fallthru
      _
    // Predicated region
    $region26: #{tpu_custom_call.1} parent=1 // pred_check
      _
    $region27: #{tpu_custom_call.1} parent=1 // pred_check_branch
      %27 = sbr.rel (0) target = $region29
    $region28: #{tpu_custom_call.1} parent=1 // pred_region
      _
    $region29: #{tpu_custom_call.1} parent=1 // pred_fallthru
      _
    // Predicated region
    $region30: #{tpu_custom_call.1} parent=1 // pred_check
      _
    $region31: #{tpu_custom_call.1} parent=1 // pred_check_branch
      %29 = sbr.rel (0) target = $region33
    $region32: #{tpu_custom_call.1} parent=1 // pred_region
      _
    $region33: #{tpu_custom_call.1} parent=1 // pred_fallthru
      _
    %v31 = vld [vmem:[%s0] sm:$0xf]
    %v32 = vld [vmem:[%s0 + $0x4] sm:$0xf]
    %v33 = vld [vmem:[%s0 + $0x8] sm:$0xf]
    %v34 = vld [vmem:[%s0 + $0xc] sm:$0xf]
    %v35 = vld [vmem:[%s0 + $0x10] sm:$0xf]
    %v36 = vld [vmem:[%s0 + $0x14] sm:$0xf]
    %v37 = vld [vmem:[%s0 + $0x18] sm:$0xf]
    %v38 = vld [vmem:[%s0 + $0x1c] sm:$0xf]
    %v39 = vld [vmem:[%s0 + $0x20] sm:$0xf]
    %v40 = vld [vmem:[%s0 + $0x24] sm:$0xf]
    %v41 = vld [vmem:[%s0 + $0x28] sm:$0xf]
    %v42 = vld [vmem:[%s0 + $0x2c] sm:$0xf]
    %v43 = vld [vmem:[%s0 + $0x30] sm:$0xf]
    %v44 = vld [vmem:[%s0 + $0x34] sm:$0xf]
    %v45 = vld [vmem:[%s0 + $0x38] sm:$0xf]
    %v46 = vld [vmem:[%s0 + $0x3c] sm:$0xf]
    %v47 = vld [vmem:[%s0 + $0x40] sm:$0xf]
    %v48 = vld [vmem:[%s0 + $0x44] sm:$0xf]
    %v49 = vld [vmem:[%s0 + $0x48] sm:$0xf]
    %v50 = vld [vmem:[%s0 + $0x4c] sm:$0xf]
    %v51 = vld [vmem:[%s0 + $0x50] sm:$0xf]
    %v52 = vld [vmem:[%s0 + $0x54] sm:$0xf]
    %v53 = vld [vmem:[%s0 + $0x58] sm:$0xf]
    %v54 = vld [vmem:[%s0 + $0x5c] sm:$0xf]
    %v55 = vld [vmem:[%s0 + $0x60] sm:$0xf]
    %v56 = vld [vmem:[%s0 + $0x64] sm:$0xf]
    %v57 = vld [vmem:[%s0 + $0x68] sm:$0xf]
    %v58 = vld [vmem:[%s0 + $0x6c] sm:$0xf]
    %v59 = vld [vmem:[%s0 + $0x70] sm:$0xf]
    %v60 = vld [vmem:[%s0 + $0x74] sm:$0xf]
    %v61 = vld [vmem:[%s0 + $0x78] sm:$0xf]
    %v62 = vld [vmem:[%s0 + $0x7c] sm:$0xf]
    %v63 = vld [vmem:[%s0 + $0x80] sm:$0xf]
    %v64 = vld [vmem:[%s0 + $0x84] sm:$0xf]
    %v65 = vld [vmem:[%s0 + $0x88] sm:$0xf]
    %v66 = vld [vmem:[%s0 + $0x8c] sm:$0xf]
    %v67 = vld [vmem:[%s0 + $0x90] sm:$0xf]
    %v68 = vld [vmem:[%s0 + $0x94] sm:$0xf]
    %v69 = vld [vmem:[%s0 + $0x98] sm:$0xf]
    %v70 = vld [vmem:[%s0 + $0x9c] sm:$0xf]
    %v71 = vld [vmem:[%s0 + $0xa0] sm:$0xf]
    %v72 = vld [vmem:[%s0 + $0xa4] sm:$0xf]
    %v73 = vld [vmem:[%s0 + $0xa8] sm:$0xf]
    %v74 = vld [vmem:[%s0 + $0xac] sm:$0xf]
    %v75 = vld [vmem:[%s0 + $0xb0] sm:$0xf]
    %v76 = vld [vmem:[%s0 + $0xb4] sm:$0xf]
    %v77 = vld [vmem:[%s0 + $0xb8] sm:$0xf]
    %v78 = vld [vmem:[%s0 + $0xbc] sm:$0xf]
    %v79 = vld [vmem:[%s0 + $0xc0] sm:$0xf]
    %v80 = vld [vmem:[%s0 + $0xc4] sm:$0xf]
    %v81 = vld [vmem:[%s0 + $0xc8] sm:$0xf]
    %v82 = vld [vmem:[%s0 + $0xcc] sm:$0xf]
    %v83 = vld [vmem:[%s0 + $0xd0] sm:$0xf]
    %v84 = vld [vmem:[%s0 + $0xd4] sm:$0xf]
    %v85 = vld [vmem:[%s0 + $0xd8] sm:$0xf]
    %v86 = vld [vmem:[%s0 + $0xdc] sm:$0xf]
    %v87 = vld [vmem:[%s0 + $0xe0] sm:$0xf]
    %v88 = vld [vmem:[%s0 + $0xe4] sm:$0xf]
    %v89 = vld [vmem:[%s0 + $0xe8] sm:$0xf]
    %v90 = vld [vmem:[%s0 + $0xec] sm:$0xf]
    %v91 = vld [vmem:[%s0 + $0xf0] sm:$0xf]
    %v92 = vld [vmem:[%s0 + $0xf4] sm:$0xf]
    %v93 = vld [vmem:[%s0 + $0xf8] sm:$0xf]
    %v94 = vld [vmem:[%s0 + $0xfc] sm:$0xf]
    %v95 = vld [vmem:[%s0 + $0x100] sm:$0xf]
    %v96 = vld [vmem:[%s0 + $0x104] sm:$0xf]
    %v97 = vld [vmem:[%s0 + $0x108] sm:$0xf]
    %v98 = vld [vmem:[%s0 + $0x10c] sm:$0xf]
    %v99 = vld [vmem:[%s0 + $0x110] sm:$0xf]
    %v100 = vld [vmem:[%s0 + $0x114] sm:$0xf]
    %v101 = vld [vmem:[%s0 + $0x118] sm:$0xf]
    %v102 = vld [vmem:[%s0 + $0x11c] sm:$0xf]
    %v103 = vld [vmem:[%s0 + $0x120] sm:$0xf]
    %v104 = vld [vmem:[%s0 + $0x124] sm:$0xf]
    %v105 = vld [vmem:[%s0 + $0x128] sm:$0xf]
    %v106 = vld [vmem:[%s0 + $0x12c] sm:$0xf]
    %v107 = vld [vmem:[%s0 + $0x130] sm:$0xf]
    %v108 = vld [vmem:[%s0 + $0x134] sm:$0xf]
    %v109 = vld [vmem:[%s0 + $0x138] sm:$0xf]
    %v110 = vld [vmem:[%s0 + $0x13c] sm:$0xf]
    %v111 = vld [vmem:[%s0 + $0x140] sm:$0xf]
    %v112 = vld [vmem:[%s0 + $0x144] sm:$0xf]
    %v113 = vld [vmem:[%s0 + $0x148] sm:$0xf]
    %v114 = vld [vmem:[%s0 + $0x14c] sm:$0xf]
    %v115 = vld [vmem:[%s0 + $0x150] sm:$0xf]
    %v116 = vld [vmem:[%s0 + $0x154] sm:$0xf]
    %v117 = vld [vmem:[%s0 + $0x158] sm:$0xf]
    %v118 = vld [vmem:[%s0 + $0x15c] sm:$0xf]
    %v119 = vld [vmem:[%s0 + $0x160] sm:$0xf]
    %v120 = vld [vmem:[%s0 + $0x164] sm:$0xf]
    %v121 = vld [vmem:[%s0 + $0x168] sm:$0xf]
    %v122 = vld [vmem:[%s0 + $0x16c] sm:$0xf]
    %v123 = vld [vmem:[%s0 + $0x170] sm:$0xf]
    %v124 = vld [vmem:[%s0 + $0x174] sm:$0xf]
    %v125 = vld [vmem:[%s0 + $0x178] sm:$0xf]
    %v126 = vld [vmem:[%s0 + $0x17c] sm:$0xf]
    %v127 = vld [vmem:[%s0 + $0x180] sm:$0xf]
    %v128 = vld [vmem:[%s0 + $0x184] sm:$0xf]
    %v129 = vld [vmem:[%s0 + $0x188] sm:$0xf]
    %v130 = vld [vmem:[%s0 + $0x18c] sm:$0xf]
    %v131 = vld [vmem:[%s0 + $0x190] sm:$0xf]
    %v132 = vld [vmem:[%s0 + $0x194] sm:$0xf]
    %v133 = vld [vmem:[%s0 + $0x198] sm:$0xf]
    %v134 = vld [vmem:[%s0 + $0x19c] sm:$0xf]
    %v135 = vld [vmem:[%s0 + $0x1a0] sm:$0xf]
    %v136 = vld [vmem:[%s0 + $0x1a4] sm:$0xf]
    %v137 = vld [vmem:[%s0 + $0x1a8] sm:$0xf]
    %v138 = vld [vmem:[%s0 + $0x1ac] sm:$0xf]
    %v139 = vld [vmem:[%s2] sm:$0xf]
    %v140 = vld [vmem:[%s2 + $0x4] sm:$0xf]
    %v141 = vld [vmem:[%s2 + $0x8] sm:$0xf]
    %v142 = vld [vmem:[%s2 + $0xc] sm:$0xf]
    %v143 = vld [vmem:[%s2 + $0x10] sm:$0xf]
    %v144 = vld [vmem:[%s2 + $0x14] sm:$0xf]
    %v145 = vld [vmem:[%s2 + $0x18] sm:$0xf]
    %v146 = vld [vmem:[%s2 + $0x1c] sm:$0xf]
    %v147 = vld [vmem:[%s2 + $0x20] sm:$0xf]
    %v148 = vld [vmem:[%s2 + $0x24] sm:$0xf]
    %v149 = vld [vmem:[%s2 + $0x28] sm:$0xf]
    %v150 = vld [vmem:[%s2 + $0x2c] sm:$0xf]
    %v151 = vld [vmem:[%s2 + $0x30] sm:$0xf]
    %v152 = vld [vmem:[%s2 + $0x34] sm:$0xf]
    %v153 = vld [vmem:[%s2 + $0x38] sm:$0xf]
    %v154 = vld [vmem:[%s2 + $0x3c] sm:$0xf]
    %v155 = vld [vmem:[%s3] sm:$0x1]
    %v157 = vlaneseq
    %v158 = vshrl.u32 %v157, 7
    %v159 = vsub.s32 0, %v158
    %v160 = vrot.slane %v155, %v159
    %v270 = vunpack.c.l.b16 %v31
    %v271 = vunpack.c.l.b16 %v32
    %v272 = vunpack.c.l.b16 %v33
    %v273 = vunpack.c.l.b16 %v34
    %v274 = vunpack.c.l.b16 %v35
    %v275 = vunpack.c.l.b16 %v36
    %v276 = vunpack.c.l.b16 %v37
    %v277 = vunpack.c.l.b16 %v38
    %v278 = vunpack.c.l.b16 %v39
    %v279 = vunpack.c.l.b16 %v40
    %v280 = vunpack.c.l.b16 %v41
    %v281 = vunpack.c.l.b16 %v42
    %v282 = vunpack.c.l.b16 %v43
    %v283 = vunpack.c.l.b16 %v44
    %v284 = vunpack.c.l.b16 %v45
    %v285 = vunpack.c.l.b16 %v46
    %v286 = vunpack.c.l.b16 %v47
    %v287 = vunpack.c.l.b16 %v48
    %v288 = vunpack.c.l.b16 %v49
    %v289 = vunpack.c.l.b16 %v50
    %v290 = vunpack.c.l.b16 %v51
    %v291 = vunpack.c.l.b16 %v52
    %v292 = vunpack.c.l.b16 %v53
    %v293 = vunpack.c.l.b16 %v54
    %v294 = vunpack.c.l.b16 %v55
    %v295 = vunpack.c.l.b16 %v56
    %v296 = vunpack.c.l.b16 %v57
    %v297 = vunpack.c.l.b16 %v58
    %v298 = vunpack.c.l.b16 %v59
    %v299 = vunpack.c.l.b16 %v60
    %v300 = vunpack.c.l.b16 %v61
    %v301 = vunpack.c.l.b16 %v62
    %v302 = vunpack.c.l.b16 %v63
    %v303 = vunpack.c.l.b16 %v64
    %v304 = vunpack.c.l.b16 %v65
    %v305 = vunpack.c.l.b16 %v66
    %v306 = vunpack.c.l.b16 %v67
    %v307 = vunpack.c.l.b16 %v68
    %v308 = vunpack.c.l.b16 %v69
    %v309 = vunpack.c.l.b16 %v70
    %v310 = vunpack.c.l.b16 %v71
    %v311 = vunpack.c.l.b16 %v72
    %v312 = vunpack.c.l.b16 %v73
    %v313 = vunpack.c.l.b16 %v74
    %v314 = vunpack.c.l.b16 %v75
    %v315 = vunpack.c.l.b16 %v76
    %v316 = vunpack.c.l.b16 %v77
    %v317 = vunpack.c.l.b16 %v78
    %v318 = vunpack.c.l.b16 %v79
    %v319 = vunpack.c.l.b16 %v80
    %v320 = vunpack.c.l.b16 %v81
    %v321 = vunpack.c.l.b16 %v82
    %v322 = vunpack.c.l.b16 %v83
    %v323 = vunpack.c.l.b16 %v84
    %v324 = vunpack.c.l.b16 %v85
    %v325 = vunpack.c.l.b16 %v86
    %v326 = vunpack.c.l.b16 %v87
    %v327 = vunpack.c.l.b16 %v88
    %v328 = vunpack.c.l.b16 %v89
    %v329 = vunpack.c.l.b16 %v90
    %v330 = vunpack.c.l.b16 %v91
    %v331 = vunpack.c.l.b16 %v92
    %v332 = vunpack.c.l.b16 %v93
    %v333 = vunpack.c.l.b16 %v94
    %v334 = vunpack.c.l.b16 %v95
    %v335 = vunpack.c.l.b16 %v96
    %v336 = vunpack.c.l.b16 %v97
    %v337 = vunpack.c.l.b16 %v98
    %v338 = vunpack.c.l.b16 %v99
    %v339 = vunpack.c.l.b16 %v100
    %v340 = vunpack.c.l.b16 %v101
    %v341 = vunpack.c.l.b16 %v102
    %v342 = vunpack.c.l.b16 %v103
    %v343 = vunpack.c.l.b16 %v104
    %v344 = vunpack.c.l.b16 %v105
    %v345 = vunpack.c.l.b16 %v106
    %v346 = vunpack.c.l.b16 %v107
    %v347 = vunpack.c.l.b16 %v108
    %v348 = vunpack.c.l.b16 %v109
    %v349 = vunpack.c.l.b16 %v110
    %v350 = vunpack.c.l.b16 %v111
    %v351 = vunpack.c.l.b16 %v112
    %v352 = vunpack.c.l.b16 %v113
    %v353 = vunpack.c.l.b16 %v114
    %v354 = vunpack.c.l.b16 %v115
    %v355 = vunpack.c.l.b16 %v116
    %v356 = vunpack.c.l.b16 %v117
    %v357 = vunpack.c.l.b16 %v118
    %v358 = vunpack.c.l.b16 %v119
    %v359 = vunpack.c.l.b16 %v120
    %v360 = vunpack.c.l.b16 %v121
    %v361 = vunpack.c.l.b16 %v122
    %v362 = vunpack.c.l.b16 %v123
    %v363 = vunpack.c.l.b16 %v124
    %v364 = vunpack.c.l.b16 %v125
    %v365 = vunpack.c.l.b16 %v126
    %v366 = vunpack.c.l.b16 %v127
    %v367 = vunpack.c.l.b16 %v128
    %v368 = vunpack.c.l.b16 %v129
    %v369 = vunpack.c.l.b16 %v130
    %v370 = vunpack.c.l.b16 %v131
    %v371 = vunpack.c.l.b16 %v132
    %v372 = vunpack.c.l.b16 %v133
    %v373 = vunpack.c.l.b16 %v134
    %v374 = vunpack.c.l.b16 %v135
    %v375 = vunpack.c.l.b16 %v136
    %v376 = vunpack.c.l.b16 %v137
    %v377 = vunpack.c.l.b16 %v138
    %v378 = vpack.c.b16 %v271, %v270
    %v379 = vpack.c.b16 %v273, %v272
    %v380 = vpack.c.b16 %v275, %v274
    %v381 = vpack.c.b16 %v277, %v276
    %v382 = vpack.c.b16 %v279, %v278
    %v383 = vpack.c.b16 %v281, %v280
    %v384 = vpack.c.b16 %v283, %v282
    %v385 = vpack.c.b16 %v285, %v284
    %v386 = vpack.c.b16 %v287, %v286
    %v387 = vpack.c.b16 %v289, %v288
    %v388 = vpack.c.b16 %v291, %v290
    %v389 = vpack.c.b16 %v293, %v292
    %v390 = vpack.c.b16 %v295, %v294
    %v391 = vpack.c.b16 %v297, %v296
    %v392 = vpack.c.b16 %v299, %v298
    %v393 = vpack.c.b16 %v301, %v300
    %v394 = vpack.c.b16 %v303, %v302
    %v395 = vpack.c.b16 %v305, %v304
    %v396 = vpack.c.b16 %v307, %v306
    %v397 = vpack.c.b16 %v309, %v308
    %v398 = vpack.c.b16 %v311, %v310
    %v399 = vpack.c.b16 %v313, %v312
    %v400 = vpack.c.b16 %v315, %v314
    %v401 = vpack.c.b16 %v317, %v316
    %v402 = vpack.c.b16 %v319, %v318
    %v403 = vpack.c.b16 %v321, %v320
    %v404 = vpack.c.b16 %v323, %v322
    %v405 = vpack.c.b16 %v325, %v324
    %v406 = vpack.c.b16 %v327, %v326
    %v407 = vpack.c.b16 %v329, %v328
    %v408 = vpack.c.b16 %v331, %v330
    %v409 = vpack.c.b16 %v333, %v332
    %v410 = vpack.c.b16 %v335, %v334
    %v411 = vpack.c.b16 %v337, %v336
    %v412 = vpack.c.b16 %v339, %v338
    %v413 = vpack.c.b16 %v341, %v340
    %v414 = vpack.c.b16 %v343, %v342
    %v415 = vpack.c.b16 %v345, %v344
    %v416 = vpack.c.b16 %v347, %v346
    %v417 = vpack.c.b16 %v349, %v348
    %v418 = vpack.c.b16 %v351, %v350
    %v419 = vpack.c.b16 %v353, %v352
    %v420 = vpack.c.b16 %v355, %v354
    %v421 = vpack.c.b16 %v357, %v356
    %v422 = vpack.c.b16 %v359, %v358
    %v423 = vpack.c.b16 %v361, %v360
    %v424 = vpack.c.b16 %v363, %v362
    %v425 = vpack.c.b16 %v365, %v364
    %v426 = vpack.c.b16 %v367, %v366
    %v427 = vpack.c.b16 %v369, %v368
    %v428 = vpack.c.b16 %v371, %v370
    %v429 = vpack.c.b16 %v373, %v372
    %v430 = vpack.c.b16 %v375, %v374
    %v431 = vpack.c.b16 %v377, %v376
    %v502 = vunpack.c.l.b16 %v139
    %v503 = vunpack.c.l.b16 %v140
    %v504 = vunpack.c.l.b16 %v141
    %v505 = vunpack.c.l.b16 %v142
    %v506 = vunpack.c.l.b16 %v143
    %v507 = vunpack.c.l.b16 %v144
    %v508 = vunpack.c.l.b16 %v145
    %v509 = vunpack.c.l.b16 %v146
    %v510 = vunpack.c.l.b16 %v147
    %v511 = vunpack.c.l.b16 %v148
    %v512 = vunpack.c.l.b16 %v149
    %v513 = vunpack.c.l.b16 %v150
    %v514 = vunpack.c.l.b16 %v151
    %v515 = vunpack.c.l.b16 %v152
    %v516 = vunpack.c.l.b16 %v153
    %v517 = vunpack.c.l.b16 %v154
    %v518 = vpack.c.b16 %v503, %v502
    %v519 = vpack.c.b16 %v505, %v504
    %v520 = vpack.c.b16 %v507, %v506
    %v521 = vpack.c.b16 %v509, %v508
    %v522 = vpack.c.b16 %v511, %v510
    %v523 = vpack.c.b16 %v513, %v512
    %v524 = vpack.c.b16 %v515, %v514
    %v525 = vpack.c.b16 %v517, %v516
    %534 = vmatprep.subr.bf16.mxu0 0
    %535 = vmatpush1.bf16.msra.mxu0 %v518
    %536 = vmatprep.subr.bf16.mxu0 0
    %537 = vmatpush1.bf16.msra.mxu0 %v519
    %538 = vmatprep.subr.bf16.mxu0 0
    %539 = vmatpush1.bf16.msra.mxu0 %v520
    %540 = vmatprep.subr.bf16.mxu0 0
    %541 = vmatpush1.bf16.msra.mxu0 %v521
    %542 = vmatprep.subr.bf16.mxu0 0
    %543 = vmatpush1.bf16.msra.mxu0 %v522
    %544 = vmatprep.subr.bf16.mxu0 0
    %545 = vmatpush1.bf16.msra.mxu0 %v523
    %546 = vmatprep.subr.bf16.mxu0 0
    %547 = vmatpush1.bf16.msra.mxu0 %v524
    %548 = vmatprep.subr.bf16.mxu0 0
    %549 = vmatpush1.bf16.msra.mxu0 %v525
    %550 = vmatprep.subr.bf16.mxu0 0
    %551 = vmatpush1.bf16.msra.mxu0 0
    %552 = vmatprep.subr.bf16.mxu0 0
    %553 = vmatpush1.bf16.msra.mxu0 0
    %554 = vmatprep.subr.bf16.mxu0 0
    %555 = vmatpush1.bf16.msra.mxu0 0
    %556 = vmatprep.subr.bf16.mxu0 0
    %557 = vmatpush1.bf16.msra.mxu0 0
    %558 = vmatprep.subr.bf16.mxu0 0
    %559 = vmatpush1.bf16.msra.mxu0 0
    %560 = vmatprep.subr.bf16.mxu0 0
    %561 = vmatpush1.bf16.msra.mxu0 0
    %562 = vmatprep.subr.bf16.mxu0 0
    %563 = vmatpush1.bf16.msra.mxu0 0
    %564 = vmatprep.subr.bf16.mxu0 0
    %565 = vmatpush1.bf16.msra.mxu0 0
    %566 = vmatprep.mubr.bf16.mxu0 0
    %567 = vmatmul.mubr.bf16.gmra.mrb[0].mxu0 %v378
    %v568 = vpop.f32.mrb[0].mxu0
    %v569 = vadd.f32 %v160, %v568
    %v570 = vpop.f32.mrb[0].mxu0
    %v571 = vpop.f32.mrb[0].mxu0
    %v572 = vadd.f32 %v160, %v571
    %v573 = vpop.f32.mrb[0].mxu0
    %574 = vmatprep.mubr.bf16.mxu0 0
    %575 = vmatmul.mubr.bf16.gmra.mrb[0].mxu0 %v379
    %v576 = vpop.f32.mrb[0].mxu0
    %v577 = vadd.f32 %v160, %v576
    %v578 = vpop.f32.mrb[0].mxu0
    %v579 = vpop.f32.mrb[0].mxu0
    %v580 = vadd.f32 %v160, %v579
    %v581 = vpop.f32.mrb[0].mxu0
    %582 = vmatprep.mubr.bf16.mxu0 0
    %583 = vmatmul.mubr.bf16.gmra.mrb[0].mxu0 %v380
    %v584 = vpop.f32.mrb[0].mxu0
    %v585 = vadd.f32 %v160, %v584
    %v586 = vpop.f32.mrb[0].mxu0
    %v587 = vpop.f32.mrb[0].mxu0
    %v588 = vadd.f32 %v160, %v587
    %v589 = vpop.f32.mrb[0].mxu0
    %590 = vmatprep.mubr.bf16.mxu0 0
    %591 = vmatmul.mubr.bf16.gmra.mrb[0].mxu0 %v381
    %v592 = vpop.f32.mrb[0].mxu0
    %v593 = vadd.f32 %v160, %v592
    %v594 = vpop.f32.mrb[0].mxu0
    %v595 = vpop.f32.mrb[0].mxu0
    %v596 = vadd.f32 %v160, %v595
    %v597 = vpop.f32.mrb[0].mxu0
    %598 = vmatprep.mubr.bf16.mxu0 0
    %599 = vmatmul.mubr.bf16.gmra.mrb[0].mxu0 %v382
    %v600 = vpop.f32.mrb[0].mxu0
    %v601 = vadd.f32 %v160, %v600
    %v602 = vpop.f32.mrb[0].mxu0
    %v603 = vpop.f32.mrb[0].mxu0
    %v604 = vadd.f32 %v160, %v603
    %v605 = vpop.f32.mrb[0].mxu0
    %606 = vmatprep.mubr.bf16.mxu0 0
    %607 = vmatmul.mubr.bf16.gmra.mrb[0].mxu0 %v383
    %v608 = vpop.f32.mrb[0].mxu0
    %v609 = vadd.f32 %v160, %v608
    %v610 = vpop.f32.mrb[0].mxu0
    %v611 = vpop.f32.mrb[0].mxu0
    %v612 = vadd.f32 %v160, %v611
    %v613 = vpop.f32.mrb[0].mxu0
    %614 = vmatprep.mubr.bf16.mxu0 0
    %615 = vmatmul.mubr.bf16.gmra.mrb[0].mxu0 %v384
    %v616 = vpop.f32.mrb[0].mxu0
    %v617 = vadd.f32 %v160, %v616
    %v618 = vpop.f32.mrb[0].mxu0
    %v619 = vpop.f32.mrb[0].mxu0
    %v620 = vadd.f32 %v160, %v619
    %v621 = vpop.f32.mrb[0].mxu0
    %622 = vmatprep.mubr.bf16.mxu0 0
    %623 = vmatmul.mubr.bf16.gmra.mrb[0].mxu0 %v385
    %v624 = vpop.f32.mrb[0].mxu0
    %v625 = vadd.f32 %v160, %v624
    %v626 = vpop.f32.mrb[0].mxu0
    %v627 = vpop.f32.mrb[0].mxu0
    %v628 = vadd.f32 %v160, %v627
    %v629 = vpop.f32.mrb[0].mxu0
    %630 = vmatprep.mubr.bf16.mxu0 0
    %631 = vmatmul.mubr.bf16.gmra.mrb[0].mxu0 %v386
    %v632 = vpop.f32.mrb[0].mxu0
    %v633 = vadd.f32 %v160, %v632
    %v634 = vpop.f32.mrb[0].mxu0
    %v635 = vpop.f32.mrb[0].mxu0
    %v636 = vadd.f32 %v160, %v635
    %v637 = vpop.f32.mrb[0].mxu0
    %638 = vmatprep.mubr.bf16.mxu0 0
    %639 = vmatmul.mubr.bf16.gmra.mrb[0].mxu0 %v387
    %v640 = vpop.f32.mrb[0].mxu0
    %v641 = vadd.f32 %v160, %v640
    %v642 = vpop.f32.mrb[0].mxu0
    %v643 = vpop.f32.mrb[0].mxu0
    %v644 = vadd.f32 %v160, %v643
    %v645 = vpop.f32.mrb[0].mxu0
    %646 = vmatprep.mubr.bf16.mxu0 0
    %647 = vmatmul.mubr.bf16.gmra.mrb[0].mxu0 %v388
    %v648 = vpop.f32.mrb[0].mxu0
    %v649 = vadd.f32 %v160, %v648
    %v650 = vpop.f32.mrb[0].mxu0
    %v651 = vpop.f32.mrb[0].mxu0
    %v652 = vadd.f32 %v160, %v651
    %v653 = vpop.f32.mrb[0].mxu0
    %654 = vmatprep.mubr.bf16.mxu0 0
    %655 = vmatmul.mubr.bf16.gmra.mrb[0].mxu0 %v389
    %v656 = vpop.f32.mrb[0].mxu0
    %v657 = vadd.f32 %v160, %v656
    %v658 = vpop.f32.mrb[0].mxu0
    %v659 = vpop.f32.mrb[0].mxu0
    %v660 = vadd.f32 %v160, %v659
    %v661 = vpop.f32.mrb[0].mxu0
    %662 = vmatprep.mubr.bf16.mxu0 0
    %663 = vmatmul.mubr.bf16.gmra.mrb[0].mxu0 %v390
    %v664 = vpop.f32.mrb[0].mxu0
    %v665 = vadd.f32 %v160, %v664
    %v666 = vpop.f32.mrb[0].mxu0
    %v667 = vpop.f32.mrb[0].mxu0
    %v668 = vadd.f32 %v160, %v667
    %v669 = vpop.f32.mrb[0].mxu0
    %670 = vmatprep.mubr.bf16.mxu0 0
    %671 = vmatmul.mubr.bf16.gmra.mrb[0].mxu0 %v391
    %v672 = vpop.f32.mrb[0].mxu0
    %v673 = vadd.f32 %v160, %v672
    %v674 = vpop.f32.mrb[0].mxu0
    %v675 = vpop.f32.mrb[0].mxu0
    %v676 = vadd.f32 %v160, %v675
    %v677 = vpop.f32.mrb[0].mxu0
    %678 = vmatprep.mubr.bf16.mxu0 0
    %679 = vmatmul.mubr.bf16.gmra.mrb[0].mxu0 %v392
    %v680 = vpop.f32.mrb[0].mxu0
    %v681 = vadd.f32 %v160, %v680
    %v682 = vpop.f32.mrb[0].mxu0
    %v683 = vpop.f32.mrb[0].mxu0
    %v684 = vadd.f32 %v160, %v683
    %v685 = vpop.f32.mrb[0].mxu0
    %686 = vmatprep.mubr.bf16.mxu0 0
    %687 = vmatmul.mubr.bf16.gmra.mrb[0].mxu0 %v393
    %v688 = vpop.f32.mrb[0].mxu0
    %v689 = vadd.f32 %v160, %v688
    %v690 = vpop.f32.mrb[0].mxu0
    %v691 = vpop.f32.mrb[0].mxu0
    %v692 = vadd.f32 %v160, %v691
    %v693 = vpop.f32.mrb[0].mxu0
    %694 = vmatprep.mubr.bf16.mxu0 0
    %695 = vmatmul.mubr.bf16.gmra.mrb[0].mxu0 %v394
    %v696 = vpop.f32.mrb[0].mxu0
    %v697 = vadd.f32 %v160, %v696
    %v698 = vpop.f32.mrb[0].mxu0
    %v699 = vpop.f32.mrb[0].mxu0
    %v700 = vadd.f32 %v160, %v699
    %v701 = vpop.f32.mrb[0].mxu0
    %702 = vmatprep.mubr.bf16.mxu0 0
    %703 = vmatmul.mubr.bf16.gmra.mrb[0].mxu0 %v395
    %v704 = vpop.f32.mrb[0].mxu0
    %v705 = vadd.f32 %v160, %v704
    %v706 = vpop.f32.mrb[0].mxu0
    %v707 = vpop.f32.mrb[0].mxu0
    %v708 = vadd.f32 %v160, %v707
    %v709 = vpop.f32.mrb[0].mxu0
    %710 = vmatprep.mubr.bf16.mxu0 0
    %711 = vmatmul.mubr.bf16.gmra.mrb[0].mxu0 %v396
    %v712 = vpop.f32.mrb[0].mxu0
    %v713 = vadd.f32 %v160, %v712
    %v714 = vpop.f32.mrb[0].mxu0
    %v715 = vpop.f32.mrb[0].mxu0
    %v716 = vadd.f32 %v160, %v715
    %v717 = vpop.f32.mrb[0].mxu0
    %718 = vmatprep.mubr.bf16.mxu0 0
    %719 = vmatmul.mubr.bf16.gmra.mrb[0].mxu0 %v397
    %v720 = vpop.f32.mrb[0].mxu0
    %v721 = vadd.f32 %v160, %v720
    %v722 = vpop.f32.mrb[0].mxu0
    %v723 = vpop.f32.mrb[0].mxu0
    %v724 = vadd.f32 %v160, %v723
    %v725 = vpop.f32.mrb[0].mxu0
    %726 = vmatprep.mubr.bf16.mxu0 0
    %727 = vmatmul.mubr.bf16.gmra.mrb[0].mxu0 %v398
    %v728 = vpop.f32.mrb[0].mxu0
    %v729 = vadd.f32 %v160, %v728
    %v730 = vpop.f32.mrb[0].mxu0
    %v731 = vpop.f32.mrb[0].mxu0
    %v732 = vadd.f32 %v160, %v731
    %v733 = vpop.f32.mrb[0].mxu0
    %734 = vmatprep.mubr.bf16.mxu0 0
    %735 = vmatmul.mubr.bf16.gmra.mrb[0].mxu0 %v399
    %v736 = vpop.f32.mrb[0].mxu0
    %v737 = vadd.f32 %v160, %v736
    %v738 = vpop.f32.mrb[0].mxu0
    %v739 = vpop.f32.mrb[0].mxu0
    %v740 = vadd.f32 %v160, %v739
    %v741 = vpop.f32.mrb[0].mxu0
    %742 = vmatprep.mubr.bf16.mxu0 0
    %743 = vmatmul.mubr.bf16.gmra.mrb[0].mxu0 %v400
    %v744 = vpop.f32.mrb[0].mxu0
    %v745 = vadd.f32 %v160, %v744
    %v746 = vpop.f32.mrb[0].mxu0
    %v747 = vpop.f32.mrb[0].mxu0
    %v748 = vadd.f32 %v160, %v747
    %v749 = vpop.f32.mrb[0].mxu0
    %750 = vmatprep.mubr.bf16.mxu0 0
    %751 = vmatmul.mubr.bf16.gmra.mrb[0].mxu0 %v401
    %v752 = vpop.f32.mrb[0].mxu0
    %v753 = vadd.f32 %v160, %v752
    %v754 = vpop.f32.mrb[0].mxu0
    %v755 = vpop.f32.mrb[0].mxu0
    %v756 = vadd.f32 %v160, %v755
    %v757 = vpop.f32.mrb[0].mxu0
    %758 = vmatprep.mubr.bf16.mxu0 0
    %759 = vmatmul.mubr.bf16.gmra.mrb[0].mxu0 %v402
    %v760 = vpop.f32.mrb[0].mxu0
    %v761 = vadd.f32 %v160, %v760
    %v762 = vpop.f32.mrb[0].mxu0
    %v763 = vpop.f32.mrb[0].mxu0
    %v764 = vadd.f32 %v160, %v763
    %v765 = vpop.f32.mrb[0].mxu0
    %766 = vmatprep.mubr.bf16.mxu0 0
    %767 = vmatmul.mubr.bf16.gmra.mrb[0].mxu0 %v403
    %v768 = vpop.f32.mrb[0].mxu0
    %v769 = vadd.f32 %v160, %v768
    %v770 = vpop.f32.mrb[0].mxu0
    %v771 = vpop.f32.mrb[0].mxu0
    %v772 = vadd.f32 %v160, %v771
    %v773 = vpop.f32.mrb[0].mxu0
    %774 = vmatprep.mubr.bf16.mxu0 0
    %775 = vmatmul.mubr.bf16.gmra.mrb[0].mxu0 %v404
    %v776 = vpop.f32.mrb[0].mxu0
    %v777 = vadd.f32 %v160, %v776
    %v778 = vpop.f32.mrb[0].mxu0
    %v779 = vpop.f32.mrb[0].mxu0
    %v780 = vadd.f32 %v160, %v779
    %v781 = vpop.f32.mrb[0].mxu0
    %782 = vmatprep.mubr.bf16.mxu0 0
    %783 = vmatmul.mubr.bf16.gmra.mrb[0].mxu0 %v405
    %v784 = vpop.f32.mrb[0].mxu0
    %v785 = vadd.f32 %v160, %v784
    %v786 = vpop.f32.mrb[0].mxu0
    %v787 = vpop.f32.mrb[0].mxu0
    %v788 = vadd.f32 %v160, %v787
    %v789 = vpop.f32.mrb[0].mxu0
    %790 = vmatprep.mubr.bf16.mxu0 0
    %791 = vmatmul.mubr.bf16.gmra.mrb[0].mxu0 %v406
    %v792 = vpop.f32.mrb[0].mxu0
    %v793 = vadd.f32 %v160, %v792
    %v794 = vpop.f32.mrb[0].mxu0
    %v795 = vpop.f32.mrb[0].mxu0
    %v796 = vadd.f32 %v160, %v795
    %v797 = vpop.f32.mrb[0].mxu0
    %798 = vmatprep.mubr.bf16.mxu0 0
    %799 = vmatmul.mubr.bf16.gmra.mrb[0].mxu0 %v407
    %v800 = vpop.f32.mrb[0].mxu0
    %v801 = vadd.f32 %v160, %v800
    %v802 = vpop.f32.mrb[0].mxu0
    %v803 = vpop.f32.mrb[0].mxu0
    %v804 = vadd.f32 %v160, %v803
    %v805 = vpop.f32.mrb[0].mxu0
    %806 = vmatprep.mubr.bf16.mxu0 0
    %807 = vmatmul.mubr.bf16.gmra.mrb[0].mxu0 %v408
    %v808 = vpop.f32.mrb[0].mxu0
    %v809 = vadd.f32 %v160, %v808
    %v810 = vpop.f32.mrb[0].mxu0
    %v811 = vpop.f32.mrb[0].mxu0
    %v812 = vadd.f32 %v160, %v811
    %v813 = vpop.f32.mrb[0].mxu0
    %814 = vmatprep.mubr.bf16.mxu0 0
    %815 = vmatmul.mubr.bf16.gmra.mrb[0].mxu0 %v409
    %v816 = vpop.f32.mrb[0].mxu0
    %v817 = vadd.f32 %v160, %v816
    %v818 = vpop.f32.mrb[0].mxu0
    %v819 = vpop.f32.mrb[0].mxu0
    %v820 = vadd.f32 %v160, %v819
    %v821 = vpop.f32.mrb[0].mxu0
    %822 = vmatprep.mubr.bf16.mxu0 0
    %823 = vmatmul.mubr.bf16.gmra.mrb[0].mxu0 %v410
    %v824 = vpop.f32.mrb[0].mxu0
    %v825 = vadd.f32 %v160, %v824
    %v826 = vpop.f32.mrb[0].mxu0
    %v827 = vpop.f32.mrb[0].mxu0
    %v828 = vadd.f32 %v160, %v827
    %v829 = vpop.f32.mrb[0].mxu0
    %830 = vmatprep.mubr.bf16.mxu0 0
    %831 = vmatmul.mubr.bf16.gmra.mrb[0].mxu0 %v411
    %v832 = vpop.f32.mrb[0].mxu0
    %v833 = vadd.f32 %v160, %v832
    %v834 = vpop.f32.mrb[0].mxu0
    %v835 = vpop.f32.mrb[0].mxu0
    %v836 = vadd.f32 %v160, %v835
    %v837 = vpop.f32.mrb[0].mxu0
    %838 = vmatprep.mubr.bf16.mxu0 0
    %839 = vmatmul.mubr.bf16.gmra.mrb[0].mxu0 %v412
    %v840 = vpop.f32.mrb[0].mxu0
    %v841 = vadd.f32 %v160, %v840
    %v842 = vpop.f32.mrb[0].mxu0
    %v843 = vpop.f32.mrb[0].mxu0
    %v844 = vadd.f32 %v160, %v843
    %v845 = vpop.f32.mrb[0].mxu0
    %846 = vmatprep.mubr.bf16.mxu0 0
    %847 = vmatmul.mubr.bf16.gmra.mrb[0].mxu0 %v413
    %v848 = vpop.f32.mrb[0].mxu0
    %v849 = vadd.f32 %v160, %v848
    %v850 = vpop.f32.mrb[0].mxu0
    %v851 = vpop.f32.mrb[0].mxu0
    %v852 = vadd.f32 %v160, %v851
    %v853 = vpop.f32.mrb[0].mxu0
    %854 = vmatprep.mubr.bf16.mxu0 0
    %855 = vmatmul.mubr.bf16.gmra.mrb[0].mxu0 %v414
    %v856 = vpop.f32.mrb[0].mxu0
    %v857 = vadd.f32 %v160, %v856
    %v858 = vpop.f32.mrb[0].mxu0
    %v859 = vpop.f32.mrb[0].mxu0
    %v860 = vadd.f32 %v160, %v859
    %v861 = vpop.f32.mrb[0].mxu0
    %862 = vmatprep.mubr.bf16.mxu0 0
    %863 = vmatmul.mubr.bf16.gmra.mrb[0].mxu0 %v415
    %v864 = vpop.f32.mrb[0].mxu0
    %v865 = vadd.f32 %v160, %v864
    %v866 = vpop.f32.mrb[0].mxu0
    %v867 = vpop.f32.mrb[0].mxu0
    %v868 = vadd.f32 %v160, %v867
    %v869 = vpop.f32.mrb[0].mxu0
    %870 = vmatprep.mubr.bf16.mxu0 0
    %871 = vmatmul.mubr.bf16.gmra.mrb[0].mxu0 %v416
    %v872 = vpop.f32.mrb[0].mxu0
    %v873 = vadd.f32 %v160, %v872
    %v874 = vpop.f32.mrb[0].mxu0
    %v875 = vpop.f32.mrb[0].mxu0
    %v876 = vadd.f32 %v160, %v875
    %v877 = vpop.f32.mrb[0].mxu0
    %878 = vmatprep.mubr.bf16.mxu0 0
    %879 = vmatmul.mubr.bf16.gmra.mrb[0].mxu0 %v417
    %v880 = vpop.f32.mrb[0].mxu0
    %v881 = vadd.f32 %v160, %v880
    %v882 = vpop.f32.mrb[0].mxu0
    %v883 = vpop.f32.mrb[0].mxu0
    %v884 = vadd.f32 %v160, %v883
    %v885 = vpop.f32.mrb[0].mxu0
    %886 = vmatprep.mubr.bf16.mxu0 0
    %887 = vmatmul.mubr.bf16.gmra.mrb[0].mxu0 %v418
    %v888 = vpop.f32.mrb[0].mxu0
    %v889 = vadd.f32 %v160, %v888
    %v890 = vpop.f32.mrb[0].mxu0
    %v891 = vpop.f32.mrb[0].mxu0
    %v892 = vadd.f32 %v160, %v891
    %v893 = vpop.f32.mrb[0].mxu0
    %894 = vmatprep.mubr.bf16.mxu0 0
    %895 = vmatmul.mubr.bf16.gmra.mrb[0].mxu0 %v419
    %v896 = vpop.f32.mrb[0].mxu0
    %v897 = vadd.f32 %v160, %v896
    %v898 = vpop.f32.mrb[0].mxu0
    %v899 = vpop.f32.mrb[0].mxu0
    %v900 = vadd.f32 %v160, %v899
    %v901 = vpop.f32.mrb[0].mxu0
    %902 = vmatprep.mubr.bf16.mxu0 0
    %903 = vmatmul.mubr.bf16.gmra.mrb[0].mxu0 %v420
    %v904 = vpop.f32.mrb[0].mxu0
    %v905 = vadd.f32 %v160, %v904
    %v906 = vpop.f32.mrb[0].mxu0
    %v907 = vpop.f32.mrb[0].mxu0
    %v908 = vadd.f32 %v160, %v907
    %v909 = vpop.f32.mrb[0].mxu0
    %910 = vmatprep.mubr.bf16.mxu0 0
    %911 = vmatmul.mubr.bf16.gmra.mrb[0].mxu0 %v421
    %v912 = vpop.f32.mrb[0].mxu0
    %v913 = vadd.f32 %v160, %v912
    %v914 = vpop.f32.mrb[0].mxu0
    %v915 = vpop.f32.mrb[0].mxu0
    %v916 = vadd.f32 %v160, %v915
    %v917 = vpop.f32.mrb[0].mxu0
    %918 = vmatprep.mubr.bf16.mxu0 0
    %919 = vmatmul.mubr.bf16.gmra.mrb[0].mxu0 %v422
    %v920 = vpop.f32.mrb[0].mxu0
    %v921 = vadd.f32 %v160, %v920
    %v922 = vpop.f32.mrb[0].mxu0
    %v923 = vpop.f32.mrb[0].mxu0
    %v924 = vadd.f32 %v160, %v923
    %v925 = vpop.f32.mrb[0].mxu0
    %926 = vmatprep.mubr.bf16.mxu0 0
    %927 = vmatmul.mubr.bf16.gmra.mrb[0].mxu0 %v423
    %v928 = vpop.f32.mrb[0].mxu0
    %v929 = vadd.f32 %v160, %v928
    %v930 = vpop.f32.mrb[0].mxu0
    %v931 = vpop.f32.mrb[0].mxu0
    %v932 = vadd.f32 %v160, %v931
    %v933 = vpop.f32.mrb[0].mxu0
    %934 = vmatprep.mubr.bf16.mxu0 0
    %935 = vmatmul.mubr.bf16.gmra.mrb[0].mxu0 %v424
    %v936 = vpop.f32.mrb[0].mxu0
    %v937 = vadd.f32 %v160, %v936
    %v938 = vpop.f32.mrb[0].mxu0
    %v939 = vpop.f32.mrb[0].mxu0
    %v940 = vadd.f32 %v160, %v939
    %v941 = vpop.f32.mrb[0].mxu0
    %942 = vmatprep.mubr.bf16.mxu0 0
    %943 = vmatmul.mubr.bf16.gmra.mrb[0].mxu0 %v425
    %v944 = vpop.f32.mrb[0].mxu0
    %v945 = vadd.f32 %v160, %v944
    %v946 = vpop.f32.mrb[0].mxu0
    %v947 = vpop.f32.mrb[0].mxu0
    %v948 = vadd.f32 %v160, %v947
    %v949 = vpop.f32.mrb[0].mxu0
    %950 = vmatprep.mubr.bf16.mxu0 0
    %951 = vmatmul.mubr.bf16.gmra.mrb[0].mxu0 %v426
    %v952 = vpop.f32.mrb[0].mxu0
    %v953 = vadd.f32 %v160, %v952
    %v954 = vpop.f32.mrb[0].mxu0
    %v955 = vpop.f32.mrb[0].mxu0
    %v956 = vadd.f32 %v160, %v955
    %v957 = vpop.f32.mrb[0].mxu0
    %958 = vmatprep.mubr.bf16.mxu0 0
    %959 = vmatmul.mubr.bf16.gmra.mrb[0].mxu0 %v427
    %v960 = vpop.f32.mrb[0].mxu0
    %v961 = vadd.f32 %v160, %v960
    %v962 = vpop.f32.mrb[0].mxu0
    %v963 = vpop.f32.mrb[0].mxu0
    %v964 = vadd.f32 %v160, %v963
    %v965 = vpop.f32.mrb[0].mxu0
    %966 = vmatprep.mubr.bf16.mxu0 0
    %967 = vmatmul.mubr.bf16.gmra.mrb[0].mxu0 %v428
    %v968 = vpop.f32.mrb[0].mxu0
    %v969 = vadd.f32 %v160, %v968
    %v970 = vpop.f32.mrb[0].mxu0
    %v971 = vpop.f32.mrb[0].mxu0
    %v972 = vadd.f32 %v160, %v971
    %v973 = vpop.f32.mrb[0].mxu0
    %974 = vmatprep.mubr.bf16.mxu0 0
    %975 = vmatmul.mubr.bf16.gmra.mrb[0].mxu0 %v429
    %v976 = vpop.f32.mrb[0].mxu0
    %v977 = vadd.f32 %v160, %v976
    %v978 = vpop.f32.mrb[0].mxu0
    %v979 = vpop.f32.mrb[0].mxu0
    %v980 = vadd.f32 %v160, %v979
    %v981 = vpop.f32.mrb[0].mxu0
    %982 = vmatprep.mubr.bf16.mxu0 0
    %983 = vmatmul.mubr.bf16.gmra.mrb[0].mxu0 %v430
    %v984 = vpop.f32.mrb[0].mxu0
    %v985 = vadd.f32 %v160, %v984
    %v986 = vpop.f32.mrb[0].mxu0
    %v987 = vpop.f32.mrb[0].mxu0
    %v988 = vadd.f32 %v160, %v987
    %v989 = vpop.f32.mrb[0].mxu0
    %990 = vmatprep.mubr.bf16.mxu0 0
    %991 = vmatmul.mubr.bf16.gmra.mrb[0].mxu0 %v431
    %v992 = vpop.f32.mrb[0].mxu0
    %v993 = vadd.f32 %v160, %v992
    %v994 = vpop.f32.mrb[0].mxu0
    %v995 = vpop.f32.mrb[0].mxu0
    %v996 = vadd.f32 %v160, %v995
    %v997 = vpop.f32.mrb[0].mxu0
    %998 = vdwg.mxu0
    %v999 = vmax.f32 %v569, 0.0
    %v1000 = vmax.f32 %v572, 0.0
    %v1001 = vmax.f32 %v577, 0.0
    %v1002 = vmax.f32 %v580, 0.0
    %v1003 = vmax.f32 %v585, 0.0
    %v1004 = vmax.f32 %v588, 0.0
    %v1005 = vmax.f32 %v593, 0.0
    %v1006 = vmax.f32 %v596, 0.0
    %v1007 = vmax.f32 %v601, 0.0
    %v1008 = vmax.f32 %v604, 0.0
    %v1009 = vmax.f32 %v609, 0.0
    %v1010 = vmax.f32 %v612, 0.0
    %v1011 = vmax.f32 %v617, 0.0
    %v1012 = vmax.f32 %v620, 0.0
    %v1013 = vmax.f32 %v625, 0.0
    %v1014 = vmax.f32 %v628, 0.0
    %v1015 = vmax.f32 %v633, 0.0
    %v1016 = vmax.f32 %v636, 0.0
    %v1017 = vmax.f32 %v641, 0.0
    %v1018 = vmax.f32 %v644, 0.0
    %v1019 = vmax.f32 %v649, 0.0
    %v1020 = vmax.f32 %v652, 0.0
    %v1021 = vmax.f32 %v657, 0.0
    %v1022 = vmax.f32 %v660, 0.0
    %v1023 = vmax.f32 %v665, 0.0
    %v1024 = vmax.f32 %v668, 0.0
    %v1025 = vmax.f32 %v673, 0.0
    %v1026 = vmax.f32 %v676, 0.0
    %v1027 = vmax.f32 %v681, 0.0
    %v1028 = vmax.f32 %v684, 0.0
    %v1029 = vmax.f32 %v689, 0.0
    %v1030 = vmax.f32 %v692, 0.0
    %v1031 = vmax.f32 %v697, 0.0
    %v1032 = vmax.f32 %v700, 0.0
    %v1033 = vmax.f32 %v705, 0.0
    %v1034 = vmax.f32 %v708, 0.0
    %v1035 = vmax.f32 %v713, 0.0
    %v1036 = vmax.f32 %v716, 0.0
    %v1037 = vmax.f32 %v721, 0.0
    %v1038 = vmax.f32 %v724, 0.0
    %v1039 = vmax.f32 %v729, 0.0
    %v1040 = vmax.f32 %v732, 0.0
    %v1041 = vmax.f32 %v737, 0.0
    %v1042 = vmax.f32 %v740, 0.0
    %v1043 = vmax.f32 %v745, 0.0
    %v1044 = vmax.f32 %v748, 0.0
    %v1045 = vmax.f32 %v753, 0.0
    %v1046 = vmax.f32 %v756, 0.0
    %v1047 = vmax.f32 %v761, 0.0
    %v1048 = vmax.f32 %v764, 0.0
    %v1049 = vmax.f32 %v769, 0.0
    %v1050 = vmax.f32 %v772, 0.0
    %v1051 = vmax.f32 %v777, 0.0
    %v1052 = vmax.f32 %v780, 0.0
    %v1053 = vmax.f32 %v785, 0.0
    %v1054 = vmax.f32 %v788, 0.0
    %v1055 = vmax.f32 %v793, 0.0
    %v1056 = vmax.f32 %v796, 0.0
    %v1057 = vmax.f32 %v801, 0.0
    %v1058 = vmax.f32 %v804, 0.0
    %v1059 = vmax.f32 %v809, 0.0
    %v1060 = vmax.f32 %v812, 0.0
    %v1061 = vmax.f32 %v817, 0.0
    %v1062 = vmax.f32 %v820, 0.0
    %v1063 = vmax.f32 %v825, 0.0
    %v1064 = vmax.f32 %v828, 0.0
    %v1065 = vmax.f32 %v833, 0.0
    %v1066 = vmax.f32 %v836, 0.0
    %v1067 = vmax.f32 %v841, 0.0
    %v1068 = vmax.f32 %v844, 0.0
    %v1069 = vmax.f32 %v849, 0.0
    %v1070 = vmax.f32 %v852, 0.0
    %v1071 = vmax.f32 %v857, 0.0
    %v1072 = vmax.f32 %v860, 0.0
    %v1073 = vmax.f32 %v865, 0.0
    %v1074 = vmax.f32 %v868, 0.0
    %v1075 = vmax.f32 %v873, 0.0
    %v1076 = vmax.f32 %v876, 0.0
    %v1077 = vmax.f32 %v881, 0.0
    %v1078 = vmax.f32 %v884, 0.0
    %v1079 = vmax.f32 %v889, 0.0
    %v1080 = vmax.f32 %v892, 0.0
    %v1081 = vmax.f32 %v897, 0.0
    %v1082 = vmax.f32 %v900, 0.0
    %v1083 = vmax.f32 %v905, 0.0
    %v1084 = vmax.f32 %v908, 0.0
    %v1085 = vmax.f32 %v913, 0.0
    %v1086 = vmax.f32 %v916, 0.0
    %v1087 = vmax.f32 %v921, 0.0
    %v1088 = vmax.f32 %v924, 0.0
    %v1089 = vmax.f32 %v929, 0.0
    %v1090 = vmax.f32 %v932, 0.0
    %v1091 = vmax.f32 %v937, 0.0
    %v1092 = vmax.f32 %v940, 0.0
    %v1093 = vmax.f32 %v945, 0.0
    %v1094 = vmax.f32 %v948, 0.0
    %v1095 = vmax.f32 %v953, 0.0
    %v1096 = vmax.f32 %v956, 0.0
    %v1097 = vmax.f32 %v961, 0.0
    %v1098 = vmax.f32 %v964, 0.0
    %v1099 = vmax.f32 %v969, 0.0
    %v1100 = vmax.f32 %v972, 0.0
    %v1101 = vmax.f32 %v977, 0.0
    %v1102 = vmax.f32 %v980, 0.0
    %v1103 = vmax.f32 %v985, 0.0
    %v1104 = vmax.f32 %v988, 0.0
    %v1105 = vmax.f32 %v993, 0.0
    %v1106 = vmax.f32 %v996, 0.0
    %v1107 = vld [vmem:[%s1] sm:$0xff]
    %v1108 = vld [vmem:[%s1 + $0x8] sm:$0xff]
    %v1109 = vld [vmem:[%s1 + $0x10] sm:$0xff]
    %v1110 = vld [vmem:[%s1 + $0x18] sm:$0xff]
    %v1111 = vld [vmem:[%s1 + $0x20] sm:$0xff]
    %v1112 = vld [vmem:[%s1 + $0x28] sm:$0xff]
    %v1113 = vld [vmem:[%s1 + $0x30] sm:$0xff]
    %v1114 = vld [vmem:[%s1 + $0x38] sm:$0xff]
    %v1115 = vld [vmem:[%s1 + $0x40] sm:$0xff]
    %v1116 = vld [vmem:[%s1 + $0x48] sm:$0xff]
    %v1117 = vld [vmem:[%s1 + $0x50] sm:$0xff]
    %v1118 = vld [vmem:[%s1 + $0x58] sm:$0xff]
    %v1119 = vld [vmem:[%s1 + $0x60] sm:$0xff]
    %v1120 = vld [vmem:[%s1 + $0x68] sm:$0xff]
    %v1121 = vld [vmem:[%s1 + $0x70] sm:$0xff]
    %v1122 = vld [vmem:[%s1 + $0x78] sm:$0xff]
    %v1123 = vld [vmem:[%s1 + $0x80] sm:$0xff]
    %v1124 = vld [vmem:[%s1 + $0x88] sm:$0xff]
    %v1125 = vld [vmem:[%s1 + $0x90] sm:$0xff]
    %v1126 = vld [vmem:[%s1 + $0x98] sm:$0xff]
    %v1127 = vld [vmem:[%s1 + $0xa0] sm:$0xff]
    %v1128 = vld [vmem:[%s1 + $0xa8] sm:$0xff]
    %v1129 = vld [vmem:[%s1 + $0xb0] sm:$0xff]
    %v1130 = vld [vmem:[%s1 + $0xb8] sm:$0xff]
    %v1131 = vld [vmem:[%s1 + $0xc0] sm:$0xff]
    %v1132 = vld [vmem:[%s1 + $0xc8] sm:$0xff]
    %v1133 = vld [vmem:[%s1 + $0xd0] sm:$0xff]
    %v1134 = vld [vmem:[%s1 + $0xd8] sm:$0xff]
    %v1135 = vld [vmem:[%s1 + $0xe0] sm:$0xff]
    %v1136 = vld [vmem:[%s1 + $0xe8] sm:$0xff]
    %v1137 = vld [vmem:[%s1 + $0xf0] sm:$0xff]
    %v1138 = vld [vmem:[%s1 + $0xf8] sm:$0xff]
    %v1139 = vld [vmem:[%s1 + $0x100] sm:$0xff]
    %v1140 = vld [vmem:[%s1 + $0x108] sm:$0xff]
    %v1141 = vld [vmem:[%s1 + $0x110] sm:$0xff]
    %v1142 = vld [vmem:[%s1 + $0x118] sm:$0xff]
    %v1143 = vld [vmem:[%s1 + $0x120] sm:$0xff]
    %v1144 = vld [vmem:[%s1 + $0x128] sm:$0xff]
    %v1145 = vld [vmem:[%s1 + $0x130] sm:$0xff]
    %v1146 = vld [vmem:[%s1 + $0x138] sm:$0xff]
    %v1147 = vld [vmem:[%s1 + $0x140] sm:$0xff]
    %v1148 = vld [vmem:[%s1 + $0x148] sm:$0xff]
    %v1149 = vld [vmem:[%s1 + $0x150] sm:$0xff]
    %v1150 = vld [vmem:[%s1 + $0x158] sm:$0xff]
    %v1151 = vld [vmem:[%s1 + $0x160] sm:$0xff]
    %v1152 = vld [vmem:[%s1 + $0x168] sm:$0xff]
    %v1153 = vld [vmem:[%s1 + $0x170] sm:$0xff]
    %v1154 = vld [vmem:[%s1 + $0x178] sm:$0xff]
    %v1155 = vld [vmem:[%s1 + $0x180] sm:$0xff]
    %v1156 = vld [vmem:[%s1 + $0x188] sm:$0xff]
    %v1157 = vld [vmem:[%s1 + $0x190] sm:$0xff]
    %v1158 = vld [vmem:[%s1 + $0x198] sm:$0xff]
    %v1159 = vld [vmem:[%s1 + $0x1a0] sm:$0xff]
    %v1160 = vld [vmem:[%s1 + $0x1a8] sm:$0xff]
    %v1161 = vld [vmem:[%s1 + $0x1b0] sm:$0xff]
    %v1162 = vld [vmem:[%s1 + $0x1b8] sm:$0xff]
    %v1163 = vld [vmem:[%s1 + $0x1c0] sm:$0xff]
    %v1164 = vld [vmem:[%s1 + $0x1c8] sm:$0xff]
    %v1165 = vld [vmem:[%s1 + $0x1d0] sm:$0xff]
    %v1166 = vld [vmem:[%s1 + $0x1d8] sm:$0xff]
    %v1167 = vld [vmem:[%s1 + $0x1e0] sm:$0xff]
    %v1168 = vld [vmem:[%s1 + $0x1e8] sm:$0xff]
    %v1169 = vld [vmem:[%s1 + $0x1f0] sm:$0xff]
    %v1170 = vld [vmem:[%s1 + $0x1f8] sm:$0xff]
    %v1171 = vld [vmem:[%s1 + $0x200] sm:$0xff]
    %v1172 = vld [vmem:[%s1 + $0x208] sm:$0xff]
    %v1173 = vld [vmem:[%s1 + $0x210] sm:$0xff]
    %v1174 = vld [vmem:[%s1 + $0x218] sm:$0xff]
    %v1175 = vld [vmem:[%s1 + $0x220] sm:$0xff]
    %v1176 = vld [vmem:[%s1 + $0x228] sm:$0xff]
    %v1177 = vld [vmem:[%s1 + $0x230] sm:$0xff]
    %v1178 = vld [vmem:[%s1 + $0x238] sm:$0xff]
    %v1179 = vld [vmem:[%s1 + $0x240] sm:$0xff]
    %v1180 = vld [vmem:[%s1 + $0x248] sm:$0xff]
    %v1181 = vld [vmem:[%s1 + $0x250] sm:$0xff]
    %v1182 = vld [vmem:[%s1 + $0x258] sm:$0xff]
    %v1183 = vld [vmem:[%s1 + $0x260] sm:$0xff]
    %v1184 = vld [vmem:[%s1 + $0x268] sm:$0xff]
    %v1185 = vld [vmem:[%s1 + $0x270] sm:$0xff]
    %v1186 = vld [vmem:[%s1 + $0x278] sm:$0xff]
    %v1187 = vld [vmem:[%s1 + $0x280] sm:$0xff]
    %v1188 = vld [vmem:[%s1 + $0x288] sm:$0xff]
    %v1189 = vld [vmem:[%s1 + $0x290] sm:$0xff]
    %v1190 = vld [vmem:[%s1 + $0x298] sm:$0xff]
    %v1191 = vld [vmem:[%s1 + $0x2a0] sm:$0xff]
    %v1192 = vld [vmem:[%s1 + $0x2a8] sm:$0xff]
    %v1193 = vld [vmem:[%s1 + $0x2b0] sm:$0xff]
    %v1194 = vld [vmem:[%s1 + $0x2b8] sm:$0xff]
    %v1195 = vld [vmem:[%s1 + $0x2c0] sm:$0xff]
    %v1196 = vld [vmem:[%s1 + $0x2c8] sm:$0xff]
    %v1197 = vld [vmem:[%s1 + $0x2d0] sm:$0xff]
    %v1198 = vld [vmem:[%s1 + $0x2d8] sm:$0xff]
    %v1199 = vld [vmem:[%s1 + $0x2e0] sm:$0xff]
    %v1200 = vld [vmem:[%s1 + $0x2e8] sm:$0xff]
    %v1201 = vld [vmem:[%s1 + $0x2f0] sm:$0xff]
    %v1202 = vld [vmem:[%s1 + $0x2f8] sm:$0xff]
    %v1203 = vld [vmem:[%s1 + $0x300] sm:$0xff]
    %v1204 = vld [vmem:[%s1 + $0x308] sm:$0xff]
    %v1205 = vld [vmem:[%s1 + $0x310] sm:$0xff]
    %v1206 = vld [vmem:[%s1 + $0x318] sm:$0xff]
    %v1207 = vld [vmem:[%s1 + $0x320] sm:$0xff]
    %v1208 = vld [vmem:[%s1 + $0x328] sm:$0xff]
    %v1209 = vld [vmem:[%s1 + $0x330] sm:$0xff]
    %v1210 = vld [vmem:[%s1 + $0x338] sm:$0xff]
    %v1211 = vld [vmem:[%s1 + $0x340] sm:$0xff]
    %v1212 = vld [vmem:[%s1 + $0x348] sm:$0xff]
    %v1213 = vld [vmem:[%s1 + $0x350] sm:$0xff]
    %v1214 = vld [vmem:[%s1 + $0x358] sm:$0xff]
    %1216 = vset.pattern.permute.xlu0 0
    %1217 = vperm.xlu0 %1216, %v1107
    %v1218 = vpop.permute.xlu0 %1217
    %1221 = vset.pattern.permute.xlu0 0
    %1222 = vperm.xlu0 %1221, %v1108
    %v1223 = vpop.permute.xlu0 %1222
    %1226 = vset.pattern.permute.xlu0 0
    %1227 = vperm.xlu0 %1226, %v1109
    %v1228 = vpop.permute.xlu0 %1227
    %1231 = vset.pattern.permute.xlu0 0
    %1232 = vperm.xlu0 %1231, %v1110
    %v1233 = vpop.permute.xlu0 %1232
    %1236 = vset.pattern.permute.xlu0 0
    %1237 = vperm.xlu0 %1236, %v1111
    %v1238 = vpop.permute.xlu0 %1237
    %1241 = vset.pattern.permute.xlu0 0
    %1242 = vperm.xlu0 %1241, %v1112
    %v1243 = vpop.permute.xlu0 %1242
    %1246 = vset.pattern.permute.xlu0 0
    %1247 = vperm.xlu0 %1246, %v1113
    %v1248 = vpop.permute.xlu0 %1247
    %1251 = vset.pattern.permute.xlu0 0
    %1252 = vperm.xlu0 %1251, %v1114
    %v1253 = vpop.permute.xlu0 %1252
    %1256 = vset.pattern.permute.xlu0 0
    %1257 = vperm.xlu0 %1256, %v1115
    %v1258 = vpop.permute.xlu0 %1257
    %1261 = vset.pattern.permute.xlu0 0
    %1262 = vperm.xlu0 %1261, %v1116
    %v1263 = vpop.permute.xlu0 %1262
    %1266 = vset.pattern.permute.xlu0 0
    %1267 = vperm.xlu0 %1266, %v1117
    %v1268 = vpop.permute.xlu0 %1267
    %1271 = vset.pattern.permute.xlu0 0
    %1272 = vperm.xlu0 %1271, %v1118
    %v1273 = vpop.permute.xlu0 %1272
    %1276 = vset.pattern.permute.xlu0 0
    %1277 = vperm.xlu0 %1276, %v1119
    %v1278 = vpop.permute.xlu0 %1277
    %1281 = vset.pattern.permute.xlu0 0
    %1282 = vperm.xlu0 %1281, %v1120
    %v1283 = vpop.permute.xlu0 %1282
    %1286 = vset.pattern.permute.xlu0 0
    %1287 = vperm.xlu0 %1286, %v1121
    %v1288 = vpop.permute.xlu0 %1287
    %1291 = vset.pattern.permute.xlu0 0
    %1292 = vperm.xlu0 %1291, %v1122
    %v1293 = vpop.permute.xlu0 %1292
    %1296 = vset.pattern.permute.xlu0 0
    %1297 = vperm.xlu0 %1296, %v1123
    %v1298 = vpop.permute.xlu0 %1297
    %1301 = vset.pattern.permute.xlu0 0
    %1302 = vperm.xlu0 %1301, %v1124
    %v1303 = vpop.permute.xlu0 %1302
    %1306 = vset.pattern.permute.xlu0 0
    %1307 = vperm.xlu0 %1306, %v1125
    %v1308 = vpop.permute.xlu0 %1307
    %1311 = vset.pattern.permute.xlu0 0
    %1312 = vperm.xlu0 %1311, %v1126
    %v1313 = vpop.permute.xlu0 %1312
    %1316 = vset.pattern.permute.xlu0 0
    %1317 = vperm.xlu0 %1316, %v1127
    %v1318 = vpop.permute.xlu0 %1317
    %1321 = vset.pattern.permute.xlu0 0
    %1322 = vperm.xlu0 %1321, %v1128
    %v1323 = vpop.permute.xlu0 %1322
    %1326 = vset.pattern.permute.xlu0 0
    %1327 = vperm.xlu0 %1326, %v1129
    %v1328 = vpop.permute.xlu0 %1327
    %1331 = vset.pattern.permute.xlu0 0
    %1332 = vperm.xlu0 %1331, %v1130
    %v1333 = vpop.permute.xlu0 %1332
    %1336 = vset.pattern.permute.xlu0 0
    %1337 = vperm.xlu0 %1336, %v1131
    %v1338 = vpop.permute.xlu0 %1337
    %1341 = vset.pattern.permute.xlu0 0
    %1342 = vperm.xlu0 %1341, %v1132
    %v1343 = vpop.permute.xlu0 %1342
    %1346 = vset.pattern.permute.xlu0 0
    %1347 = vperm.xlu0 %1346, %v1133
    %v1348 = vpop.permute.xlu0 %1347
    %1351 = vset.pattern.permute.xlu0 0
    %1352 = vperm.xlu0 %1351, %v1134
    %v1353 = vpop.permute.xlu0 %1352
    %1356 = vset.pattern.permute.xlu0 0
    %1357 = vperm.xlu0 %1356, %v1135
    %v1358 = vpop.permute.xlu0 %1357
    %1361 = vset.pattern.permute.xlu0 0
    %1362 = vperm.xlu0 %1361, %v1136
    %v1363 = vpop.permute.xlu0 %1362
    %1366 = vset.pattern.permute.xlu0 0
    %1367 = vperm.xlu0 %1366, %v1137
    %v1368 = vpop.permute.xlu0 %1367
    %1371 = vset.pattern.permute.xlu0 0
    %1372 = vperm.xlu0 %1371, %v1138
    %v1373 = vpop.permute.xlu0 %1372
    %1376 = vset.pattern.permute.xlu0 0
    %1377 = vperm.xlu0 %1376, %v1139
    %v1378 = vpop.permute.xlu0 %1377
    %1381 = vset.pattern.permute.xlu0 0
    %1382 = vperm.xlu0 %1381, %v1140
    %v1383 = vpop.permute.xlu0 %1382
    %1386 = vset.pattern.permute.xlu0 0
    %1387 = vperm.xlu0 %1386, %v1141
    %v1388 = vpop.permute.xlu0 %1387
    %1391 = vset.pattern.permute.xlu0 0
    %1392 = vperm.xlu0 %1391, %v1142
    %v1393 = vpop.permute.xlu0 %1392
    %1396 = vset.pattern.permute.xlu0 0
    %1397 = vperm.xlu0 %1396, %v1143
    %v1398 = vpop.permute.xlu0 %1397
    %1401 = vset.pattern.permute.xlu0 0
    %1402 = vperm.xlu0 %1401, %v1144
    %v1403 = vpop.permute.xlu0 %1402
    %1406 = vset.pattern.permute.xlu0 0
    %1407 = vperm.xlu0 %1406, %v1145
    %v1408 = vpop.permute.xlu0 %1407
    %1411 = vset.pattern.permute.xlu0 0
    %1412 = vperm.xlu0 %1411, %v1146
    %v1413 = vpop.permute.xlu0 %1412
    %1416 = vset.pattern.permute.xlu0 0
    %1417 = vperm.xlu0 %1416, %v1147
    %v1418 = vpop.permute.xlu0 %1417
    %1421 = vset.pattern.permute.xlu0 0
    %1422 = vperm.xlu0 %1421, %v1148
    %v1423 = vpop.permute.xlu0 %1422
    %1426 = vset.pattern.permute.xlu0 0
    %1427 = vperm.xlu0 %1426, %v1149
    %v1428 = vpop.permute.xlu0 %1427
    %1431 = vset.pattern.permute.xlu0 0
    %1432 = vperm.xlu0 %1431, %v1150
    %v1433 = vpop.permute.xlu0 %1432
    %1436 = vset.pattern.permute.xlu0 0
    %1437 = vperm.xlu0 %1436, %v1151
    %v1438 = vpop.permute.xlu0 %1437
    %1441 = vset.pattern.permute.xlu0 0
    %1442 = vperm.xlu0 %1441, %v1152
    %v1443 = vpop.permute.xlu0 %1442
    %1446 = vset.pattern.permute.xlu0 0
    %1447 = vperm.xlu0 %1446, %v1153
    %v1448 = vpop.permute.xlu0 %1447
    %1451 = vset.pattern.permute.xlu0 0
    %1452 = vperm.xlu0 %1451, %v1154
    %v1453 = vpop.permute.xlu0 %1452
    %1456 = vset.pattern.permute.xlu0 0
    %1457 = vperm.xlu0 %1456, %v1155
    %v1458 = vpop.permute.xlu0 %1457
    %1461 = vset.pattern.permute.xlu0 0
    %1462 = vperm.xlu0 %1461, %v1156
    %v1463 = vpop.permute.xlu0 %1462
    %1466 = vset.pattern.permute.xlu0 0
    %1467 = vperm.xlu0 %1466, %v1157
    %v1468 = vpop.permute.xlu0 %1467
    %1471 = vset.pattern.permute.xlu0 0
    %1472 = vperm.xlu0 %1471, %v1158
    %v1473 = vpop.permute.xlu0 %1472
    %1476 = vset.pattern.permute.xlu0 0
    %1477 = vperm.xlu0 %1476, %v1159
    %v1478 = vpop.permute.xlu0 %1477
    %1481 = vset.pattern.permute.xlu0 0
    %1482 = vperm.xlu0 %1481, %v1160
    %v1483 = vpop.permute.xlu0 %1482
    %1486 = vset.pattern.permute.xlu0 0
    %1487 = vperm.xlu0 %1486, %v1161
    %v1488 = vpop.permute.xlu0 %1487
    %1491 = vset.pattern.permute.xlu0 0
    %1492 = vperm.xlu0 %1491, %v1162
    %v1493 = vpop.permute.xlu0 %1492
    %1496 = vset.pattern.permute.xlu0 0
    %1497 = vperm.xlu0 %1496, %v1163
    %v1498 = vpop.permute.xlu0 %1497
    %1501 = vset.pattern.permute.xlu0 0
    %1502 = vperm.xlu0 %1501, %v1164
    %v1503 = vpop.permute.xlu0 %1502
    %1506 = vset.pattern.permute.xlu0 0
    %1507 = vperm.xlu0 %1506, %v1165
    %v1508 = vpop.permute.xlu0 %1507
    %1511 = vset.pattern.permute.xlu0 0
    %1512 = vperm.xlu0 %1511, %v1166
    %v1513 = vpop.permute.xlu0 %1512
    %1516 = vset.pattern.permute.xlu0 0
    %1517 = vperm.xlu0 %1516, %v1167
    %v1518 = vpop.permute.xlu0 %1517
    %1521 = vset.pattern.permute.xlu0 0
    %1522 = vperm.xlu0 %1521, %v1168
    %v1523 = vpop.permute.xlu0 %1522
    %1526 = vset.pattern.permute.xlu0 0
    %1527 = vperm.xlu0 %1526, %v1169
    %v1528 = vpop.permute.xlu0 %1527
    %1531 = vset.pattern.permute.xlu0 0
    %1532 = vperm.xlu0 %1531, %v1170
    %v1533 = vpop.permute.xlu0 %1532
    %1536 = vset.pattern.permute.xlu0 0
    %1537 = vperm.xlu0 %1536, %v1171
    %v1538 = vpop.permute.xlu0 %1537
    %1541 = vset.pattern.permute.xlu0 0
    %1542 = vperm.xlu0 %1541, %v1172
    %v1543 = vpop.permute.xlu0 %1542
    %1546 = vset.pattern.permute.xlu0 0
    %1547 = vperm.xlu0 %1546, %v1173
    %v1548 = vpop.permute.xlu0 %1547
    %1551 = vset.pattern.permute.xlu0 0
    %1552 = vperm.xlu0 %1551, %v1174
    %v1553 = vpop.permute.xlu0 %1552
    %1556 = vset.pattern.permute.xlu0 0
    %1557 = vperm.xlu0 %1556, %v1175
    %v1558 = vpop.permute.xlu0 %1557
    %1561 = vset.pattern.permute.xlu0 0
    %1562 = vperm.xlu0 %1561, %v1176
    %v1563 = vpop.permute.xlu0 %1562
    %1566 = vset.pattern.permute.xlu0 0
    %1567 = vperm.xlu0 %1566, %v1177
    %v1568 = vpop.permute.xlu0 %1567
    %1571 = vset.pattern.permute.xlu0 0
    %1572 = vperm.xlu0 %1571, %v1178
    %v1573 = vpop.permute.xlu0 %1572
    %1576 = vset.pattern.permute.xlu0 0
    %1577 = vperm.xlu0 %1576, %v1179
    %v1578 = vpop.permute.xlu0 %1577
    %1581 = vset.pattern.permute.xlu0 0
    %1582 = vperm.xlu0 %1581, %v1180
    %v1583 = vpop.permute.xlu0 %1582
    %1586 = vset.pattern.permute.xlu0 0
    %1587 = vperm.xlu0 %1586, %v1181
    %v1588 = vpop.permute.xlu0 %1587
    %1591 = vset.pattern.permute.xlu0 0
    %1592 = vperm.xlu0 %1591, %v1182
    %v1593 = vpop.permute.xlu0 %1592
    %1596 = vset.pattern.permute.xlu0 0
    %1597 = vperm.xlu0 %1596, %v1183
    %v1598 = vpop.permute.xlu0 %1597
    %1601 = vset.pattern.permute.xlu0 0
    %1602 = vperm.xlu0 %1601, %v1184
    %v1603 = vpop.permute.xlu0 %1602
    %1606 = vset.pattern.permute.xlu0 0
    %1607 = vperm.xlu0 %1606, %v1185
    %v1608 = vpop.permute.xlu0 %1607
    %1611 = vset.pattern.permute.xlu0 0
    %1612 = vperm.xlu0 %1611, %v1186
    %v1613 = vpop.permute.xlu0 %1612
    %1616 = vset.pattern.permute.xlu0 0
    %1617 = vperm.xlu0 %1616, %v1187
    %v1618 = vpop.permute.xlu0 %1617
    %1621 = vset.pattern.permute.xlu0 0
    %1622 = vperm.xlu0 %1621, %v1188
    %v1623 = vpop.permute.xlu0 %1622
    %1626 = vset.pattern.permute.xlu0 0
    %1627 = vperm.xlu0 %1626, %v1189
    %v1628 = vpop.permute.xlu0 %1627
    %1631 = vset.pattern.permute.xlu0 0
    %1632 = vperm.xlu0 %1631, %v1190
    %v1633 = vpop.permute.xlu0 %1632
    %1636 = vset.pattern.permute.xlu0 0
    %1637 = vperm.xlu0 %1636, %v1191
    %v1638 = vpop.permute.xlu0 %1637
    %1641 = vset.pattern.permute.xlu0 0
    %1642 = vperm.xlu0 %1641, %v1192
    %v1643 = vpop.permute.xlu0 %1642
    %1646 = vset.pattern.permute.xlu0 0
    %1647 = vperm.xlu0 %1646, %v1193
    %v1648 = vpop.permute.xlu0 %1647
    %1651 = vset.pattern.permute.xlu0 0
    %1652 = vperm.xlu0 %1651, %v1194
    %v1653 = vpop.permute.xlu0 %1652
    %1656 = vset.pattern.permute.xlu0 0
    %1657 = vperm.xlu0 %1656, %v1195
    %v1658 = vpop.permute.xlu0 %1657
    %1661 = vset.pattern.permute.xlu0 0
    %1662 = vperm.xlu0 %1661, %v1196
    %v1663 = vpop.permute.xlu0 %1662
    %1666 = vset.pattern.permute.xlu0 0
    %1667 = vperm.xlu0 %1666, %v1197
    %v1668 = vpop.permute.xlu0 %1667
    %1671 = vset.pattern.permute.xlu0 0
    %1672 = vperm.xlu0 %1671, %v1198
    %v1673 = vpop.permute.xlu0 %1672
    %1676 = vset.pattern.permute.xlu0 0
    %1677 = vperm.xlu0 %1676, %v1199
    %v1678 = vpop.permute.xlu0 %1677
    %1681 = vset.pattern.permute.xlu0 0
    %1682 = vperm.xlu0 %1681, %v1200
    %v1683 = vpop.permute.xlu0 %1682
    %1686 = vset.pattern.permute.xlu0 0
    %1687 = vperm.xlu0 %1686, %v1201
    %v1688 = vpop.permute.xlu0 %1687
    %1691 = vset.pattern.permute.xlu0 0
    %1692 = vperm.xlu0 %1691, %v1202
    %v1693 = vpop.permute.xlu0 %1692
    %1696 = vset.pattern.permute.xlu0 0
    %1697 = vperm.xlu0 %1696, %v1203
    %v1698 = vpop.permute.xlu0 %1697
    %1701 = vset.pattern.permute.xlu0 0
    %1702 = vperm.xlu0 %1701, %v1204
    %v1703 = vpop.permute.xlu0 %1702
    %1706 = vset.pattern.permute.xlu0 0
    %1707 = vperm.xlu0 %1706, %v1205
    %v1708 = vpop.permute.xlu0 %1707
    %1711 = vset.pattern.permute.xlu0 0
    %1712 = vperm.xlu0 %1711, %v1206
    %v1713 = vpop.permute.xlu0 %1712
    %1716 = vset.pattern.permute.xlu0 0
    %1717 = vperm.xlu0 %1716, %v1207
    %v1718 = vpop.permute.xlu0 %1717
    %1721 = vset.pattern.permute.xlu0 0
    %1722 = vperm.xlu0 %1721, %v1208
    %v1723 = vpop.permute.xlu0 %1722
    %1726 = vset.pattern.permute.xlu0 0
    %1727 = vperm.xlu0 %1726, %v1209
    %v1728 = vpop.permute.xlu0 %1727
    %1731 = vset.pattern.permute.xlu0 0
    %1732 = vperm.xlu0 %1731, %v1210
    %v1733 = vpop.permute.xlu0 %1732
    %1736 = vset.pattern.permute.xlu0 0
    %1737 = vperm.xlu0 %1736, %v1211
    %v1738 = vpop.permute.xlu0 %1737
    %1741 = vset.pattern.permute.xlu0 0
    %1742 = vperm.xlu0 %1741, %v1212
    %v1743 = vpop.permute.xlu0 %1742
    %1746 = vset.pattern.permute.xlu0 0
    %1747 = vperm.xlu0 %1746, %v1213
    %v1748 = vpop.permute.xlu0 %1747
    %1751 = vset.pattern.permute.xlu0 0
    %1752 = vperm.xlu0 %1751, %v1214
    %v1753 = vpop.permute.xlu0 %1752
    %v1755 = vmul.f32 %v999, %v1218
    %v1756 = vmul.f32 %v1000, %v1223
    %v1757 = vmul.f32 %v1001, %v1228
    %v1758 = vmul.f32 %v1002, %v1233
    %v1759 = vmul.f32 %v1003, %v1238
    %v1760 = vmul.f32 %v1004, %v1243
    %v1761 = vmul.f32 %v1005, %v1248
    %v1762 = vmul.f32 %v1006, %v1253
    %v1763 = vmul.f32 %v1007, %v1258
    %v1764 = vmul.f32 %v1008, %v1263
    %v1765 = vmul.f32 %v1009, %v1268
    %v1766 = vmul.f32 %v1010, %v1273
    %v1767 = vmul.f32 %v1011, %v1278
    %v1768 = vmul.f32 %v1012, %v1283
    %v1769 = vmul.f32 %v1013, %v1288
    %v1770 = vmul.f32 %v1014, %v1293
    %v1771 = vmul.f32 %v1015, %v1298
    %v1772 = vmul.f32 %v1016, %v1303
    %v1773 = vmul.f32 %v1017, %v1308
    %v1774 = vmul.f32 %v1018, %v1313
    %v1775 = vmul.f32 %v1019, %v1318
    %v1776 = vmul.f32 %v1020, %v1323
    %v1777 = vmul.f32 %v1021, %v1328
    %v1778 = vmul.f32 %v1022, %v1333
    %v1779 = vmul.f32 %v1023, %v1338
    %v1780 = vmul.f32 %v1024, %v1343
    %v1781 = vmul.f32 %v1025, %v1348
    %v1782 = vmul.f32 %v1026, %v1353
    %v1783 = vmul.f32 %v1027, %v1358
    %v1784 = vmul.f32 %v1028, %v1363
    %v1785 = vmul.f32 %v1029, %v1368
    %v1786 = vmul.f32 %v1030, %v1373
    %v1787 = vmul.f32 %v1031, %v1378
    %v1788 = vmul.f32 %v1032, %v1383
    %v1789 = vmul.f32 %v1033, %v1388
    %v1790 = vmul.f32 %v1034, %v1393
    %v1791 = vmul.f32 %v1035, %v1398
    %v1792 = vmul.f32 %v1036, %v1403
    %v1793 = vmul.f32 %v1037, %v1408
    %v1794 = vmul.f32 %v1038, %v1413
    %v1795 = vmul.f32 %v1039, %v1418
    %v1796 = vmul.f32 %v1040, %v1423
    %v1797 = vmul.f32 %v1041, %v1428
    %v1798 = vmul.f32 %v1042, %v1433
    %v1799 = vmul.f32 %v1043, %v1438
    %v1800 = vmul.f32 %v1044, %v1443
    %v1801 = vmul.f32 %v1045, %v1448
    %v1802 = vmul.f32 %v1046, %v1453
    %v1803 = vmul.f32 %v1047, %v1458
    %v1804 = vmul.f32 %v1048, %v1463
    %v1805 = vmul.f32 %v1049, %v1468
    %v1806 = vmul.f32 %v1050, %v1473
    %v1807 = vmul.f32 %v1051, %v1478
    %v1808 = vmul.f32 %v1052, %v1483
    %v1809 = vmul.f32 %v1053, %v1488
    %v1810 = vmul.f32 %v1054, %v1493
    %v1811 = vmul.f32 %v1055, %v1498
    %v1812 = vmul.f32 %v1056, %v1503
    %v1813 = vmul.f32 %v1057, %v1508
    %v1814 = vmul.f32 %v1058, %v1513
    %v1815 = vmul.f32 %v1059, %v1518
    %v1816 = vmul.f32 %v1060, %v1523
    %v1817 = vmul.f32 %v1061, %v1528
    %v1818 = vmul.f32 %v1062, %v1533
    %v1819 = vmul.f32 %v1063, %v1538
    %v1820 = vmul.f32 %v1064, %v1543
    %v1821 = vmul.f32 %v1065, %v1548
    %v1822 = vmul.f32 %v1066, %v1553
    %v1823 = vmul.f32 %v1067, %v1558
    %v1824 = vmul.f32 %v1068, %v1563
    %v1825 = vmul.f32 %v1069, %v1568
    %v1826 = vmul.f32 %v1070, %v1573
    %v1827 = vmul.f32 %v1071, %v1578
    %v1828 = vmul.f32 %v1072, %v1583
    %v1829 = vmul.f32 %v1073, %v1588
    %v1830 = vmul.f32 %v1074, %v1593
    %v1831 = vmul.f32 %v1075, %v1598
    %v1832 = vmul.f32 %v1076, %v1603
    %v1833 = vmul.f32 %v1077, %v1608
    %v1834 = vmul.f32 %v1078, %v1613
    %v1835 = vmul.f32 %v1079, %v1618
    %v1836 = vmul.f32 %v1080, %v1623
    %v1837 = vmul.f32 %v1081, %v1628
    %v1838 = vmul.f32 %v1082, %v1633
    %v1839 = vmul.f32 %v1083, %v1638
    %v1840 = vmul.f32 %v1084, %v1643
    %v1841 = vmul.f32 %v1085, %v1648
    %v1842 = vmul.f32 %v1086, %v1653
    %v1843 = vmul.f32 %v1087, %v1658
    %v1844 = vmul.f32 %v1088, %v1663
    %v1845 = vmul.f32 %v1089, %v1668
    %v1846 = vmul.f32 %v1090, %v1673
    %v1847 = vmul.f32 %v1091, %v1678
    %v1848 = vmul.f32 %v1092, %v1683
    %v1849 = vmul.f32 %v1093, %v1688
    %v1850 = vmul.f32 %v1094, %v1693
    %v1851 = vmul.f32 %v1095, %v1698
    %v1852 = vmul.f32 %v1096, %v1703
    %v1853 = vmul.f32 %v1097, %v1708
    %v1854 = vmul.f32 %v1098, %v1713
    %v1855 = vmul.f32 %v1099, %v1718
    %v1856 = vmul.f32 %v1100, %v1723
    %v1857 = vmul.f32 %v1101, %v1728
    %v1858 = vmul.f32 %v1102, %v1733
    %v1859 = vmul.f32 %v1103, %v1738
    %v1860 = vmul.f32 %v1104, %v1743
    %v1861 = vmul.f32 %v1105, %v1748
    %v1862 = vmul.f32 %v1106, %v1753
    %vm1863 = vcmask 261120
    %1864 = vst.msk [vmem:[#allocation2 + $0x20] sm:$0xff] %vm1863, %v1755
    %1865 = vst.msk [vmem:[#allocation2 + $0x28] sm:$0xff] %vm1863, %v1756
    %1866 = vst.msk [vmem:[#allocation2 + $0x30] sm:$0xff] %vm1863, %v1757
    %1867 = vst.msk [vmem:[#allocation2 + $0x38] sm:$0xff] %vm1863, %v1758
    %1868 = vst.msk [vmem:[#allocation2 + $0x40] sm:$0xff] %vm1863, %v1759
    %1869 = vst.msk [vmem:[#allocation2 + $0x48] sm:$0xff] %vm1863, %v1760
    %1870 = vst.msk [vmem:[#allocation2 + $0x50] sm:$0xff] %vm1863, %v1761
    %1871 = vst.msk [vmem:[#allocation2 + $0x58] sm:$0xff] %vm1863, %v1762
    %1872 = vst.msk [vmem:[#allocation2 + $0x60] sm:$0xff] %vm1863, %v1763
    %1873 = vst.msk [vmem:[#allocation2 + $0x68] sm:$0xff] %vm1863, %v1764
    %1874 = vst.msk [vmem:[#allocation2 + $0x70] sm:$0xff] %vm1863, %v1765
    %1875 = vst.msk [vmem:[#allocation2 + $0x78] sm:$0xff] %vm1863, %v1766
    %1876 = vst.msk [vmem:[#allocation2 + $0x80] sm:$0xff] %vm1863, %v1767
    %1877 = vst.msk [vmem:[#allocation2 + $0x88] sm:$0xff] %vm1863, %v1768
    %1878 = vst.msk [vmem:[#allocation2 + $0x90] sm:$0xff] %vm1863, %v1769
    %1879 = vst.msk [vmem:[#allocation2 + $0x98] sm:$0xff] %vm1863, %v1770
    %1880 = vst.msk [vmem:[#allocation2 + $0xa0] sm:$0xff] %vm1863, %v1771
    %1881 = vst.msk [vmem:[#allocation2 + $0xa8] sm:$0xff] %vm1863, %v1772
    %1882 = vst.msk [vmem:[#allocation2 + $0xb0] sm:$0xff] %vm1863, %v1773
    %1883 = vst.msk [vmem:[#allocation2 + $0xb8] sm:$0xff] %vm1863, %v1774
    %1884 = vst.msk [vmem:[#allocation2 + $0xc0] sm:$0xff] %vm1863, %v1775
    %1885 = vst.msk [vmem:[#allocation2 + $0xc8] sm:$0xff] %vm1863, %v1776
    %1886 = vst.msk [vmem:[#allocation2 + $0xd0] sm:$0xff] %vm1863, %v1777
    %1887 = vst.msk [vmem:[#allocation2 + $0xd8] sm:$0xff] %vm1863, %v1778
    %1888 = vst.msk [vmem:[#allocation2 + $0xe0] sm:$0xff] %vm1863, %v1779
    %1889 = vst.msk [vmem:[#allocation2 + $0xe8] sm:$0xff] %vm1863, %v1780
    %1890 = vst.msk [vmem:[#allocation2 + $0xf0] sm:$0xff] %vm1863, %v1781
    %1891 = vst.msk [vmem:[#allocation2 + $0xf8] sm:$0xff] %vm1863, %v1782
    %1892 = vst.msk [vmem:[#allocation2 + $0x100] sm:$0xff] %vm1863, %v1783
    %1893 = vst.msk [vmem:[#allocation2 + $0x108] sm:$0xff] %vm1863, %v1784
    %1894 = vst.msk [vmem:[#allocation2 + $0x110] sm:$0xff] %vm1863, %v1785
    %1895 = vst.msk [vmem:[#allocation2 + $0x118] sm:$0xff] %vm1863, %v1786
    %1896 = vst.msk [vmem:[#allocation2 + $0x120] sm:$0xff] %vm1863, %v1787
    %1897 = vst.msk [vmem:[#allocation2 + $0x128] sm:$0xff] %vm1863, %v1788
    %1898 = vst.msk [vmem:[#allocation2 + $0x130] sm:$0xff] %vm1863, %v1789
    %1899 = vst.msk [vmem:[#allocation2 + $0x138] sm:$0xff] %vm1863, %v1790
    %1900 = vst.msk [vmem:[#allocation2 + $0x140] sm:$0xff] %vm1863, %v1791
    %1901 = vst.msk [vmem:[#allocation2 + $0x148] sm:$0xff] %vm1863, %v1792
    %1902 = vst.msk [vmem:[#allocation2 + $0x150] sm:$0xff] %vm1863, %v1793
    %1903 = vst.msk [vmem:[#allocation2 + $0x158] sm:$0xff] %vm1863, %v1794
    %1904 = vst.msk [vmem:[#allocation2 + $0x160] sm:$0xff] %vm1863, %v1795
    %1905 = vst.msk [vmem:[#allocation2 + $0x168] sm:$0xff] %vm1863, %v1796
    %1906 = vst.msk [vmem:[#allocation2 + $0x170] sm:$0xff] %vm1863, %v1797
    %1907 = vst.msk [vmem:[#allocation2 + $0x178] sm:$0xff] %vm1863, %v1798
    %1908 = vst.msk [vmem:[#allocation2 + $0x180] sm:$0xff] %vm1863, %v1799
    %1909 = vst.msk [vmem:[#allocation2 + $0x188] sm:$0xff] %vm1863, %v1800
    %1910 = vst.msk [vmem:[#allocation2 + $0x190] sm:$0xff] %vm1863, %v1801
    %1911 = vst.msk [vmem:[#allocation2 + $0x198] sm:$0xff] %vm1863, %v1802
    %1912 = vst.msk [vmem:[#allocation2 + $0x1a0] sm:$0xff] %vm1863, %v1803
    %1913 = vst.msk [vmem:[#allocation2 + $0x1a8] sm:$0xff] %vm1863, %v1804
    %1914 = vst.msk [vmem:[#allocation2 + $0x1b0] sm:$0xff] %vm1863, %v1805
    %1915 = vst.msk [vmem:[#allocation2 + $0x1b8] sm:$0xff] %vm1863, %v1806
    %1916 = vst.msk [vmem:[#allocation2 + $0x1c0] sm:$0xff] %vm1863, %v1807
    %1917 = vst.msk [vmem:[#allocation2 + $0x1c8] sm:$0xff] %vm1863, %v1808
    %1918 = vst.msk [vmem:[#allocation2 + $0x1d0] sm:$0xff] %vm1863, %v1809
    %1919 = vst.msk [vmem:[#allocation2 + $0x1d8] sm:$0xff] %vm1863, %v1810
    %1920 = vst.msk [vmem:[#allocation2 + $0x1e0] sm:$0xff] %vm1863, %v1811
    %1921 = vst.msk [vmem:[#allocation2 + $0x1e8] sm:$0xff] %vm1863, %v1812
    %1922 = vst.msk [vmem:[#allocation2 + $0x1f0] sm:$0xff] %vm1863, %v1813
    %1923 = vst.msk [vmem:[#allocation2 + $0x1f8] sm:$0xff] %vm1863, %v1814
    %1924 = vst.msk [vmem:[#allocation2 + $0x200] sm:$0xff] %vm1863, %v1815
    %1925 = vst.msk [vmem:[#allocation2 + $0x208] sm:$0xff] %vm1863, %v1816
    %1926 = vst.msk [vmem:[#allocation2 + $0x210] sm:$0xff] %vm1863, %v1817
    %1927 = vst.msk [vmem:[#allocation2 + $0x218] sm:$0xff] %vm1863, %v1818
    %1928 = vst.msk [vmem:[#allocation2 + $0x220] sm:$0xff] %vm1863, %v1819
    %1929 = vst.msk [vmem:[#allocation2 + $0x228] sm:$0xff] %vm1863, %v1820
    %1930 = vst.msk [vmem:[#allocation2 + $0x230] sm:$0xff] %vm1863, %v1821
    %1931 = vst.msk [vmem:[#allocation2 + $0x238] sm:$0xff] %vm1863, %v1822
    %1932 = vst.msk [vmem:[#allocation2 + $0x240] sm:$0xff] %vm1863, %v1823
    %1933 = vst.msk [vmem:[#allocation2 + $0x248] sm:$0xff] %vm1863, %v1824
    %1934 = vst.msk [vmem:[#allocation2 + $0x250] sm:$0xff] %vm1863, %v1825
    %1935 = vst.msk [vmem:[#allocation2 + $0x258] sm:$0xff] %vm1863, %v1826
    %1936 = vst.msk [vmem:[#allocation2 + $0x260] sm:$0xff] %vm1863, %v1827
    %1937 = vst.msk [vmem:[#allocation2 + $0x268] sm:$0xff] %vm1863, %v1828
    %1938 = vst.msk [vmem:[#allocation2 + $0x270] sm:$0xff] %vm1863, %v1829
    %1939 = vst.msk [vmem:[#allocation2 + $0x278] sm:$0xff] %vm1863, %v1830
    %1940 = vst.msk [vmem:[#allocation2 + $0x280] sm:$0xff] %vm1863, %v1831
    %1941 = vst.msk [vmem:[#allocation2 + $0x288] sm:$0xff] %vm1863, %v1832
    %1942 = vst.msk [vmem:[#allocation2 + $0x290] sm:$0xff] %vm1863, %v1833
    %1943 = vst.msk [vmem:[#allocation2 + $0x298] sm:$0xff] %vm1863, %v1834
    %1944 = vst.msk [vmem:[#allocation2 + $0x2a0] sm:$0xff] %vm1863, %v1835
    %1945 = vst.msk [vmem:[#allocation2 + $0x2a8] sm:$0xff] %vm1863, %v1836
    %1946 = vst.msk [vmem:[#allocation2 + $0x2b0] sm:$0xff] %vm1863, %v1837
    %1947 = vst.msk [vmem:[#allocation2 + $0x2b8] sm:$0xff] %vm1863, %v1838
    %1948 = vst.msk [vmem:[#allocation2 + $0x2c0] sm:$0xff] %vm1863, %v1839
    %1949 = vst.msk [vmem:[#allocation2 + $0x2c8] sm:$0xff] %vm1863, %v1840
    %1950 = vst.msk [vmem:[#allocation2 + $0x2d0] sm:$0xff] %vm1863, %v1841
    %1951 = vst.msk [vmem:[#allocation2 + $0x2d8] sm:$0xff] %vm1863, %v1842
    %1952 = vst.msk [vmem:[#allocation2 + $0x2e0] sm:$0xff] %vm1863, %v1843
    %1953 = vst.msk [vmem:[#allocation2 + $0x2e8] sm:$0xff] %vm1863, %v1844
    %1954 = vst.msk [vmem:[#allocation2 + $0x2f0] sm:$0xff] %vm1863, %v1845
    %1955 = vst.msk [vmem:[#allocation2 + $0x2f8] sm:$0xff] %vm1863, %v1846
    %1956 = vst.msk [vmem:[#allocation2 + $0x300] sm:$0xff] %vm1863, %v1847
    %1957 = vst.msk [vmem:[#allocation2 + $0x308] sm:$0xff] %vm1863, %v1848
    %1958 = vst.msk [vmem:[#allocation2 + $0x310] sm:$0xff] %vm1863, %v1849
    %1959 = vst.msk [vmem:[#allocation2 + $0x318] sm:$0xff] %vm1863, %v1850
    %1960 = vst.msk [vmem:[#allocation2 + $0x320] sm:$0xff] %vm1863, %v1851
    %1961 = vst.msk [vmem:[#allocation2 + $0x328] sm:$0xff] %vm1863, %v1852
    %1962 = vst.msk [vmem:[#allocation2 + $0x330] sm:$0xff] %vm1863, %v1853
    %1963 = vst.msk [vmem:[#allocation2 + $0x338] sm:$0xff] %vm1863, %v1854
    %1964 = vst.msk [vmem:[#allocation2 + $0x340] sm:$0xff] %vm1863, %v1855
    %1965 = vst.msk [vmem:[#allocation2 + $0x348] sm:$0xff] %vm1863, %v1856
    %1966 = vst.msk [vmem:[#allocation2 + $0x350] sm:$0xff] %vm1863, %v1857
    %1967 = vst.msk [vmem:[#allocation2 + $0x358] sm:$0xff] %vm1863, %v1858
    %1968 = vst.msk [vmem:[#allocation2 + $0x360] sm:$0xff] %vm1863, %v1859
    %1969 = vst.msk [vmem:[#allocation2 + $0x368] sm:$0xff] %vm1863, %v1860
    %1970 = vst.msk [vmem:[#allocation2 + $0x370] sm:$0xff] %vm1863, %v1861
    %1971 = vst.msk [vmem:[#allocation2 + $0x378] sm:$0xff] %vm1863, %v1862
    %v1972 = vld [vmem:[#allocation2 + $0x7] sm:$0xff]
    %v1973 = vld [vmem:[#allocation2 + $0xf] sm:$0xff]
    %v1974 = vld [vmem:[#allocation2 + $0x17] sm:$0xff]
    %v1975 = vld [vmem:[#allocation2 + $0x1f] sm:$0xff]
    %v1976 = vld [vmem:[#allocation2 + $0x27] sm:$0xff]
    %v1977 = vld [vmem:[#allocation2 + $0x2f] sm:$0xff]
    %v1978 = vld [vmem:[#allocation2 + $0x37] sm:$0xff]
    %v1979 = vld [vmem:[#allocation2 + $0x3f] sm:$0xff]
    %v1980 = vld [vmem:[#allocation2 + $0x47] sm:$0xff]
    %v1981 = vld [vmem:[#allocation2 + $0x4f] sm:$0xff]
    %v1982 = vld [vmem:[#allocation2 + $0x57] sm:$0xff]
    %v1983 = vld [vmem:[#allocation2 + $0x5f] sm:$0xff]
    %v1984 = vld [vmem:[#allocation2 + $0x67] sm:$0xff]
    %v1985 = vld [vmem:[#allocation2 + $0x6f] sm:$0xff]
    %v1986 = vld [vmem:[#allocation2 + $0x77] sm:$0xff]
    %v1987 = vld [vmem:[#allocation2 + $0x7f] sm:$0xff]
    %v1988 = vld [vmem:[#allocation2 + $0x87] sm:$0xff]
    %v1989 = vld [vmem:[#allocation2 + $0x8f] sm:$0xff]
    %v1990 = vld [vmem:[#allocation2 + $0x97] sm:$0xff]
    %v1991 = vld [vmem:[#allocation2 + $0x9f] sm:$0xff]
    %v1992 = vld [vmem:[#allocation2 + $0xa7] sm:$0xff]
    %v1993 = vld [vmem:[#allocation2 + $0xaf] sm:$0xff]
    %v1994 = vld [vmem:[#allocation2 + $0xb7] sm:$0xff]
    %v1995 = vld [vmem:[#allocation2 + $0xbf] sm:$0xff]
    %v1996 = vld [vmem:[#allocation2 + $0xc7] sm:$0xff]
    %v1997 = vld [vmem:[#allocation2 + $0xcf] sm:$0xff]
    %v1998 = vld [vmem:[#allocation2 + $0xd7] sm:$0xff]
    %v1999 = vld [vmem:[#allocation2 + $0xdf] sm:$0xff]
    %v2000 = vld [vmem:[#allocation2 + $0xe7] sm:$0xff]
    %v2001 = vld [vmem:[#allocation2 + $0xef] sm:$0xff]
    %v2002 = vld [vmem:[#allocation2 + $0xf7] sm:$0xff]
    %v2003 = vld [vmem:[#allocation2 + $0xff] sm:$0xff]
    %v2004 = vld [vmem:[#allocation2 + $0x107] sm:$0xff]
    %v2005 = vld [vmem:[#allocation2 + $0x10f] sm:$0xff]
    %v2006 = vld [vmem:[#allocation2 + $0x117] sm:$0xff]
    %v2007 = vld [vmem:[#allocation2 + $0x11f] sm:$0xff]
    %v2008 = vld [vmem:[#allocation2 + $0x127] sm:$0xff]
    %v2009 = vld [vmem:[#allocation2 + $0x12f] sm:$0xff]
    %v2010 = vld [vmem:[#allocation2 + $0x137] sm:$0xff]
    %v2011 = vld [vmem:[#allocation2 + $0x13f] sm:$0xff]
    %v2012 = vld [vmem:[#allocation2 + $0x147] sm:$0xff]
    %v2013 = vld [vmem:[#allocation2 + $0x14f] sm:$0xff]
    %v2014 = vld [vmem:[#allocation2 + $0x157] sm:$0xff]
    %v2015 = vld [vmem:[#allocation2 + $0x15f] sm:$0xff]
    %v2016 = vld [vmem:[#allocation2 + $0x167] sm:$0xff]
    %v2017 = vld [vmem:[#allocation2 + $0x16f] sm:$0xff]
    %v2018 = vld [vmem:[#allocation2 + $0x177] sm:$0xff]
    %v2019 = vld [vmem:[#allocation2 + $0x17f] sm:$0xff]
    %v2020 = vld [vmem:[#allocation2 + $0x187] sm:$0xff]
    %v2021 = vld [vmem:[#allocation2 + $0x18f] sm:$0xff]
    %v2022 = vld [vmem:[#allocation2 + $0x197] sm:$0xff]
    %v2023 = vld [vmem:[#allocation2 + $0x19f] sm:$0xff]
    %v2024 = vld [vmem:[#allocation2 + $0x1a7] sm:$0xff]
    %v2025 = vld [vmem:[#allocation2 + $0x1af] sm:$0xff]
    %v2026 = vld [vmem:[#allocation2 + $0x1b7] sm:$0xff]
    %v2027 = vld [vmem:[#allocation2 + $0x1bf] sm:$0xff]
    %v2028 = vld [vmem:[#allocation2 + $0x1c7] sm:$0xff]
    %v2029 = vld [vmem:[#allocation2 + $0x1cf] sm:$0xff]
    %v2030 = vld [vmem:[#allocation2 + $0x1d7] sm:$0xff]
    %v2031 = vld [vmem:[#allocation2 + $0x1df] sm:$0xff]
    %v2032 = vld [vmem:[#allocation2 + $0x1e7] sm:$0xff]
    %v2033 = vld [vmem:[#allocation2 + $0x1ef] sm:$0xff]
    %v2034 = vld [vmem:[#allocation2 + $0x1f7] sm:$0xff]
    %v2035 = vld [vmem:[#allocation2 + $0x1ff] sm:$0xff]
    %v2036 = vld [vmem:[#allocation2 + $0x207] sm:$0xff]
    %v2037 = vld [vmem:[#allocation2 + $0x20f] sm:$0xff]
    %v2038 = vld [vmem:[#allocation2 + $0x217] sm:$0xff]
    %v2039 = vld [vmem:[#allocation2 + $0x21f] sm:$0xff]
    %v2040 = vld [vmem:[#allocation2 + $0x227] sm:$0xff]
    %v2041 = vld [vmem:[#allocation2 + $0x22f] sm:$0xff]
    %v2042 = vld [vmem:[#allocation2 + $0x237] sm:$0xff]
    %v2043 = vld [vmem:[#allocation2 + $0x23f] sm:$0xff]
    %v2044 = vld [vmem:[#allocation2 + $0x247] sm:$0xff]
    %v2045 = vld [vmem:[#allocation2 + $0x24f] sm:$0xff]
    %v2046 = vld [vmem:[#allocation2 + $0x257] sm:$0xff]
    %v2047 = vld [vmem:[#allocation2 + $0x25f] sm:$0xff]
    %v2048 = vld [vmem:[#allocation2 + $0x267] sm:$0xff]
    %v2049 = vld [vmem:[#allocation2 + $0x26f] sm:$0xff]
    %v2050 = vld [vmem:[#allocation2 + $0x277] sm:$0xff]
    %v2051 = vld [vmem:[#allocation2 + $0x27f] sm:$0xff]
    %v2052 = vld [vmem:[#allocation2 + $0x287] sm:$0xff]
    %v2053 = vld [vmem:[#allocation2 + $0x28f] sm:$0xff]
    %v2054 = vld [vmem:[#allocation2 + $0x297] sm:$0xff]
    %v2055 = vld [vmem:[#allocation2 + $0x29f] sm:$0xff]
    %v2056 = vld [vmem:[#allocation2 + $0x2a7] sm:$0xff]
    %v2057 = vld [vmem:[#allocation2 + $0x2af] sm:$0xff]
    %v2058 = vld [vmem:[#allocation2 + $0x2b7] sm:$0xff]
    %v2059 = vld [vmem:[#allocation2 + $0x2bf] sm:$0xff]
    %v2060 = vld [vmem:[#allocation2 + $0x2c7] sm:$0xff]
    %v2061 = vld [vmem:[#allocation2 + $0x2cf] sm:$0xff]
    %v2062 = vld [vmem:[#allocation2 + $0x2d7] sm:$0xff]
    %v2063 = vld [vmem:[#allocation2 + $0x2df] sm:$0xff]
    %v2064 = vld [vmem:[#allocation2 + $0x2e7] sm:$0xff]
    %v2065 = vld [vmem:[#allocation2 + $0x2ef] sm:$0xff]
    %v2066 = vld [vmem:[#allocation2 + $0x2f7] sm:$0xff]
    %v2067 = vld [vmem:[#allocation2 + $0x2ff] sm:$0xff]
    %v2068 = vld [vmem:[#allocation2 + $0x307] sm:$0xff]
    %v2069 = vld [vmem:[#allocation2 + $0x30f] sm:$0xff]
    %v2070 = vld [vmem:[#allocation2 + $0x317] sm:$0xff]
    %v2071 = vld [vmem:[#allocation2 + $0x31f] sm:$0xff]
    %v2072 = vld [vmem:[#allocation2 + $0x327] sm:$0xff]
    %v2073 = vld [vmem:[#allocation2 + $0x32f] sm:$0xff]
    %v2074 = vld [vmem:[#allocation2 + $0x337] sm:$0xff]
    %v2075 = vld [vmem:[#allocation2 + $0x33f] sm:$0xff]
    %v2076 = vld [vmem:[#allocation2 + $0x347] sm:$0xff]
    %v2077 = vld [vmem:[#allocation2 + $0x34f] sm:$0xff]
    %v2078 = vld [vmem:[#allocation2 + $0x357] sm:$0xff]
    %v2079 = vld [vmem:[#allocation2 + $0x35f] sm:$0xff]
    %v2080 = vpack.c.bf16 %v1973, %v1972
    %v2081 = vpack.c.bf16 %v1975, %v1974
    %v2082 = vpack.c.bf16 %v1977, %v1976
    %v2083 = vpack.c.bf16 %v1979, %v1978
    %v2084 = vpack.c.bf16 %v1981, %v1980
    %v2085 = vpack.c.bf16 %v1983, %v1982
    %v2086 = vpack.c.bf16 %v1985, %v1984
    %v2087 = vpack.c.bf16 %v1987, %v1986
    %v2088 = vpack.c.bf16 %v1989, %v1988
    %v2089 = vpack.c.bf16 %v1991, %v1990
    %v2090 = vpack.c.bf16 %v1993, %v1992
    %v2091 = vpack.c.bf16 %v1995, %v1994
    %v2092 = vpack.c.bf16 %v1997, %v1996
    %v2093 = vpack.c.bf16 %v1999, %v1998
    %v2094 = vpack.c.bf16 %v2001, %v2000
    %v2095 = vpack.c.bf16 %v2003, %v2002
    %v2096 = vpack.c.bf16 %v2005, %v2004
    %v2097 = vpack.c.bf16 %v2007, %v2006
    %v2098 = vpack.c.bf16 %v2009, %v2008
    %v2099 = vpack.c.bf16 %v2011, %v2010
    %v2100 = vpack.c.bf16 %v2013, %v2012
    %v2101 = vpack.c.bf16 %v2015, %v2014
    %v2102 = vpack.c.bf16 %v2017, %v2016
    %v2103 = vpack.c.bf16 %v2019, %v2018
    %v2104 = vpack.c.bf16 %v2021, %v2020
    %v2105 = vpack.c.bf16 %v2023, %v2022
    %v2106 = vpack.c.bf16 %v2025, %v2024
    %v2107 = vpack.c.bf16 %v2027, %v2026
    %v2108 = vpack.c.bf16 %v2029, %v2028
    %v2109 = vpack.c.bf16 %v2031, %v2030
    %v2110 = vpack.c.bf16 %v2033, %v2032
    %v2111 = vpack.c.bf16 %v2035, %v2034
    %v2112 = vpack.c.bf16 %v2037, %v2036
    %v2113 = vpack.c.bf16 %v2039, %v2038
    %v2114 = vpack.c.bf16 %v2041, %v2040
    %v2115 = vpack.c.bf16 %v2043, %v2042
    %v2116 = vpack.c.bf16 %v2045, %v2044
    %v2117 = vpack.c.bf16 %v2047, %v2046
    %v2118 = vpack.c.bf16 %v2049, %v2048
    %v2119 = vpack.c.bf16 %v2051, %v2050
    %v2120 = vpack.c.bf16 %v2053, %v2052
    %v2121 = vpack.c.bf16 %v2055, %v2054
    %v2122 = vpack.c.bf16 %v2057, %v2056
    %v2123 = vpack.c.bf16 %v2059, %v2058
    %v2124 = vpack.c.bf16 %v2061, %v2060
    %v2125 = vpack.c.bf16 %v2063, %v2062
    %v2126 = vpack.c.bf16 %v2065, %v2064
    %v2127 = vpack.c.bf16 %v2067, %v2066
    %v2128 = vpack.c.bf16 %v2069, %v2068
    %v2129 = vpack.c.bf16 %v2071, %v2070
    %v2130 = vpack.c.bf16 %v2073, %v2072
    %v2131 = vpack.c.bf16 %v2075, %v2074
    %v2132 = vpack.c.bf16 %v2077, %v2076
    %v2133 = vpack.c.bf16 %v2079, %v2078
    %v2134 = vld [vmem:[%s4] sm:$0xf]
    %v2135 = vld [vmem:[%s4 + $0x4] sm:$0xf]
    %v2136 = vld [vmem:[%s4 + $0x8] sm:$0xf]
    %v2137 = vld [vmem:[%s4 + $0xc] sm:$0xf]
    %v2138 = vld [vmem:[#allocation2 + $0x8] sm:$0xff]
    %v2139 = vld [vmem:[#allocation2 + $0x10] sm:$0xff]
    %v2140 = vld [vmem:[#allocation2 + $0x18] sm:$0xff]
    %v2141 = vld [vmem:[#allocation2 + $0x20] sm:$0xff]
    %v2142 = vld [vmem:[#allocation2 + $0x28] sm:$0xff]
    %v2143 = vld [vmem:[#allocation2 + $0x30] sm:$0xff]
    %v2144 = vld [vmem:[#allocation2 + $0x38] sm:$0xff]
    %v2145 = vld [vmem:[#allocation2 + $0x40] sm:$0xff]
    %v2146 = vld [vmem:[#allocation2 + $0x48] sm:$0xff]
    %v2147 = vld [vmem:[#allocation2 + $0x50] sm:$0xff]
    %v2148 = vld [vmem:[#allocation2 + $0x58] sm:$0xff]
    %v2149 = vld [vmem:[#allocation2 + $0x60] sm:$0xff]
    %v2150 = vld [vmem:[#allocation2 + $0x68] sm:$0xff]
    %v2151 = vld [vmem:[#allocation2 + $0x70] sm:$0xff]
    %v2152 = vld [vmem:[#allocation2 + $0x78] sm:$0xff]
    %v2153 = vld [vmem:[#allocation2 + $0x80] sm:$0xff]
    %v2154 = vld [vmem:[#allocation2 + $0x88] sm:$0xff]
    %v2155 = vld [vmem:[#allocation2 + $0x90] sm:$0xff]
    %v2156 = vld [vmem:[#allocation2 + $0x98] sm:$0xff]
    %v2157 = vld [vmem:[#allocation2 + $0xa0] sm:$0xff]
    %v2158 = vld [vmem:[#allocation2 + $0xa8] sm:$0xff]
    %v2159 = vld [vmem:[#allocation2 + $0xb0] sm:$0xff]
    %v2160 = vld [vmem:[#allocation2 + $0xb8] sm:$0xff]
    %v2161 = vld [vmem:[#allocation2 + $0xc0] sm:$0xff]
    %v2162 = vld [vmem:[#allocation2 + $0xc8] sm:$0xff]
    %v2163 = vld [vmem:[#allocation2 + $0xd0] sm:$0xff]
    %v2164 = vld [vmem:[#allocation2 + $0xd8] sm:$0xff]
    %v2165 = vld [vmem:[#allocation2 + $0xe0] sm:$0xff]
    %v2166 = vld [vmem:[#allocation2 + $0xe8] sm:$0xff]
    %v2167 = vld [vmem:[#allocation2 + $0xf0] sm:$0xff]
    %v2168 = vld [vmem:[#allocation2 + $0xf8] sm:$0xff]
    %v2169 = vld [vmem:[#allocation2 + $0x100] sm:$0xff]
    %v2170 = vld [vmem:[#allocation2 + $0x108] sm:$0xff]
    %v2171 = vld [vmem:[#allocation2 + $0x110] sm:$0xff]
    %v2172 = vld [vmem:[#allocation2 + $0x118] sm:$0xff]
    %v2173 = vld [vmem:[#allocation2 + $0x120] sm:$0xff]
    %v2174 = vld [vmem:[#allocation2 + $0x128] sm:$0xff]
    %v2175 = vld [vmem:[#allocation2 + $0x130] sm:$0xff]
    %v2176 = vld [vmem:[#allocation2 + $0x138] sm:$0xff]
    %v2177 = vld [vmem:[#allocation2 + $0x140] sm:$0xff]
    %v2178 = vld [vmem:[#allocation2 + $0x148] sm:$0xff]
    %v2179 = vld [vmem:[#allocation2 + $0x150] sm:$0xff]
    %v2180 = vld [vmem:[#allocation2 + $0x158] sm:$0xff]
    %v2181 = vld [vmem:[#allocation2 + $0x160] sm:$0xff]
    %v2182 = vld [vmem:[#allocation2 + $0x168] sm:$0xff]
    %v2183 = vld [vmem:[#allocation2 + $0x170] sm:$0xff]
    %v2184 = vld [vmem:[#allocation2 + $0x178] sm:$0xff]
    %v2185 = vld [vmem:[#allocation2 + $0x180] sm:$0xff]
    %v2186 = vld [vmem:[#allocation2 + $0x188] sm:$0xff]
    %v2187 = vld [vmem:[#allocation2 + $0x190] sm:$0xff]
    %v2188 = vld [vmem:[#allocation2 + $0x198] sm:$0xff]
    %v2189 = vld [vmem:[#allocation2 + $0x1a0] sm:$0xff]
    %v2190 = vld [vmem:[#allocation2 + $0x1a8] sm:$0xff]
    %v2191 = vld [vmem:[#allocation2 + $0x1b0] sm:$0xff]
    %v2192 = vld [vmem:[#allocation2 + $0x1b8] sm:$0xff]
    %v2193 = vld [vmem:[#allocation2 + $0x1c0] sm:$0xff]
    %v2194 = vld [vmem:[#allocation2 + $0x1c8] sm:$0xff]
    %v2195 = vld [vmem:[#allocation2 + $0x1d0] sm:$0xff]
    %v2196 = vld [vmem:[#allocation2 + $0x1d8] sm:$0xff]
    %v2197 = vld [vmem:[#allocation2 + $0x1e0] sm:$0xff]
    %v2198 = vld [vmem:[#allocation2 + $0x1e8] sm:$0xff]
    %v2199 = vld [vmem:[#allocation2 + $0x1f0] sm:$0xff]
    %v2200 = vld [vmem:[#allocation2 + $0x1f8] sm:$0xff]
    %v2201 = vld [vmem:[#allocation2 + $0x200] sm:$0xff]
    %v2202 = vld [vmem:[#allocation2 + $0x208] sm:$0xff]
    %v2203 = vld [vmem:[#allocation2 + $0x210] sm:$0xff]
    %v2204 = vld [vmem:[#allocation2 + $0x218] sm:$0xff]
    %v2205 = vld [vmem:[#allocation2 + $0x220] sm:$0xff]
    %v2206 = vld [vmem:[#allocation2 + $0x228] sm:$0xff]
    %v2207 = vld [vmem:[#allocation2 + $0x230] sm:$0xff]
    %v2208 = vld [vmem:[#allocation2 + $0x238] sm:$0xff]
    %v2209 = vld [vmem:[#allocation2 + $0x240] sm:$0xff]
    %v2210 = vld [vmem:[#allocation2 + $0x248] sm:$0xff]
    %v2211 = vld [vmem:[#allocation2 + $0x250] sm:$0xff]
    %v2212 = vld [vmem:[#allocation2 + $0x258] sm:$0xff]
    %v2213 = vld [vmem:[#allocation2 + $0x260] sm:$0xff]
    %v2214 = vld [vmem:[#allocation2 + $0x268] sm:$0xff]
    %v2215 = vld [vmem:[#allocation2 + $0x270] sm:$0xff]
    %v2216 = vld [vmem:[#allocation2 + $0x278] sm:$0xff]
    %v2217 = vld [vmem:[#allocation2 + $0x280] sm:$0xff]
    %v2218 = vld [vmem:[#allocation2 + $0x288] sm:$0xff]
    %v2219 = vld [vmem:[#allocation2 + $0x290] sm:$0xff]
    %v2220 = vld [vmem:[#allocation2 + $0x298] sm:$0xff]
    %v2221 = vld [vmem:[#allocation2 + $0x2a0] sm:$0xff]
    %v2222 = vld [vmem:[#allocation2 + $0x2a8] sm:$0xff]
    %v2223 = vld [vmem:[#allocation2 + $0x2b0] sm:$0xff]
    %v2224 = vld [vmem:[#allocation2 + $0x2b8] sm:$0xff]
    %v2225 = vld [vmem:[#allocation2 + $0x2c0] sm:$0xff]
    %v2226 = vld [vmem:[#allocation2 + $0x2c8] sm:$0xff]
    %v2227 = vld [vmem:[#allocation2 + $0x2d0] sm:$0xff]
    %v2228 = vld [vmem:[#allocation2 + $0x2d8] sm:$0xff]
    %v2229 = vld [vmem:[#allocation2 + $0x2e0] sm:$0xff]
    %v2230 = vld [vmem:[#allocation2 + $0x2e8] sm:$0xff]
    %v2231 = vld [vmem:[#allocation2 + $0x2f0] sm:$0xff]
    %v2232 = vld [vmem:[#allocation2 + $0x2f8] sm:$0xff]
    %v2233 = vld [vmem:[#allocation2 + $0x300] sm:$0xff]
    %v2234 = vld [vmem:[#allocation2 + $0x308] sm:$0xff]
    %v2235 = vld [vmem:[#allocation2 + $0x310] sm:$0xff]
    %v2236 = vld [vmem:[#allocation2 + $0x318] sm:$0xff]
    %v2237 = vld [vmem:[#allocation2 + $0x320] sm:$0xff]
    %v2238 = vld [vmem:[#allocation2 + $0x328] sm:$0xff]
    %v2239 = vld [vmem:[#allocation2 + $0x330] sm:$0xff]
    %v2240 = vld [vmem:[#allocation2 + $0x338] sm:$0xff]
    %v2241 = vld [vmem:[#allocation2 + $0x340] sm:$0xff]
    %v2242 = vld [vmem:[#allocation2 + $0x348] sm:$0xff]
    %v2243 = vld [vmem:[#allocation2 + $0x350] sm:$0xff]
    %v2244 = vld [vmem:[#allocation2 + $0x358] sm:$0xff]
    %v2245 = vld [vmem:[#allocation2 + $0x360] sm:$0xff]
    %v2246 = vpack.c.bf16 %v2139, %v2138
    %v2247 = vpack.c.bf16 %v2141, %v2140
    %v2248 = vpack.c.bf16 %v2143, %v2142
    %v2249 = vpack.c.bf16 %v2145, %v2144
    %v2250 = vpack.c.bf16 %v2147, %v2146
    %v2251 = vpack.c.bf16 %v2149, %v2148
    %v2252 = vpack.c.bf16 %v2151, %v2150
    %v2253 = vpack.c.bf16 %v2153, %v2152
    %v2254 = vpack.c.bf16 %v2155, %v2154
    %v2255 = vpack.c.bf16 %v2157, %v2156
    %v2256 = vpack.c.bf16 %v2159, %v2158
    %v2257 = vpack.c.bf16 %v2161, %v2160
    %v2258 = vpack.c.bf16 %v2163, %v2162
    %v2259 = vpack.c.bf16 %v2165, %v2164
    %v2260 = vpack.c.bf16 %v2167, %v2166
    %v2261 = vpack.c.bf16 %v2169, %v2168
    %v2262 = vpack.c.bf16 %v2171, %v2170
    %v2263 = vpack.c.bf16 %v2173, %v2172
    %v2264 = vpack.c.bf16 %v2175, %v2174
    %v2265 = vpack.c.bf16 %v2177, %v2176
    %v2266 = vpack.c.bf16 %v2179, %v2178
    %v2267 = vpack.c.bf16 %v2181, %v2180
    %v2268 = vpack.c.bf16 %v2183, %v2182
    %v2269 = vpack.c.bf16 %v2185, %v2184
    %v2270 = vpack.c.bf16 %v2187, %v2186
    %v2271 = vpack.c.bf16 %v2189, %v2188
    %v2272 = vpack.c.bf16 %v2191, %v2190
    %v2273 = vpack.c.bf16 %v2193, %v2192
    %v2274 = vpack.c.bf16 %v2195, %v2194
    %v2275 = vpack.c.bf16 %v2197, %v2196
    %v2276 = vpack.c.bf16 %v2199, %v2198
    %v2277 = vpack.c.bf16 %v2201, %v2200
    %v2278 = vpack.c.bf16 %v2203, %v2202
    %v2279 = vpack.c.bf16 %v2205, %v2204
    %v2280 = vpack.c.bf16 %v2207, %v2206
    %v2281 = vpack.c.bf16 %v2209, %v2208
    %v2282 = vpack.c.bf16 %v2211, %v2210
    %v2283 = vpack.c.bf16 %v2213, %v2212
    %v2284 = vpack.c.bf16 %v2215, %v2214
    %v2285 = vpack.c.bf16 %v2217, %v2216
    %v2286 = vpack.c.bf16 %v2219, %v2218
    %v2287 = vpack.c.bf16 %v2221, %v2220
    %v2288 = vpack.c.bf16 %v2223, %v2222
    %v2289 = vpack.c.bf16 %v2225, %v2224
    %v2290 = vpack.c.bf16 %v2227, %v2226
    %v2291 = vpack.c.bf16 %v2229, %v2228
    %v2292 = vpack.c.bf16 %v2231, %v2230
    %v2293 = vpack.c.bf16 %v2233, %v2232
    %v2294 = vpack.c.bf16 %v2235, %v2234
    %v2295 = vpack.c.bf16 %v2237, %v2236
    %v2296 = vpack.c.bf16 %v2239, %v2238
    %v2297 = vpack.c.bf16 %v2241, %v2240
    %v2298 = vpack.c.bf16 %v2243, %v2242
    %v2299 = vpack.c.bf16 %v2245, %v2244
    %s2300 = scalar_lea.vmem %s4, 16
    %v2301 = vld [vmem:[%s2300] sm:$0xf]
    %v2302 = vld [vmem:[%s2300 + $0x4] sm:$0xf]
    %v2303 = vld [vmem:[%s2300 + $0x8] sm:$0xf]
    %v2304 = vld [vmem:[%s2300 + $0xc] sm:$0xf]
    %v2309 = vunpack.c.l.b16 %v2301
    %v2310 = vunpack.c.l.b16 %v2302
    %v2311 = vunpack.c.l.b16 %v2303
    %v2312 = vunpack.c.l.b16 %v2304
    %v2313 = vpack.c.b16 %v2310, %v2309
    %v2314 = vpack.c.b16 %v2312, %v2311
    %v2318 = vsel %vm1863, %v2246, 0
    %v2321 = vsel %vm1863, %v2247, 0
    %v2324 = vsel %vm1863, %v2248, 0
    %v2327 = vsel %vm1863, %v2249, 0
    %v2330 = vsel %vm1863, %v2250, 0
    %v2333 = vsel %vm1863, %v2251, 0
    %v2336 = vsel %vm1863, %v2252, 0
    %v2339 = vsel %vm1863, %v2253, 0
    %v2342 = vsel %vm1863, %v2254, 0
    %v2345 = vsel %vm1863, %v2255, 0
    %v2348 = vsel %vm1863, %v2256, 0
    %v2351 = vsel %vm1863, %v2257, 0
    %v2354 = vsel %vm1863, %v2258, 0
    %v2357 = vsel %vm1863, %v2259, 0
    %v2360 = vsel %vm1863, %v2260, 0
    %v2363 = vsel %vm1863, %v2261, 0
    %v2366 = vsel %vm1863, %v2262, 0
    %v2369 = vsel %vm1863, %v2263, 0
    %v2372 = vsel %vm1863, %v2264, 0
    %v2375 = vsel %vm1863, %v2265, 0
    %v2378 = vsel %vm1863, %v2266, 0
    %v2381 = vsel %vm1863, %v2267, 0
    %v2384 = vsel %vm1863, %v2268, 0
    %v2387 = vsel %vm1863, %v2269, 0
    %v2390 = vsel %vm1863, %v2270, 0
    %v2393 = vsel %vm1863, %v2271, 0
    %v2396 = vsel %vm1863, %v2272, 0
    %v2399 = vsel %vm1863, %v2273, 0
    %v2402 = vsel %vm1863, %v2274, 0
    %v2405 = vsel %vm1863, %v2275, 0
    %v2408 = vsel %vm1863, %v2276, 0
    %v2411 = vsel %vm1863, %v2277, 0
    %v2414 = vsel %vm1863, %v2278, 0
    %v2417 = vsel %vm1863, %v2279, 0
    %v2420 = vsel %vm1863, %v2280, 0
    %v2423 = vsel %vm1863, %v2281, 0
    %v2426 = vsel %vm1863, %v2282, 0
    %v2429 = vsel %vm1863, %v2283, 0
    %v2432 = vsel %vm1863, %v2284, 0
    %v2435 = vsel %vm1863, %v2285, 0
    %v2438 = vsel %vm1863, %v2286, 0
    %v2441 = vsel %vm1863, %v2287, 0
    %v2444 = vsel %vm1863, %v2288, 0
    %v2447 = vsel %vm1863, %v2289, 0
    %v2450 = vsel %vm1863, %v2290, 0
    %v2453 = vsel %vm1863, %v2291, 0
    %v2456 = vsel %vm1863, %v2292, 0
    %v2459 = vsel %vm1863, %v2293, 0
    %v2462 = vsel %vm1863, %v2294, 0
    %v2465 = vsel %vm1863, %v2295, 0
    %v2468 = vsel %vm1863, %v2296, 0
    %v2471 = vsel %vm1863, %v2297, 0
    %v2474 = vsel %vm1863, %v2298, 0
    %v2477 = vsel %vm1863, %v2299, 0
    %2479 = vmatprep.subr.bf16.mxu0 0
    %2480 = vmatpush1.bf16.msra.mxu0 %v2313
    %2481 = vmatprep.subr.bf16.mxu0 0
    %2482 = vmatpush1.bf16.msra.mxu0 %v2314
    %2483 = vmatprep.subr.bf16.mxu0 0
    %2484 = vmatpush1.bf16.msra.mxu0 0
    %2485 = vmatprep.subr.bf16.mxu0 0
    %2486 = vmatpush1.bf16.msra.mxu0 0
    %2487 = vmatprep.subr.bf16.mxu0 0
    %2488 = vmatpush1.bf16.msra.mxu0 0
    %2489 = vmatprep.subr.bf16.mxu0 0
    %2490 = vmatpush1.bf16.msra.mxu0 0
    %2491 = vmatprep.subr.bf16.mxu0 0
    %2492 = vmatpush1.bf16.msra.mxu0 0
    %2493 = vmatprep.subr.bf16.mxu0 0
    %2494 = vmatpush1.bf16.msra.mxu0 0
    %2495 = vmatprep.subr.bf16.mxu0 0
    %2496 = vmatpush1.bf16.msra.mxu0 0
    %2497 = vmatprep.subr.bf16.mxu0 0
    %2498 = vmatpush1.bf16.msra.mxu0 0
    %2499 = vmatprep.subr.bf16.mxu0 0
    %2500 = vmatpush1.bf16.msra.mxu0 0
    %2501 = vmatprep.subr.bf16.mxu0 0
    %2502 = vmatpush1.bf16.msra.mxu0 0
    %2503 = vmatprep.subr.bf16.mxu0 0
    %2504 = vmatpush1.bf16.msra.mxu0 0
    %2505 = vmatprep.subr.bf16.mxu0 0
    %2506 = vmatpush1.bf16.msra.mxu0 0
    %2507 = vmatprep.subr.bf16.mxu0 0
    %2508 = vmatpush1.bf16.msra.mxu0 0
    %2509 = vmatprep.subr.bf16.mxu0 0
    %2510 = vmatpush1.bf16.msra.mxu0 0
    %2511 = vmatprep.mubr.bf16.mxu0 0
    %2512 = vmatmul.mubr.bf16.gmra.mrb[0].mxu0 %v2318
    %v2513 = vpop.f32.mrb[0].mxu0
    %v2514 = vadd.f32 0.0, %v2513
    %v2515 = vpop.f32.mrb[0].mxu0
    %v2516 = vpop.f32.mrb[0].mxu0
    %v2517 = vadd.f32 0.0, %v2516
    %v2518 = vpop.f32.mrb[0].mxu0
    %2519 = vmatprep.mubr.bf16.mxu0 0
    %2520 = vmatmul.mubr.bf16.gmra.mrb[0].mxu0 %v2321
    %v2521 = vpop.f32.mrb[0].mxu0
    %v2522 = vadd.f32 0.0, %v2521
    %v2523 = vpop.f32.mrb[0].mxu0
    %v2524 = vpop.f32.mrb[0].mxu0
    %v2525 = vadd.f32 0.0, %v2524
    %v2526 = vpop.f32.mrb[0].mxu0
    %2527 = vmatprep.mubr.bf16.mxu0 0
    %2528 = vmatmul.mubr.bf16.gmra.mrb[0].mxu0 %v2324
    %v2529 = vpop.f32.mrb[0].mxu0
    %v2530 = vadd.f32 0.0, %v2529
    %v2531 = vpop.f32.mrb[0].mxu0
    %v2532 = vpop.f32.mrb[0].mxu0
    %v2533 = vadd.f32 0.0, %v2532
    %v2534 = vpop.f32.mrb[0].mxu0
    %2535 = vmatprep.mubr.bf16.mxu0 0
    %2536 = vmatmul.mubr.bf16.gmra.mrb[0].mxu0 %v2327
    %v2537 = vpop.f32.mrb[0].mxu0
    %v2538 = vadd.f32 0.0, %v2537
    %v2539 = vpop.f32.mrb[0].mxu0
    %v2540 = vpop.f32.mrb[0].mxu0
    %v2541 = vadd.f32 0.0, %v2540
    %v2542 = vpop.f32.mrb[0].mxu0
    %2543 = vmatprep.mubr.bf16.mxu0 0
    %2544 = vmatmul.mubr.bf16.gmra.mrb[0].mxu0 %v2330
    %v2545 = vpop.f32.mrb[0].mxu0
    %v2546 = vadd.f32 0.0, %v2545
    %v2547 = vpop.f32.mrb[0].mxu0
    %v2548 = vpop.f32.mrb[0].mxu0
    %v2549 = vadd.f32 0.0, %v2548
    %v2550 = vpop.f32.mrb[0].mxu0
    %2551 = vmatprep.mubr.bf16.mxu0 0
    %2552 = vmatmul.mubr.bf16.gmra.mrb[0].mxu0 %v2333
    %v2553 = vpop.f32.mrb[0].mxu0
    %v2554 = vadd.f32 0.0, %v2553
    %v2555 = vpop.f32.mrb[0].mxu0
    %v2556 = vpop.f32.mrb[0].mxu0
    %v2557 = vadd.f32 0.0, %v2556
    %v2558 = vpop.f32.mrb[0].mxu0
    %2559 = vmatprep.mubr.bf16.mxu0 0
    %2560 = vmatmul.mubr.bf16.gmra.mrb[0].mxu0 %v2336
    %v2561 = vpop.f32.mrb[0].mxu0
    %v2562 = vadd.f32 0.0, %v2561
    %v2563 = vpop.f32.mrb[0].mxu0
    %v2564 = vpop.f32.mrb[0].mxu0
    %v2565 = vadd.f32 0.0, %v2564
    %v2566 = vpop.f32.mrb[0].mxu0
    %2567 = vmatprep.mubr.bf16.mxu0 0
    %2568 = vmatmul.mubr.bf16.gmra.mrb[0].mxu0 %v2339
    %v2569 = vpop.f32.mrb[0].mxu0
    %v2570 = vadd.f32 0.0, %v2569
    %v2571 = vpop.f32.mrb[0].mxu0
    %v2572 = vpop.f32.mrb[0].mxu0
    %v2573 = vadd.f32 0.0, %v2572
    %v2574 = vpop.f32.mrb[0].mxu0
    %2575 = vmatprep.mubr.bf16.mxu0 0
    %2576 = vmatmul.mubr.bf16.gmra.mrb[0].mxu0 %v2342
    %v2577 = vpop.f32.mrb[0].mxu0
    %v2578 = vadd.f32 0.0, %v2577
    %v2579 = vpop.f32.mrb[0].mxu0
    %v2580 = vpop.f32.mrb[0].mxu0
    %v2581 = vadd.f32 0.0, %v2580
    %v2582 = vpop.f32.mrb[0].mxu0
    %2583 = vmatprep.mubr.bf16.mxu0 0
    %2584 = vmatmul.mubr.bf16.gmra.mrb[0].mxu0 %v2345
    %v2585 = vpop.f32.mrb[0].mxu0
    %v2586 = vadd.f32 0.0, %v2585
    %v2587 = vpop.f32.mrb[0].mxu0
    %v2588 = vpop.f32.mrb[0].mxu0
    %v2589 = vadd.f32 0.0, %v2588
    %v2590 = vpop.f32.mrb[0].mxu0
    %2591 = vmatprep.mubr.bf16.mxu0 0
    %2592 = vmatmul.mubr.bf16.gmra.mrb[0].mxu0 %v2348
    %v2593 = vpop.f32.mrb[0].mxu0
    %v2594 = vadd.f32 0.0, %v2593
    %v2595 = vpop.f32.mrb[0].mxu0
    %v2596 = vpop.f32.mrb[0].mxu0
    %v2597 = vadd.f32 0.0, %v2596
    %v2598 = vpop.f32.mrb[0].mxu0
    %2599 = vmatprep.mubr.bf16.mxu0 0
    %2600 = vmatmul.mubr.bf16.gmra.mrb[0].mxu0 %v2351
    %v2601 = vpop.f32.mrb[0].mxu0
    %v2602 = vadd.f32 0.0, %v2601
    %v2603 = vpop.f32.mrb[0].mxu0
    %v2604 = vpop.f32.mrb[0].mxu0
    %v2605 = vadd.f32 0.0, %v2604
    %v2606 = vpop.f32.mrb[0].mxu0
    %2607 = vmatprep.mubr.bf16.mxu0 0
    %2608 = vmatmul.mubr.bf16.gmra.mrb[0].mxu0 %v2354
    %v2609 = vpop.f32.mrb[0].mxu0
    %v2610 = vadd.f32 0.0, %v2609
    %v2611 = vpop.f32.mrb[0].mxu0
    %v2612 = vpop.f32.mrb[0].mxu0
    %v2613 = vadd.f32 0.0, %v2612
    %v2614 = vpop.f32.mrb[0].mxu0
    %2615 = vmatprep.mubr.bf16.mxu0 0
    %2616 = vmatmul.mubr.bf16.gmra.mrb[0].mxu0 %v2357
    %v2617 = vpop.f32.mrb[0].mxu0
    %v2618 = vadd.f32 0.0, %v2617
    %v2619 = vpop.f32.mrb[0].mxu0
    %v2620 = vpop.f32.mrb[0].mxu0
    %v2621 = vadd.f32 0.0, %v2620
    %v2622 = vpop.f32.mrb[0].mxu0
    %2623 = vmatprep.mubr.bf16.mxu0 0
    %2624 = vmatmul.mubr.bf16.gmra.mrb[0].mxu0 %v2360
    %v2625 = vpop.f32.mrb[0].mxu0
    %v2626 = vadd.f32 0.0, %v2625
    %v2627 = vpop.f32.mrb[0].mxu0
    %v2628 = vpop.f32.mrb[0].mxu0
    %v2629 = vadd.f32 0.0, %v2628
    %v2630 = vpop.f32.mrb[0].mxu0
    %2631 = vmatprep.mubr.bf16.mxu0 0
    %2632 = vmatmul.mubr.bf16.gmra.mrb[0].mxu0 %v2363
    %v2633 = vpop.f32.mrb[0].mxu0
    %v2634 = vadd.f32 0.0, %v2633
    %v2635 = vpop.f32.mrb[0].mxu0
    %v2636 = vpop.f32.mrb[0].mxu0
    %v2637 = vadd.f32 0.0, %v2636
    %v2638 = vpop.f32.mrb[0].mxu0
    %2639 = vmatprep.mubr.bf16.mxu0 0
    %2640 = vmatmul.mubr.bf16.gmra.mrb[0].mxu0 %v2366
    %v2641 = vpop.f32.mrb[0].mxu0
    %v2642 = vadd.f32 0.0, %v2641
    %v2643 = vpop.f32.mrb[0].mxu0
    %v2644 = vpop.f32.mrb[0].mxu0
    %v2645 = vadd.f32 0.0, %v2644
    %v2646 = vpop.f32.mrb[0].mxu0
    %2647 = vmatprep.mubr.bf16.mxu0 0
    %2648 = vmatmul.mubr.bf16.gmra.mrb[0].mxu0 %v2369
    %v2649 = vpop.f32.mrb[0].mxu0
    %v2650 = vadd.f32 0.0, %v2649
    %v2651 = vpop.f32.mrb[0].mxu0
    %v2652 = vpop.f32.mrb[0].mxu0
    %v2653 = vadd.f32 0.0, %v2652
    %v2654 = vpop.f32.mrb[0].mxu0
    %2655 = vmatprep.mubr.bf16.mxu0 0
    %2656 = vmatmul.mubr.bf16.gmra.mrb[0].mxu0 %v2372
    %v2657 = vpop.f32.mrb[0].mxu0
    %v2658 = vadd.f32 0.0, %v2657
    %v2659 = vpop.f32.mrb[0].mxu0
    %v2660 = vpop.f32.mrb[0].mxu0
    %v2661 = vadd.f32 0.0, %v2660
    %v2662 = vpop.f32.mrb[0].mxu0
    %2663 = vmatprep.mubr.bf16.mxu0 0
    %2664 = vmatmul.mubr.bf16.gmra.mrb[0].mxu0 %v2375
    %v2665 = vpop.f32.mrb[0].mxu0
    %v2666 = vadd.f32 0.0, %v2665
    %v2667 = vpop.f32.mrb[0].mxu0
    %v2668 = vpop.f32.mrb[0].mxu0
    %v2669 = vadd.f32 0.0, %v2668
    %v2670 = vpop.f32.mrb[0].mxu0
    %2671 = vmatprep.mubr.bf16.mxu0 0
    %2672 = vmatmul.mubr.bf16.gmra.mrb[0].mxu0 %v2378
    %v2673 = vpop.f32.mrb[0].mxu0
    %v2674 = vadd.f32 0.0, %v2673
    %v2675 = vpop.f32.mrb[0].mxu0
    %v2676 = vpop.f32.mrb[0].mxu0
    %v2677 = vadd.f32 0.0, %v2676
    %v2678 = vpop.f32.mrb[0].mxu0
    %2679 = vmatprep.mubr.bf16.mxu0 0
    %2680 = vmatmul.mubr.bf16.gmra.mrb[0].mxu0 %v2381
    %v2681 = vpop.f32.mrb[0].mxu0
    %v2682 = vadd.f32 0.0, %v2681
    %v2683 = vpop.f32.mrb[0].mxu0
    %v2684 = vpop.f32.mrb[0].mxu0
    %v2685 = vadd.f32 0.0, %v2684
    %v2686 = vpop.f32.mrb[0].mxu0
    %2687 = vmatprep.mubr.bf16.mxu0 0
    %2688 = vmatmul.mubr.bf16.gmra.mrb[0].mxu0 %v2384
    %v2689 = vpop.f32.mrb[0].mxu0
    %v2690 = vadd.f32 0.0, %v2689
    %v2691 = vpop.f32.mrb[0].mxu0
    %v2692 = vpop.f32.mrb[0].mxu0
    %v2693 = vadd.f32 0.0, %v2692
    %v2694 = vpop.f32.mrb[0].mxu0
    %2695 = vmatprep.mubr.bf16.mxu0 0
    %2696 = vmatmul.mubr.bf16.gmra.mrb[0].mxu0 %v2387
    %v2697 = vpop.f32.mrb[0].mxu0
    %v2698 = vadd.f32 0.0, %v2697
    %v2699 = vpop.f32.mrb[0].mxu0
    %v2700 = vpop.f32.mrb[0].mxu0
    %v2701 = vadd.f32 0.0, %v2700
    %v2702 = vpop.f32.mrb[0].mxu0
    %2703 = vmatprep.mubr.bf16.mxu0 0
    %2704 = vmatmul.mubr.bf16.gmra.mrb[0].mxu0 %v2390
    %v2705 = vpop.f32.mrb[0].mxu0
    %v2706 = vadd.f32 0.0, %v2705
    %v2707 = vpop.f32.mrb[0].mxu0
    %v2708 = vpop.f32.mrb[0].mxu0
    %v2709 = vadd.f32 0.0, %v2708
    %v2710 = vpop.f32.mrb[0].mxu0
    %2711 = vmatprep.mubr.bf16.mxu0 0
    %2712 = vmatmul.mubr.bf16.gmra.mrb[0].mxu0 %v2393
    %v2713 = vpop.f32.mrb[0].mxu0
    %v2714 = vadd.f32 0.0, %v2713
    %v2715 = vpop.f32.mrb[0].mxu0
    %v2716 = vpop.f32.mrb[0].mxu0
    %v2717 = vadd.f32 0.0, %v2716
    %v2718 = vpop.f32.mrb[0].mxu0
    %2719 = vmatprep.mubr.bf16.mxu0 0
    %2720 = vmatmul.mubr.bf16.gmra.mrb[0].mxu0 %v2396
    %v2721 = vpop.f32.mrb[0].mxu0
    %v2722 = vadd.f32 0.0, %v2721
    %v2723 = vpop.f32.mrb[0].mxu0
    %v2724 = vpop.f32.mrb[0].mxu0
    %v2725 = vadd.f32 0.0, %v2724
    %v2726 = vpop.f32.mrb[0].mxu0
    %2727 = vmatprep.mubr.bf16.mxu0 0
    %2728 = vmatmul.mubr.bf16.gmra.mrb[0].mxu0 %v2399
    %v2729 = vpop.f32.mrb[0].mxu0
    %v2730 = vadd.f32 0.0, %v2729
    %v2731 = vpop.f32.mrb[0].mxu0
    %v2732 = vpop.f32.mrb[0].mxu0
    %v2733 = vadd.f32 0.0, %v2732
    %v2734 = vpop.f32.mrb[0].mxu0
    %2735 = vmatprep.mubr.bf16.mxu0 0
    %2736 = vmatmul.mubr.bf16.gmra.mrb[0].mxu0 %v2402
    %v2737 = vpop.f32.mrb[0].mxu0
    %v2738 = vadd.f32 0.0, %v2737
    %v2739 = vpop.f32.mrb[0].mxu0
    %v2740 = vpop.f32.mrb[0].mxu0
    %v2741 = vadd.f32 0.0, %v2740
    %v2742 = vpop.f32.mrb[0].mxu0
    %2743 = vmatprep.mubr.bf16.mxu0 0
    %2744 = vmatmul.mubr.bf16.gmra.mrb[0].mxu0 %v2405
    %v2745 = vpop.f32.mrb[0].mxu0
    %v2746 = vadd.f32 0.0, %v2745
    %v2747 = vpop.f32.mrb[0].mxu0
    %v2748 = vpop.f32.mrb[0].mxu0
    %v2749 = vadd.f32 0.0, %v2748
    %v2750 = vpop.f32.mrb[0].mxu0
    %2751 = vmatprep.mubr.bf16.mxu0 0
    %2752 = vmatmul.mubr.bf16.gmra.mrb[0].mxu0 %v2408
    %v2753 = vpop.f32.mrb[0].mxu0
    %v2754 = vadd.f32 0.0, %v2753
    %v2755 = vpop.f32.mrb[0].mxu0
    %v2756 = vpop.f32.mrb[0].mxu0
    %v2757 = vadd.f32 0.0, %v2756
    %v2758 = vpop.f32.mrb[0].mxu0
    %2759 = vmatprep.mubr.bf16.mxu0 0
    %2760 = vmatmul.mubr.bf16.gmra.mrb[0].mxu0 %v2411
    %v2761 = vpop.f32.mrb[0].mxu0
    %v2762 = vadd.f32 0.0, %v2761
    %v2763 = vpop.f32.mrb[0].mxu0
    %v2764 = vpop.f32.mrb[0].mxu0
    %v2765 = vadd.f32 0.0, %v2764
    %v2766 = vpop.f32.mrb[0].mxu0
    %2767 = vmatprep.mubr.bf16.mxu0 0
    %2768 = vmatmul.mubr.bf16.gmra.mrb[0].mxu0 %v2414
    %v2769 = vpop.f32.mrb[0].mxu0
    %v2770 = vadd.f32 0.0, %v2769
    %v2771 = vpop.f32.mrb[0].mxu0
    %v2772 = vpop.f32.mrb[0].mxu0
    %v2773 = vadd.f32 0.0, %v2772
    %v2774 = vpop.f32.mrb[0].mxu0
    %2775 = vmatprep.mubr.bf16.mxu0 0
    %2776 = vmatmul.mubr.bf16.gmra.mrb[0].mxu0 %v2417
    %v2777 = vpop.f32.mrb[0].mxu0
    %v2778 = vadd.f32 0.0, %v2777
    %v2779 = vpop.f32.mrb[0].mxu0
    %v2780 = vpop.f32.mrb[0].mxu0
    %v2781 = vadd.f32 0.0, %v2780
    %v2782 = vpop.f32.mrb[0].mxu0
    %2783 = vmatprep.mubr.bf16.mxu0 0
    %2784 = vmatmul.mubr.bf16.gmra.mrb[0].mxu0 %v2420
    %v2785 = vpop.f32.mrb[0].mxu0
    %v2786 = vadd.f32 0.0, %v2785
    %v2787 = vpop.f32.mrb[0].mxu0
    %v2788 = vpop.f32.mrb[0].mxu0
    %v2789 = vadd.f32 0.0, %v2788
    %v2790 = vpop.f32.mrb[0].mxu0
    %2791 = vmatprep.mubr.bf16.mxu0 0
    %2792 = vmatmul.mubr.bf16.gmra.mrb[0].mxu0 %v2423
    %v2793 = vpop.f32.mrb[0].mxu0
    %v2794 = vadd.f32 0.0, %v2793
    %v2795 = vpop.f32.mrb[0].mxu0
    %v2796 = vpop.f32.mrb[0].mxu0
    %v2797 = vadd.f32 0.0, %v2796
    %v2798 = vpop.f32.mrb[0].mxu0
    %2799 = vmatprep.mubr.bf16.mxu0 0
    %2800 = vmatmul.mubr.bf16.gmra.mrb[0].mxu0 %v2426
    %v2801 = vpop.f32.mrb[0].mxu0
    %v2802 = vadd.f32 0.0, %v2801
    %v2803 = vpop.f32.mrb[0].mxu0
    %v2804 = vpop.f32.mrb[0].mxu0
    %v2805 = vadd.f32 0.0, %v2804
    %v2806 = vpop.f32.mrb[0].mxu0
    %2807 = vmatprep.mubr.bf16.mxu0 0
    %2808 = vmatmul.mubr.bf16.gmra.mrb[0].mxu0 %v2429
    %v2809 = vpop.f32.mrb[0].mxu0
    %v2810 = vadd.f32 0.0, %v2809
    %v2811 = vpop.f32.mrb[0].mxu0
    %v2812 = vpop.f32.mrb[0].mxu0
    %v2813 = vadd.f32 0.0, %v2812
    %v2814 = vpop.f32.mrb[0].mxu0
    %2815 = vmatprep.mubr.bf16.mxu0 0
    %2816 = vmatmul.mubr.bf16.gmra.mrb[0].mxu0 %v2432
    %v2817 = vpop.f32.mrb[0].mxu0
    %v2818 = vadd.f32 0.0, %v2817
    %v2819 = vpop.f32.mrb[0].mxu0
    %v2820 = vpop.f32.mrb[0].mxu0
    %v2821 = vadd.f32 0.0, %v2820
    %v2822 = vpop.f32.mrb[0].mxu0
    %2823 = vmatprep.mubr.bf16.mxu0 0
    %2824 = vmatmul.mubr.bf16.gmra.mrb[0].mxu0 %v2435
    %v2825 = vpop.f32.mrb[0].mxu0
    %v2826 = vadd.f32 0.0, %v2825
    %v2827 = vpop.f32.mrb[0].mxu0
    %v2828 = vpop.f32.mrb[0].mxu0
    %v2829 = vadd.f32 0.0, %v2828
    %v2830 = vpop.f32.mrb[0].mxu0
    %2831 = vmatprep.mubr.bf16.mxu0 0
    %2832 = vmatmul.mubr.bf16.gmra.mrb[0].mxu0 %v2438
    %v2833 = vpop.f32.mrb[0].mxu0
    %v2834 = vadd.f32 0.0, %v2833
    %v2835 = vpop.f32.mrb[0].mxu0
    %v2836 = vpop.f32.mrb[0].mxu0
    %v2837 = vadd.f32 0.0, %v2836
    %v2838 = vpop.f32.mrb[0].mxu0
    %2839 = vmatprep.mubr.bf16.mxu0 0
    %2840 = vmatmul.mubr.bf16.gmra.mrb[0].mxu0 %v2441
    %v2841 = vpop.f32.mrb[0].mxu0
    %v2842 = vadd.f32 0.0, %v2841
    %v2843 = vpop.f32.mrb[0].mxu0
    %v2844 = vpop.f32.mrb[0].mxu0
    %v2845 = vadd.f32 0.0, %v2844
    %v2846 = vpop.f32.mrb[0].mxu0
    %2847 = vmatprep.mubr.bf16.mxu0 0
    %2848 = vmatmul.mubr.bf16.gmra.mrb[0].mxu0 %v2444
    %v2849 = vpop.f32.mrb[0].mxu0
    %v2850 = vadd.f32 0.0, %v2849
    %v2851 = vpop.f32.mrb[0].mxu0
    %v2852 = vpop.f32.mrb[0].mxu0
    %v2853 = vadd.f32 0.0, %v2852
    %v2854 = vpop.f32.mrb[0].mxu0
    %2855 = vmatprep.mubr.bf16.mxu0 0
    %2856 = vmatmul.mubr.bf16.gmra.mrb[0].mxu0 %v2447
    %v2857 = vpop.f32.mrb[0].mxu0
    %v2858 = vadd.f32 0.0, %v2857
    %v2859 = vpop.f32.mrb[0].mxu0
    %v2860 = vpop.f32.mrb[0].mxu0
    %v2861 = vadd.f32 0.0, %v2860
    %v2862 = vpop.f32.mrb[0].mxu0
    %2863 = vmatprep.mubr.bf16.mxu0 0
    %2864 = vmatmul.mubr.bf16.gmra.mrb[0].mxu0 %v2450
    %v2865 = vpop.f32.mrb[0].mxu0
    %v2866 = vadd.f32 0.0, %v2865
    %v2867 = vpop.f32.mrb[0].mxu0
    %v2868 = vpop.f32.mrb[0].mxu0
    %v2869 = vadd.f32 0.0, %v2868
    %v2870 = vpop.f32.mrb[0].mxu0
    %2871 = vmatprep.mubr.bf16.mxu0 0
    %2872 = vmatmul.mubr.bf16.gmra.mrb[0].mxu0 %v2453
    %v2873 = vpop.f32.mrb[0].mxu0
    %v2874 = vadd.f32 0.0, %v2873
    %v2875 = vpop.f32.mrb[0].mxu0
    %v2876 = vpop.f32.mrb[0].mxu0
    %v2877 = vadd.f32 0.0, %v2876
    %v2878 = vpop.f32.mrb[0].mxu0
    %2879 = vmatprep.mubr.bf16.mxu0 0
    %2880 = vmatmul.mubr.bf16.gmra.mrb[0].mxu0 %v2456
    %v2881 = vpop.f32.mrb[0].mxu0
    %v2882 = vadd.f32 0.0, %v2881
    %v2883 = vpop.f32.mrb[0].mxu0
    %v2884 = vpop.f32.mrb[0].mxu0
    %v2885 = vadd.f32 0.0, %v2884
    %v2886 = vpop.f32.mrb[0].mxu0
    %2887 = vmatprep.mubr.bf16.mxu0 0
    %2888 = vmatmul.mubr.bf16.gmra.mrb[0].mxu0 %v2459
    %v2889 = vpop.f32.mrb[0].mxu0
    %v2890 = vadd.f32 0.0, %v2889
    %v2891 = vpop.f32.mrb[0].mxu0
    %v2892 = vpop.f32.mrb[0].mxu0
    %v2893 = vadd.f32 0.0, %v2892
    %v2894 = vpop.f32.mrb[0].mxu0
    %2895 = vmatprep.mubr.bf16.mxu0 0
    %2896 = vmatmul.mubr.bf16.gmra.mrb[0].mxu0 %v2462
    %v2897 = vpop.f32.mrb[0].mxu0
    %v2898 = vadd.f32 0.0, %v2897
    %v2899 = vpop.f32.mrb[0].mxu0
    %v2900 = vpop.f32.mrb[0].mxu0
    %v2901 = vadd.f32 0.0, %v2900
    %v2902 = vpop.f32.mrb[0].mxu0
    %2903 = vmatprep.mubr.bf16.mxu0 0
    %2904 = vmatmul.mubr.bf16.gmra.mrb[0].mxu0 %v2465
    %v2905 = vpop.f32.mrb[0].mxu0
    %v2906 = vadd.f32 0.0, %v2905
    %v2907 = vpop.f32.mrb[0].mxu0
    %v2908 = vpop.f32.mrb[0].mxu0
    %v2909 = vadd.f32 0.0, %v2908
    %v2910 = vpop.f32.mrb[0].mxu0
    %2911 = vmatprep.mubr.bf16.mxu0 0
    %2912 = vmatmul.mubr.bf16.gmra.mrb[0].mxu0 %v2468
    %v2913 = vpop.f32.mrb[0].mxu0
    %v2914 = vadd.f32 0.0, %v2913
    %v2915 = vpop.f32.mrb[0].mxu0
    %v2916 = vpop.f32.mrb[0].mxu0
    %v2917 = vadd.f32 0.0, %v2916
    %v2918 = vpop.f32.mrb[0].mxu0
    %2919 = vmatprep.mubr.bf16.mxu0 0
    %2920 = vmatmul.mubr.bf16.gmra.mrb[0].mxu0 %v2471
    %v2921 = vpop.f32.mrb[0].mxu0
    %v2922 = vadd.f32 0.0, %v2921
    %v2923 = vpop.f32.mrb[0].mxu0
    %v2924 = vpop.f32.mrb[0].mxu0
    %v2925 = vadd.f32 0.0, %v2924
    %v2926 = vpop.f32.mrb[0].mxu0
    %2927 = vmatprep.mubr.bf16.mxu0 0
    %2928 = vmatmul.mubr.bf16.gmra.mrb[0].mxu0 %v2474
    %v2929 = vpop.f32.mrb[0].mxu0
    %v2930 = vadd.f32 0.0, %v2929
    %v2931 = vpop.f32.mrb[0].mxu0
    %v2932 = vpop.f32.mrb[0].mxu0
    %v2933 = vadd.f32 0.0, %v2932
    %v2934 = vpop.f32.mrb[0].mxu0
    %2935 = vmatprep.mubr.bf16.mxu0 0
    %2936 = vmatmul.mubr.bf16.gmra.mrb[0].mxu0 %v2477
    %v2937 = vpop.f32.mrb[0].mxu0
    %v2938 = vadd.f32 0.0, %v2937
    %v2939 = vpop.f32.mrb[0].mxu0
    %v2940 = vpop.f32.mrb[0].mxu0
    %v2941 = vadd.f32 0.0, %v2940
    %v2942 = vpop.f32.mrb[0].mxu0
    %2943 = vdwg.mxu0
    %v2948 = vunpack.c.l.b16 %v2134
    %v2949 = vunpack.c.l.b16 %v2135
    %v2950 = vunpack.c.l.b16 %v2136
    %v2951 = vunpack.c.l.b16 %v2137
    %v2952 = vpack.c.b16 %v2949, %v2948
    %v2953 = vpack.c.b16 %v2951, %v2950
    %v2957 = vsel %vm1863, %v2080, 0
    %v2960 = vsel %vm1863, %v2081, 0
    %v2963 = vsel %vm1863, %v2082, 0
    %v2966 = vsel %vm1863, %v2083, 0
    %v2969 = vsel %vm1863, %v2084, 0
    %v2972 = vsel %vm1863, %v2085, 0
    %v2975 = vsel %vm1863, %v2086, 0
    %v2978 = vsel %vm1863, %v2087, 0
    %v2981 = vsel %vm1863, %v2088, 0
    %v2984 = vsel %vm1863, %v2089, 0
    %v2987 = vsel %vm1863, %v2090, 0
    %v2990 = vsel %vm1863, %v2091, 0
    %v2993 = vsel %vm1863, %v2092, 0
    %v2996 = vsel %vm1863, %v2093, 0
    %v2999 = vsel %vm1863, %v2094, 0
    %v3002 = vsel %vm1863, %v2095, 0
    %v3005 = vsel %vm1863, %v2096, 0
    %v3008 = vsel %vm1863, %v2097, 0
    %v3011 = vsel %vm1863, %v2098, 0
    %v3014 = vsel %vm1863, %v2099, 0
    %v3017 = vsel %vm1863, %v2100, 0
    %v3020 = vsel %vm1863, %v2101, 0
    %v3023 = vsel %vm1863, %v2102, 0
    %v3026 = vsel %vm1863, %v2103, 0
    %v3029 = vsel %vm1863, %v2104, 0
    %v3032 = vsel %vm1863, %v2105, 0
    %v3035 = vsel %vm1863, %v2106, 0
    %v3038 = vsel %vm1863, %v2107, 0
    %v3041 = vsel %vm1863, %v2108, 0
    %v3044 = vsel %vm1863, %v2109, 0
    %v3047 = vsel %vm1863, %v2110, 0
    %v3050 = vsel %vm1863, %v2111, 0
    %v3053 = vsel %vm1863, %v2112, 0
    %v3056 = vsel %vm1863, %v2113, 0
    %v3059 = vsel %vm1863, %v2114, 0
    %v3062 = vsel %vm1863, %v2115, 0
    %v3065 = vsel %vm1863, %v2116, 0
    %v3068 = vsel %vm1863, %v2117, 0
    %v3071 = vsel %vm1863, %v2118, 0
    %v3074 = vsel %vm1863, %v2119, 0
    %v3077 = vsel %vm1863, %v2120, 0
    %v3080 = vsel %vm1863, %v2121, 0
    %v3083 = vsel %vm1863, %v2122, 0
    %v3086 = vsel %vm1863, %v2123, 0
    %v3089 = vsel %vm1863, %v2124, 0
    %v3092 = vsel %vm1863, %v2125, 0
    %v3095 = vsel %vm1863, %v2126, 0
    %v3098 = vsel %vm1863, %v2127, 0
    %v3101 = vsel %vm1863, %v2128, 0
    %v3104 = vsel %vm1863, %v2129, 0
    %v3107 = vsel %vm1863, %v2130, 0
    %v3110 = vsel %vm1863, %v2131, 0
    %v3113 = vsel %vm1863, %v2132, 0
    %v3116 = vsel %vm1863, %v2133, 0
    %3118 = vmatprep.subr.bf16.mxu0 0
    %3119 = vmatpush1.bf16.msra.mxu0 %v2952
    %3120 = vmatprep.subr.bf16.mxu0 0
    %3121 = vmatpush1.bf16.msra.mxu0 %v2953
    %3122 = vmatprep.subr.bf16.mxu0 0
    %3123 = vmatpush1.bf16.msra.mxu0 0
    %3124 = vmatprep.subr.bf16.mxu0 0
    %3125 = vmatpush1.bf16.msra.mxu0 0
    %3126 = vmatprep.subr.bf16.mxu0 0
    %3127 = vmatpush1.bf16.msra.mxu0 0
    %3128 = vmatprep.subr.bf16.mxu0 0
    %3129 = vmatpush1.bf16.msra.mxu0 0
    %3130 = vmatprep.subr.bf16.mxu0 0
    %3131 = vmatpush1.bf16.msra.mxu0 0
    %3132 = vmatprep.subr.bf16.mxu0 0
    %3133 = vmatpush1.bf16.msra.mxu0 0
    %3134 = vmatprep.subr.bf16.mxu0 0
    %3135 = vmatpush1.bf16.msra.mxu0 0
    %3136 = vmatprep.subr.bf16.mxu0 0
    %3137 = vmatpush1.bf16.msra.mxu0 0
    %3138 = vmatprep.subr.bf16.mxu0 0
    %3139 = vmatpush1.bf16.msra.mxu0 0
    %3140 = vmatprep.subr.bf16.mxu0 0
    %3141 = vmatpush1.bf16.msra.mxu0 0
    %3142 = vmatprep.subr.bf16.mxu0 0
    %3143 = vmatpush1.bf16.msra.mxu0 0
    %3144 = vmatprep.subr.bf16.mxu0 0
    %3145 = vmatpush1.bf16.msra.mxu0 0
    %3146 = vmatprep.subr.bf16.mxu0 0
    %3147 = vmatpush1.bf16.msra.mxu0 0
    %3148 = vmatprep.subr.bf16.mxu0 0
    %3149 = vmatpush1.bf16.msra.mxu0 0
    %3150 = vmatprep.mubr.bf16.mxu0 0
    %3151 = vmatmul.mubr.bf16.gmra.mrb[0].mxu0 %v2957
    %v3152 = vpop.f32.mrb[0].mxu0
    %v3153 = vadd.f32 %v2514, %v3152
    %v3154 = vpop.f32.mrb[0].mxu0
    %v3155 = vpop.f32.mrb[0].mxu0
    %v3156 = vadd.f32 %v2517, %v3155
    %v3157 = vpop.f32.mrb[0].mxu0
    %3158 = vmatprep.mubr.bf16.mxu0 0
    %3159 = vmatmul.mubr.bf16.gmra.mrb[0].mxu0 %v2960
    %v3160 = vpop.f32.mrb[0].mxu0
    %v3161 = vadd.f32 %v2522, %v3160
    %v3162 = vpop.f32.mrb[0].mxu0
    %v3163 = vpop.f32.mrb[0].mxu0
    %v3164 = vadd.f32 %v2525, %v3163
    %v3165 = vpop.f32.mrb[0].mxu0
    %3166 = vmatprep.mubr.bf16.mxu0 0
    %3167 = vmatmul.mubr.bf16.gmra.mrb[0].mxu0 %v2963
    %v3168 = vpop.f32.mrb[0].mxu0
    %v3169 = vadd.f32 %v2530, %v3168
    %v3170 = vpop.f32.mrb[0].mxu0
    %v3171 = vpop.f32.mrb[0].mxu0
    %v3172 = vadd.f32 %v2533, %v3171
    %v3173 = vpop.f32.mrb[0].mxu0
    %3174 = vmatprep.mubr.bf16.mxu0 0
    %3175 = vmatmul.mubr.bf16.gmra.mrb[0].mxu0 %v2966
    %v3176 = vpop.f32.mrb[0].mxu0
    %v3177 = vadd.f32 %v2538, %v3176
    %v3178 = vpop.f32.mrb[0].mxu0
    %v3179 = vpop.f32.mrb[0].mxu0
    %v3180 = vadd.f32 %v2541, %v3179
    %v3181 = vpop.f32.mrb[0].mxu0
    %3182 = vmatprep.mubr.bf16.mxu0 0
    %3183 = vmatmul.mubr.bf16.gmra.mrb[0].mxu0 %v2969
    %v3184 = vpop.f32.mrb[0].mxu0
    %v3185 = vadd.f32 %v2546, %v3184
    %v3186 = vpop.f32.mrb[0].mxu0
    %v3187 = vpop.f32.mrb[0].mxu0
    %v3188 = vadd.f32 %v2549, %v3187
    %v3189 = vpop.f32.mrb[0].mxu0
    %3190 = vmatprep.mubr.bf16.mxu0 0
    %3191 = vmatmul.mubr.bf16.gmra.mrb[0].mxu0 %v2972
    %v3192 = vpop.f32.mrb[0].mxu0
    %v3193 = vadd.f32 %v2554, %v3192
    %v3194 = vpop.f32.mrb[0].mxu0
    %v3195 = vpop.f32.mrb[0].mxu0
    %v3196 = vadd.f32 %v2557, %v3195
    %v3197 = vpop.f32.mrb[0].mxu0
    %3198 = vmatprep.mubr.bf16.mxu0 0
    %3199 = vmatmul.mubr.bf16.gmra.mrb[0].mxu0 %v2975
    %v3200 = vpop.f32.mrb[0].mxu0
    %v3201 = vadd.f32 %v2562, %v3200
    %v3202 = vpop.f32.mrb[0].mxu0
    %v3203 = vpop.f32.mrb[0].mxu0
    %v3204 = vadd.f32 %v2565, %v3203
    %v3205 = vpop.f32.mrb[0].mxu0
    %3206 = vmatprep.mubr.bf16.mxu0 0
    %3207 = vmatmul.mubr.bf16.gmra.mrb[0].mxu0 %v2978
    %v3208 = vpop.f32.mrb[0].mxu0
    %v3209 = vadd.f32 %v2570, %v3208
    %v3210 = vpop.f32.mrb[0].mxu0
    %v3211 = vpop.f32.mrb[0].mxu0
    %v3212 = vadd.f32 %v2573, %v3211
    %v3213 = vpop.f32.mrb[0].mxu0
    %3214 = vmatprep.mubr.bf16.mxu0 0
    %3215 = vmatmul.mubr.bf16.gmra.mrb[0].mxu0 %v2981
    %v3216 = vpop.f32.mrb[0].mxu0
    %v3217 = vadd.f32 %v2578, %v3216
    %v3218 = vpop.f32.mrb[0].mxu0
    %v3219 = vpop.f32.mrb[0].mxu0
    %v3220 = vadd.f32 %v2581, %v3219
    %v3221 = vpop.f32.mrb[0].mxu0
    %3222 = vmatprep.mubr.bf16.mxu0 0
    %3223 = vmatmul.mubr.bf16.gmra.mrb[0].mxu0 %v2984
    %v3224 = vpop.f32.mrb[0].mxu0
    %v3225 = vadd.f32 %v2586, %v3224
    %v3226 = vpop.f32.mrb[0].mxu0
    %v3227 = vpop.f32.mrb[0].mxu0
    %v3228 = vadd.f32 %v2589, %v3227
    %v3229 = vpop.f32.mrb[0].mxu0
    %3230 = vmatprep.mubr.bf16.mxu0 0
    %3231 = vmatmul.mubr.bf16.gmra.mrb[0].mxu0 %v2987
    %v3232 = vpop.f32.mrb[0].mxu0
    %v3233 = vadd.f32 %v2594, %v3232
    %v3234 = vpop.f32.mrb[0].mxu0
    %v3235 = vpop.f32.mrb[0].mxu0
    %v3236 = vadd.f32 %v2597, %v3235
    %v3237 = vpop.f32.mrb[0].mxu0
    %3238 = vmatprep.mubr.bf16.mxu0 0
    %3239 = vmatmul.mubr.bf16.gmra.mrb[0].mxu0 %v2990
    %v3240 = vpop.f32.mrb[0].mxu0
    %v3241 = vadd.f32 %v2602, %v3240
    %v3242 = vpop.f32.mrb[0].mxu0
    %v3243 = vpop.f32.mrb[0].mxu0
    %v3244 = vadd.f32 %v2605, %v3243
    %v3245 = vpop.f32.mrb[0].mxu0
    %3246 = vmatprep.mubr.bf16.mxu0 0
    %3247 = vmatmul.mubr.bf16.gmra.mrb[0].mxu0 %v2993
    %v3248 = vpop.f32.mrb[0].mxu0
    %v3249 = vadd.f32 %v2610, %v3248
    %v3250 = vpop.f32.mrb[0].mxu0
    %v3251 = vpop.f32.mrb[0].mxu0
    %v3252 = vadd.f32 %v2613, %v3251
    %v3253 = vpop.f32.mrb[0].mxu0
    %3254 = vmatprep.mubr.bf16.mxu0 0
    %3255 = vmatmul.mubr.bf16.gmra.mrb[0].mxu0 %v2996
    %v3256 = vpop.f32.mrb[0].mxu0
    %v3257 = vadd.f32 %v2618, %v3256
    %v3258 = vpop.f32.mrb[0].mxu0
    %v3259 = vpop.f32.mrb[0].mxu0
    %v3260 = vadd.f32 %v2621, %v3259
    %v3261 = vpop.f32.mrb[0].mxu0
    %3262 = vmatprep.mubr.bf16.mxu0 0
    %3263 = vmatmul.mubr.bf16.gmra.mrb[0].mxu0 %v2999
    %v3264 = vpop.f32.mrb[0].mxu0
    %v3265 = vadd.f32 %v2626, %v3264
    %v3266 = vpop.f32.mrb[0].mxu0
    %v3267 = vpop.f32.mrb[0].mxu0
    %v3268 = vadd.f32 %v2629, %v3267
    %v3269 = vpop.f32.mrb[0].mxu0
    %3270 = vmatprep.mubr.bf16.mxu0 0
    %3271 = vmatmul.mubr.bf16.gmra.mrb[0].mxu0 %v3002
    %v3272 = vpop.f32.mrb[0].mxu0
    %v3273 = vadd.f32 %v2634, %v3272
    %v3274 = vpop.f32.mrb[0].mxu0
    %v3275 = vpop.f32.mrb[0].mxu0
    %v3276 = vadd.f32 %v2637, %v3275
    %v3277 = vpop.f32.mrb[0].mxu0
    %3278 = vmatprep.mubr.bf16.mxu0 0
    %3279 = vmatmul.mubr.bf16.gmra.mrb[0].mxu0 %v3005
    %v3280 = vpop.f32.mrb[0].mxu0
    %v3281 = vadd.f32 %v2642, %v3280
    %v3282 = vpop.f32.mrb[0].mxu0
    %v3283 = vpop.f32.mrb[0].mxu0
    %v3284 = vadd.f32 %v2645, %v3283
    %v3285 = vpop.f32.mrb[0].mxu0
    %3286 = vmatprep.mubr.bf16.mxu0 0
    %3287 = vmatmul.mubr.bf16.gmra.mrb[0].mxu0 %v3008
    %v3288 = vpop.f32.mrb[0].mxu0
    %v3289 = vadd.f32 %v2650, %v3288
    %v3290 = vpop.f32.mrb[0].mxu0
    %v3291 = vpop.f32.mrb[0].mxu0
    %v3292 = vadd.f32 %v2653, %v3291
    %v3293 = vpop.f32.mrb[0].mxu0
    %3294 = vmatprep.mubr.bf16.mxu0 0
    %3295 = vmatmul.mubr.bf16.gmra.mrb[0].mxu0 %v3011
    %v3296 = vpop.f32.mrb[0].mxu0
    %v3297 = vadd.f32 %v2658, %v3296
    %v3298 = vpop.f32.mrb[0].mxu0
    %v3299 = vpop.f32.mrb[0].mxu0
    %v3300 = vadd.f32 %v2661, %v3299
    %v3301 = vpop.f32.mrb[0].mxu0
    %3302 = vmatprep.mubr.bf16.mxu0 0
    %3303 = vmatmul.mubr.bf16.gmra.mrb[0].mxu0 %v3014
    %v3304 = vpop.f32.mrb[0].mxu0
    %v3305 = vadd.f32 %v2666, %v3304
    %v3306 = vpop.f32.mrb[0].mxu0
    %v3307 = vpop.f32.mrb[0].mxu0
    %v3308 = vadd.f32 %v2669, %v3307
    %v3309 = vpop.f32.mrb[0].mxu0
    %3310 = vmatprep.mubr.bf16.mxu0 0
    %3311 = vmatmul.mubr.bf16.gmra.mrb[0].mxu0 %v3017
    %v3312 = vpop.f32.mrb[0].mxu0
    %v3313 = vadd.f32 %v2674, %v3312
    %v3314 = vpop.f32.mrb[0].mxu0
    %v3315 = vpop.f32.mrb[0].mxu0
    %v3316 = vadd.f32 %v2677, %v3315
    %v3317 = vpop.f32.mrb[0].mxu0
    %3318 = vmatprep.mubr.bf16.mxu0 0
    %3319 = vmatmul.mubr.bf16.gmra.mrb[0].mxu0 %v3020
    %v3320 = vpop.f32.mrb[0].mxu0
    %v3321 = vadd.f32 %v2682, %v3320
    %v3322 = vpop.f32.mrb[0].mxu0
    %v3323 = vpop.f32.mrb[0].mxu0
    %v3324 = vadd.f32 %v2685, %v3323
    %v3325 = vpop.f32.mrb[0].mxu0
    %3326 = vmatprep.mubr.bf16.mxu0 0
    %3327 = vmatmul.mubr.bf16.gmra.mrb[0].mxu0 %v3023
    %v3328 = vpop.f32.mrb[0].mxu0
    %v3329 = vadd.f32 %v2690, %v3328
    %v3330 = vpop.f32.mrb[0].mxu0
    %v3331 = vpop.f32.mrb[0].mxu0
    %v3332 = vadd.f32 %v2693, %v3331
    %v3333 = vpop.f32.mrb[0].mxu0
    %3334 = vmatprep.mubr.bf16.mxu0 0
    %3335 = vmatmul.mubr.bf16.gmra.mrb[0].mxu0 %v3026
    %v3336 = vpop.f32.mrb[0].mxu0
    %v3337 = vadd.f32 %v2698, %v3336
    %v3338 = vpop.f32.mrb[0].mxu0
    %v3339 = vpop.f32.mrb[0].mxu0
    %v3340 = vadd.f32 %v2701, %v3339
    %v3341 = vpop.f32.mrb[0].mxu0
    %3342 = vmatprep.mubr.bf16.mxu0 0
    %3343 = vmatmul.mubr.bf16.gmra.mrb[0].mxu0 %v3029
    %v3344 = vpop.f32.mrb[0].mxu0
    %v3345 = vadd.f32 %v2706, %v3344
    %v3346 = vpop.f32.mrb[0].mxu0
    %v3347 = vpop.f32.mrb[0].mxu0
    %v3348 = vadd.f32 %v2709, %v3347
    %v3349 = vpop.f32.mrb[0].mxu0
    %3350 = vmatprep.mubr.bf16.mxu0 0
    %3351 = vmatmul.mubr.bf16.gmra.mrb[0].mxu0 %v3032
    %v3352 = vpop.f32.mrb[0].mxu0
    %v3353 = vadd.f32 %v2714, %v3352
    %v3354 = vpop.f32.mrb[0].mxu0
    %v3355 = vpop.f32.mrb[0].mxu0
    %v3356 = vadd.f32 %v2717, %v3355
    %v3357 = vpop.f32.mrb[0].mxu0
    %3358 = vmatprep.mubr.bf16.mxu0 0
    %3359 = vmatmul.mubr.bf16.gmra.mrb[0].mxu0 %v3035
    %v3360 = vpop.f32.mrb[0].mxu0
    %v3361 = vadd.f32 %v2722, %v3360
    %v3362 = vpop.f32.mrb[0].mxu0
    %v3363 = vpop.f32.mrb[0].mxu0
    %v3364 = vadd.f32 %v2725, %v3363
    %v3365 = vpop.f32.mrb[0].mxu0
    %3366 = vmatprep.mubr.bf16.mxu0 0
    %3367 = vmatmul.mubr.bf16.gmra.mrb[0].mxu0 %v3038
    %v3368 = vpop.f32.mrb[0].mxu0
    %v3369 = vadd.f32 %v2730, %v3368
    %v3370 = vpop.f32.mrb[0].mxu0
    %v3371 = vpop.f32.mrb[0].mxu0
    %v3372 = vadd.f32 %v2733, %v3371
    %v3373 = vpop.f32.mrb[0].mxu0
    %3374 = vmatprep.mubr.bf16.mxu0 0
    %3375 = vmatmul.mubr.bf16.gmra.mrb[0].mxu0 %v3041
    %v3376 = vpop.f32.mrb[0].mxu0
    %v3377 = vadd.f32 %v2738, %v3376
    %v3378 = vpop.f32.mrb[0].mxu0
    %v3379 = vpop.f32.mrb[0].mxu0
    %v3380 = vadd.f32 %v2741, %v3379
    %v3381 = vpop.f32.mrb[0].mxu0
    %3382 = vmatprep.mubr.bf16.mxu0 0
    %3383 = vmatmul.mubr.bf16.gmra.mrb[0].mxu0 %v3044
    %v3384 = vpop.f32.mrb[0].mxu0
    %v3385 = vadd.f32 %v2746, %v3384
    %v3386 = vpop.f32.mrb[0].mxu0
    %v3387 = vpop.f32.mrb[0].mxu0
    %v3388 = vadd.f32 %v2749, %v3387
    %v3389 = vpop.f32.mrb[0].mxu0
    %3390 = vmatprep.mubr.bf16.mxu0 0
    %3391 = vmatmul.mubr.bf16.gmra.mrb[0].mxu0 %v3047
    %v3392 = vpop.f32.mrb[0].mxu0
    %v3393 = vadd.f32 %v2754, %v3392
    %v3394 = vpop.f32.mrb[0].mxu0
    %v3395 = vpop.f32.mrb[0].mxu0
    %v3396 = vadd.f32 %v2757, %v3395
    %v3397 = vpop.f32.mrb[0].mxu0
    %3398 = vmatprep.mubr.bf16.mxu0 0
    %3399 = vmatmul.mubr.bf16.gmra.mrb[0].mxu0 %v3050
    %v3400 = vpop.f32.mrb[0].mxu0
    %v3401 = vadd.f32 %v2762, %v3400
    %v3402 = vpop.f32.mrb[0].mxu0
    %v3403 = vpop.f32.mrb[0].mxu0
    %v3404 = vadd.f32 %v2765, %v3403
    %v3405 = vpop.f32.mrb[0].mxu0
    %3406 = vmatprep.mubr.bf16.mxu0 0
    %3407 = vmatmul.mubr.bf16.gmra.mrb[0].mxu0 %v3053
    %v3408 = vpop.f32.mrb[0].mxu0
    %v3409 = vadd.f32 %v2770, %v3408
    %v3410 = vpop.f32.mrb[0].mxu0
    %v3411 = vpop.f32.mrb[0].mxu0
    %v3412 = vadd.f32 %v2773, %v3411
    %v3413 = vpop.f32.mrb[0].mxu0
    %3414 = vmatprep.mubr.bf16.mxu0 0
    %3415 = vmatmul.mubr.bf16.gmra.mrb[0].mxu0 %v3056
    %v3416 = vpop.f32.mrb[0].mxu0
    %v3417 = vadd.f32 %v2778, %v3416
    %v3418 = vpop.f32.mrb[0].mxu0
    %v3419 = vpop.f32.mrb[0].mxu0
    %v3420 = vadd.f32 %v2781, %v3419
    %v3421 = vpop.f32.mrb[0].mxu0
    %3422 = vmatprep.mubr.bf16.mxu0 0
    %3423 = vmatmul.mubr.bf16.gmra.mrb[0].mxu0 %v3059
    %v3424 = vpop.f32.mrb[0].mxu0
    %v3425 = vadd.f32 %v2786, %v3424
    %v3426 = vpop.f32.mrb[0].mxu0
    %v3427 = vpop.f32.mrb[0].mxu0
    %v3428 = vadd.f32 %v2789, %v3427
    %v3429 = vpop.f32.mrb[0].mxu0
    %3430 = vmatprep.mubr.bf16.mxu0 0
    %3431 = vmatmul.mubr.bf16.gmra.mrb[0].mxu0 %v3062
    %v3432 = vpop.f32.mrb[0].mxu0
    %v3433 = vadd.f32 %v2794, %v3432
    %v3434 = vpop.f32.mrb[0].mxu0
    %v3435 = vpop.f32.mrb[0].mxu0
    %v3436 = vadd.f32 %v2797, %v3435
    %v3437 = vpop.f32.mrb[0].mxu0
    %3438 = vmatprep.mubr.bf16.mxu0 0
    %3439 = vmatmul.mubr.bf16.gmra.mrb[0].mxu0 %v3065
    %v3440 = vpop.f32.mrb[0].mxu0
    %v3441 = vadd.f32 %v2802, %v3440
    %v3442 = vpop.f32.mrb[0].mxu0
    %v3443 = vpop.f32.mrb[0].mxu0
    %v3444 = vadd.f32 %v2805, %v3443
    %v3445 = vpop.f32.mrb[0].mxu0
    %3446 = vmatprep.mubr.bf16.mxu0 0
    %3447 = vmatmul.mubr.bf16.gmra.mrb[0].mxu0 %v3068
    %v3448 = vpop.f32.mrb[0].mxu0
    %v3449 = vadd.f32 %v2810, %v3448
    %v3450 = vpop.f32.mrb[0].mxu0
    %v3451 = vpop.f32.mrb[0].mxu0
    %v3452 = vadd.f32 %v2813, %v3451
    %v3453 = vpop.f32.mrb[0].mxu0
    %3454 = vmatprep.mubr.bf16.mxu0 0
    %3455 = vmatmul.mubr.bf16.gmra.mrb[0].mxu0 %v3071
    %v3456 = vpop.f32.mrb[0].mxu0
    %v3457 = vadd.f32 %v2818, %v3456
    %v3458 = vpop.f32.mrb[0].mxu0
    %v3459 = vpop.f32.mrb[0].mxu0
    %v3460 = vadd.f32 %v2821, %v3459
    %v3461 = vpop.f32.mrb[0].mxu0
    %3462 = vmatprep.mubr.bf16.mxu0 0
    %3463 = vmatmul.mubr.bf16.gmra.mrb[0].mxu0 %v3074
    %v3464 = vpop.f32.mrb[0].mxu0
    %v3465 = vadd.f32 %v2826, %v3464
    %v3466 = vpop.f32.mrb[0].mxu0
    %v3467 = vpop.f32.mrb[0].mxu0
    %v3468 = vadd.f32 %v2829, %v3467
    %v3469 = vpop.f32.mrb[0].mxu0
    %3470 = vmatprep.mubr.bf16.mxu0 0
    %3471 = vmatmul.mubr.bf16.gmra.mrb[0].mxu0 %v3077
    %v3472 = vpop.f32.mrb[0].mxu0
    %v3473 = vadd.f32 %v2834, %v3472
    %v3474 = vpop.f32.mrb[0].mxu0
    %v3475 = vpop.f32.mrb[0].mxu0
    %v3476 = vadd.f32 %v2837, %v3475
    %v3477 = vpop.f32.mrb[0].mxu0
    %3478 = vmatprep.mubr.bf16.mxu0 0
    %3479 = vmatmul.mubr.bf16.gmra.mrb[0].mxu0 %v3080
    %v3480 = vpop.f32.mrb[0].mxu0
    %v3481 = vadd.f32 %v2842, %v3480
    %v3482 = vpop.f32.mrb[0].mxu0
    %v3483 = vpop.f32.mrb[0].mxu0
    %v3484 = vadd.f32 %v2845, %v3483
    %v3485 = vpop.f32.mrb[0].mxu0
    %3486 = vmatprep.mubr.bf16.mxu0 0
    %3487 = vmatmul.mubr.bf16.gmra.mrb[0].mxu0 %v3083
    %v3488 = vpop.f32.mrb[0].mxu0
    %v3489 = vadd.f32 %v2850, %v3488
    %v3490 = vpop.f32.mrb[0].mxu0
    %v3491 = vpop.f32.mrb[0].mxu0
    %v3492 = vadd.f32 %v2853, %v3491
    %v3493 = vpop.f32.mrb[0].mxu0
    %3494 = vmatprep.mubr.bf16.mxu0 0
    %3495 = vmatmul.mubr.bf16.gmra.mrb[0].mxu0 %v3086
    %v3496 = vpop.f32.mrb[0].mxu0
    %v3497 = vadd.f32 %v2858, %v3496
    %v3498 = vpop.f32.mrb[0].mxu0
    %v3499 = vpop.f32.mrb[0].mxu0
    %v3500 = vadd.f32 %v2861, %v3499
    %v3501 = vpop.f32.mrb[0].mxu0
    %3502 = vmatprep.mubr.bf16.mxu0 0
    %3503 = vmatmul.mubr.bf16.gmra.mrb[0].mxu0 %v3089
    %v3504 = vpop.f32.mrb[0].mxu0
    %v3505 = vadd.f32 %v2866, %v3504
    %v3506 = vpop.f32.mrb[0].mxu0
    %v3507 = vpop.f32.mrb[0].mxu0
    %v3508 = vadd.f32 %v2869, %v3507
    %v3509 = vpop.f32.mrb[0].mxu0
    %3510 = vmatprep.mubr.bf16.mxu0 0
    %3511 = vmatmul.mubr.bf16.gmra.mrb[0].mxu0 %v3092
    %v3512 = vpop.f32.mrb[0].mxu0
    %v3513 = vadd.f32 %v2874, %v3512
    %v3514 = vpop.f32.mrb[0].mxu0
    %v3515 = vpop.f32.mrb[0].mxu0
    %v3516 = vadd.f32 %v2877, %v3515
    %v3517 = vpop.f32.mrb[0].mxu0
    %3518 = vmatprep.mubr.bf16.mxu0 0
    %3519 = vmatmul.mubr.bf16.gmra.mrb[0].mxu0 %v3095
    %v3520 = vpop.f32.mrb[0].mxu0
    %v3521 = vadd.f32 %v2882, %v3520
    %v3522 = vpop.f32.mrb[0].mxu0
    %v3523 = vpop.f32.mrb[0].mxu0
    %v3524 = vadd.f32 %v2885, %v3523
    %v3525 = vpop.f32.mrb[0].mxu0
    %3526 = vmatprep.mubr.bf16.mxu0 0
    %3527 = vmatmul.mubr.bf16.gmra.mrb[0].mxu0 %v3098
    %v3528 = vpop.f32.mrb[0].mxu0
    %v3529 = vadd.f32 %v2890, %v3528
    %v3530 = vpop.f32.mrb[0].mxu0
    %v3531 = vpop.f32.mrb[0].mxu0
    %v3532 = vadd.f32 %v2893, %v3531
    %v3533 = vpop.f32.mrb[0].mxu0
    %3534 = vmatprep.mubr.bf16.mxu0 0
    %3535 = vmatmul.mubr.bf16.gmra.mrb[0].mxu0 %v3101
    %v3536 = vpop.f32.mrb[0].mxu0
    %v3537 = vadd.f32 %v2898, %v3536
    %v3538 = vpop.f32.mrb[0].mxu0
    %v3539 = vpop.f32.mrb[0].mxu0
    %v3540 = vadd.f32 %v2901, %v3539
    %v3541 = vpop.f32.mrb[0].mxu0
    %3542 = vmatprep.mubr.bf16.mxu0 0
    %3543 = vmatmul.mubr.bf16.gmra.mrb[0].mxu0 %v3104
    %v3544 = vpop.f32.mrb[0].mxu0
    %v3545 = vadd.f32 %v2906, %v3544
    %v3546 = vpop.f32.mrb[0].mxu0
    %v3547 = vpop.f32.mrb[0].mxu0
    %v3548 = vadd.f32 %v2909, %v3547
    %v3549 = vpop.f32.mrb[0].mxu0
    %3550 = vmatprep.mubr.bf16.mxu0 0
    %3551 = vmatmul.mubr.bf16.gmra.mrb[0].mxu0 %v3107
    %v3552 = vpop.f32.mrb[0].mxu0
    %v3553 = vadd.f32 %v2914, %v3552
    %v3554 = vpop.f32.mrb[0].mxu0
    %v3555 = vpop.f32.mrb[0].mxu0
    %v3556 = vadd.f32 %v2917, %v3555
    %v3557 = vpop.f32.mrb[0].mxu0
    %3558 = vmatprep.mubr.bf16.mxu0 0
    %3559 = vmatmul.mubr.bf16.gmra.mrb[0].mxu0 %v3110
    %v3560 = vpop.f32.mrb[0].mxu0
    %v3561 = vadd.f32 %v2922, %v3560
    %v3562 = vpop.f32.mrb[0].mxu0
    %v3563 = vpop.f32.mrb[0].mxu0
    %v3564 = vadd.f32 %v2925, %v3563
    %v3565 = vpop.f32.mrb[0].mxu0
    %3566 = vmatprep.mubr.bf16.mxu0 0
    %3567 = vmatmul.mubr.bf16.gmra.mrb[0].mxu0 %v3113
    %v3568 = vpop.f32.mrb[0].mxu0
    %v3569 = vadd.f32 %v2930, %v3568
    %v3570 = vpop.f32.mrb[0].mxu0
    %v3571 = vpop.f32.mrb[0].mxu0
    %v3572 = vadd.f32 %v2933, %v3571
    %v3573 = vpop.f32.mrb[0].mxu0
    %3574 = vmatprep.mubr.bf16.mxu0 0
    %3575 = vmatmul.mubr.bf16.gmra.mrb[0].mxu0 %v3116
    %v3576 = vpop.f32.mrb[0].mxu0
    %v3577 = vadd.f32 %v2938, %v3576
    %v3578 = vpop.f32.mrb[0].mxu0
    %v3579 = vpop.f32.mrb[0].mxu0
    %v3580 = vadd.f32 %v2941, %v3579
    %v3581 = vpop.f32.mrb[0].mxu0
    %3582 = vdwg.mxu0
    %v3583 = vld [vmem:[#allocation2 + $0x9] sm:$0xff]
    %v3584 = vld [vmem:[#allocation2 + $0x11] sm:$0xff]
    %v3585 = vld [vmem:[#allocation2 + $0x19] sm:$0xff]
    %v3586 = vld [vmem:[#allocation2 + $0x21] sm:$0xff]
    %v3587 = vld [vmem:[#allocation2 + $0x29] sm:$0xff]
    %v3588 = vld [vmem:[#allocation2 + $0x31] sm:$0xff]
    %v3589 = vld [vmem:[#allocation2 + $0x39] sm:$0xff]
    %v3590 = vld [vmem:[#allocation2 + $0x41] sm:$0xff]
    %v3591 = vld [vmem:[#allocation2 + $0x49] sm:$0xff]
    %v3592 = vld [vmem:[#allocation2 + $0x51] sm:$0xff]
    %v3593 = vld [vmem:[#allocation2 + $0x59] sm:$0xff]
    %v3594 = vld [vmem:[#allocation2 + $0x61] sm:$0xff]
    %v3595 = vld [vmem:[#allocation2 + $0x69] sm:$0xff]
    %v3596 = vld [vmem:[#allocation2 + $0x71] sm:$0xff]
    %v3597 = vld [vmem:[#allocation2 + $0x79] sm:$0xff]
    %v3598 = vld [vmem:[#allocation2 + $0x81] sm:$0xff]
    %v3599 = vld [vmem:[#allocation2 + $0x89] sm:$0xff]
    %v3600 = vld [vmem:[#allocation2 + $0x91] sm:$0xff]
    %v3601 = vld [vmem:[#allocation2 + $0x99] sm:$0xff]
    %v3602 = vld [vmem:[#allocation2 + $0xa1] sm:$0xff]
    %v3603 = vld [vmem:[#allocation2 + $0xa9] sm:$0xff]
    %v3604 = vld [vmem:[#allocation2 + $0xb1] sm:$0xff]
    %v3605 = vld [vmem:[#allocation2 + $0xb9] sm:$0xff]
    %v3606 = vld [vmem:[#allocation2 + $0xc1] sm:$0xff]
    %v3607 = vld [vmem:[#allocation2 + $0xc9] sm:$0xff]
    %v3608 = vld [vmem:[#allocation2 + $0xd1] sm:$0xff]
    %v3609 = vld [vmem:[#allocation2 + $0xd9] sm:$0xff]
    %v3610 = vld [vmem:[#allocation2 + $0xe1] sm:$0xff]
    %v3611 = vld [vmem:[#allocation2 + $0xe9] sm:$0xff]
    %v3612 = vld [vmem:[#allocation2 + $0xf1] sm:$0xff]
    %v3613 = vld [vmem:[#allocation2 + $0xf9] sm:$0xff]
    %v3614 = vld [vmem:[#allocation2 + $0x101] sm:$0xff]
    %v3615 = vld [vmem:[#allocation2 + $0x109] sm:$0xff]
    %v3616 = vld [vmem:[#allocation2 + $0x111] sm:$0xff]
    %v3617 = vld [vmem:[#allocation2 + $0x119] sm:$0xff]
    %v3618 = vld [vmem:[#allocation2 + $0x121] sm:$0xff]
    %v3619 = vld [vmem:[#allocation2 + $0x129] sm:$0xff]
    %v3620 = vld [vmem:[#allocation2 + $0x131] sm:$0xff]
    %v3621 = vld [vmem:[#allocation2 + $0x139] sm:$0xff]
    %v3622 = vld [vmem:[#allocation2 + $0x141] sm:$0xff]
    %v3623 = vld [vmem:[#allocation2 + $0x149] sm:$0xff]
    %v3624 = vld [vmem:[#allocation2 + $0x151] sm:$0xff]
    %v3625 = vld [vmem:[#allocation2 + $0x159] sm:$0xff]
    %v3626 = vld [vmem:[#allocation2 + $0x161] sm:$0xff]
    %v3627 = vld [vmem:[#allocation2 + $0x169] sm:$0xff]
    %v3628 = vld [vmem:[#allocation2 + $0x171] sm:$0xff]
    %v3629 = vld [vmem:[#allocation2 + $0x179] sm:$0xff]
    %v3630 = vld [vmem:[#allocation2 + $0x181] sm:$0xff]
    %v3631 = vld [vmem:[#allocation2 + $0x189] sm:$0xff]
    %v3632 = vld [vmem:[#allocation2 + $0x191] sm:$0xff]
    %v3633 = vld [vmem:[#allocation2 + $0x199] sm:$0xff]
    %v3634 = vld [vmem:[#allocation2 + $0x1a1] sm:$0xff]
    %v3635 = vld [vmem:[#allocation2 + $0x1a9] sm:$0xff]
    %v3636 = vld [vmem:[#allocation2 + $0x1b1] sm:$0xff]
    %v3637 = vld [vmem:[#allocation2 + $0x1b9] sm:$0xff]
    %v3638 = vld [vmem:[#allocation2 + $0x1c1] sm:$0xff]
    %v3639 = vld [vmem:[#allocation2 + $0x1c9] sm:$0xff]
    %v3640 = vld [vmem:[#allocation2 + $0x1d1] sm:$0xff]
    %v3641 = vld [vmem:[#allocation2 + $0x1d9] sm:$0xff]
    %v3642 = vld [vmem:[#allocation2 + $0x1e1] sm:$0xff]
    %v3643 = vld [vmem:[#allocation2 + $0x1e9] sm:$0xff]
    %v3644 = vld [vmem:[#allocation2 + $0x1f1] sm:$0xff]
    %v3645 = vld [vmem:[#allocation2 + $0x1f9] sm:$0xff]
    %v3646 = vld [vmem:[#allocation2 + $0x201] sm:$0xff]
    %v3647 = vld [vmem:[#allocation2 + $0x209] sm:$0xff]
    %v3648 = vld [vmem:[#allocation2 + $0x211] sm:$0xff]
    %v3649 = vld [vmem:[#allocation2 + $0x219] sm:$0xff]
    %v3650 = vld [vmem:[#allocation2 + $0x221] sm:$0xff]
    %v3651 = vld [vmem:[#allocation2 + $0x229] sm:$0xff]
    %v3652 = vld [vmem:[#allocation2 + $0x231] sm:$0xff]
    %v3653 = vld [vmem:[#allocation2 + $0x239] sm:$0xff]
    %v3654 = vld [vmem:[#allocation2 + $0x241] sm:$0xff]
    %v3655 = vld [vmem:[#allocation2 + $0x249] sm:$0xff]
    %v3656 = vld [vmem:[#allocation2 + $0x251] sm:$0xff]
    %v3657 = vld [vmem:[#allocation2 + $0x259] sm:$0xff]
    %v3658 = vld [vmem:[#allocation2 + $0x261] sm:$0xff]
    %v3659 = vld [vmem:[#allocation2 + $0x269] sm:$0xff]
    %v3660 = vld [vmem:[#allocation2 + $0x271] sm:$0xff]
    %v3661 = vld [vmem:[#allocation2 + $0x279] sm:$0xff]
    %v3662 = vld [vmem:[#allocation2 + $0x281] sm:$0xff]
    %v3663 = vld [vmem:[#allocation2 + $0x289] sm:$0xff]
    %v3664 = vld [vmem:[#allocation2 + $0x291] sm:$0xff]
    %v3665 = vld [vmem:[#allocation2 + $0x299] sm:$0xff]
    %v3666 = vld [vmem:[#allocation2 + $0x2a1] sm:$0xff]
    %v3667 = vld [vmem:[#allocation2 + $0x2a9] sm:$0xff]
    %v3668 = vld [vmem:[#allocation2 + $0x2b1] sm:$0xff]
    %v3669 = vld [vmem:[#allocation2 + $0x2b9] sm:$0xff]
    %v3670 = vld [vmem:[#allocation2 + $0x2c1] sm:$0xff]
    %v3671 = vld [vmem:[#allocation2 + $0x2c9] sm:$0xff]
    %v3672 = vld [vmem:[#allocation2 + $0x2d1] sm:$0xff]
    %v3673 = vld [vmem:[#allocation2 + $0x2d9] sm:$0xff]
    %v3674 = vld [vmem:[#allocation2 + $0x2e1] sm:$0xff]
    %v3675 = vld [vmem:[#allocation2 + $0x2e9] sm:$0xff]
    %v3676 = vld [vmem:[#allocation2 + $0x2f1] sm:$0xff]
    %v3677 = vld [vmem:[#allocation2 + $0x2f9] sm:$0xff]
    %v3678 = vld [vmem:[#allocation2 + $0x301] sm:$0xff]
    %v3679 = vld [vmem:[#allocation2 + $0x309] sm:$0xff]
    %v3680 = vld [vmem:[#allocation2 + $0x311] sm:$0xff]
    %v3681 = vld [vmem:[#allocation2 + $0x319] sm:$0xff]
    %v3682 = vld [vmem:[#allocation2 + $0x321] sm:$0xff]
    %v3683 = vld [vmem:[#allocation2 + $0x329] sm:$0xff]
    %v3684 = vld [vmem:[#allocation2 + $0x331] sm:$0xff]
    %v3685 = vld [vmem:[#allocation2 + $0x339] sm:$0xff]
    %v3686 = vld [vmem:[#allocation2 + $0x341] sm:$0xff]
    %v3687 = vld [vmem:[#allocation2 + $0x349] sm:$0xff]
    %v3688 = vld [vmem:[#allocation2 + $0x351] sm:$0xff]
    %v3689 = vld [vmem:[#allocation2 + $0x359] sm:$0xff]
    %v3690 = vld [vmem:[#allocation2 + $0x361] sm:$0xff]
    %v3691 = vpack.c.bf16 %v3584, %v3583
    %v3692 = vpack.c.bf16 %v3586, %v3585
    %v3693 = vpack.c.bf16 %v3588, %v3587
    %v3694 = vpack.c.bf16 %v3590, %v3589
    %v3695 = vpack.c.bf16 %v3592, %v3591
    %v3696 = vpack.c.bf16 %v3594, %v3593
    %v3697 = vpack.c.bf16 %v3596, %v3595
    %v3698 = vpack.c.bf16 %v3598, %v3597
    %v3699 = vpack.c.bf16 %v3600, %v3599
    %v3700 = vpack.c.bf16 %v3602, %v3601
    %v3701 = vpack.c.bf16 %v3604, %v3603
    %v3702 = vpack.c.bf16 %v3606, %v3605
    %v3703 = vpack.c.bf16 %v3608, %v3607
    %v3704 = vpack.c.bf16 %v3610, %v3609
    %v3705 = vpack.c.bf16 %v3612, %v3611
    %v3706 = vpack.c.bf16 %v3614, %v3613
    %v3707 = vpack.c.bf16 %v3616, %v3615
    %v3708 = vpack.c.bf16 %v3618, %v3617
    %v3709 = vpack.c.bf16 %v3620, %v3619
    %v3710 = vpack.c.bf16 %v3622, %v3621
    %v3711 = vpack.c.bf16 %v3624, %v3623
    %v3712 = vpack.c.bf16 %v3626, %v3625
    %v3713 = vpack.c.bf16 %v3628, %v3627
    %v3714 = vpack.c.bf16 %v3630, %v3629
    %v3715 = vpack.c.bf16 %v3632, %v3631
    %v3716 = vpack.c.bf16 %v3634, %v3633
    %v3717 = vpack.c.bf16 %v3636, %v3635
    %v3718 = vpack.c.bf16 %v3638, %v3637
    %v3719 = vpack.c.bf16 %v3640, %v3639
    %v3720 = vpack.c.bf16 %v3642, %v3641
    %v3721 = vpack.c.bf16 %v3644, %v3643
    %v3722 = vpack.c.bf16 %v3646, %v3645
    %v3723 = vpack.c.bf16 %v3648, %v3647
    %v3724 = vpack.c.bf16 %v3650, %v3649
    %v3725 = vpack.c.bf16 %v3652, %v3651
    %v3726 = vpack.c.bf16 %v3654, %v3653
    %v3727 = vpack.c.bf16 %v3656, %v3655
    %v3728 = vpack.c.bf16 %v3658, %v3657
    %v3729 = vpack.c.bf16 %v3660, %v3659
    %v3730 = vpack.c.bf16 %v3662, %v3661
    %v3731 = vpack.c.bf16 %v3664, %v3663
    %v3732 = vpack.c.bf16 %v3666, %v3665
    %v3733 = vpack.c.bf16 %v3668, %v3667
    %v3734 = vpack.c.bf16 %v3670, %v3669
    %v3735 = vpack.c.bf16 %v3672, %v3671
    %v3736 = vpack.c.bf16 %v3674, %v3673
    %v3737 = vpack.c.bf16 %v3676, %v3675
    %v3738 = vpack.c.bf16 %v3678, %v3677
    %v3739 = vpack.c.bf16 %v3680, %v3679
    %v3740 = vpack.c.bf16 %v3682, %v3681
    %v3741 = vpack.c.bf16 %v3684, %v3683
    %v3742 = vpack.c.bf16 %v3686, %v3685
    %v3743 = vpack.c.bf16 %v3688, %v3687
    %v3744 = vpack.c.bf16 %v3690, %v3689
    %s3745 = scalar_lea.vmem %s4, 32
    %v3746 = vld [vmem:[%s3745] sm:$0xf]
    %v3747 = vld [vmem:[%s3745 + $0x4] sm:$0xf]
    %v3748 = vld [vmem:[%s3745 + $0x8] sm:$0xf]
    %v3749 = vld [vmem:[%s3745 + $0xc] sm:$0xf]
    %v3754 = vunpack.c.l.b16 %v3746
    %v3755 = vunpack.c.l.b16 %v3747
    %v3756 = vunpack.c.l.b16 %v3748
    %v3757 = vunpack.c.l.b16 %v3749
    %v3758 = vpack.c.b16 %v3755, %v3754
    %v3759 = vpack.c.b16 %v3757, %v3756
    %v3763 = vsel %vm1863, %v3691, 0
    %v3766 = vsel %vm1863, %v3692, 0
    %v3769 = vsel %vm1863, %v3693, 0
    %v3772 = vsel %vm1863, %v3694, 0
    %v3775 = vsel %vm1863, %v3695, 0
    %v3778 = vsel %vm1863, %v3696, 0
    %v3781 = vsel %vm1863, %v3697, 0
    %v3784 = vsel %vm1863, %v3698, 0
    %v3787 = vsel %vm1863, %v3699, 0
    %v3790 = vsel %vm1863, %v3700, 0
    %v3793 = vsel %vm1863, %v3701, 0
    %v3796 = vsel %vm1863, %v3702, 0
    %v3799 = vsel %vm1863, %v3703, 0
    %v3802 = vsel %vm1863, %v3704, 0
    %v3805 = vsel %vm1863, %v3705, 0
    %v3808 = vsel %vm1863, %v3706, 0
    %v3811 = vsel %vm1863, %v3707, 0
    %v3814 = vsel %vm1863, %v3708, 0
    %v3817 = vsel %vm1863, %v3709, 0
    %v3820 = vsel %vm1863, %v3710, 0
    %v3823 = vsel %vm1863, %v3711, 0
    %v3826 = vsel %vm1863, %v3712, 0
    %v3829 = vsel %vm1863, %v3713, 0
    %v3832 = vsel %vm1863, %v3714, 0
    %v3835 = vsel %vm1863, %v3715, 0
    %v3838 = vsel %vm1863, %v3716, 0
    %v3841 = vsel %vm1863, %v3717, 0
    %v3844 = vsel %vm1863, %v3718, 0
    %v3847 = vsel %vm1863, %v3719, 0
    %v3850 = vsel %vm1863, %v3720, 0
    %v3853 = vsel %vm1863, %v3721, 0
    %v3856 = vsel %vm1863, %v3722, 0
    %v3859 = vsel %vm1863, %v3723, 0
    %v3862 = vsel %vm1863, %v3724, 0
    %v3865 = vsel %vm1863, %v3725, 0
    %v3868 = vsel %vm1863, %v3726, 0
    %v3871 = vsel %vm1863, %v3727, 0
    %v3874 = vsel %vm1863, %v3728, 0
    %v3877 = vsel %vm1863, %v3729, 0
    %v3880 = vsel %vm1863, %v3730, 0
    %v3883 = vsel %vm1863, %v3731, 0
    %v3886 = vsel %vm1863, %v3732, 0
    %v3889 = vsel %vm1863, %v3733, 0
    %v3892 = vsel %vm1863, %v3734, 0
    %v3895 = vsel %vm1863, %v3735, 0
    %v3898 = vsel %vm1863, %v3736, 0
    %v3901 = vsel %vm1863, %v3737, 0
    %v3904 = vsel %vm1863, %v3738, 0
    %v3907 = vsel %vm1863, %v3739, 0
    %v3910 = vsel %vm1863, %v3740, 0
    %v3913 = vsel %vm1863, %v3741, 0
    %v3916 = vsel %vm1863, %v3742, 0
    %v3919 = vsel %vm1863, %v3743, 0
    %v3922 = vsel %vm1863, %v3744, 0
    %3924 = vmatprep.subr.bf16.mxu0 0
    %3925 = vmatpush1.bf16.msra.mxu0 %v3758
    %3926 = vmatprep.subr.bf16.mxu0 0
    %3927 = vmatpush1.bf16.msra.mxu0 %v3759
    %3928 = vmatprep.subr.bf16.mxu0 0
    %3929 = vmatpush1.bf16.msra.mxu0 0
    %3930 = vmatprep.subr.bf16.mxu0 0
    %3931 = vmatpush1.bf16.msra.mxu0 0
    %3932 = vmatprep.subr.bf16.mxu0 0
    %3933 = vmatpush1.bf16.msra.mxu0 0
    %3934 = vmatprep.subr.bf16.mxu0 0
    %3935 = vmatpush1.bf16.msra.mxu0 0
    %3936 = vmatprep.subr.bf16.mxu0 0
    %3937 = vmatpush1.bf16.msra.mxu0 0
    %3938 = vmatprep.subr.bf16.mxu0 0
    %3939 = vmatpush1.bf16.msra.mxu0 0
    %3940 = vmatprep.subr.bf16.mxu0 0
    %3941 = vmatpush1.bf16.msra.mxu0 0
    %3942 = vmatprep.subr.bf16.mxu0 0
    %3943 = vmatpush1.bf16.msra.mxu0 0
    %3944 = vmatprep.subr.bf16.mxu0 0
    %3945 = vmatpush1.bf16.msra.mxu0 0
    %3946 = vmatprep.subr.bf16.mxu0 0
    %3947 = vmatpush1.bf16.msra.mxu0 0
    %3948 = vmatprep.subr.bf16.mxu0 0
    %3949 = vmatpush1.bf16.msra.mxu0 0
    %3950 = vmatprep.subr.bf16.mxu0 0
    %3951 = vmatpush1.bf16.msra.mxu0 0
    %3952 = vmatprep.subr.bf16.mxu0 0
    %3953 = vmatpush1.bf16.msra.mxu0 0
    %3954 = vmatprep.subr.bf16.mxu0 0
    %3955 = vmatpush1.bf16.msra.mxu0 0
    %3956 = vmatprep.mubr.bf16.mxu0 0
    %3957 = vmatmul.mubr.bf16.gmra.mrb[0].mxu0 %v3763
    %v3958 = vpop.f32.mrb[0].mxu0
    %v3959 = vadd.f32 0.0, %v3958
    %v3960 = vpop.f32.mrb[0].mxu0
    %v3961 = vpop.f32.mrb[0].mxu0
    %v3962 = vadd.f32 0.0, %v3961
    %v3963 = vpop.f32.mrb[0].mxu0
    %3964 = vmatprep.mubr.bf16.mxu0 0
    %3965 = vmatmul.mubr.bf16.gmra.mrb[0].mxu0 %v3766
    %v3966 = vpop.f32.mrb[0].mxu0
    %v3967 = vadd.f32 0.0, %v3966
    %v3968 = vpop.f32.mrb[0].mxu0
    %v3969 = vpop.f32.mrb[0].mxu0
    %v3970 = vadd.f32 0.0, %v3969
    %v3971 = vpop.f32.mrb[0].mxu0
    %3972 = vmatprep.mubr.bf16.mxu0 0
    %3973 = vmatmul.mubr.bf16.gmra.mrb[0].mxu0 %v3769
    %v3974 = vpop.f32.mrb[0].mxu0
    %v3975 = vadd.f32 0.0, %v3974
    %v3976 = vpop.f32.mrb[0].mxu0
    %v3977 = vpop.f32.mrb[0].mxu0
    %v3978 = vadd.f32 0.0, %v3977
    %v3979 = vpop.f32.mrb[0].mxu0
    %3980 = vmatprep.mubr.bf16.mxu0 0
    %3981 = vmatmul.mubr.bf16.gmra.mrb[0].mxu0 %v3772
    %v3982 = vpop.f32.mrb[0].mxu0
    %v3983 = vadd.f32 0.0, %v3982
    %v3984 = vpop.f32.mrb[0].mxu0
    %v3985 = vpop.f32.mrb[0].mxu0
    %v3986 = vadd.f32 0.0, %v3985
    %v3987 = vpop.f32.mrb[0].mxu0
    %3988 = vmatprep.mubr.bf16.mxu0 0
    %3989 = vmatmul.mubr.bf16.gmra.mrb[0].mxu0 %v3775
    %v3990 = vpop.f32.mrb[0].mxu0
    %v3991 = vadd.f32 0.0, %v3990
    %v3992 = vpop.f32.mrb[0].mxu0
    %v3993 = vpop.f32.mrb[0].mxu0
    %v3994 = vadd.f32 0.0, %v3993
    %v3995 = vpop.f32.mrb[0].mxu0
    %3996 = vmatprep.mubr.bf16.mxu0 0
    %3997 = vmatmul.mubr.bf16.gmra.mrb[0].mxu0 %v3778
    %v3998 = vpop.f32.mrb[0].mxu0
    %v3999 = vadd.f32 0.0, %v3998
    %v4000 = vpop.f32.mrb[0].mxu0
    %v4001 = vpop.f32.mrb[0].mxu0
    %v4002 = vadd.f32 0.0, %v4001
    %v4003 = vpop.f32.mrb[0].mxu0
    %4004 = vmatprep.mubr.bf16.mxu0 0
    %4005 = vmatmul.mubr.bf16.gmra.mrb[0].mxu0 %v3781
    %v4006 = vpop.f32.mrb[0].mxu0
    %v4007 = vadd.f32 0.0, %v4006
    %v4008 = vpop.f32.mrb[0].mxu0
    %v4009 = vpop.f32.mrb[0].mxu0
    %v4010 = vadd.f32 0.0, %v4009
    %v4011 = vpop.f32.mrb[0].mxu0
    %4012 = vmatprep.mubr.bf16.mxu0 0
    %4013 = vmatmul.mubr.bf16.gmra.mrb[0].mxu0 %v3784
    %v4014 = vpop.f32.mrb[0].mxu0
    %v4015 = vadd.f32 0.0, %v4014
    %v4016 = vpop.f32.mrb[0].mxu0
    %v4017 = vpop.f32.mrb[0].mxu0
    %v4018 = vadd.f32 0.0, %v4017
    %v4019 = vpop.f32.mrb[0].mxu0
    %4020 = vmatprep.mubr.bf16.mxu0 0
    %4021 = vmatmul.mubr.bf16.gmra.mrb[0].mxu0 %v3787
    %v4022 = vpop.f32.mrb[0].mxu0
    %v4023 = vadd.f32 0.0, %v4022
    %v4024 = vpop.f32.mrb[0].mxu0
    %v4025 = vpop.f32.mrb[0].mxu0
    %v4026 = vadd.f32 0.0, %v4025
    %v4027 = vpop.f32.mrb[0].mxu0
    %4028 = vmatprep.mubr.bf16.mxu0 0
    %4029 = vmatmul.mubr.bf16.gmra.mrb[0].mxu0 %v3790
    %v4030 = vpop.f32.mrb[0].mxu0
    %v4031 = vadd.f32 0.0, %v4030
    %v4032 = vpop.f32.mrb[0].mxu0
    %v4033 = vpop.f32.mrb[0].mxu0
    %v4034 = vadd.f32 0.0, %v4033
    %v4035 = vpop.f32.mrb[0].mxu0
    %4036 = vmatprep.mubr.bf16.mxu0 0
    %4037 = vmatmul.mubr.bf16.gmra.mrb[0].mxu0 %v3793
    %v4038 = vpop.f32.mrb[0].mxu0
    %v4039 = vadd.f32 0.0, %v4038
    %v4040 = vpop.f32.mrb[0].mxu0
    %v4041 = vpop.f32.mrb[0].mxu0
    %v4042 = vadd.f32 0.0, %v4041
    %v4043 = vpop.f32.mrb[0].mxu0
    %4044 = vmatprep.mubr.bf16.mxu0 0
    %4045 = vmatmul.mubr.bf16.gmra.mrb[0].mxu0 %v3796
    %v4046 = vpop.f32.mrb[0].mxu0
    %v4047 = vadd.f32 0.0, %v4046
    %v4048 = vpop.f32.mrb[0].mxu0
    %v4049 = vpop.f32.mrb[0].mxu0
    %v4050 = vadd.f32 0.0, %v4049
    %v4051 = vpop.f32.mrb[0].mxu0
    %4052 = vmatprep.mubr.bf16.mxu0 0
    %4053 = vmatmul.mubr.bf16.gmra.mrb[0].mxu0 %v3799
    %v4054 = vpop.f32.mrb[0].mxu0
    %v4055 = vadd.f32 0.0, %v4054
    %v4056 = vpop.f32.mrb[0].mxu0
    %v4057 = vpop.f32.mrb[0].mxu0
    %v4058 = vadd.f32 0.0, %v4057
    %v4059 = vpop.f32.mrb[0].mxu0
    %4060 = vmatprep.mubr.bf16.mxu0 0
    %4061 = vmatmul.mubr.bf16.gmra.mrb[0].mxu0 %v3802
    %v4062 = vpop.f32.mrb[0].mxu0
    %v4063 = vadd.f32 0.0, %v4062
    %v4064 = vpop.f32.mrb[0].mxu0
    %v4065 = vpop.f32.mrb[0].mxu0
    %v4066 = vadd.f32 0.0, %v4065
    %v4067 = vpop.f32.mrb[0].mxu0
    %4068 = vmatprep.mubr.bf16.mxu0 0
    %4069 = vmatmul.mubr.bf16.gmra.mrb[0].mxu0 %v3805
    %v4070 = vpop.f32.mrb[0].mxu0
    %v4071 = vadd.f32 0.0, %v4070
    %v4072 = vpop.f32.mrb[0].mxu0
    %v4073 = vpop.f32.mrb[0].mxu0
    %v4074 = vadd.f32 0.0, %v4073
    %v4075 = vpop.f32.mrb[0].mxu0
    %4076 = vmatprep.mubr.bf16.mxu0 0
    %4077 = vmatmul.mubr.bf16.gmra.mrb[0].mxu0 %v3808
    %v4078 = vpop.f32.mrb[0].mxu0
    %v4079 = vadd.f32 0.0, %v4078
    %v4080 = vpop.f32.mrb[0].mxu0
    %v4081 = vpop.f32.mrb[0].mxu0
    %v4082 = vadd.f32 0.0, %v4081
    %v4083 = vpop.f32.mrb[0].mxu0
    %4084 = vmatprep.mubr.bf16.mxu0 0
    %4085 = vmatmul.mubr.bf16.gmra.mrb[0].mxu0 %v3811
    %v4086 = vpop.f32.mrb[0].mxu0
    %v4087 = vadd.f32 0.0, %v4086
    %v4088 = vpop.f32.mrb[0].mxu0
    %v4089 = vpop.f32.mrb[0].mxu0
    %v4090 = vadd.f32 0.0, %v4089
    %v4091 = vpop.f32.mrb[0].mxu0
    %4092 = vmatprep.mubr.bf16.mxu0 0
    %4093 = vmatmul.mubr.bf16.gmra.mrb[0].mxu0 %v3814
    %v4094 = vpop.f32.mrb[0].mxu0
    %v4095 = vadd.f32 0.0, %v4094
    %v4096 = vpop.f32.mrb[0].mxu0
    %v4097 = vpop.f32.mrb[0].mxu0
    %v4098 = vadd.f32 0.0, %v4097
    %v4099 = vpop.f32.mrb[0].mxu0
    %4100 = vmatprep.mubr.bf16.mxu0 0
    %4101 = vmatmul.mubr.bf16.gmra.mrb[0].mxu0 %v3817
    %v4102 = vpop.f32.mrb[0].mxu0
    %v4103 = vadd.f32 0.0, %v4102
    %v4104 = vpop.f32.mrb[0].mxu0
    %v4105 = vpop.f32.mrb[0].mxu0
    %v4106 = vadd.f32 0.0, %v4105
    %v4107 = vpop.f32.mrb[0].mxu0
    %4108 = vmatprep.mubr.bf16.mxu0 0
    %4109 = vmatmul.mubr.bf16.gmra.mrb[0].mxu0 %v3820
    %v4110 = vpop.f32.mrb[0].mxu0
    %v4111 = vadd.f32 0.0, %v4110
    %v4112 = vpop.f32.mrb[0].mxu0
    %v4113 = vpop.f32.mrb[0].mxu0
    %v4114 = vadd.f32 0.0, %v4113
    %v4115 = vpop.f32.mrb[0].mxu0
    %4116 = vmatprep.mubr.bf16.mxu0 0
    %4117 = vmatmul.mubr.bf16.gmra.mrb[0].mxu0 %v3823
    %v4118 = vpop.f32.mrb[0].mxu0
    %v4119 = vadd.f32 0.0, %v4118
    %v4120 = vpop.f32.mrb[0].mxu0
    %v4121 = vpop.f32.mrb[0].mxu0
    %v4122 = vadd.f32 0.0, %v4121
    %v4123 = vpop.f32.mrb[0].mxu0
    %4124 = vmatprep.mubr.bf16.mxu0 0
    %4125 = vmatmul.mubr.bf16.gmra.mrb[0].mxu0 %v3826
    %v4126 = vpop.f32.mrb[0].mxu0
    %v4127 = vadd.f32 0.0, %v4126
    %v4128 = vpop.f32.mrb[0].mxu0
    %v4129 = vpop.f32.mrb[0].mxu0
    %v4130 = vadd.f32 0.0, %v4129
    %v4131 = vpop.f32.mrb[0].mxu0
    %4132 = vmatprep.mubr.bf16.mxu0 0
    %4133 = vmatmul.mubr.bf16.gmra.mrb[0].mxu0 %v3829
    %v4134 = vpop.f32.mrb[0].mxu0
    %v4135 = vadd.f32 0.0, %v4134
    %v4136 = vpop.f32.mrb[0].mxu0
    %v4137 = vpop.f32.mrb[0].mxu0
    %v4138 = vadd.f32 0.0, %v4137
    %v4139 = vpop.f32.mrb[0].mxu0
    %4140 = vmatprep.mubr.bf16.mxu0 0
    %4141 = vmatmul.mubr.bf16.gmra.mrb[0].mxu0 %v3832
    %v4142 = vpop.f32.mrb[0].mxu0
    %v4143 = vadd.f32 0.0, %v4142
    %v4144 = vpop.f32.mrb[0].mxu0
    %v4145 = vpop.f32.mrb[0].mxu0
    %v4146 = vadd.f32 0.0, %v4145
    %v4147 = vpop.f32.mrb[0].mxu0
    %4148 = vmatprep.mubr.bf16.mxu0 0
    %4149 = vmatmul.mubr.bf16.gmra.mrb[0].mxu0 %v3835
    %v4150 = vpop.f32.mrb[0].mxu0
    %v4151 = vadd.f32 0.0, %v4150
    %v4152 = vpop.f32.mrb[0].mxu0
    %v4153 = vpop.f32.mrb[0].mxu0
    %v4154 = vadd.f32 0.0, %v4153
    %v4155 = vpop.f32.mrb[0].mxu0
    %4156 = vmatprep.mubr.bf16.mxu0 0
    %4157 = vmatmul.mubr.bf16.gmra.mrb[0].mxu0 %v3838
    %v4158 = vpop.f32.mrb[0].mxu0
    %v4159 = vadd.f32 0.0, %v4158
    %v4160 = vpop.f32.mrb[0].mxu0
    %v4161 = vpop.f32.mrb[0].mxu0
    %v4162 = vadd.f32 0.0, %v4161
    %v4163 = vpop.f32.mrb[0].mxu0
    %4164 = vmatprep.mubr.bf16.mxu0 0
    %4165 = vmatmul.mubr.bf16.gmra.mrb[0].mxu0 %v3841
    %v4166 = vpop.f32.mrb[0].mxu0
    %v4167 = vadd.f32 0.0, %v4166
    %v4168 = vpop.f32.mrb[0].mxu0
    %v4169 = vpop.f32.mrb[0].mxu0
    %v4170 = vadd.f32 0.0, %v4169
    %v4171 = vpop.f32.mrb[0].mxu0
    %4172 = vmatprep.mubr.bf16.mxu0 0
    %4173 = vmatmul.mubr.bf16.gmra.mrb[0].mxu0 %v3844
    %v4174 = vpop.f32.mrb[0].mxu0
    %v4175 = vadd.f32 0.0, %v4174
    %v4176 = vpop.f32.mrb[0].mxu0
    %v4177 = vpop.f32.mrb[0].mxu0
    %v4178 = vadd.f32 0.0, %v4177
    %v4179 = vpop.f32.mrb[0].mxu0
    %4180 = vmatprep.mubr.bf16.mxu0 0
    %4181 = vmatmul.mubr.bf16.gmra.mrb[0].mxu0 %v3847
    %v4182 = vpop.f32.mrb[0].mxu0
    %v4183 = vadd.f32 0.0, %v4182
    %v4184 = vpop.f32.mrb[0].mxu0
    %v4185 = vpop.f32.mrb[0].mxu0
    %v4186 = vadd.f32 0.0, %v4185
    %v4187 = vpop.f32.mrb[0].mxu0
    %4188 = vmatprep.mubr.bf16.mxu0 0
    %4189 = vmatmul.mubr.bf16.gmra.mrb[0].mxu0 %v3850
    %v4190 = vpop.f32.mrb[0].mxu0
    %v4191 = vadd.f32 0.0, %v4190
    %v4192 = vpop.f32.mrb[0].mxu0
    %v4193 = vpop.f32.mrb[0].mxu0
    %v4194 = vadd.f32 0.0, %v4193
    %v4195 = vpop.f32.mrb[0].mxu0
    %4196 = vmatprep.mubr.bf16.mxu0 0
    %4197 = vmatmul.mubr.bf16.gmra.mrb[0].mxu0 %v3853
    %v4198 = vpop.f32.mrb[0].mxu0
    %v4199 = vadd.f32 0.0, %v4198
    %v4200 = vpop.f32.mrb[0].mxu0
    %v4201 = vpop.f32.mrb[0].mxu0
    %v4202 = vadd.f32 0.0, %v4201
    %v4203 = vpop.f32.mrb[0].mxu0
    %4204 = vmatprep.mubr.bf16.mxu0 0
    %4205 = vmatmul.mubr.bf16.gmra.mrb[0].mxu0 %v3856
    %v4206 = vpop.f32.mrb[0].mxu0
    %v4207 = vadd.f32 0.0, %v4206
    %v4208 = vpop.f32.mrb[0].mxu0
    %v4209 = vpop.f32.mrb[0].mxu0
    %v4210 = vadd.f32 0.0, %v4209
    %v4211 = vpop.f32.mrb[0].mxu0
    %4212 = vmatprep.mubr.bf16.mxu0 0
    %4213 = vmatmul.mubr.bf16.gmra.mrb[0].mxu0 %v3859
    %v4214 = vpop.f32.mrb[0].mxu0
    %v4215 = vadd.f32 0.0, %v4214
    %v4216 = vpop.f32.mrb[0].mxu0
    %v4217 = vpop.f32.mrb[0].mxu0
    %v4218 = vadd.f32 0.0, %v4217
    %v4219 = vpop.f32.mrb[0].mxu0
    %4220 = vmatprep.mubr.bf16.mxu0 0
    %4221 = vmatmul.mubr.bf16.gmra.mrb[0].mxu0 %v3862
    %v4222 = vpop.f32.mrb[0].mxu0
    %v4223 = vadd.f32 0.0, %v4222
    %v4224 = vpop.f32.mrb[0].mxu0
    %v4225 = vpop.f32.mrb[0].mxu0
    %v4226 = vadd.f32 0.0, %v4225
    %v4227 = vpop.f32.mrb[0].mxu0
    %4228 = vmatprep.mubr.bf16.mxu0 0
    %4229 = vmatmul.mubr.bf16.gmra.mrb[0].mxu0 %v3865
    %v4230 = vpop.f32.mrb[0].mxu0
    %v4231 = vadd.f32 0.0, %v4230
    %v4232 = vpop.f32.mrb[0].mxu0
    %v4233 = vpop.f32.mrb[0].mxu0
    %v4234 = vadd.f32 0.0, %v4233
    %v4235 = vpop.f32.mrb[0].mxu0
    %4236 = vmatprep.mubr.bf16.mxu0 0
    %4237 = vmatmul.mubr.bf16.gmra.mrb[0].mxu0 %v3868
    %v4238 = vpop.f32.mrb[0].mxu0
    %v4239 = vadd.f32 0.0, %v4238
    %v4240 = vpop.f32.mrb[0].mxu0
    %v4241 = vpop.f32.mrb[0].mxu0
    %v4242 = vadd.f32 0.0, %v4241
    %v4243 = vpop.f32.mrb[0].mxu0
    %4244 = vmatprep.mubr.bf16.mxu0 0
    %4245 = vmatmul.mubr.bf16.gmra.mrb[0].mxu0 %v3871
    %v4246 = vpop.f32.mrb[0].mxu0
    %v4247 = vadd.f32 0.0, %v4246
    %v4248 = vpop.f32.mrb[0].mxu0
    %v4249 = vpop.f32.mrb[0].mxu0
    %v4250 = vadd.f32 0.0, %v4249
    %v4251 = vpop.f32.mrb[0].mxu0
    %4252 = vmatprep.mubr.bf16.mxu0 0
    %4253 = vmatmul.mubr.bf16.gmra.mrb[0].mxu0 %v3874
    %v4254 = vpop.f32.mrb[0].mxu0
    %v4255 = vadd.f32 0.0, %v4254
    %v4256 = vpop.f32.mrb[0].mxu0
    %v4257 = vpop.f32.mrb[0].mxu0
    %v4258 = vadd.f32 0.0, %v4257
    %v4259 = vpop.f32.mrb[0].mxu0
    %4260 = vmatprep.mubr.bf16.mxu0 0
    %4261 = vmatmul.mubr.bf16.gmra.mrb[0].mxu0 %v3877
    %v4262 = vpop.f32.mrb[0].mxu0
    %v4263 = vadd.f32 0.0, %v4262
    %v4264 = vpop.f32.mrb[0].mxu0
    %v4265 = vpop.f32.mrb[0].mxu0
    %v4266 = vadd.f32 0.0, %v4265
    %v4267 = vpop.f32.mrb[0].mxu0
    %4268 = vmatprep.mubr.bf16.mxu0 0
    %4269 = vmatmul.mubr.bf16.gmra.mrb[0].mxu0 %v3880
    %v4270 = vpop.f32.mrb[0].mxu0
    %v4271 = vadd.f32 0.0, %v4270
    %v4272 = vpop.f32.mrb[0].mxu0
    %v4273 = vpop.f32.mrb[0].mxu0
    %v4274 = vadd.f32 0.0, %v4273
    %v4275 = vpop.f32.mrb[0].mxu0
    %4276 = vmatprep.mubr.bf16.mxu0 0
    %4277 = vmatmul.mubr.bf16.gmra.mrb[0].mxu0 %v3883
    %v4278 = vpop.f32.mrb[0].mxu0
    %v4279 = vadd.f32 0.0, %v4278
    %v4280 = vpop.f32.mrb[0].mxu0
    %v4281 = vpop.f32.mrb[0].mxu0
    %v4282 = vadd.f32 0.0, %v4281
    %v4283 = vpop.f32.mrb[0].mxu0
    %4284 = vmatprep.mubr.bf16.mxu0 0
    %4285 = vmatmul.mubr.bf16.gmra.mrb[0].mxu0 %v3886
    %v4286 = vpop.f32.mrb[0].mxu0
    %v4287 = vadd.f32 0.0, %v4286
    %v4288 = vpop.f32.mrb[0].mxu0
    %v4289 = vpop.f32.mrb[0].mxu0
    %v4290 = vadd.f32 0.0, %v4289
    %v4291 = vpop.f32.mrb[0].mxu0
    %4292 = vmatprep.mubr.bf16.mxu0 0
    %4293 = vmatmul.mubr.bf16.gmra.mrb[0].mxu0 %v3889
    %v4294 = vpop.f32.mrb[0].mxu0
    %v4295 = vadd.f32 0.0, %v4294
    %v4296 = vpop.f32.mrb[0].mxu0
    %v4297 = vpop.f32.mrb[0].mxu0
    %v4298 = vadd.f32 0.0, %v4297
    %v4299 = vpop.f32.mrb[0].mxu0
    %4300 = vmatprep.mubr.bf16.mxu0 0
    %4301 = vmatmul.mubr.bf16.gmra.mrb[0].mxu0 %v3892
    %v4302 = vpop.f32.mrb[0].mxu0
    %v4303 = vadd.f32 0.0, %v4302
    %v4304 = vpop.f32.mrb[0].mxu0
    %v4305 = vpop.f32.mrb[0].mxu0
    %v4306 = vadd.f32 0.0, %v4305
    %v4307 = vpop.f32.mrb[0].mxu0
    %4308 = vmatprep.mubr.bf16.mxu0 0
    %4309 = vmatmul.mubr.bf16.gmra.mrb[0].mxu0 %v3895
    %v4310 = vpop.f32.mrb[0].mxu0
    %v4311 = vadd.f32 0.0, %v4310
    %v4312 = vpop.f32.mrb[0].mxu0
    %v4313 = vpop.f32.mrb[0].mxu0
    %v4314 = vadd.f32 0.0, %v4313
    %v4315 = vpop.f32.mrb[0].mxu0
    %4316 = vmatprep.mubr.bf16.mxu0 0
    %4317 = vmatmul.mubr.bf16.gmra.mrb[0].mxu0 %v3898
    %v4318 = vpop.f32.mrb[0].mxu0
    %v4319 = vadd.f32 0.0, %v4318
    %v4320 = vpop.f32.mrb[0].mxu0
    %v4321 = vpop.f32.mrb[0].mxu0
    %v4322 = vadd.f32 0.0, %v4321
    %v4323 = vpop.f32.mrb[0].mxu0
    %4324 = vmatprep.mubr.bf16.mxu0 0
    %4325 = vmatmul.mubr.bf16.gmra.mrb[0].mxu0 %v3901
    %v4326 = vpop.f32.mrb[0].mxu0
    %v4327 = vadd.f32 0.0, %v4326
    %v4328 = vpop.f32.mrb[0].mxu0
    %v4329 = vpop.f32.mrb[0].mxu0
    %v4330 = vadd.f32 0.0, %v4329
    %v4331 = vpop.f32.mrb[0].mxu0
    %4332 = vmatprep.mubr.bf16.mxu0 0
    %4333 = vmatmul.mubr.bf16.gmra.mrb[0].mxu0 %v3904
    %v4334 = vpop.f32.mrb[0].mxu0
    %v4335 = vadd.f32 0.0, %v4334
    %v4336 = vpop.f32.mrb[0].mxu0
    %v4337 = vpop.f32.mrb[0].mxu0
    %v4338 = vadd.f32 0.0, %v4337
    %v4339 = vpop.f32.mrb[0].mxu0
    %4340 = vmatprep.mubr.bf16.mxu0 0
    %4341 = vmatmul.mubr.bf16.gmra.mrb[0].mxu0 %v3907
    %v4342 = vpop.f32.mrb[0].mxu0
    %v4343 = vadd.f32 0.0, %v4342
    %v4344 = vpop.f32.mrb[0].mxu0
    %v4345 = vpop.f32.mrb[0].mxu0
    %v4346 = vadd.f32 0.0, %v4345
    %v4347 = vpop.f32.mrb[0].mxu0
    %4348 = vmatprep.mubr.bf16.mxu0 0
    %4349 = vmatmul.mubr.bf16.gmra.mrb[0].mxu0 %v3910
    %v4350 = vpop.f32.mrb[0].mxu0
    %v4351 = vadd.f32 0.0, %v4350
    %v4352 = vpop.f32.mrb[0].mxu0
    %v4353 = vpop.f32.mrb[0].mxu0
    %v4354 = vadd.f32 0.0, %v4353
    %v4355 = vpop.f32.mrb[0].mxu0
    %4356 = vmatprep.mubr.bf16.mxu0 0
    %4357 = vmatmul.mubr.bf16.gmra.mrb[0].mxu0 %v3913
    %v4358 = vpop.f32.mrb[0].mxu0
    %v4359 = vadd.f32 0.0, %v4358
    %v4360 = vpop.f32.mrb[0].mxu0
    %v4361 = vpop.f32.mrb[0].mxu0
    %v4362 = vadd.f32 0.0, %v4361
    %v4363 = vpop.f32.mrb[0].mxu0
    %4364 = vmatprep.mubr.bf16.mxu0 0
    %4365 = vmatmul.mubr.bf16.gmra.mrb[0].mxu0 %v3916
    %v4366 = vpop.f32.mrb[0].mxu0
    %v4367 = vadd.f32 0.0, %v4366
    %v4368 = vpop.f32.mrb[0].mxu0
    %v4369 = vpop.f32.mrb[0].mxu0
    %v4370 = vadd.f32 0.0, %v4369
    %v4371 = vpop.f32.mrb[0].mxu0
    %4372 = vmatprep.mubr.bf16.mxu0 0
    %4373 = vmatmul.mubr.bf16.gmra.mrb[0].mxu0 %v3919
    %v4374 = vpop.f32.mrb[0].mxu0
    %v4375 = vadd.f32 0.0, %v4374
    %v4376 = vpop.f32.mrb[0].mxu0
    %v4377 = vpop.f32.mrb[0].mxu0
    %v4378 = vadd.f32 0.0, %v4377
    %v4379 = vpop.f32.mrb[0].mxu0
    %4380 = vmatprep.mubr.bf16.mxu0 0
    %4381 = vmatmul.mubr.bf16.gmra.mrb[0].mxu0 %v3922
    %v4382 = vpop.f32.mrb[0].mxu0
    %v4383 = vadd.f32 0.0, %v4382
    %v4384 = vpop.f32.mrb[0].mxu0
    %v4385 = vpop.f32.mrb[0].mxu0
    %v4386 = vadd.f32 0.0, %v4385
    %v4387 = vpop.f32.mrb[0].mxu0
    %4388 = vdwg.mxu0
    %v4389 = vadd.f32 %v3153, %v3959
    %v4390 = vadd.f32 %v3156, %v3962
    %v4391 = vadd.f32 %v3161, %v3967
    %v4392 = vadd.f32 %v3164, %v3970
    %v4393 = vadd.f32 %v3169, %v3975
    %v4394 = vadd.f32 %v3172, %v3978
    %v4395 = vadd.f32 %v3177, %v3983
    %v4396 = vadd.f32 %v3180, %v3986
    %v4397 = vadd.f32 %v3185, %v3991
    %v4398 = vadd.f32 %v3188, %v3994
    %v4399 = vadd.f32 %v3193, %v3999
    %v4400 = vadd.f32 %v3196, %v4002
    %v4401 = vadd.f32 %v3201, %v4007
    %v4402 = vadd.f32 %v3204, %v4010
    %v4403 = vadd.f32 %v3209, %v4015
    %v4404 = vadd.f32 %v3212, %v4018
    %v4405 = vadd.f32 %v3217, %v4023
    %v4406 = vadd.f32 %v3220, %v4026
    %v4407 = vadd.f32 %v3225, %v4031
    %v4408 = vadd.f32 %v3228, %v4034
    %v4409 = vadd.f32 %v3233, %v4039
    %v4410 = vadd.f32 %v3236, %v4042
    %v4411 = vadd.f32 %v3241, %v4047
    %v4412 = vadd.f32 %v3244, %v4050
    %v4413 = vadd.f32 %v3249, %v4055
    %v4414 = vadd.f32 %v3252, %v4058
    %v4415 = vadd.f32 %v3257, %v4063
    %v4416 = vadd.f32 %v3260, %v4066
    %v4417 = vadd.f32 %v3265, %v4071
    %v4418 = vadd.f32 %v3268, %v4074
    %v4419 = vadd.f32 %v3273, %v4079
    %v4420 = vadd.f32 %v3276, %v4082
    %v4421 = vadd.f32 %v3281, %v4087
    %v4422 = vadd.f32 %v3284, %v4090
    %v4423 = vadd.f32 %v3289, %v4095
    %v4424 = vadd.f32 %v3292, %v4098
    %v4425 = vadd.f32 %v3297, %v4103
    %v4426 = vadd.f32 %v3300, %v4106
    %v4427 = vadd.f32 %v3305, %v4111
    %v4428 = vadd.f32 %v3308, %v4114
    %v4429 = vadd.f32 %v3313, %v4119
    %v4430 = vadd.f32 %v3316, %v4122
    %v4431 = vadd.f32 %v3321, %v4127
    %v4432 = vadd.f32 %v3324, %v4130
    %v4433 = vadd.f32 %v3329, %v4135
    %v4434 = vadd.f32 %v3332, %v4138
    %v4435 = vadd.f32 %v3337, %v4143
    %v4436 = vadd.f32 %v3340, %v4146
    %v4437 = vadd.f32 %v3345, %v4151
    %v4438 = vadd.f32 %v3348, %v4154
    %v4439 = vadd.f32 %v3353, %v4159
    %v4440 = vadd.f32 %v3356, %v4162
    %v4441 = vadd.f32 %v3361, %v4167
    %v4442 = vadd.f32 %v3364, %v4170
    %v4443 = vadd.f32 %v3369, %v4175
    %v4444 = vadd.f32 %v3372, %v4178
    %v4445 = vadd.f32 %v3377, %v4183
    %v4446 = vadd.f32 %v3380, %v4186
    %v4447 = vadd.f32 %v3385, %v4191
    %v4448 = vadd.f32 %v3388, %v4194
    %v4449 = vadd.f32 %v3393, %v4199
    %v4450 = vadd.f32 %v3396, %v4202
    %v4451 = vadd.f32 %v3401, %v4207
    %v4452 = vadd.f32 %v3404, %v4210
    %v4453 = vadd.f32 %v3409, %v4215
    %v4454 = vadd.f32 %v3412, %v4218
    %v4455 = vadd.f32 %v3417, %v4223
    %v4456 = vadd.f32 %v3420, %v4226
    %v4457 = vadd.f32 %v3425, %v4231
    %v4458 = vadd.f32 %v3428, %v4234
    %v4459 = vadd.f32 %v3433, %v4239
    %v4460 = vadd.f32 %v3436, %v4242
    %v4461 = vadd.f32 %v3441, %v4247
    %v4462 = vadd.f32 %v3444, %v4250
    %v4463 = vadd.f32 %v3449, %v4255
    %v4464 = vadd.f32 %v3452, %v4258
    %v4465 = vadd.f32 %v3457, %v4263
    %v4466 = vadd.f32 %v3460, %v4266
    %v4467 = vadd.f32 %v3465, %v4271
    %v4468 = vadd.f32 %v3468, %v4274
    %v4469 = vadd.f32 %v3473, %v4279
    %v4470 = vadd.f32 %v3476, %v4282
    %v4471 = vadd.f32 %v3481, %v4287
    %v4472 = vadd.f32 %v3484, %v4290
    %v4473 = vadd.f32 %v3489, %v4295
    %v4474 = vadd.f32 %v3492, %v4298
    %v4475 = vadd.f32 %v3497, %v4303
    %v4476 = vadd.f32 %v3500, %v4306
    %v4477 = vadd.f32 %v3505, %v4311
    %v4478 = vadd.f32 %v3508, %v4314
    %v4479 = vadd.f32 %v3513, %v4319
    %v4480 = vadd.f32 %v3516, %v4322
    %v4481 = vadd.f32 %v3521, %v4327
    %v4482 = vadd.f32 %v3524, %v4330
    %v4483 = vadd.f32 %v3529, %v4335
    %v4484 = vadd.f32 %v3532, %v4338
    %v4485 = vadd.f32 %v3537, %v4343
    %v4486 = vadd.f32 %v3540, %v4346
    %v4487 = vadd.f32 %v3545, %v4351
    %v4488 = vadd.f32 %v3548, %v4354
    %v4489 = vadd.f32 %v3553, %v4359
    %v4490 = vadd.f32 %v3556, %v4362
    %v4491 = vadd.f32 %v3561, %v4367
    %v4492 = vadd.f32 %v3564, %v4370
    %v4493 = vadd.f32 %v3569, %v4375
    %v4494 = vadd.f32 %v3572, %v4378
    %v4495 = vadd.f32 %v3577, %v4383
    %v4496 = vadd.f32 %v3580, %v4386
    %v4497 = vld [vmem:[#allocation2 + $0x1f] sm:$0xff]
    %v4498 = vld [vmem:[#allocation2 + $0x27] sm:$0xff]
    %v4499 = vld [vmem:[#allocation2 + $0x2f] sm:$0xff]
    %v4500 = vld [vmem:[#allocation2 + $0x37] sm:$0xff]
    %v4501 = vld [vmem:[#allocation2 + $0x3f] sm:$0xff]
    %v4502 = vld [vmem:[#allocation2 + $0x47] sm:$0xff]
    %v4503 = vld [vmem:[#allocation2 + $0x4f] sm:$0xff]
    %v4504 = vld [vmem:[#allocation2 + $0x57] sm:$0xff]
    %v4505 = vld [vmem:[#allocation2 + $0x5f] sm:$0xff]
    %v4506 = vld [vmem:[#allocation2 + $0x67] sm:$0xff]
    %v4507 = vld [vmem:[#allocation2 + $0x6f] sm:$0xff]
    %v4508 = vld [vmem:[#allocation2 + $0x77] sm:$0xff]
    %v4509 = vld [vmem:[#allocation2 + $0x7f] sm:$0xff]
    %v4510 = vld [vmem:[#allocation2 + $0x87] sm:$0xff]
    %v4511 = vld [vmem:[#allocation2 + $0x8f] sm:$0xff]
    %v4512 = vld [vmem:[#allocation2 + $0x97] sm:$0xff]
    %v4513 = vld [vmem:[#allocation2 + $0x9f] sm:$0xff]
    %v4514 = vld [vmem:[#allocation2 + $0xa7] sm:$0xff]
    %v4515 = vld [vmem:[#allocation2 + $0xaf] sm:$0xff]
    %v4516 = vld [vmem:[#allocation2 + $0xb7] sm:$0xff]
    %v4517 = vld [vmem:[#allocation2 + $0xbf] sm:$0xff]
    %v4518 = vld [vmem:[#allocation2 + $0xc7] sm:$0xff]
    %v4519 = vld [vmem:[#allocation2 + $0xcf] sm:$0xff]
    %v4520 = vld [vmem:[#allocation2 + $0xd7] sm:$0xff]
    %v4521 = vld [vmem:[#allocation2 + $0xdf] sm:$0xff]
    %v4522 = vld [vmem:[#allocation2 + $0xe7] sm:$0xff]
    %v4523 = vld [vmem:[#allocation2 + $0xef] sm:$0xff]
    %v4524 = vld [vmem:[#allocation2 + $0xf7] sm:$0xff]
    %v4525 = vld [vmem:[#allocation2 + $0xff] sm:$0xff]
    %v4526 = vld [vmem:[#allocation2 + $0x107] sm:$0xff]
    %v4527 = vld [vmem:[#allocation2 + $0x10f] sm:$0xff]
    %v4528 = vld [vmem:[#allocation2 + $0x117] sm:$0xff]
    %v4529 = vld [vmem:[#allocation2 + $0x11f] sm:$0xff]
    %v4530 = vld [vmem:[#allocation2 + $0x127] sm:$0xff]
    %v4531 = vld [vmem:[#allocation2 + $0x12f] sm:$0xff]
    %v4532 = vld [vmem:[#allocation2 + $0x137] sm:$0xff]
    %v4533 = vld [vmem:[#allocation2 + $0x13f] sm:$0xff]
    %v4534 = vld [vmem:[#allocation2 + $0x147] sm:$0xff]
    %v4535 = vld [vmem:[#allocation2 + $0x14f] sm:$0xff]
    %v4536 = vld [vmem:[#allocation2 + $0x157] sm:$0xff]
    %v4537 = vld [vmem:[#allocation2 + $0x15f] sm:$0xff]
    %v4538 = vld [vmem:[#allocation2 + $0x167] sm:$0xff]
    %v4539 = vld [vmem:[#allocation2 + $0x16f] sm:$0xff]
    %v4540 = vld [vmem:[#allocation2 + $0x177] sm:$0xff]
    %v4541 = vld [vmem:[#allocation2 + $0x17f] sm:$0xff]
    %v4542 = vld [vmem:[#allocation2 + $0x187] sm:$0xff]
    %v4543 = vld [vmem:[#allocation2 + $0x18f] sm:$0xff]
    %v4544 = vld [vmem:[#allocation2 + $0x197] sm:$0xff]
    %v4545 = vld [vmem:[#allocation2 + $0x19f] sm:$0xff]
    %v4546 = vld [vmem:[#allocation2 + $0x1a7] sm:$0xff]
    %v4547 = vld [vmem:[#allocation2 + $0x1af] sm:$0xff]
    %v4548 = vld [vmem:[#allocation2 + $0x1b7] sm:$0xff]
    %v4549 = vld [vmem:[#allocation2 + $0x1bf] sm:$0xff]
    %v4550 = vld [vmem:[#allocation2 + $0x1c7] sm:$0xff]
    %v4551 = vld [vmem:[#allocation2 + $0x1cf] sm:$0xff]
    %v4552 = vld [vmem:[#allocation2 + $0x1d7] sm:$0xff]
    %v4553 = vld [vmem:[#allocation2 + $0x1df] sm:$0xff]
    %v4554 = vld [vmem:[#allocation2 + $0x1e7] sm:$0xff]
    %v4555 = vld [vmem:[#allocation2 + $0x1ef] sm:$0xff]
    %v4556 = vld [vmem:[#allocation2 + $0x1f7] sm:$0xff]
    %v4557 = vld [vmem:[#allocation2 + $0x1ff] sm:$0xff]
    %v4558 = vld [vmem:[#allocation2 + $0x207] sm:$0xff]
    %v4559 = vld [vmem:[#allocation2 + $0x20f] sm:$0xff]
    %v4560 = vld [vmem:[#allocation2 + $0x217] sm:$0xff]
    %v4561 = vld [vmem:[#allocation2 + $0x21f] sm:$0xff]
    %v4562 = vld [vmem:[#allocation2 + $0x227] sm:$0xff]
    %v4563 = vld [vmem:[#allocation2 + $0x22f] sm:$0xff]
    %v4564 = vld [vmem:[#allocation2 + $0x237] sm:$0xff]
    %v4565 = vld [vmem:[#allocation2 + $0x23f] sm:$0xff]
    %v4566 = vld [vmem:[#allocation2 + $0x247] sm:$0xff]
    %v4567 = vld [vmem:[#allocation2 + $0x24f] sm:$0xff]
    %v4568 = vld [vmem:[#allocation2 + $0x257] sm:$0xff]
    %v4569 = vld [vmem:[#allocation2 + $0x25f] sm:$0xff]
    %v4570 = vld [vmem:[#allocation2 + $0x267] sm:$0xff]
    %v4571 = vld [vmem:[#allocation2 + $0x26f] sm:$0xff]
    %v4572 = vld [vmem:[#allocation2 + $0x277] sm:$0xff]
    %v4573 = vld [vmem:[#allocation2 + $0x27f] sm:$0xff]
    %v4574 = vld [vmem:[#allocation2 + $0x287] sm:$0xff]
    %v4575 = vld [vmem:[#allocation2 + $0x28f] sm:$0xff]
    %v4576 = vld [vmem:[#allocation2 + $0x297] sm:$0xff]
    %v4577 = vld [vmem:[#allocation2 + $0x29f] sm:$0xff]
    %v4578 = vld [vmem:[#allocation2 + $0x2a7] sm:$0xff]
    %v4579 = vld [vmem:[#allocation2 + $0x2af] sm:$0xff]
    %v4580 = vld [vmem:[#allocation2 + $0x2b7] sm:$0xff]
    %v4581 = vld [vmem:[#allocation2 + $0x2bf] sm:$0xff]
    %v4582 = vld [vmem:[#allocation2 + $0x2c7] sm:$0xff]
    %v4583 = vld [vmem:[#allocation2 + $0x2cf] sm:$0xff]
    %v4584 = vld [vmem:[#allocation2 + $0x2d7] sm:$0xff]
    %v4585 = vld [vmem:[#allocation2 + $0x2df] sm:$0xff]
    %v4586 = vld [vmem:[#allocation2 + $0x2e7] sm:$0xff]
    %v4587 = vld [vmem:[#allocation2 + $0x2ef] sm:$0xff]
    %v4588 = vld [vmem:[#allocation2 + $0x2f7] sm:$0xff]
    %v4589 = vld [vmem:[#allocation2 + $0x2ff] sm:$0xff]
    %v4590 = vld [vmem:[#allocation2 + $0x307] sm:$0xff]
    %v4591 = vld [vmem:[#allocation2 + $0x30f] sm:$0xff]
    %v4592 = vld [vmem:[#allocation2 + $0x317] sm:$0xff]
    %v4593 = vld [vmem:[#allocation2 + $0x31f] sm:$0xff]
    %v4594 = vld [vmem:[#allocation2 + $0x327] sm:$0xff]
    %v4595 = vld [vmem:[#allocation2 + $0x32f] sm:$0xff]
    %v4596 = vld [vmem:[#allocation2 + $0x337] sm:$0xff]
    %v4597 = vld [vmem:[#allocation2 + $0x33f] sm:$0xff]
    %v4598 = vld [vmem:[#allocation2 + $0x347] sm:$0xff]
    %v4599 = vld [vmem:[#allocation2 + $0x34f] sm:$0xff]
    %v4600 = vld [vmem:[#allocation2 + $0x357] sm:$0xff]
    %v4601 = vld [vmem:[#allocation2 + $0x35f] sm:$0xff]
    %v4602 = vld [vmem:[#allocation2 + $0x367] sm:$0xff]
    %v4603 = vld [vmem:[#allocation2 + $0x36f] sm:$0xff]
    %v4604 = vld [vmem:[#allocation2 + $0x377] sm:$0xff]
    %v4605 = vpack.c.bf16 %v4498, %v4497
    %v4606 = vpack.c.bf16 %v4500, %v4499
    %v4607 = vpack.c.bf16 %v4502, %v4501
    %v4608 = vpack.c.bf16 %v4504, %v4503
    %v4609 = vpack.c.bf16 %v4506, %v4505
    %v4610 = vpack.c.bf16 %v4508, %v4507
    %v4611 = vpack.c.bf16 %v4510, %v4509
    %v4612 = vpack.c.bf16 %v4512, %v4511
    %v4613 = vpack.c.bf16 %v4514, %v4513
    %v4614 = vpack.c.bf16 %v4516, %v4515
    %v4615 = vpack.c.bf16 %v4518, %v4517
    %v4616 = vpack.c.bf16 %v4520, %v4519
    %v4617 = vpack.c.bf16 %v4522, %v4521
    %v4618 = vpack.c.bf16 %v4524, %v4523
    %v4619 = vpack.c.bf16 %v4526, %v4525
    %v4620 = vpack.c.bf16 %v4528, %v4527
    %v4621 = vpack.c.bf16 %v4530, %v4529
    %v4622 = vpack.c.bf16 %v4532, %v4531
    %v4623 = vpack.c.bf16 %v4534, %v4533
    %v4624 = vpack.c.bf16 %v4536, %v4535
    %v4625 = vpack.c.bf16 %v4538, %v4537
    %v4626 = vpack.c.bf16 %v4540, %v4539
    %v4627 = vpack.c.bf16 %v4542, %v4541
    %v4628 = vpack.c.bf16 %v4544, %v4543
    %v4629 = vpack.c.bf16 %v4546, %v4545
    %v4630 = vpack.c.bf16 %v4548, %v4547
    %v4631 = vpack.c.bf16 %v4550, %v4549
    %v4632 = vpack.c.bf16 %v4552, %v4551
    %v4633 = vpack.c.bf16 %v4554, %v4553
    %v4634 = vpack.c.bf16 %v4556, %v4555
    %v4635 = vpack.c.bf16 %v4558, %v4557
    %v4636 = vpack.c.bf16 %v4560, %v4559
    %v4637 = vpack.c.bf16 %v4562, %v4561
    %v4638 = vpack.c.bf16 %v4564, %v4563
    %v4639 = vpack.c.bf16 %v4566, %v4565
    %v4640 = vpack.c.bf16 %v4568, %v4567
    %v4641 = vpack.c.bf16 %v4570, %v4569
    %v4642 = vpack.c.bf16 %v4572, %v4571
    %v4643 = vpack.c.bf16 %v4574, %v4573
    %v4644 = vpack.c.bf16 %v4576, %v4575
    %v4645 = vpack.c.bf16 %v4578, %v4577
    %v4646 = vpack.c.bf16 %v4580, %v4579
    %v4647 = vpack.c.bf16 %v4582, %v4581
    %v4648 = vpack.c.bf16 %v4584, %v4583
    %v4649 = vpack.c.bf16 %v4586, %v4585
    %v4650 = vpack.c.bf16 %v4588, %v4587
    %v4651 = vpack.c.bf16 %v4590, %v4589
    %v4652 = vpack.c.bf16 %v4592, %v4591
    %v4653 = vpack.c.bf16 %v4594, %v4593
    %v4654 = vpack.c.bf16 %v4596, %v4595
    %v4655 = vpack.c.bf16 %v4598, %v4597
    %v4656 = vpack.c.bf16 %v4600, %v4599
    %v4657 = vpack.c.bf16 %v4602, %v4601
    %v4658 = vpack.c.bf16 %v4604, %v4603
    %s4659 = scalar_lea.vmem %s4, 48
    %v4660 = vld [vmem:[%s4659] sm:$0xf]
    %v4661 = vld [vmem:[%s4659 + $0x4] sm:$0xf]
    %v4662 = vld [vmem:[%s4659 + $0x8] sm:$0xf]
    %v4663 = vld [vmem:[%s4659 + $0xc] sm:$0xf]
    %v4668 = vunpack.c.l.b16 %v4660
    %v4669 = vunpack.c.l.b16 %v4661
    %v4670 = vunpack.c.l.b16 %v4662
    %v4671 = vunpack.c.l.b16 %v4663
    %v4672 = vpack.c.b16 %v4669, %v4668
    %v4673 = vpack.c.b16 %v4671, %v4670
    %v4677 = vsel %vm1863, %v4605, 0
    %v4680 = vsel %vm1863, %v4606, 0
    %v4683 = vsel %vm1863, %v4607, 0
    %v4686 = vsel %vm1863, %v4608, 0
    %v4689 = vsel %vm1863, %v4609, 0
    %v4692 = vsel %vm1863, %v4610, 0
    %v4695 = vsel %vm1863, %v4611, 0
    %v4698 = vsel %vm1863, %v4612, 0
    %v4701 = vsel %vm1863, %v4613, 0
    %v4704 = vsel %vm1863, %v4614, 0
    %v4707 = vsel %vm1863, %v4615, 0
    %v4710 = vsel %vm1863, %v4616, 0
    %v4713 = vsel %vm1863, %v4617, 0
    %v4716 = vsel %vm1863, %v4618, 0
    %v4719 = vsel %vm1863, %v4619, 0
    %v4722 = vsel %vm1863, %v4620, 0
    %v4725 = vsel %vm1863, %v4621, 0
    %v4728 = vsel %vm1863, %v4622, 0
    %v4731 = vsel %vm1863, %v4623, 0
    %v4734 = vsel %vm1863, %v4624, 0
    %v4737 = vsel %vm1863, %v4625, 0
    %v4740 = vsel %vm1863, %v4626, 0
    %v4743 = vsel %vm1863, %v4627, 0
    %v4746 = vsel %vm1863, %v4628, 0
    %v4749 = vsel %vm1863, %v4629, 0
    %v4752 = vsel %vm1863, %v4630, 0
    %v4755 = vsel %vm1863, %v4631, 0
    %v4758 = vsel %vm1863, %v4632, 0
    %v4761 = vsel %vm1863, %v4633, 0
    %v4764 = vsel %vm1863, %v4634, 0
    %v4767 = vsel %vm1863, %v4635, 0
    %v4770 = vsel %vm1863, %v4636, 0
    %v4773 = vsel %vm1863, %v4637, 0
    %v4776 = vsel %vm1863, %v4638, 0
    %v4779 = vsel %vm1863, %v4639, 0
    %v4782 = vsel %vm1863, %v4640, 0
    %v4785 = vsel %vm1863, %v4641, 0
    %v4788 = vsel %vm1863, %v4642, 0
    %v4791 = vsel %vm1863, %v4643, 0
    %v4794 = vsel %vm1863, %v4644, 0
    %v4797 = vsel %vm1863, %v4645, 0
    %v4800 = vsel %vm1863, %v4646, 0
    %v4803 = vsel %vm1863, %v4647, 0
    %v4806 = vsel %vm1863, %v4648, 0
    %v4809 = vsel %vm1863, %v4649, 0
    %v4812 = vsel %vm1863, %v4650, 0
    %v4815 = vsel %vm1863, %v4651, 0
    %v4818 = vsel %vm1863, %v4652, 0
    %v4821 = vsel %vm1863, %v4653, 0
    %v4824 = vsel %vm1863, %v4654, 0
    %v4827 = vsel %vm1863, %v4655, 0
    %v4830 = vsel %vm1863, %v4656, 0
    %v4833 = vsel %vm1863, %v4657, 0
    %v4836 = vsel %vm1863, %v4658, 0
    %4838 = vmatprep.subr.bf16.mxu0 0
    %4839 = vmatpush1.bf16.msra.mxu0 %v4672
    %4840 = vmatprep.subr.bf16.mxu0 0
    %4841 = vmatpush1.bf16.msra.mxu0 %v4673
    %4842 = vmatprep.subr.bf16.mxu0 0
    %4843 = vmatpush1.bf16.msra.mxu0 0
    %4844 = vmatprep.subr.bf16.mxu0 0
    %4845 = vmatpush1.bf16.msra.mxu0 0
    %4846 = vmatprep.subr.bf16.mxu0 0
    %4847 = vmatpush1.bf16.msra.mxu0 0
    %4848 = vmatprep.subr.bf16.mxu0 0
    %4849 = vmatpush1.bf16.msra.mxu0 0
    %4850 = vmatprep.subr.bf16.mxu0 0
    %4851 = vmatpush1.bf16.msra.mxu0 0
    %4852 = vmatprep.subr.bf16.mxu0 0
    %4853 = vmatpush1.bf16.msra.mxu0 0
    %4854 = vmatprep.subr.bf16.mxu0 0
    %4855 = vmatpush1.bf16.msra.mxu0 0
    %4856 = vmatprep.subr.bf16.mxu0 0
    %4857 = vmatpush1.bf16.msra.mxu0 0
    %4858 = vmatprep.subr.bf16.mxu0 0
    %4859 = vmatpush1.bf16.msra.mxu0 0
    %4860 = vmatprep.subr.bf16.mxu0 0
    %4861 = vmatpush1.bf16.msra.mxu0 0
    %4862 = vmatprep.subr.bf16.mxu0 0
    %4863 = vmatpush1.bf16.msra.mxu0 0
    %4864 = vmatprep.subr.bf16.mxu0 0
    %4865 = vmatpush1.bf16.msra.mxu0 0
    %4866 = vmatprep.subr.bf16.mxu0 0
    %4867 = vmatpush1.bf16.msra.mxu0 0
    %4868 = vmatprep.subr.bf16.mxu0 0
    %4869 = vmatpush1.bf16.msra.mxu0 0
    %4870 = vmatprep.mubr.bf16.mxu0 0
    %4871 = vmatmul.mubr.bf16.gmra.mrb[0].mxu0 %v4677
    %v4872 = vpop.f32.mrb[0].mxu0
    %v4873 = vadd.f32 0.0, %v4872
    %v4874 = vpop.f32.mrb[0].mxu0
    %v4875 = vpop.f32.mrb[0].mxu0
    %v4876 = vadd.f32 0.0, %v4875
    %v4877 = vpop.f32.mrb[0].mxu0
    %4878 = vmatprep.mubr.bf16.mxu0 0
    %4879 = vmatmul.mubr.bf16.gmra.mrb[0].mxu0 %v4680
    %v4880 = vpop.f32.mrb[0].mxu0
    %v4881 = vadd.f32 0.0, %v4880
    %v4882 = vpop.f32.mrb[0].mxu0
    %v4883 = vpop.f32.mrb[0].mxu0
    %v4884 = vadd.f32 0.0, %v4883
    %v4885 = vpop.f32.mrb[0].mxu0
    %4886 = vmatprep.mubr.bf16.mxu0 0
    %4887 = vmatmul.mubr.bf16.gmra.mrb[0].mxu0 %v4683
    %v4888 = vpop.f32.mrb[0].mxu0
    %v4889 = vadd.f32 0.0, %v4888
    %v4890 = vpop.f32.mrb[0].mxu0
    %v4891 = vpop.f32.mrb[0].mxu0
    %v4892 = vadd.f32 0.0, %v4891
    %v4893 = vpop.f32.mrb[0].mxu0
    %4894 = vmatprep.mubr.bf16.mxu0 0
    %4895 = vmatmul.mubr.bf16.gmra.mrb[0].mxu0 %v4686
    %v4896 = vpop.f32.mrb[0].mxu0
    %v4897 = vadd.f32 0.0, %v4896
    %v4898 = vpop.f32.mrb[0].mxu0
    %v4899 = vpop.f32.mrb[0].mxu0
    %v4900 = vadd.f32 0.0, %v4899
    %v4901 = vpop.f32.mrb[0].mxu0
    %4902 = vmatprep.mubr.bf16.mxu0 0
    %4903 = vmatmul.mubr.bf16.gmra.mrb[0].mxu0 %v4689
    %v4904 = vpop.f32.mrb[0].mxu0
    %v4905 = vadd.f32 0.0, %v4904
    %v4906 = vpop.f32.mrb[0].mxu0
    %v4907 = vpop.f32.mrb[0].mxu0
    %v4908 = vadd.f32 0.0, %v4907
    %v4909 = vpop.f32.mrb[0].mxu0
    %4910 = vmatprep.mubr.bf16.mxu0 0
    %4911 = vmatmul.mubr.bf16.gmra.mrb[0].mxu0 %v4692
    %v4912 = vpop.f32.mrb[0].mxu0
    %v4913 = vadd.f32 0.0, %v4912
    %v4914 = vpop.f32.mrb[0].mxu0
    %v4915 = vpop.f32.mrb[0].mxu0
    %v4916 = vadd.f32 0.0, %v4915
    %v4917 = vpop.f32.mrb[0].mxu0
    %4918 = vmatprep.mubr.bf16.mxu0 0
    %4919 = vmatmul.mubr.bf16.gmra.mrb[0].mxu0 %v4695
    %v4920 = vpop.f32.mrb[0].mxu0
    %v4921 = vadd.f32 0.0, %v4920
    %v4922 = vpop.f32.mrb[0].mxu0
    %v4923 = vpop.f32.mrb[0].mxu0
    %v4924 = vadd.f32 0.0, %v4923
    %v4925 = vpop.f32.mrb[0].mxu0
    %4926 = vmatprep.mubr.bf16.mxu0 0
    %4927 = vmatmul.mubr.bf16.gmra.mrb[0].mxu0 %v4698
    %v4928 = vpop.f32.mrb[0].mxu0
    %v4929 = vadd.f32 0.0, %v4928
    %v4930 = vpop.f32.mrb[0].mxu0
    %v4931 = vpop.f32.mrb[0].mxu0
    %v4932 = vadd.f32 0.0, %v4931
    %v4933 = vpop.f32.mrb[0].mxu0
    %4934 = vmatprep.mubr.bf16.mxu0 0
    %4935 = vmatmul.mubr.bf16.gmra.mrb[0].mxu0 %v4701
    %v4936 = vpop.f32.mrb[0].mxu0
    %v4937 = vadd.f32 0.0, %v4936
    %v4938 = vpop.f32.mrb[0].mxu0
    %v4939 = vpop.f32.mrb[0].mxu0
    %v4940 = vadd.f32 0.0, %v4939
    %v4941 = vpop.f32.mrb[0].mxu0
    %4942 = vmatprep.mubr.bf16.mxu0 0
    %4943 = vmatmul.mubr.bf16.gmra.mrb[0].mxu0 %v4704
    %v4944 = vpop.f32.mrb[0].mxu0
    %v4945 = vadd.f32 0.0, %v4944
    %v4946 = vpop.f32.mrb[0].mxu0
    %v4947 = vpop.f32.mrb[0].mxu0
    %v4948 = vadd.f32 0.0, %v4947
    %v4949 = vpop.f32.mrb[0].mxu0
    %4950 = vmatprep.mubr.bf16.mxu0 0
    %4951 = vmatmul.mubr.bf16.gmra.mrb[0].mxu0 %v4707
    %v4952 = vpop.f32.mrb[0].mxu0
    %v4953 = vadd.f32 0.0, %v4952
    %v4954 = vpop.f32.mrb[0].mxu0
    %v4955 = vpop.f32.mrb[0].mxu0
    %v4956 = vadd.f32 0.0, %v4955
    %v4957 = vpop.f32.mrb[0].mxu0
    %4958 = vmatprep.mubr.bf16.mxu0 0
    %4959 = vmatmul.mubr.bf16.gmra.mrb[0].mxu0 %v4710
    %v4960 = vpop.f32.mrb[0].mxu0
    %v4961 = vadd.f32 0.0, %v4960
    %v4962 = vpop.f32.mrb[0].mxu0
    %v4963 = vpop.f32.mrb[0].mxu0
    %v4964 = vadd.f32 0.0, %v4963
    %v4965 = vpop.f32.mrb[0].mxu0
    %4966 = vmatprep.mubr.bf16.mxu0 0
    %4967 = vmatmul.mubr.bf16.gmra.mrb[0].mxu0 %v4713
    %v4968 = vpop.f32.mrb[0].mxu0
    %v4969 = vadd.f32 0.0, %v4968
    %v4970 = vpop.f32.mrb[0].mxu0
    %v4971 = vpop.f32.mrb[0].mxu0
    %v4972 = vadd.f32 0.0, %v4971
    %v4973 = vpop.f32.mrb[0].mxu0
    %4974 = vmatprep.mubr.bf16.mxu0 0
    %4975 = vmatmul.mubr.bf16.gmra.mrb[0].mxu0 %v4716
    %v4976 = vpop.f32.mrb[0].mxu0
    %v4977 = vadd.f32 0.0, %v4976
    %v4978 = vpop.f32.mrb[0].mxu0
    %v4979 = vpop.f32.mrb[0].mxu0
    %v4980 = vadd.f32 0.0, %v4979
    %v4981 = vpop.f32.mrb[0].mxu0
    %4982 = vmatprep.mubr.bf16.mxu0 0
    %4983 = vmatmul.mubr.bf16.gmra.mrb[0].mxu0 %v4719
    %v4984 = vpop.f32.mrb[0].mxu0
    %v4985 = vadd.f32 0.0, %v4984
    %v4986 = vpop.f32.mrb[0].mxu0
    %v4987 = vpop.f32.mrb[0].mxu0
    %v4988 = vadd.f32 0.0, %v4987
    %v4989 = vpop.f32.mrb[0].mxu0
    %4990 = vmatprep.mubr.bf16.mxu0 0
    %4991 = vmatmul.mubr.bf16.gmra.mrb[0].mxu0 %v4722
    %v4992 = vpop.f32.mrb[0].mxu0
    %v4993 = vadd.f32 0.0, %v4992
    %v4994 = vpop.f32.mrb[0].mxu0
    %v4995 = vpop.f32.mrb[0].mxu0
    %v4996 = vadd.f32 0.0, %v4995
    %v4997 = vpop.f32.mrb[0].mxu0
    %4998 = vmatprep.mubr.bf16.mxu0 0
    %4999 = vmatmul.mubr.bf16.gmra.mrb[0].mxu0 %v4725
    %v5000 = vpop.f32.mrb[0].mxu0
    %v5001 = vadd.f32 0.0, %v5000
    %v5002 = vpop.f32.mrb[0].mxu0
    %v5003 = vpop.f32.mrb[0].mxu0
    %v5004 = vadd.f32 0.0, %v5003
    %v5005 = vpop.f32.mrb[0].mxu0
    %5006 = vmatprep.mubr.bf16.mxu0 0
    %5007 = vmatmul.mubr.bf16.gmra.mrb[0].mxu0 %v4728
    %v5008 = vpop.f32.mrb[0].mxu0
    %v5009 = vadd.f32 0.0, %v5008
    %v5010 = vpop.f32.mrb[0].mxu0
    %v5011 = vpop.f32.mrb[0].mxu0
    %v5012 = vadd.f32 0.0, %v5011
    %v5013 = vpop.f32.mrb[0].mxu0
    %5014 = vmatprep.mubr.bf16.mxu0 0
    %5015 = vmatmul.mubr.bf16.gmra.mrb[0].mxu0 %v4731
    %v5016 = vpop.f32.mrb[0].mxu0
    %v5017 = vadd.f32 0.0, %v5016
    %v5018 = vpop.f32.mrb[0].mxu0
    %v5019 = vpop.f32.mrb[0].mxu0
    %v5020 = vadd.f32 0.0, %v5019
    %v5021 = vpop.f32.mrb[0].mxu0
    %5022 = vmatprep.mubr.bf16.mxu0 0
    %5023 = vmatmul.mubr.bf16.gmra.mrb[0].mxu0 %v4734
    %v5024 = vpop.f32.mrb[0].mxu0
    %v5025 = vadd.f32 0.0, %v5024
    %v5026 = vpop.f32.mrb[0].mxu0
    %v5027 = vpop.f32.mrb[0].mxu0
    %v5028 = vadd.f32 0.0, %v5027
    %v5029 = vpop.f32.mrb[0].mxu0
    %5030 = vmatprep.mubr.bf16.mxu0 0
    %5031 = vmatmul.mubr.bf16.gmra.mrb[0].mxu0 %v4737
    %v5032 = vpop.f32.mrb[0].mxu0
    %v5033 = vadd.f32 0.0, %v5032
    %v5034 = vpop.f32.mrb[0].mxu0
    %v5035 = vpop.f32.mrb[0].mxu0
    %v5036 = vadd.f32 0.0, %v5035
    %v5037 = vpop.f32.mrb[0].mxu0
    %5038 = vmatprep.mubr.bf16.mxu0 0
    %5039 = vmatmul.mubr.bf16.gmra.mrb[0].mxu0 %v4740
    %v5040 = vpop.f32.mrb[0].mxu0
    %v5041 = vadd.f32 0.0, %v5040
    %v5042 = vpop.f32.mrb[0].mxu0
    %v5043 = vpop.f32.mrb[0].mxu0
    %v5044 = vadd.f32 0.0, %v5043
    %v5045 = vpop.f32.mrb[0].mxu0
    %5046 = vmatprep.mubr.bf16.mxu0 0
    %5047 = vmatmul.mubr.bf16.gmra.mrb[0].mxu0 %v4743
    %v5048 = vpop.f32.mrb[0].mxu0
    %v5049 = vadd.f32 0.0, %v5048
    %v5050 = vpop.f32.mrb[0].mxu0
    %v5051 = vpop.f32.mrb[0].mxu0
    %v5052 = vadd.f32 0.0, %v5051
    %v5053 = vpop.f32.mrb[0].mxu0
    %5054 = vmatprep.mubr.bf16.mxu0 0
    %5055 = vmatmul.mubr.bf16.gmra.mrb[0].mxu0 %v4746
    %v5056 = vpop.f32.mrb[0].mxu0
    %v5057 = vadd.f32 0.0, %v5056
    %v5058 = vpop.f32.mrb[0].mxu0
    %v5059 = vpop.f32.mrb[0].mxu0
    %v5060 = vadd.f32 0.0, %v5059
    %v5061 = vpop.f32.mrb[0].mxu0
    %5062 = vmatprep.mubr.bf16.mxu0 0
    %5063 = vmatmul.mubr.bf16.gmra.mrb[0].mxu0 %v4749
    %v5064 = vpop.f32.mrb[0].mxu0
    %v5065 = vadd.f32 0.0, %v5064
    %v5066 = vpop.f32.mrb[0].mxu0
    %v5067 = vpop.f32.mrb[0].mxu0
    %v5068 = vadd.f32 0.0, %v5067
    %v5069 = vpop.f32.mrb[0].mxu0
    %5070 = vmatprep.mubr.bf16.mxu0 0
    %5071 = vmatmul.mubr.bf16.gmra.mrb[0].mxu0 %v4752
    %v5072 = vpop.f32.mrb[0].mxu0
    %v5073 = vadd.f32 0.0, %v5072
    %v5074 = vpop.f32.mrb[0].mxu0
    %v5075 = vpop.f32.mrb[0].mxu0
    %v5076 = vadd.f32 0.0, %v5075
    %v5077 = vpop.f32.mrb[0].mxu0
    %5078 = vmatprep.mubr.bf16.mxu0 0
    %5079 = vmatmul.mubr.bf16.gmra.mrb[0].mxu0 %v4755
    %v5080 = vpop.f32.mrb[0].mxu0
    %v5081 = vadd.f32 0.0, %v5080
    %v5082 = vpop.f32.mrb[0].mxu0
    %v5083 = vpop.f32.mrb[0].mxu0
    %v5084 = vadd.f32 0.0, %v5083
    %v5085 = vpop.f32.mrb[0].mxu0
    %5086 = vmatprep.mubr.bf16.mxu0 0
    %5087 = vmatmul.mubr.bf16.gmra.mrb[0].mxu0 %v4758
    %v5088 = vpop.f32.mrb[0].mxu0
    %v5089 = vadd.f32 0.0, %v5088
    %v5090 = vpop.f32.mrb[0].mxu0
    %v5091 = vpop.f32.mrb[0].mxu0
    %v5092 = vadd.f32 0.0, %v5091
    %v5093 = vpop.f32.mrb[0].mxu0
    %5094 = vmatprep.mubr.bf16.mxu0 0
    %5095 = vmatmul.mubr.bf16.gmra.mrb[0].mxu0 %v4761
    %v5096 = vpop.f32.mrb[0].mxu0
    %v5097 = vadd.f32 0.0, %v5096
    %v5098 = vpop.f32.mrb[0].mxu0
    %v5099 = vpop.f32.mrb[0].mxu0
    %v5100 = vadd.f32 0.0, %v5099
    %v5101 = vpop.f32.mrb[0].mxu0
    %5102 = vmatprep.mubr.bf16.mxu0 0
    %5103 = vmatmul.mubr.bf16.gmra.mrb[0].mxu0 %v4764
    %v5104 = vpop.f32.mrb[0].mxu0
    %v5105 = vadd.f32 0.0, %v5104
    %v5106 = vpop.f32.mrb[0].mxu0
    %v5107 = vpop.f32.mrb[0].mxu0
    %v5108 = vadd.f32 0.0, %v5107
    %v5109 = vpop.f32.mrb[0].mxu0
    %5110 = vmatprep.mubr.bf16.mxu0 0
    %5111 = vmatmul.mubr.bf16.gmra.mrb[0].mxu0 %v4767
    %v5112 = vpop.f32.mrb[0].mxu0
    %v5113 = vadd.f32 0.0, %v5112
    %v5114 = vpop.f32.mrb[0].mxu0
    %v5115 = vpop.f32.mrb[0].mxu0
    %v5116 = vadd.f32 0.0, %v5115
    %v5117 = vpop.f32.mrb[0].mxu0
    %5118 = vmatprep.mubr.bf16.mxu0 0
    %5119 = vmatmul.mubr.bf16.gmra.mrb[0].mxu0 %v4770
    %v5120 = vpop.f32.mrb[0].mxu0
    %v5121 = vadd.f32 0.0, %v5120
    %v5122 = vpop.f32.mrb[0].mxu0
    %v5123 = vpop.f32.mrb[0].mxu0
    %v5124 = vadd.f32 0.0, %v5123
    %v5125 = vpop.f32.mrb[0].mxu0
    %5126 = vmatprep.mubr.bf16.mxu0 0
    %5127 = vmatmul.mubr.bf16.gmra.mrb[0].mxu0 %v4773
    %v5128 = vpop.f32.mrb[0].mxu0
    %v5129 = vadd.f32 0.0, %v5128
    %v5130 = vpop.f32.mrb[0].mxu0
    %v5131 = vpop.f32.mrb[0].mxu0
    %v5132 = vadd.f32 0.0, %v5131
    %v5133 = vpop.f32.mrb[0].mxu0
    %5134 = vmatprep.mubr.bf16.mxu0 0
    %5135 = vmatmul.mubr.bf16.gmra.mrb[0].mxu0 %v4776
    %v5136 = vpop.f32.mrb[0].mxu0
    %v5137 = vadd.f32 0.0, %v5136
    %v5138 = vpop.f32.mrb[0].mxu0
    %v5139 = vpop.f32.mrb[0].mxu0
    %v5140 = vadd.f32 0.0, %v5139
    %v5141 = vpop.f32.mrb[0].mxu0
    %5142 = vmatprep.mubr.bf16.mxu0 0
    %5143 = vmatmul.mubr.bf16.gmra.mrb[0].mxu0 %v4779
    %v5144 = vpop.f32.mrb[0].mxu0
    %v5145 = vadd.f32 0.0, %v5144
    %v5146 = vpop.f32.mrb[0].mxu0
    %v5147 = vpop.f32.mrb[0].mxu0
    %v5148 = vadd.f32 0.0, %v5147
    %v5149 = vpop.f32.mrb[0].mxu0
    %5150 = vmatprep.mubr.bf16.mxu0 0
    %5151 = vmatmul.mubr.bf16.gmra.mrb[0].mxu0 %v4782
    %v5152 = vpop.f32.mrb[0].mxu0
    %v5153 = vadd.f32 0.0, %v5152
    %v5154 = vpop.f32.mrb[0].mxu0
    %v5155 = vpop.f32.mrb[0].mxu0
    %v5156 = vadd.f32 0.0, %v5155
    %v5157 = vpop.f32.mrb[0].mxu0
    %5158 = vmatprep.mubr.bf16.mxu0 0
    %5159 = vmatmul.mubr.bf16.gmra.mrb[0].mxu0 %v4785
    %v5160 = vpop.f32.mrb[0].mxu0
    %v5161 = vadd.f32 0.0, %v5160
    %v5162 = vpop.f32.mrb[0].mxu0
    %v5163 = vpop.f32.mrb[0].mxu0
    %v5164 = vadd.f32 0.0, %v5163
    %v5165 = vpop.f32.mrb[0].mxu0
    %5166 = vmatprep.mubr.bf16.mxu0 0
    %5167 = vmatmul.mubr.bf16.gmra.mrb[0].mxu0 %v4788
    %v5168 = vpop.f32.mrb[0].mxu0
    %v5169 = vadd.f32 0.0, %v5168
    %v5170 = vpop.f32.mrb[0].mxu0
    %v5171 = vpop.f32.mrb[0].mxu0
    %v5172 = vadd.f32 0.0, %v5171
    %v5173 = vpop.f32.mrb[0].mxu0
    %5174 = vmatprep.mubr.bf16.mxu0 0
    %5175 = vmatmul.mubr.bf16.gmra.mrb[0].mxu0 %v4791
    %v5176 = vpop.f32.mrb[0].mxu0
    %v5177 = vadd.f32 0.0, %v5176
    %v5178 = vpop.f32.mrb[0].mxu0
    %v5179 = vpop.f32.mrb[0].mxu0
    %v5180 = vadd.f32 0.0, %v5179
    %v5181 = vpop.f32.mrb[0].mxu0
    %5182 = vmatprep.mubr.bf16.mxu0 0
    %5183 = vmatmul.mubr.bf16.gmra.mrb[0].mxu0 %v4794
    %v5184 = vpop.f32.mrb[0].mxu0
    %v5185 = vadd.f32 0.0, %v5184
    %v5186 = vpop.f32.mrb[0].mxu0
    %v5187 = vpop.f32.mrb[0].mxu0
    %v5188 = vadd.f32 0.0, %v5187
    %v5189 = vpop.f32.mrb[0].mxu0
    %5190 = vmatprep.mubr.bf16.mxu0 0
    %5191 = vmatmul.mubr.bf16.gmra.mrb[0].mxu0 %v4797
    %v5192 = vpop.f32.mrb[0].mxu0
    %v5193 = vadd.f32 0.0, %v5192
    %v5194 = vpop.f32.mrb[0].mxu0
    %v5195 = vpop.f32.mrb[0].mxu0
    %v5196 = vadd.f32 0.0, %v5195
    %v5197 = vpop.f32.mrb[0].mxu0
    %5198 = vmatprep.mubr.bf16.mxu0 0
    %5199 = vmatmul.mubr.bf16.gmra.mrb[0].mxu0 %v4800
    %v5200 = vpop.f32.mrb[0].mxu0
    %v5201 = vadd.f32 0.0, %v5200
    %v5202 = vpop.f32.mrb[0].mxu0
    %v5203 = vpop.f32.mrb[0].mxu0
    %v5204 = vadd.f32 0.0, %v5203
    %v5205 = vpop.f32.mrb[0].mxu0
    %5206 = vmatprep.mubr.bf16.mxu0 0
    %5207 = vmatmul.mubr.bf16.gmra.mrb[0].mxu0 %v4803
    %v5208 = vpop.f32.mrb[0].mxu0
    %v5209 = vadd.f32 0.0, %v5208
    %v5210 = vpop.f32.mrb[0].mxu0
    %v5211 = vpop.f32.mrb[0].mxu0
    %v5212 = vadd.f32 0.0, %v5211
    %v5213 = vpop.f32.mrb[0].mxu0
    %5214 = vmatprep.mubr.bf16.mxu0 0
    %5215 = vmatmul.mubr.bf16.gmra.mrb[0].mxu0 %v4806
    %v5216 = vpop.f32.mrb[0].mxu0
    %v5217 = vadd.f32 0.0, %v5216
    %v5218 = vpop.f32.mrb[0].mxu0
    %v5219 = vpop.f32.mrb[0].mxu0
    %v5220 = vadd.f32 0.0, %v5219
    %v5221 = vpop.f32.mrb[0].mxu0
    %5222 = vmatprep.mubr.bf16.mxu0 0
    %5223 = vmatmul.mubr.bf16.gmra.mrb[0].mxu0 %v4809
    %v5224 = vpop.f32.mrb[0].mxu0
    %v5225 = vadd.f32 0.0, %v5224
    %v5226 = vpop.f32.mrb[0].mxu0
    %v5227 = vpop.f32.mrb[0].mxu0
    %v5228 = vadd.f32 0.0, %v5227
    %v5229 = vpop.f32.mrb[0].mxu0
    %5230 = vmatprep.mubr.bf16.mxu0 0
    %5231 = vmatmul.mubr.bf16.gmra.mrb[0].mxu0 %v4812
    %v5232 = vpop.f32.mrb[0].mxu0
    %v5233 = vadd.f32 0.0, %v5232
    %v5234 = vpop.f32.mrb[0].mxu0
    %v5235 = vpop.f32.mrb[0].mxu0
    %v5236 = vadd.f32 0.0, %v5235
    %v5237 = vpop.f32.mrb[0].mxu0
    %5238 = vmatprep.mubr.bf16.mxu0 0
    %5239 = vmatmul.mubr.bf16.gmra.mrb[0].mxu0 %v4815
    %v5240 = vpop.f32.mrb[0].mxu0
    %v5241 = vadd.f32 0.0, %v5240
    %v5242 = vpop.f32.mrb[0].mxu0
    %v5243 = vpop.f32.mrb[0].mxu0
    %v5244 = vadd.f32 0.0, %v5243
    %v5245 = vpop.f32.mrb[0].mxu0
    %5246 = vmatprep.mubr.bf16.mxu0 0
    %5247 = vmatmul.mubr.bf16.gmra.mrb[0].mxu0 %v4818
    %v5248 = vpop.f32.mrb[0].mxu0
    %v5249 = vadd.f32 0.0, %v5248
    %v5250 = vpop.f32.mrb[0].mxu0
    %v5251 = vpop.f32.mrb[0].mxu0
    %v5252 = vadd.f32 0.0, %v5251
    %v5253 = vpop.f32.mrb[0].mxu0
    %5254 = vmatprep.mubr.bf16.mxu0 0
    %5255 = vmatmul.mubr.bf16.gmra.mrb[0].mxu0 %v4821
    %v5256 = vpop.f32.mrb[0].mxu0
    %v5257 = vadd.f32 0.0, %v5256
    %v5258 = vpop.f32.mrb[0].mxu0
    %v5259 = vpop.f32.mrb[0].mxu0
    %v5260 = vadd.f32 0.0, %v5259
    %v5261 = vpop.f32.mrb[0].mxu0
    %5262 = vmatprep.mubr.bf16.mxu0 0
    %5263 = vmatmul.mubr.bf16.gmra.mrb[0].mxu0 %v4824
    %v5264 = vpop.f32.mrb[0].mxu0
    %v5265 = vadd.f32 0.0, %v5264
    %v5266 = vpop.f32.mrb[0].mxu0
    %v5267 = vpop.f32.mrb[0].mxu0
    %v5268 = vadd.f32 0.0, %v5267
    %v5269 = vpop.f32.mrb[0].mxu0
    %5270 = vmatprep.mubr.bf16.mxu0 0
    %5271 = vmatmul.mubr.bf16.gmra.mrb[0].mxu0 %v4827
    %v5272 = vpop.f32.mrb[0].mxu0
    %v5273 = vadd.f32 0.0, %v5272
    %v5274 = vpop.f32.mrb[0].mxu0
    %v5275 = vpop.f32.mrb[0].mxu0
    %v5276 = vadd.f32 0.0, %v5275
    %v5277 = vpop.f32.mrb[0].mxu0
    %5278 = vmatprep.mubr.bf16.mxu0 0
    %5279 = vmatmul.mubr.bf16.gmra.mrb[0].mxu0 %v4830
    %v5280 = vpop.f32.mrb[0].mxu0
    %v5281 = vadd.f32 0.0, %v5280
    %v5282 = vpop.f32.mrb[0].mxu0
    %v5283 = vpop.f32.mrb[0].mxu0
    %v5284 = vadd.f32 0.0, %v5283
    %v5285 = vpop.f32.mrb[0].mxu0
    %5286 = vmatprep.mubr.bf16.mxu0 0
    %5287 = vmatmul.mubr.bf16.gmra.mrb[0].mxu0 %v4833
    %v5288 = vpop.f32.mrb[0].mxu0
    %v5289 = vadd.f32 0.0, %v5288
    %v5290 = vpop.f32.mrb[0].mxu0
    %v5291 = vpop.f32.mrb[0].mxu0
    %v5292 = vadd.f32 0.0, %v5291
    %v5293 = vpop.f32.mrb[0].mxu0
    %5294 = vmatprep.mubr.bf16.mxu0 0
    %5295 = vmatmul.mubr.bf16.gmra.mrb[0].mxu0 %v4836
    %v5296 = vpop.f32.mrb[0].mxu0
    %v5297 = vadd.f32 0.0, %v5296
    %v5298 = vpop.f32.mrb[0].mxu0
    %v5299 = vpop.f32.mrb[0].mxu0
    %v5300 = vadd.f32 0.0, %v5299
    %v5301 = vpop.f32.mrb[0].mxu0
    %5302 = vdwg.mxu0
    %v5303 = vadd.f32 %v4389, %v4873
    %v5304 = vadd.f32 %v4390, %v4876
    %v5305 = vadd.f32 %v4391, %v4881
    %v5306 = vadd.f32 %v4392, %v4884
    %v5307 = vadd.f32 %v4393, %v4889
    %v5308 = vadd.f32 %v4394, %v4892
    %v5309 = vadd.f32 %v4395, %v4897
    %v5310 = vadd.f32 %v4396, %v4900
    %v5311 = vadd.f32 %v4397, %v4905
    %v5312 = vadd.f32 %v4398, %v4908
    %v5313 = vadd.f32 %v4399, %v4913
    %v5314 = vadd.f32 %v4400, %v4916
    %v5315 = vadd.f32 %v4401, %v4921
    %v5316 = vadd.f32 %v4402, %v4924
    %v5317 = vadd.f32 %v4403, %v4929
    %v5318 = vadd.f32 %v4404, %v4932
    %v5319 = vadd.f32 %v4405, %v4937
    %v5320 = vadd.f32 %v4406, %v4940
    %v5321 = vadd.f32 %v4407, %v4945
    %v5322 = vadd.f32 %v4408, %v4948
    %v5323 = vadd.f32 %v4409, %v4953
    %v5324 = vadd.f32 %v4410, %v4956
    %v5325 = vadd.f32 %v4411, %v4961
    %v5326 = vadd.f32 %v4412, %v4964
    %v5327 = vadd.f32 %v4413, %v4969
    %v5328 = vadd.f32 %v4414, %v4972
    %v5329 = vadd.f32 %v4415, %v4977
    %v5330 = vadd.f32 %v4416, %v4980
    %v5331 = vadd.f32 %v4417, %v4985
    %v5332 = vadd.f32 %v4418, %v4988
    %v5333 = vadd.f32 %v4419, %v4993
    %v5334 = vadd.f32 %v4420, %v4996
    %v5335 = vadd.f32 %v4421, %v5001
    %v5336 = vadd.f32 %v4422, %v5004
    %v5337 = vadd.f32 %v4423, %v5009
    %v5338 = vadd.f32 %v4424, %v5012
    %v5339 = vadd.f32 %v4425, %v5017
    %v5340 = vadd.f32 %v4426, %v5020
    %v5341 = vadd.f32 %v4427, %v5025
    %v5342 = vadd.f32 %v4428, %v5028
    %v5343 = vadd.f32 %v4429, %v5033
    %v5344 = vadd.f32 %v4430, %v5036
    %v5345 = vadd.f32 %v4431, %v5041
    %v5346 = vadd.f32 %v4432, %v5044
    %v5347 = vadd.f32 %v4433, %v5049
    %v5348 = vadd.f32 %v4434, %v5052
    %v5349 = vadd.f32 %v4435, %v5057
    %v5350 = vadd.f32 %v4436, %v5060
    %v5351 = vadd.f32 %v4437, %v5065
    %v5352 = vadd.f32 %v4438, %v5068
    %v5353 = vadd.f32 %v4439, %v5073
    %v5354 = vadd.f32 %v4440, %v5076
    %v5355 = vadd.f32 %v4441, %v5081
    %v5356 = vadd.f32 %v4442, %v5084
    %v5357 = vadd.f32 %v4443, %v5089
    %v5358 = vadd.f32 %v4444, %v5092
    %v5359 = vadd.f32 %v4445, %v5097
    %v5360 = vadd.f32 %v4446, %v5100
    %v5361 = vadd.f32 %v4447, %v5105
    %v5362 = vadd.f32 %v4448, %v5108
    %v5363 = vadd.f32 %v4449, %v5113
    %v5364 = vadd.f32 %v4450, %v5116
    %v5365 = vadd.f32 %v4451, %v5121
    %v5366 = vadd.f32 %v4452, %v5124
    %v5367 = vadd.f32 %v4453, %v5129
    %v5368 = vadd.f32 %v4454, %v5132
    %v5369 = vadd.f32 %v4455, %v5137
    %v5370 = vadd.f32 %v4456, %v5140
    %v5371 = vadd.f32 %v4457, %v5145
    %v5372 = vadd.f32 %v4458, %v5148
    %v5373 = vadd.f32 %v4459, %v5153
    %v5374 = vadd.f32 %v4460, %v5156
    %v5375 = vadd.f32 %v4461, %v5161
    %v5376 = vadd.f32 %v4462, %v5164
    %v5377 = vadd.f32 %v4463, %v5169
    %v5378 = vadd.f32 %v4464, %v5172
    %v5379 = vadd.f32 %v4465, %v5177
    %v5380 = vadd.f32 %v4466, %v5180
    %v5381 = vadd.f32 %v4467, %v5185
    %v5382 = vadd.f32 %v4468, %v5188
    %v5383 = vadd.f32 %v4469, %v5193
    %v5384 = vadd.f32 %v4470, %v5196
    %v5385 = vadd.f32 %v4471, %v5201
    %v5386 = vadd.f32 %v4472, %v5204
    %v5387 = vadd.f32 %v4473, %v5209
    %v5388 = vadd.f32 %v4474, %v5212
    %v5389 = vadd.f32 %v4475, %v5217
    %v5390 = vadd.f32 %v4476, %v5220
    %v5391 = vadd.f32 %v4477, %v5225
    %v5392 = vadd.f32 %v4478, %v5228
    %v5393 = vadd.f32 %v4479, %v5233
    %v5394 = vadd.f32 %v4480, %v5236
    %v5395 = vadd.f32 %v4481, %v5241
    %v5396 = vadd.f32 %v4482, %v5244
    %v5397 = vadd.f32 %v4483, %v5249
    %v5398 = vadd.f32 %v4484, %v5252
    %v5399 = vadd.f32 %v4485, %v5257
    %v5400 = vadd.f32 %v4486, %v5260
    %v5401 = vadd.f32 %v4487, %v5265
    %v5402 = vadd.f32 %v4488, %v5268
    %v5403 = vadd.f32 %v4489, %v5273
    %v5404 = vadd.f32 %v4490, %v5276
    %v5405 = vadd.f32 %v4491, %v5281
    %v5406 = vadd.f32 %v4492, %v5284
    %v5407 = vadd.f32 %v4493, %v5289
    %v5408 = vadd.f32 %v4494, %v5292
    %v5409 = vadd.f32 %v4495, %v5297
    %v5410 = vadd.f32 %v4496, %v5300
    %v5411 = vld [vmem:[#allocation2 + $0x20] sm:$0xff]
    %v5412 = vld [vmem:[#allocation2 + $0x28] sm:$0xff]
    %v5413 = vld [vmem:[#allocation2 + $0x30] sm:$0xff]
    %v5414 = vld [vmem:[#allocation2 + $0x38] sm:$0xff]
    %v5415 = vld [vmem:[#allocation2 + $0x40] sm:$0xff]
    %v5416 = vld [vmem:[#allocation2 + $0x48] sm:$0xff]
    %v5417 = vld [vmem:[#allocation2 + $0x50] sm:$0xff]
    %v5418 = vld [vmem:[#allocation2 + $0x58] sm:$0xff]
    %v5419 = vld [vmem:[#allocation2 + $0x60] sm:$0xff]
    %v5420 = vld [vmem:[#allocation2 + $0x68] sm:$0xff]
    %v5421 = vld [vmem:[#allocation2 + $0x70] sm:$0xff]
    %v5422 = vld [vmem:[#allocation2 + $0x78] sm:$0xff]
    %v5423 = vld [vmem:[#allocation2 + $0x80] sm:$0xff]
    %v5424 = vld [vmem:[#allocation2 + $0x88] sm:$0xff]
    %v5425 = vld [vmem:[#allocation2 + $0x90] sm:$0xff]
    %v5426 = vld [vmem:[#allocation2 + $0x98] sm:$0xff]
    %v5427 = vld [vmem:[#allocation2 + $0xa0] sm:$0xff]
    %v5428 = vld [vmem:[#allocation2 + $0xa8] sm:$0xff]
    %v5429 = vld [vmem:[#allocation2 + $0xb0] sm:$0xff]
    %v5430 = vld [vmem:[#allocation2 + $0xb8] sm:$0xff]
    %v5431 = vld [vmem:[#allocation2 + $0xc0] sm:$0xff]
    %v5432 = vld [vmem:[#allocation2 + $0xc8] sm:$0xff]
    %v5433 = vld [vmem:[#allocation2 + $0xd0] sm:$0xff]
    %v5434 = vld [vmem:[#allocation2 + $0xd8] sm:$0xff]
    %v5435 = vld [vmem:[#allocation2 + $0xe0] sm:$0xff]
    %v5436 = vld [vmem:[#allocation2 + $0xe8] sm:$0xff]
    %v5437 = vld [vmem:[#allocation2 + $0xf0] sm:$0xff]
    %v5438 = vld [vmem:[#allocation2 + $0xf8] sm:$0xff]
    %v5439 = vld [vmem:[#allocation2 + $0x100] sm:$0xff]
    %v5440 = vld [vmem:[#allocation2 + $0x108] sm:$0xff]
    %v5441 = vld [vmem:[#allocation2 + $0x110] sm:$0xff]
    %v5442 = vld [vmem:[#allocation2 + $0x118] sm:$0xff]
    %v5443 = vld [vmem:[#allocation2 + $0x120] sm:$0xff]
    %v5444 = vld [vmem:[#allocation2 + $0x128] sm:$0xff]
    %v5445 = vld [vmem:[#allocation2 + $0x130] sm:$0xff]
    %v5446 = vld [vmem:[#allocation2 + $0x138] sm:$0xff]
    %v5447 = vld [vmem:[#allocation2 + $0x140] sm:$0xff]
    %v5448 = vld [vmem:[#allocation2 + $0x148] sm:$0xff]
    %v5449 = vld [vmem:[#allocation2 + $0x150] sm:$0xff]
    %v5450 = vld [vmem:[#allocation2 + $0x158] sm:$0xff]
    %v5451 = vld [vmem:[#allocation2 + $0x160] sm:$0xff]
    %v5452 = vld [vmem:[#allocation2 + $0x168] sm:$0xff]
    %v5453 = vld [vmem:[#allocation2 + $0x170] sm:$0xff]
    %v5454 = vld [vmem:[#allocation2 + $0x178] sm:$0xff]
    %v5455 = vld [vmem:[#allocation2 + $0x180] sm:$0xff]
    %v5456 = vld [vmem:[#allocation2 + $0x188] sm:$0xff]
    %v5457 = vld [vmem:[#allocation2 + $0x190] sm:$0xff]
    %v5458 = vld [vmem:[#allocation2 + $0x198] sm:$0xff]
    %v5459 = vld [vmem:[#allocation2 + $0x1a0] sm:$0xff]
    %v5460 = vld [vmem:[#allocation2 + $0x1a8] sm:$0xff]
    %v5461 = vld [vmem:[#allocation2 + $0x1b0] sm:$0xff]
    %v5462 = vld [vmem:[#allocation2 + $0x1b8] sm:$0xff]
    %v5463 = vld [vmem:[#allocation2 + $0x1c0] sm:$0xff]
    %v5464 = vld [vmem:[#allocation2 + $0x1c8] sm:$0xff]
    %v5465 = vld [vmem:[#allocation2 + $0x1d0] sm:$0xff]
    %v5466 = vld [vmem:[#allocation2 + $0x1d8] sm:$0xff]
    %v5467 = vld [vmem:[#allocation2 + $0x1e0] sm:$0xff]
    %v5468 = vld [vmem:[#allocation2 + $0x1e8] sm:$0xff]
    %v5469 = vld [vmem:[#allocation2 + $0x1f0] sm:$0xff]
    %v5470 = vld [vmem:[#allocation2 + $0x1f8] sm:$0xff]
    %v5471 = vld [vmem:[#allocation2 + $0x200] sm:$0xff]
    %v5472 = vld [vmem:[#allocation2 + $0x208] sm:$0xff]
    %v5473 = vld [vmem:[#allocation2 + $0x210] sm:$0xff]
    %v5474 = vld [vmem:[#allocation2 + $0x218] sm:$0xff]
    %v5475 = vld [vmem:[#allocation2 + $0x220] sm:$0xff]
    %v5476 = vld [vmem:[#allocation2 + $0x228] sm:$0xff]
    %v5477 = vld [vmem:[#allocation2 + $0x230] sm:$0xff]
    %v5478 = vld [vmem:[#allocation2 + $0x238] sm:$0xff]
    %v5479 = vld [vmem:[#allocation2 + $0x240] sm:$0xff]
    %v5480 = vld [vmem:[#allocation2 + $0x248] sm:$0xff]
    %v5481 = vld [vmem:[#allocation2 + $0x250] sm:$0xff]
    %v5482 = vld [vmem:[#allocation2 + $0x258] sm:$0xff]
    %v5483 = vld [vmem:[#allocation2 + $0x260] sm:$0xff]
    %v5484 = vld [vmem:[#allocation2 + $0x268] sm:$0xff]
    %v5485 = vld [vmem:[#allocation2 + $0x270] sm:$0xff]
    %v5486 = vld [vmem:[#allocation2 + $0x278] sm:$0xff]
    %v5487 = vld [vmem:[#allocation2 + $0x280] sm:$0xff]
    %v5488 = vld [vmem:[#allocation2 + $0x288] sm:$0xff]
    %v5489 = vld [vmem:[#allocation2 + $0x290] sm:$0xff]
    %v5490 = vld [vmem:[#allocation2 + $0x298] sm:$0xff]
    %v5491 = vld [vmem:[#allocation2 + $0x2a0] sm:$0xff]
    %v5492 = vld [vmem:[#allocation2 + $0x2a8] sm:$0xff]
    %v5493 = vld [vmem:[#allocation2 + $0x2b0] sm:$0xff]
    %v5494 = vld [vmem:[#allocation2 + $0x2b8] sm:$0xff]
    %v5495 = vld [vmem:[#allocation2 + $0x2c0] sm:$0xff]
    %v5496 = vld [vmem:[#allocation2 + $0x2c8] sm:$0xff]
    %v5497 = vld [vmem:[#allocation2 + $0x2d0] sm:$0xff]
    %v5498 = vld [vmem:[#allocation2 + $0x2d8] sm:$0xff]
    %v5499 = vld [vmem:[#allocation2 + $0x2e0] sm:$0xff]
    %v5500 = vld [vmem:[#allocation2 + $0x2e8] sm:$0xff]
    %v5501 = vld [vmem:[#allocation2 + $0x2f0] sm:$0xff]
    %v5502 = vld [vmem:[#allocation2 + $0x2f8] sm:$0xff]
    %v5503 = vld [vmem:[#allocation2 + $0x300] sm:$0xff]
    %v5504 = vld [vmem:[#allocation2 + $0x308] sm:$0xff]
    %v5505 = vld [vmem:[#allocation2 + $0x310] sm:$0xff]
    %v5506 = vld [vmem:[#allocation2 + $0x318] sm:$0xff]
    %v5507 = vld [vmem:[#allocation2 + $0x320] sm:$0xff]
    %v5508 = vld [vmem:[#allocation2 + $0x328] sm:$0xff]
    %v5509 = vld [vmem:[#allocation2 + $0x330] sm:$0xff]
    %v5510 = vld [vmem:[#allocation2 + $0x338] sm:$0xff]
    %v5511 = vld [vmem:[#allocation2 + $0x340] sm:$0xff]
    %v5512 = vld [vmem:[#allocation2 + $0x348] sm:$0xff]
    %v5513 = vld [vmem:[#allocation2 + $0x350] sm:$0xff]
    %v5514 = vld [vmem:[#allocation2 + $0x358] sm:$0xff]
    %v5515 = vld [vmem:[#allocation2 + $0x360] sm:$0xff]
    %v5516 = vld [vmem:[#allocation2 + $0x368] sm:$0xff]
    %v5517 = vld [vmem:[#allocation2 + $0x370] sm:$0xff]
    %v5518 = vld [vmem:[#allocation2 + $0x378] sm:$0xff]
    %v5519 = vpack.c.bf16 %v5412, %v5411
    %v5520 = vpack.c.bf16 %v5414, %v5413
    %v5521 = vpack.c.bf16 %v5416, %v5415
    %v5522 = vpack.c.bf16 %v5418, %v5417
    %v5523 = vpack.c.bf16 %v5420, %v5419
    %v5524 = vpack.c.bf16 %v5422, %v5421
    %v5525 = vpack.c.bf16 %v5424, %v5423
    %v5526 = vpack.c.bf16 %v5426, %v5425
    %v5527 = vpack.c.bf16 %v5428, %v5427
    %v5528 = vpack.c.bf16 %v5430, %v5429
    %v5529 = vpack.c.bf16 %v5432, %v5431
    %v5530 = vpack.c.bf16 %v5434, %v5433
    %v5531 = vpack.c.bf16 %v5436, %v5435
    %v5532 = vpack.c.bf16 %v5438, %v5437
    %v5533 = vpack.c.bf16 %v5440, %v5439
    %v5534 = vpack.c.bf16 %v5442, %v5441
    %v5535 = vpack.c.bf16 %v5444, %v5443
    %v5536 = vpack.c.bf16 %v5446, %v5445
    %v5537 = vpack.c.bf16 %v5448, %v5447
    %v5538 = vpack.c.bf16 %v5450, %v5449
    %v5539 = vpack.c.bf16 %v5452, %v5451
    %v5540 = vpack.c.bf16 %v5454, %v5453
    %v5541 = vpack.c.bf16 %v5456, %v5455
    %v5542 = vpack.c.bf16 %v5458, %v5457
    %v5543 = vpack.c.bf16 %v5460, %v5459
    %v5544 = vpack.c.bf16 %v5462, %v5461
    %v5545 = vpack.c.bf16 %v5464, %v5463
    %v5546 = vpack.c.bf16 %v5466, %v5465
    %v5547 = vpack.c.bf16 %v5468, %v5467
    %v5548 = vpack.c.bf16 %v5470, %v5469
    %v5549 = vpack.c.bf16 %v5472, %v5471
    %v5550 = vpack.c.bf16 %v5474, %v5473
    %v5551 = vpack.c.bf16 %v5476, %v5475
    %v5552 = vpack.c.bf16 %v5478, %v5477
    %v5553 = vpack.c.bf16 %v5480, %v5479
    %v5554 = vpack.c.bf16 %v5482, %v5481
    %v5555 = vpack.c.bf16 %v5484, %v5483
    %v5556 = vpack.c.bf16 %v5486, %v5485
    %v5557 = vpack.c.bf16 %v5488, %v5487
    %v5558 = vpack.c.bf16 %v5490, %v5489
    %v5559 = vpack.c.bf16 %v5492, %v5491
    %v5560 = vpack.c.bf16 %v5494, %v5493
    %v5561 = vpack.c.bf16 %v5496, %v5495
    %v5562 = vpack.c.bf16 %v5498, %v5497
    %v5563 = vpack.c.bf16 %v5500, %v5499
    %v5564 = vpack.c.bf16 %v5502, %v5501
    %v5565 = vpack.c.bf16 %v5504, %v5503
    %v5566 = vpack.c.bf16 %v5506, %v5505
    %v5567 = vpack.c.bf16 %v5508, %v5507
    %v5568 = vpack.c.bf16 %v5510, %v5509
    %v5569 = vpack.c.bf16 %v5512, %v5511
    %v5570 = vpack.c.bf16 %v5514, %v5513
    %v5571 = vpack.c.bf16 %v5516, %v5515
    %v5572 = vpack.c.bf16 %v5518, %v5517
    %s5573 = scalar_lea.vmem %s4, 64
    %v5574 = vld [vmem:[%s5573] sm:$0xf]
    %v5575 = vld [vmem:[%s5573 + $0x4] sm:$0xf]
    %v5576 = vld [vmem:[%s5573 + $0x8] sm:$0xf]
    %v5577 = vld [vmem:[%s5573 + $0xc] sm:$0xf]
    %v5582 = vunpack.c.l.b16 %v5574
    %v5583 = vunpack.c.l.b16 %v5575
    %v5584 = vunpack.c.l.b16 %v5576
    %v5585 = vunpack.c.l.b16 %v5577
    %v5586 = vpack.c.b16 %v5583, %v5582
    %v5587 = vpack.c.b16 %v5585, %v5584
    %v5591 = vsel %vm1863, %v5519, 0
    %v5594 = vsel %vm1863, %v5520, 0
    %v5597 = vsel %vm1863, %v5521, 0
    %v5600 = vsel %vm1863, %v5522, 0
    %v5603 = vsel %vm1863, %v5523, 0
    %v5606 = vsel %vm1863, %v5524, 0
    %v5609 = vsel %vm1863, %v5525, 0
    %v5612 = vsel %vm1863, %v5526, 0
    %v5615 = vsel %vm1863, %v5527, 0
    %v5618 = vsel %vm1863, %v5528, 0
    %v5621 = vsel %vm1863, %v5529, 0
    %v5624 = vsel %vm1863, %v5530, 0
    %v5627 = vsel %vm1863, %v5531, 0
    %v5630 = vsel %vm1863, %v5532, 0
    %v5633 = vsel %vm1863, %v5533, 0
    %v5636 = vsel %vm1863, %v5534, 0
    %v5639 = vsel %vm1863, %v5535, 0
    %v5642 = vsel %vm1863, %v5536, 0
    %v5645 = vsel %vm1863, %v5537, 0
    %v5648 = vsel %vm1863, %v5538, 0
    %v5651 = vsel %vm1863, %v5539, 0
    %v5654 = vsel %vm1863, %v5540, 0
    %v5657 = vsel %vm1863, %v5541, 0
    %v5660 = vsel %vm1863, %v5542, 0
    %v5663 = vsel %vm1863, %v5543, 0
    %v5666 = vsel %vm1863, %v5544, 0
    %v5669 = vsel %vm1863, %v5545, 0
    %v5672 = vsel %vm1863, %v5546, 0
    %v5675 = vsel %vm1863, %v5547, 0
    %v5678 = vsel %vm1863, %v5548, 0
    %v5681 = vsel %vm1863, %v5549, 0
    %v5684 = vsel %vm1863, %v5550, 0
    %v5687 = vsel %vm1863, %v5551, 0
    %v5690 = vsel %vm1863, %v5552, 0
    %v5693 = vsel %vm1863, %v5553, 0
    %v5696 = vsel %vm1863, %v5554, 0
    %v5699 = vsel %vm1863, %v5555, 0
    %v5702 = vsel %vm1863, %v5556, 0
    %v5705 = vsel %vm1863, %v5557, 0
    %v5708 = vsel %vm1863, %v5558, 0
    %v5711 = vsel %vm1863, %v5559, 0
    %v5714 = vsel %vm1863, %v5560, 0
    %v5717 = vsel %vm1863, %v5561, 0
    %v5720 = vsel %vm1863, %v5562, 0
    %v5723 = vsel %vm1863, %v5563, 0
    %v5726 = vsel %vm1863, %v5564, 0
    %v5729 = vsel %vm1863, %v5565, 0
    %v5732 = vsel %vm1863, %v5566, 0
    %v5735 = vsel %vm1863, %v5567, 0
    %v5738 = vsel %vm1863, %v5568, 0
    %v5741 = vsel %vm1863, %v5569, 0
    %v5744 = vsel %vm1863, %v5570, 0
    %v5747 = vsel %vm1863, %v5571, 0
    %v5750 = vsel %vm1863, %v5572, 0
    %5752 = vmatprep.subr.bf16.mxu0 0
    %5753 = vmatpush1.bf16.msra.mxu0 %v5586
    %5754 = vmatprep.subr.bf16.mxu0 0
    %5755 = vmatpush1.bf16.msra.mxu0 %v5587
    %5756 = vmatprep.subr.bf16.mxu0 0
    %5757 = vmatpush1.bf16.msra.mxu0 0
    %5758 = vmatprep.subr.bf16.mxu0 0
    %5759 = vmatpush1.bf16.msra.mxu0 0
    %5760 = vmatprep.subr.bf16.mxu0 0
    %5761 = vmatpush1.bf16.msra.mxu0 0
    %5762 = vmatprep.subr.bf16.mxu0 0
    %5763 = vmatpush1.bf16.msra.mxu0 0
    %5764 = vmatprep.subr.bf16.mxu0 0
    %5765 = vmatpush1.bf16.msra.mxu0 0
    %5766 = vmatprep.subr.bf16.mxu0 0
    %5767 = vmatpush1.bf16.msra.mxu0 0
    %5768 = vmatprep.subr.bf16.mxu0 0
    %5769 = vmatpush1.bf16.msra.mxu0 0
    %5770 = vmatprep.subr.bf16.mxu0 0
    %5771 = vmatpush1.bf16.msra.mxu0 0
    %5772 = vmatprep.subr.bf16.mxu0 0
    %5773 = vmatpush1.bf16.msra.mxu0 0
    %5774 = vmatprep.subr.bf16.mxu0 0
    %5775 = vmatpush1.bf16.msra.mxu0 0
    %5776 = vmatprep.subr.bf16.mxu0 0
    %5777 = vmatpush1.bf16.msra.mxu0 0
    %5778 = vmatprep.subr.bf16.mxu0 0
    %5779 = vmatpush1.bf16.msra.mxu0 0
    %5780 = vmatprep.subr.bf16.mxu0 0
    %5781 = vmatpush1.bf16.msra.mxu0 0
    %5782 = vmatprep.subr.bf16.mxu0 0
    %5783 = vmatpush1.bf16.msra.mxu0 0
    %5784 = vmatprep.mubr.bf16.mxu0 0
    %5785 = vmatmul.mubr.bf16.gmra.mrb[0].mxu0 %v5591
    %v5786 = vpop.f32.mrb[0].mxu0
    %v5787 = vadd.f32 0.0, %v5786
    %v5788 = vpop.f32.mrb[0].mxu0
    %v5789 = vpop.f32.mrb[0].mxu0
    %v5790 = vadd.f32 0.0, %v5789
    %v5791 = vpop.f32.mrb[0].mxu0
    %5792 = vmatprep.mubr.bf16.mxu0 0
    %5793 = vmatmul.mubr.bf16.gmra.mrb[0].mxu0 %v5594
    %v5794 = vpop.f32.mrb[0].mxu0
    %v5795 = vadd.f32 0.0, %v5794
    %v5796 = vpop.f32.mrb[0].mxu0
    %v5797 = vpop.f32.mrb[0].mxu0
    %v5798 = vadd.f32 0.0, %v5797
    %v5799 = vpop.f32.mrb[0].mxu0
    %5800 = vmatprep.mubr.bf16.mxu0 0
    %5801 = vmatmul.mubr.bf16.gmra.mrb[0].mxu0 %v5597
    %v5802 = vpop.f32.mrb[0].mxu0
    %v5803 = vadd.f32 0.0, %v5802
    %v5804 = vpop.f32.mrb[0].mxu0
    %v5805 = vpop.f32.mrb[0].mxu0
    %v5806 = vadd.f32 0.0, %v5805
    %v5807 = vpop.f32.mrb[0].mxu0
    %5808 = vmatprep.mubr.bf16.mxu0 0
    %5809 = vmatmul.mubr.bf16.gmra.mrb[0].mxu0 %v5600
    %v5810 = vpop.f32.mrb[0].mxu0
    %v5811 = vadd.f32 0.0, %v5810
    %v5812 = vpop.f32.mrb[0].mxu0
    %v5813 = vpop.f32.mrb[0].mxu0
    %v5814 = vadd.f32 0.0, %v5813
    %v5815 = vpop.f32.mrb[0].mxu0
    %5816 = vmatprep.mubr.bf16.mxu0 0
    %5817 = vmatmul.mubr.bf16.gmra.mrb[0].mxu0 %v5603
    %v5818 = vpop.f32.mrb[0].mxu0
    %v5819 = vadd.f32 0.0, %v5818
    %v5820 = vpop.f32.mrb[0].mxu0
    %v5821 = vpop.f32.mrb[0].mxu0
    %v5822 = vadd.f32 0.0, %v5821
    %v5823 = vpop.f32.mrb[0].mxu0
    %5824 = vmatprep.mubr.bf16.mxu0 0
    %5825 = vmatmul.mubr.bf16.gmra.mrb[0].mxu0 %v5606
    %v5826 = vpop.f32.mrb[0].mxu0
    %v5827 = vadd.f32 0.0, %v5826
    %v5828 = vpop.f32.mrb[0].mxu0
    %v5829 = vpop.f32.mrb[0].mxu0
    %v5830 = vadd.f32 0.0, %v5829
    %v5831 = vpop.f32.mrb[0].mxu0
    %5832 = vmatprep.mubr.bf16.mxu0 0
    %5833 = vmatmul.mubr.bf16.gmra.mrb[0].mxu0 %v5609
    %v5834 = vpop.f32.mrb[0].mxu0
    %v5835 = vadd.f32 0.0, %v5834
    %v5836 = vpop.f32.mrb[0].mxu0
    %v5837 = vpop.f32.mrb[0].mxu0
    %v5838 = vadd.f32 0.0, %v5837
    %v5839 = vpop.f32.mrb[0].mxu0
    %5840 = vmatprep.mubr.bf16.mxu0 0
    %5841 = vmatmul.mubr.bf16.gmra.mrb[0].mxu0 %v5612
    %v5842 = vpop.f32.mrb[0].mxu0
    %v5843 = vadd.f32 0.0, %v5842
    %v5844 = vpop.f32.mrb[0].mxu0
    %v5845 = vpop.f32.mrb[0].mxu0
    %v5846 = vadd.f32 0.0, %v5845
    %v5847 = vpop.f32.mrb[0].mxu0
    %5848 = vmatprep.mubr.bf16.mxu0 0
    %5849 = vmatmul.mubr.bf16.gmra.mrb[0].mxu0 %v5615
    %v5850 = vpop.f32.mrb[0].mxu0
    %v5851 = vadd.f32 0.0, %v5850
    %v5852 = vpop.f32.mrb[0].mxu0
    %v5853 = vpop.f32.mrb[0].mxu0
    %v5854 = vadd.f32 0.0, %v5853
    %v5855 = vpop.f32.mrb[0].mxu0
    %5856 = vmatprep.mubr.bf16.mxu0 0
    %5857 = vmatmul.mubr.bf16.gmra.mrb[0].mxu0 %v5618
    %v5858 = vpop.f32.mrb[0].mxu0
    %v5859 = vadd.f32 0.0, %v5858
    %v5860 = vpop.f32.mrb[0].mxu0
    %v5861 = vpop.f32.mrb[0].mxu0
    %v5862 = vadd.f32 0.0, %v5861
    %v5863 = vpop.f32.mrb[0].mxu0
    %5864 = vmatprep.mubr.bf16.mxu0 0
    %5865 = vmatmul.mubr.bf16.gmra.mrb[0].mxu0 %v5621
    %v5866 = vpop.f32.mrb[0].mxu0
    %v5867 = vadd.f32 0.0, %v5866
    %v5868 = vpop.f32.mrb[0].mxu0
    %v5869 = vpop.f32.mrb[0].mxu0
    %v5870 = vadd.f32 0.0, %v5869
    %v5871 = vpop.f32.mrb[0].mxu0
    %5872 = vmatprep.mubr.bf16.mxu0 0
    %5873 = vmatmul.mubr.bf16.gmra.mrb[0].mxu0 %v5624
    %v5874 = vpop.f32.mrb[0].mxu0
    %v5875 = vadd.f32 0.0, %v5874
    %v5876 = vpop.f32.mrb[0].mxu0
    %v5877 = vpop.f32.mrb[0].mxu0
    %v5878 = vadd.f32 0.0, %v5877
    %v5879 = vpop.f32.mrb[0].mxu0
    %5880 = vmatprep.mubr.bf16.mxu0 0
    %5881 = vmatmul.mubr.bf16.gmra.mrb[0].mxu0 %v5627
    %v5882 = vpop.f32.mrb[0].mxu0
    %v5883 = vadd.f32 0.0, %v5882
    %v5884 = vpop.f32.mrb[0].mxu0
    %v5885 = vpop.f32.mrb[0].mxu0
    %v5886 = vadd.f32 0.0, %v5885
    %v5887 = vpop.f32.mrb[0].mxu0
    %5888 = vmatprep.mubr.bf16.mxu0 0
    %5889 = vmatmul.mubr.bf16.gmra.mrb[0].mxu0 %v5630
    %v5890 = vpop.f32.mrb[0].mxu0
    %v5891 = vadd.f32 0.0, %v5890
    %v5892 = vpop.f32.mrb[0].mxu0
    %v5893 = vpop.f32.mrb[0].mxu0
    %v5894 = vadd.f32 0.0, %v5893
    %v5895 = vpop.f32.mrb[0].mxu0
    %5896 = vmatprep.mubr.bf16.mxu0 0
    %5897 = vmatmul.mubr.bf16.gmra.mrb[0].mxu0 %v5633
    %v5898 = vpop.f32.mrb[0].mxu0
    %v5899 = vadd.f32 0.0, %v5898
    %v5900 = vpop.f32.mrb[0].mxu0
    %v5901 = vpop.f32.mrb[0].mxu0
    %v5902 = vadd.f32 0.0, %v5901
    %v5903 = vpop.f32.mrb[0].mxu0
    %5904 = vmatprep.mubr.bf16.mxu0 0
    %5905 = vmatmul.mubr.bf16.gmra.mrb[0].mxu0 %v5636
    %v5906 = vpop.f32.mrb[0].mxu0
    %v5907 = vadd.f32 0.0, %v5906
    %v5908 = vpop.f32.mrb[0].mxu0
    %v5909 = vpop.f32.mrb[0].mxu0
    %v5910 = vadd.f32 0.0, %v5909
    %v5911 = vpop.f32.mrb[0].mxu0
    %5912 = vmatprep.mubr.bf16.mxu0 0
    %5913 = vmatmul.mubr.bf16.gmra.mrb[0].mxu0 %v5639
    %v5914 = vpop.f32.mrb[0].mxu0
    %v5915 = vadd.f32 0.0, %v5914
    %v5916 = vpop.f32.mrb[0].mxu0
    %v5917 = vpop.f32.mrb[0].mxu0
    %v5918 = vadd.f32 0.0, %v5917
    %v5919 = vpop.f32.mrb[0].mxu0
    %5920 = vmatprep.mubr.bf16.mxu0 0
    %5921 = vmatmul.mubr.bf16.gmra.mrb[0].mxu0 %v5642
    %v5922 = vpop.f32.mrb[0].mxu0
    %v5923 = vadd.f32 0.0, %v5922
    %v5924 = vpop.f32.mrb[0].mxu0
    %v5925 = vpop.f32.mrb[0].mxu0
    %v5926 = vadd.f32 0.0, %v5925
    %v5927 = vpop.f32.mrb[0].mxu0
    %5928 = vmatprep.mubr.bf16.mxu0 0
    %5929 = vmatmul.mubr.bf16.gmra.mrb[0].mxu0 %v5645
    %v5930 = vpop.f32.mrb[0].mxu0
    %v5931 = vadd.f32 0.0, %v5930
    %v5932 = vpop.f32.mrb[0].mxu0
    %v5933 = vpop.f32.mrb[0].mxu0
    %v5934 = vadd.f32 0.0, %v5933
    %v5935 = vpop.f32.mrb[0].mxu0
    %5936 = vmatprep.mubr.bf16.mxu0 0
    %5937 = vmatmul.mubr.bf16.gmra.mrb[0].mxu0 %v5648
    %v5938 = vpop.f32.mrb[0].mxu0
    %v5939 = vadd.f32 0.0, %v5938
    %v5940 = vpop.f32.mrb[0].mxu0
    %v5941 = vpop.f32.mrb[0].mxu0
    %v5942 = vadd.f32 0.0, %v5941
    %v5943 = vpop.f32.mrb[0].mxu0
    %5944 = vmatprep.mubr.bf16.mxu0 0
    %5945 = vmatmul.mubr.bf16.gmra.mrb[0].mxu0 %v5651
    %v5946 = vpop.f32.mrb[0].mxu0
    %v5947 = vadd.f32 0.0, %v5946
    %v5948 = vpop.f32.mrb[0].mxu0
    %v5949 = vpop.f32.mrb[0].mxu0
    %v5950 = vadd.f32 0.0, %v5949
    %v5951 = vpop.f32.mrb[0].mxu0
    %5952 = vmatprep.mubr.bf16.mxu0 0
    %5953 = vmatmul.mubr.bf16.gmra.mrb[0].mxu0 %v5654
    %v5954 = vpop.f32.mrb[0].mxu0
    %v5955 = vadd.f32 0.0, %v5954
    %v5956 = vpop.f32.mrb[0].mxu0
    %v5957 = vpop.f32.mrb[0].mxu0
    %v5958 = vadd.f32 0.0, %v5957
    %v5959 = vpop.f32.mrb[0].mxu0
    %5960 = vmatprep.mubr.bf16.mxu0 0
    %5961 = vmatmul.mubr.bf16.gmra.mrb[0].mxu0 %v5657
    %v5962 = vpop.f32.mrb[0].mxu0
    %v5963 = vadd.f32 0.0, %v5962
    %v5964 = vpop.f32.mrb[0].mxu0
    %v5965 = vpop.f32.mrb[0].mxu0
    %v5966 = vadd.f32 0.0, %v5965
    %v5967 = vpop.f32.mrb[0].mxu0
    %5968 = vmatprep.mubr.bf16.mxu0 0
    %5969 = vmatmul.mubr.bf16.gmra.mrb[0].mxu0 %v5660
    %v5970 = vpop.f32.mrb[0].mxu0
    %v5971 = vadd.f32 0.0, %v5970
    %v5972 = vpop.f32.mrb[0].mxu0
    %v5973 = vpop.f32.mrb[0].mxu0
    %v5974 = vadd.f32 0.0, %v5973
    %v5975 = vpop.f32.mrb[0].mxu0
    %5976 = vmatprep.mubr.bf16.mxu0 0
    %5977 = vmatmul.mubr.bf16.gmra.mrb[0].mxu0 %v5663
    %v5978 = vpop.f32.mrb[0].mxu0
    %v5979 = vadd.f32 0.0, %v5978
    %v5980 = vpop.f32.mrb[0].mxu0
    %v5981 = vpop.f32.mrb[0].mxu0
    %v5982 = vadd.f32 0.0, %v5981
    %v5983 = vpop.f32.mrb[0].mxu0
    %5984 = vmatprep.mubr.bf16.mxu0 0
    %5985 = vmatmul.mubr.bf16.gmra.mrb[0].mxu0 %v5666
    %v5986 = vpop.f32.mrb[0].mxu0
    %v5987 = vadd.f32 0.0, %v5986
    %v5988 = vpop.f32.mrb[0].mxu0
    %v5989 = vpop.f32.mrb[0].mxu0
    %v5990 = vadd.f32 0.0, %v5989
    %v5991 = vpop.f32.mrb[0].mxu0
    %5992 = vmatprep.mubr.bf16.mxu0 0
    %5993 = vmatmul.mubr.bf16.gmra.mrb[0].mxu0 %v5669
    %v5994 = vpop.f32.mrb[0].mxu0
    %v5995 = vadd.f32 0.0, %v5994
    %v5996 = vpop.f32.mrb[0].mxu0
    %v5997 = vpop.f32.mrb[0].mxu0
    %v5998 = vadd.f32 0.0, %v5997
    %v5999 = vpop.f32.mrb[0].mxu0
    %6000 = vmatprep.mubr.bf16.mxu0 0
    %6001 = vmatmul.mubr.bf16.gmra.mrb[0].mxu0 %v5672
    %v6002 = vpop.f32.mrb[0].mxu0
    %v6003 = vadd.f32 0.0, %v6002
    %v6004 = vpop.f32.mrb[0].mxu0
    %v6005 = vpop.f32.mrb[0].mxu0
    %v6006 = vadd.f32 0.0, %v6005
    %v6007 = vpop.f32.mrb[0].mxu0
    %6008 = vmatprep.mubr.bf16.mxu0 0
    %6009 = vmatmul.mubr.bf16.gmra.mrb[0].mxu0 %v5675
    %v6010 = vpop.f32.mrb[0].mxu0
    %v6011 = vadd.f32 0.0, %v6010
    %v6012 = vpop.f32.mrb[0].mxu0
    %v6013 = vpop.f32.mrb[0].mxu0
    %v6014 = vadd.f32 0.0, %v6013
    %v6015 = vpop.f32.mrb[0].mxu0
    %6016 = vmatprep.mubr.bf16.mxu0 0
    %6017 = vmatmul.mubr.bf16.gmra.mrb[0].mxu0 %v5678
    %v6018 = vpop.f32.mrb[0].mxu0
    %v6019 = vadd.f32 0.0, %v6018
    %v6020 = vpop.f32.mrb[0].mxu0
    %v6021 = vpop.f32.mrb[0].mxu0
    %v6022 = vadd.f32 0.0, %v6021
    %v6023 = vpop.f32.mrb[0].mxu0
    %6024 = vmatprep.mubr.bf16.mxu0 0
    %6025 = vmatmul.mubr.bf16.gmra.mrb[0].mxu0 %v5681
    %v6026 = vpop.f32.mrb[0].mxu0
    %v6027 = vadd.f32 0.0, %v6026
    %v6028 = vpop.f32.mrb[0].mxu0
    %v6029 = vpop.f32.mrb[0].mxu0
    %v6030 = vadd.f32 0.0, %v6029
    %v6031 = vpop.f32.mrb[0].mxu0
    %6032 = vmatprep.mubr.bf16.mxu0 0
    %6033 = vmatmul.mubr.bf16.gmra.mrb[0].mxu0 %v5684
    %v6034 = vpop.f32.mrb[0].mxu0
    %v6035 = vadd.f32 0.0, %v6034
    %v6036 = vpop.f32.mrb[0].mxu0
    %v6037 = vpop.f32.mrb[0].mxu0
    %v6038 = vadd.f32 0.0, %v6037
    %v6039 = vpop.f32.mrb[0].mxu0
    %6040 = vmatprep.mubr.bf16.mxu0 0
    %6041 = vmatmul.mubr.bf16.gmra.mrb[0].mxu0 %v5687
    %v6042 = vpop.f32.mrb[0].mxu0
    %v6043 = vadd.f32 0.0, %v6042
    %v6044 = vpop.f32.mrb[0].mxu0
    %v6045 = vpop.f32.mrb[0].mxu0
    %v6046 = vadd.f32 0.0, %v6045
    %v6047 = vpop.f32.mrb[0].mxu0
    %6048 = vmatprep.mubr.bf16.mxu0 0
    %6049 = vmatmul.mubr.bf16.gmra.mrb[0].mxu0 %v5690
    %v6050 = vpop.f32.mrb[0].mxu0
    %v6051 = vadd.f32 0.0, %v6050
    %v6052 = vpop.f32.mrb[0].mxu0
    %v6053 = vpop.f32.mrb[0].mxu0
    %v6054 = vadd.f32 0.0, %v6053
    %v6055 = vpop.f32.mrb[0].mxu0
    %6056 = vmatprep.mubr.bf16.mxu0 0
    %6057 = vmatmul.mubr.bf16.gmra.mrb[0].mxu0 %v5693
    %v6058 = vpop.f32.mrb[0].mxu0
    %v6059 = vadd.f32 0.0, %v6058
    %v6060 = vpop.f32.mrb[0].mxu0
    %v6061 = vpop.f32.mrb[0].mxu0
    %v6062 = vadd.f32 0.0, %v6061
    %v6063 = vpop.f32.mrb[0].mxu0
    %6064 = vmatprep.mubr.bf16.mxu0 0
    %6065 = vmatmul.mubr.bf16.gmra.mrb[0].mxu0 %v5696
    %v6066 = vpop.f32.mrb[0].mxu0
    %v6067 = vadd.f32 0.0, %v6066
    %v6068 = vpop.f32.mrb[0].mxu0
    %v6069 = vpop.f32.mrb[0].mxu0
    %v6070 = vadd.f32 0.0, %v6069
    %v6071 = vpop.f32.mrb[0].mxu0
    %6072 = vmatprep.mubr.bf16.mxu0 0
    %6073 = vmatmul.mubr.bf16.gmra.mrb[0].mxu0 %v5699
    %v6074 = vpop.f32.mrb[0].mxu0
    %v6075 = vadd.f32 0.0, %v6074
    %v6076 = vpop.f32.mrb[0].mxu0
    %v6077 = vpop.f32.mrb[0].mxu0
    %v6078 = vadd.f32 0.0, %v6077
    %v6079 = vpop.f32.mrb[0].mxu0
    %6080 = vmatprep.mubr.bf16.mxu0 0
    %6081 = vmatmul.mubr.bf16.gmra.mrb[0].mxu0 %v5702
    %v6082 = vpop.f32.mrb[0].mxu0
    %v6083 = vadd.f32 0.0, %v6082
    %v6084 = vpop.f32.mrb[0].mxu0
    %v6085 = vpop.f32.mrb[0].mxu0
    %v6086 = vadd.f32 0.0, %v6085
    %v6087 = vpop.f32.mrb[0].mxu0
    %6088 = vmatprep.mubr.bf16.mxu0 0
    %6089 = vmatmul.mubr.bf16.gmra.mrb[0].mxu0 %v5705
    %v6090 = vpop.f32.mrb[0].mxu0
    %v6091 = vadd.f32 0.0, %v6090
    %v6092 = vpop.f32.mrb[0].mxu0
    %v6093 = vpop.f32.mrb[0].mxu0
    %v6094 = vadd.f32 0.0, %v6093
    %v6095 = vpop.f32.mrb[0].mxu0
    %6096 = vmatprep.mubr.bf16.mxu0 0
    %6097 = vmatmul.mubr.bf16.gmra.mrb[0].mxu0 %v5708
    %v6098 = vpop.f32.mrb[0].mxu0
    %v6099 = vadd.f32 0.0, %v6098
    %v6100 = vpop.f32.mrb[0].mxu0
    %v6101 = vpop.f32.mrb[0].mxu0
    %v6102 = vadd.f32 0.0, %v6101
    %v6103 = vpop.f32.mrb[0].mxu0
    %6104 = vmatprep.mubr.bf16.mxu0 0
    %6105 = vmatmul.mubr.bf16.gmra.mrb[0].mxu0 %v5711
    %v6106 = vpop.f32.mrb[0].mxu0
    %v6107 = vadd.f32 0.0, %v6106
    %v6108 = vpop.f32.mrb[0].mxu0
    %v6109 = vpop.f32.mrb[0].mxu0
    %v6110 = vadd.f32 0.0, %v6109
    %v6111 = vpop.f32.mrb[0].mxu0
    %6112 = vmatprep.mubr.bf16.mxu0 0
    %6113 = vmatmul.mubr.bf16.gmra.mrb[0].mxu0 %v5714
    %v6114 = vpop.f32.mrb[0].mxu0
    %v6115 = vadd.f32 0.0, %v6114
    %v6116 = vpop.f32.mrb[0].mxu0
    %v6117 = vpop.f32.mrb[0].mxu0
    %v6118 = vadd.f32 0.0, %v6117
    %v6119 = vpop.f32.mrb[0].mxu0
    %6120 = vmatprep.mubr.bf16.mxu0 0
    %6121 = vmatmul.mubr.bf16.gmra.mrb[0].mxu0 %v5717
    %v6122 = vpop.f32.mrb[0].mxu0
    %v6123 = vadd.f32 0.0, %v6122
    %v6124 = vpop.f32.mrb[0].mxu0
    %v6125 = vpop.f32.mrb[0].mxu0
    %v6126 = vadd.f32 0.0, %v6125
    %v6127 = vpop.f32.mrb[0].mxu0
    %6128 = vmatprep.mubr.bf16.mxu0 0
    %6129 = vmatmul.mubr.bf16.gmra.mrb[0].mxu0 %v5720
    %v6130 = vpop.f32.mrb[0].mxu0
    %v6131 = vadd.f32 0.0, %v6130
    %v6132 = vpop.f32.mrb[0].mxu0
    %v6133 = vpop.f32.mrb[0].mxu0
    %v6134 = vadd.f32 0.0, %v6133
    %v6135 = vpop.f32.mrb[0].mxu0
    %6136 = vmatprep.mubr.bf16.mxu0 0
    %6137 = vmatmul.mubr.bf16.gmra.mrb[0].mxu0 %v5723
    %v6138 = vpop.f32.mrb[0].mxu0
    %v6139 = vadd.f32 0.0, %v6138
    %v6140 = vpop.f32.mrb[0].mxu0
    %v6141 = vpop.f32.mrb[0].mxu0
    %v6142 = vadd.f32 0.0, %v6141
    %v6143 = vpop.f32.mrb[0].mxu0
    %6144 = vmatprep.mubr.bf16.mxu0 0
    %6145 = vmatmul.mubr.bf16.gmra.mrb[0].mxu0 %v5726
    %v6146 = vpop.f32.mrb[0].mxu0
    %v6147 = vadd.f32 0.0, %v6146
    %v6148 = vpop.f32.mrb[0].mxu0
    %v6149 = vpop.f32.mrb[0].mxu0
    %v6150 = vadd.f32 0.0, %v6149
    %v6151 = vpop.f32.mrb[0].mxu0
    %6152 = vmatprep.mubr.bf16.mxu0 0
    %6153 = vmatmul.mubr.bf16.gmra.mrb[0].mxu0 %v5729
    %v6154 = vpop.f32.mrb[0].mxu0
    %v6155 = vadd.f32 0.0, %v6154
    %v6156 = vpop.f32.mrb[0].mxu0
    %v6157 = vpop.f32.mrb[0].mxu0
    %v6158 = vadd.f32 0.0, %v6157
    %v6159 = vpop.f32.mrb[0].mxu0
    %6160 = vmatprep.mubr.bf16.mxu0 0
    %6161 = vmatmul.mubr.bf16.gmra.mrb[0].mxu0 %v5732
    %v6162 = vpop.f32.mrb[0].mxu0
    %v6163 = vadd.f32 0.0, %v6162
    %v6164 = vpop.f32.mrb[0].mxu0
    %v6165 = vpop.f32.mrb[0].mxu0
    %v6166 = vadd.f32 0.0, %v6165
    %v6167 = vpop.f32.mrb[0].mxu0
    %6168 = vmatprep.mubr.bf16.mxu0 0
    %6169 = vmatmul.mubr.bf16.gmra.mrb[0].mxu0 %v5735
    %v6170 = vpop.f32.mrb[0].mxu0
    %v6171 = vadd.f32 0.0, %v6170
    %v6172 = vpop.f32.mrb[0].mxu0
    %v6173 = vpop.f32.mrb[0].mxu0
    %v6174 = vadd.f32 0.0, %v6173
    %v6175 = vpop.f32.mrb[0].mxu0
    %6176 = vmatprep.mubr.bf16.mxu0 0
    %6177 = vmatmul.mubr.bf16.gmra.mrb[0].mxu0 %v5738
    %v6178 = vpop.f32.mrb[0].mxu0
    %v6179 = vadd.f32 0.0, %v6178
    %v6180 = vpop.f32.mrb[0].mxu0
    %v6181 = vpop.f32.mrb[0].mxu0
    %v6182 = vadd.f32 0.0, %v6181
    %v6183 = vpop.f32.mrb[0].mxu0
    %6184 = vmatprep.mubr.bf16.mxu0 0
    %6185 = vmatmul.mubr.bf16.gmra.mrb[0].mxu0 %v5741
    %v6186 = vpop.f32.mrb[0].mxu0
    %v6187 = vadd.f32 0.0, %v6186
    %v6188 = vpop.f32.mrb[0].mxu0
    %v6189 = vpop.f32.mrb[0].mxu0
    %v6190 = vadd.f32 0.0, %v6189
    %v6191 = vpop.f32.mrb[0].mxu0
    %6192 = vmatprep.mubr.bf16.mxu0 0
    %6193 = vmatmul.mubr.bf16.gmra.mrb[0].mxu0 %v5744
    %v6194 = vpop.f32.mrb[0].mxu0
    %v6195 = vadd.f32 0.0, %v6194
    %v6196 = vpop.f32.mrb[0].mxu0
    %v6197 = vpop.f32.mrb[0].mxu0
    %v6198 = vadd.f32 0.0, %v6197
    %v6199 = vpop.f32.mrb[0].mxu0
    %6200 = vmatprep.mubr.bf16.mxu0 0
    %6201 = vmatmul.mubr.bf16.gmra.mrb[0].mxu0 %v5747
    %v6202 = vpop.f32.mrb[0].mxu0
    %v6203 = vadd.f32 0.0, %v6202
    %v6204 = vpop.f32.mrb[0].mxu0
    %v6205 = vpop.f32.mrb[0].mxu0
    %v6206 = vadd.f32 0.0, %v6205
    %v6207 = vpop.f32.mrb[0].mxu0
    %6208 = vmatprep.mubr.bf16.mxu0 0
    %6209 = vmatmul.mubr.bf16.gmra.mrb[0].mxu0 %v5750
    %v6210 = vpop.f32.mrb[0].mxu0
    %v6211 = vadd.f32 0.0, %v6210
    %v6212 = vpop.f32.mrb[0].mxu0
    %v6213 = vpop.f32.mrb[0].mxu0
    %v6214 = vadd.f32 0.0, %v6213
    %v6215 = vpop.f32.mrb[0].mxu0
    %6216 = vdwg.mxu0
    %v6217 = vadd.f32 %v5303, %v5787
    %v6218 = vadd.f32 %v5304, %v5790
    %v6219 = vadd.f32 %v5305, %v5795
    %v6220 = vadd.f32 %v5306, %v5798
    %v6221 = vadd.f32 %v5307, %v5803
    %v6222 = vadd.f32 %v5308, %v5806
    %v6223 = vadd.f32 %v5309, %v5811
    %v6224 = vadd.f32 %v5310, %v5814
    %v6225 = vadd.f32 %v5311, %v5819
    %v6226 = vadd.f32 %v5312, %v5822
    %v6227 = vadd.f32 %v5313, %v5827
    %v6228 = vadd.f32 %v5314, %v5830
    %v6229 = vadd.f32 %v5315, %v5835
    %v6230 = vadd.f32 %v5316, %v5838
    %v6231 = vadd.f32 %v5317, %v5843
    %v6232 = vadd.f32 %v5318, %v5846
    %v6233 = vadd.f32 %v5319, %v5851
    %v6234 = vadd.f32 %v5320, %v5854
    %v6235 = vadd.f32 %v5321, %v5859
    %v6236 = vadd.f32 %v5322, %v5862
    %v6237 = vadd.f32 %v5323, %v5867
    %v6238 = vadd.f32 %v5324, %v5870
    %v6239 = vadd.f32 %v5325, %v5875
    %v6240 = vadd.f32 %v5326, %v5878
    %v6241 = vadd.f32 %v5327, %v5883
    %v6242 = vadd.f32 %v5328, %v5886
    %v6243 = vadd.f32 %v5329, %v5891
    %v6244 = vadd.f32 %v5330, %v5894
    %v6245 = vadd.f32 %v5331, %v5899
    %v6246 = vadd.f32 %v5332, %v5902
    %v6247 = vadd.f32 %v5333, %v5907
    %v6248 = vadd.f32 %v5334, %v5910
    %v6249 = vadd.f32 %v5335, %v5915
    %v6250 = vadd.f32 %v5336, %v5918
    %v6251 = vadd.f32 %v5337, %v5923
    %v6252 = vadd.f32 %v5338, %v5926
    %v6253 = vadd.f32 %v5339, %v5931
    %v6254 = vadd.f32 %v5340, %v5934
    %v6255 = vadd.f32 %v5341, %v5939
    %v6256 = vadd.f32 %v5342, %v5942
    %v6257 = vadd.f32 %v5343, %v5947
    %v6258 = vadd.f32 %v5344, %v5950
    %v6259 = vadd.f32 %v5345, %v5955
    %v6260 = vadd.f32 %v5346, %v5958
    %v6261 = vadd.f32 %v5347, %v5963
    %v6262 = vadd.f32 %v5348, %v5966
    %v6263 = vadd.f32 %v5349, %v5971
    %v6264 = vadd.f32 %v5350, %v5974
    %v6265 = vadd.f32 %v5351, %v5979
    %v6266 = vadd.f32 %v5352, %v5982
    %v6267 = vadd.f32 %v5353, %v5987
    %v6268 = vadd.f32 %v5354, %v5990
    %v6269 = vadd.f32 %v5355, %v5995
    %v6270 = vadd.f32 %v5356, %v5998
    %v6271 = vadd.f32 %v5357, %v6003
    %v6272 = vadd.f32 %v5358, %v6006
    %v6273 = vadd.f32 %v5359, %v6011
    %v6274 = vadd.f32 %v5360, %v6014
    %v6275 = vadd.f32 %v5361, %v6019
    %v6276 = vadd.f32 %v5362, %v6022
    %v6277 = vadd.f32 %v5363, %v6027
    %v6278 = vadd.f32 %v5364, %v6030
    %v6279 = vadd.f32 %v5365, %v6035
    %v6280 = vadd.f32 %v5366, %v6038
    %v6281 = vadd.f32 %v5367, %v6043
    %v6282 = vadd.f32 %v5368, %v6046
    %v6283 = vadd.f32 %v5369, %v6051
    %v6284 = vadd.f32 %v5370, %v6054
    %v6285 = vadd.f32 %v5371, %v6059
    %v6286 = vadd.f32 %v5372, %v6062
    %v6287 = vadd.f32 %v5373, %v6067
    %v6288 = vadd.f32 %v5374, %v6070
    %v6289 = vadd.f32 %v5375, %v6075
    %v6290 = vadd.f32 %v5376, %v6078
    %v6291 = vadd.f32 %v5377, %v6083
    %v6292 = vadd.f32 %v5378, %v6086
    %v6293 = vadd.f32 %v5379, %v6091
    %v6294 = vadd.f32 %v5380, %v6094
    %v6295 = vadd.f32 %v5381, %v6099
    %v6296 = vadd.f32 %v5382, %v6102
    %v6297 = vadd.f32 %v5383, %v6107
    %v6298 = vadd.f32 %v5384, %v6110
    %v6299 = vadd.f32 %v5385, %v6115
    %v6300 = vadd.f32 %v5386, %v6118
    %v6301 = vadd.f32 %v5387, %v6123
    %v6302 = vadd.f32 %v5388, %v6126
    %v6303 = vadd.f32 %v5389, %v6131
    %v6304 = vadd.f32 %v5390, %v6134
    %v6305 = vadd.f32 %v5391, %v6139
    %v6306 = vadd.f32 %v5392, %v6142
    %v6307 = vadd.f32 %v5393, %v6147
    %v6308 = vadd.f32 %v5394, %v6150
    %v6309 = vadd.f32 %v5395, %v6155
    %v6310 = vadd.f32 %v5396, %v6158
    %v6311 = vadd.f32 %v5397, %v6163
    %v6312 = vadd.f32 %v5398, %v6166
    %v6313 = vadd.f32 %v5399, %v6171
    %v6314 = vadd.f32 %v5400, %v6174
    %v6315 = vadd.f32 %v5401, %v6179
    %v6316 = vadd.f32 %v5402, %v6182
    %v6317 = vadd.f32 %v5403, %v6187
    %v6318 = vadd.f32 %v5404, %v6190
    %v6319 = vadd.f32 %v5405, %v6195
    %v6320 = vadd.f32 %v5406, %v6198
    %v6321 = vadd.f32 %v5407, %v6203
    %v6322 = vadd.f32 %v5408, %v6206
    %v6323 = vadd.f32 %v5409, %v6211
    %v6324 = vadd.f32 %v5410, %v6214
    %v6325 = vld [vmem:[#allocation2 + $0x21] sm:$0xff]
    %v6326 = vld [vmem:[#allocation2 + $0x29] sm:$0xff]
    %v6327 = vld [vmem:[#allocation2 + $0x31] sm:$0xff]
    %v6328 = vld [vmem:[#allocation2 + $0x39] sm:$0xff]
    %v6329 = vld [vmem:[#allocation2 + $0x41] sm:$0xff]
    %v6330 = vld [vmem:[#allocation2 + $0x49] sm:$0xff]
    %v6331 = vld [vmem:[#allocation2 + $0x51] sm:$0xff]
    %v6332 = vld [vmem:[#allocation2 + $0x59] sm:$0xff]
    %v6333 = vld [vmem:[#allocation2 + $0x61] sm:$0xff]
    %v6334 = vld [vmem:[#allocation2 + $0x69] sm:$0xff]
    %v6335 = vld [vmem:[#allocation2 + $0x71] sm:$0xff]
    %v6336 = vld [vmem:[#allocation2 + $0x79] sm:$0xff]
    %v6337 = vld [vmem:[#allocation2 + $0x81] sm:$0xff]
    %v6338 = vld [vmem:[#allocation2 + $0x89] sm:$0xff]
    %v6339 = vld [vmem:[#allocation2 + $0x91] sm:$0xff]
    %v6340 = vld [vmem:[#allocation2 + $0x99] sm:$0xff]
    %v6341 = vld [vmem:[#allocation2 + $0xa1] sm:$0xff]
    %v6342 = vld [vmem:[#allocation2 + $0xa9] sm:$0xff]
    %v6343 = vld [vmem:[#allocation2 + $0xb1] sm:$0xff]
    %v6344 = vld [vmem:[#allocation2 + $0xb9] sm:$0xff]
    %v6345 = vld [vmem:[#allocation2 + $0xc1] sm:$0xff]
    %v6346 = vld [vmem:[#allocation2 + $0xc9] sm:$0xff]
    %v6347 = vld [vmem:[#allocation2 + $0xd1] sm:$0xff]
    %v6348 = vld [vmem:[#allocation2 + $0xd9] sm:$0xff]
    %v6349 = vld [vmem:[#allocation2 + $0xe1] sm:$0xff]
    %v6350 = vld [vmem:[#allocation2 + $0xe9] sm:$0xff]
    %v6351 = vld [vmem:[#allocation2 + $0xf1] sm:$0xff]
    %v6352 = vld [vmem:[#allocation2 + $0xf9] sm:$0xff]
    %v6353 = vld [vmem:[#allocation2 + $0x101] sm:$0xff]
    %v6354 = vld [vmem:[#allocation2 + $0x109] sm:$0xff]
    %v6355 = vld [vmem:[#allocation2 + $0x111] sm:$0xff]
    %v6356 = vld [vmem:[#allocation2 + $0x119] sm:$0xff]
    %v6357 = vld [vmem:[#allocation2 + $0x121] sm:$0xff]
    %v6358 = vld [vmem:[#allocation2 + $0x129] sm:$0xff]
    %v6359 = vld [vmem:[#allocation2 + $0x131] sm:$0xff]
    %v6360 = vld [vmem:[#allocation2 + $0x139] sm:$0xff]
    %v6361 = vld [vmem:[#allocation2 + $0x141] sm:$0xff]
    %v6362 = vld [vmem:[#allocation2 + $0x149] sm:$0xff]
    %v6363 = vld [vmem:[#allocation2 + $0x151] sm:$0xff]
    %v6364 = vld [vmem:[#allocation2 + $0x159] sm:$0xff]
    %v6365 = vld [vmem:[#allocation2 + $0x161] sm:$0xff]
    %v6366 = vld [vmem:[#allocation2 + $0x169] sm:$0xff]
    %v6367 = vld [vmem:[#allocation2 + $0x171] sm:$0xff]
    %v6368 = vld [vmem:[#allocation2 + $0x179] sm:$0xff]
    %v6369 = vld [vmem:[#allocation2 + $0x181] sm:$0xff]
    %v6370 = vld [vmem:[#allocation2 + $0x189] sm:$0xff]
    %v6371 = vld [vmem:[#allocation2 + $0x191] sm:$0xff]
    %v6372 = vld [vmem:[#allocation2 + $0x199] sm:$0xff]
    %v6373 = vld [vmem:[#allocation2 + $0x1a1] sm:$0xff]
    %v6374 = vld [vmem:[#allocation2 + $0x1a9] sm:$0xff]
    %v6375 = vld [vmem:[#allocation2 + $0x1b1] sm:$0xff]
    %v6376 = vld [vmem:[#allocation2 + $0x1b9] sm:$0xff]
    %v6377 = vld [vmem:[#allocation2 + $0x1c1] sm:$0xff]
    %v6378 = vld [vmem:[#allocation2 + $0x1c9] sm:$0xff]
    %v6379 = vld [vmem:[#allocation2 + $0x1d1] sm:$0xff]
    %v6380 = vld [vmem:[#allocation2 + $0x1d9] sm:$0xff]
    %v6381 = vld [vmem:[#allocation2 + $0x1e1] sm:$0xff]
    %v6382 = vld [vmem:[#allocation2 + $0x1e9] sm:$0xff]
    %v6383 = vld [vmem:[#allocation2 + $0x1f1] sm:$0xff]
    %v6384 = vld [vmem:[#allocation2 + $0x1f9] sm:$0xff]
    %v6385 = vld [vmem:[#allocation2 + $0x201] sm:$0xff]
    %v6386 = vld [vmem:[#allocation2 + $0x209] sm:$0xff]
    %v6387 = vld [vmem:[#allocation2 + $0x211] sm:$0xff]
    %v6388 = vld [vmem:[#allocation2 + $0x219] sm:$0xff]
    %v6389 = vld [vmem:[#allocation2 + $0x221] sm:$0xff]
    %v6390 = vld [vmem:[#allocation2 + $0x229] sm:$0xff]
    %v6391 = vld [vmem:[#allocation2 + $0x231] sm:$0xff]
    %v6392 = vld [vmem:[#allocation2 + $0x239] sm:$0xff]
    %v6393 = vld [vmem:[#allocation2 + $0x241] sm:$0xff]
    %v6394 = vld [vmem:[#allocation2 + $0x249] sm:$0xff]
    %v6395 = vld [vmem:[#allocation2 + $0x251] sm:$0xff]
    %v6396 = vld [vmem:[#allocation2 + $0x259] sm:$0xff]
    %v6397 = vld [vmem:[#allocation2 + $0x261] sm:$0xff]
    %v6398 = vld [vmem:[#allocation2 + $0x269] sm:$0xff]
    %v6399 = vld [vmem:[#allocation2 + $0x271] sm:$0xff]
    %v6400 = vld [vmem:[#allocation2 + $0x279] sm:$0xff]
    %v6401 = vld [vmem:[#allocation2 + $0x281] sm:$0xff]
    %v6402 = vld [vmem:[#allocation2 + $0x289] sm:$0xff]
    %v6403 = vld [vmem:[#allocation2 + $0x291] sm:$0xff]
    %v6404 = vld [vmem:[#allocation2 + $0x299] sm:$0xff]
    %v6405 = vld [vmem:[#allocation2 + $0x2a1] sm:$0xff]
    %v6406 = vld [vmem:[#allocation2 + $0x2a9] sm:$0xff]
    %v6407 = vld [vmem:[#allocation2 + $0x2b1] sm:$0xff]
    %v6408 = vld [vmem:[#allocation2 + $0x2b9] sm:$0xff]
    %v6409 = vld [vmem:[#allocation2 + $0x2c1] sm:$0xff]
    %v6410 = vld [vmem:[#allocation2 + $0x2c9] sm:$0xff]
    %v6411 = vld [vmem:[#allocation2 + $0x2d1] sm:$0xff]
    %v6412 = vld [vmem:[#allocation2 + $0x2d9] sm:$0xff]
    %v6413 = vld [vmem:[#allocation2 + $0x2e1] sm:$0xff]
    %v6414 = vld [vmem:[#allocation2 + $0x2e9] sm:$0xff]
    %v6415 = vld [vmem:[#allocation2 + $0x2f1] sm:$0xff]
    %v6416 = vld [vmem:[#allocation2 + $0x2f9] sm:$0xff]
    %v6417 = vld [vmem:[#allocation2 + $0x301] sm:$0xff]
    %v6418 = vld [vmem:[#allocation2 + $0x309] sm:$0xff]
    %v6419 = vld [vmem:[#allocation2 + $0x311] sm:$0xff]
    %v6420 = vld [vmem:[#allocation2 + $0x319] sm:$0xff]
    %v6421 = vld [vmem:[#allocation2 + $0x321] sm:$0xff]
    %v6422 = vld [vmem:[#allocation2 + $0x329] sm:$0xff]
    %v6423 = vld [vmem:[#allocation2 + $0x331] sm:$0xff]
    %v6424 = vld [vmem:[#allocation2 + $0x339] sm:$0xff]
    %v6425 = vld [vmem:[#allocation2 + $0x341] sm:$0xff]
    %v6426 = vld [vmem:[#allocation2 + $0x349] sm:$0xff]
    %v6427 = vld [vmem:[#allocation2 + $0x351] sm:$0xff]
    %v6428 = vld [vmem:[#allocation2 + $0x359] sm:$0xff]
    %v6429 = vld [vmem:[#allocation2 + $0x361] sm:$0xff]
    %v6430 = vld [vmem:[#allocation2 + $0x369] sm:$0xff]
    %v6431 = vld [vmem:[#allocation2 + $0x371] sm:$0xff]
    %v6432 = vld [vmem:[#allocation2 + $0x379] sm:$0xff]
    %v6433 = vpack.c.bf16 %v6326, %v6325
    %v6434 = vpack.c.bf16 %v6328, %v6327
    %v6435 = vpack.c.bf16 %v6330, %v6329
    %v6436 = vpack.c.bf16 %v6332, %v6331
    %v6437 = vpack.c.bf16 %v6334, %v6333
    %v6438 = vpack.c.bf16 %v6336, %v6335
    %v6439 = vpack.c.bf16 %v6338, %v6337
    %v6440 = vpack.c.bf16 %v6340, %v6339
    %v6441 = vpack.c.bf16 %v6342, %v6341
    %v6442 = vpack.c.bf16 %v6344, %v6343
    %v6443 = vpack.c.bf16 %v6346, %v6345
    %v6444 = vpack.c.bf16 %v6348, %v6347
    %v6445 = vpack.c.bf16 %v6350, %v6349
    %v6446 = vpack.c.bf16 %v6352, %v6351
    %v6447 = vpack.c.bf16 %v6354, %v6353
    %v6448 = vpack.c.bf16 %v6356, %v6355
    %v6449 = vpack.c.bf16 %v6358, %v6357
    %v6450 = vpack.c.bf16 %v6360, %v6359
    %v6451 = vpack.c.bf16 %v6362, %v6361
    %v6452 = vpack.c.bf16 %v6364, %v6363
    %v6453 = vpack.c.bf16 %v6366, %v6365
    %v6454 = vpack.c.bf16 %v6368, %v6367
    %v6455 = vpack.c.bf16 %v6370, %v6369
    %v6456 = vpack.c.bf16 %v6372, %v6371
    %v6457 = vpack.c.bf16 %v6374, %v6373
    %v6458 = vpack.c.bf16 %v6376, %v6375
    %v6459 = vpack.c.bf16 %v6378, %v6377
    %v6460 = vpack.c.bf16 %v6380, %v6379
    %v6461 = vpack.c.bf16 %v6382, %v6381
    %v6462 = vpack.c.bf16 %v6384, %v6383
    %v6463 = vpack.c.bf16 %v6386, %v6385
    %v6464 = vpack.c.bf16 %v6388, %v6387
    %v6465 = vpack.c.bf16 %v6390, %v6389
    %v6466 = vpack.c.bf16 %v6392, %v6391
    %v6467 = vpack.c.bf16 %v6394, %v6393
    %v6468 = vpack.c.bf16 %v6396, %v6395
    %v6469 = vpack.c.bf16 %v6398, %v6397
    %v6470 = vpack.c.bf16 %v6400, %v6399
    %v6471 = vpack.c.bf16 %v6402, %v6401
    %v6472 = vpack.c.bf16 %v6404, %v6403
    %v6473 = vpack.c.bf16 %v6406, %v6405
    %v6474 = vpack.c.bf16 %v6408, %v6407
    %v6475 = vpack.c.bf16 %v6410, %v6409
    %v6476 = vpack.c.bf16 %v6412, %v6411
    %v6477 = vpack.c.bf16 %v6414, %v6413
    %v6478 = vpack.c.bf16 %v6416, %v6415
    %v6479 = vpack.c.bf16 %v6418, %v6417
    %v6480 = vpack.c.bf16 %v6420, %v6419
    %v6481 = vpack.c.bf16 %v6422, %v6421
    %v6482 = vpack.c.bf16 %v6424, %v6423
    %v6483 = vpack.c.bf16 %v6426, %v6425
    %v6484 = vpack.c.bf16 %v6428, %v6427
    %v6485 = vpack.c.bf16 %v6430, %v6429
    %v6486 = vpack.c.bf16 %v6432, %v6431
    %s6487 = scalar_lea.vmem %s4, 80
    %v6488 = vld [vmem:[%s6487] sm:$0xf]
    %v6489 = vld [vmem:[%s6487 + $0x4] sm:$0xf]
    %v6490 = vld [vmem:[%s6487 + $0x8] sm:$0xf]
    %v6491 = vld [vmem:[%s6487 + $0xc] sm:$0xf]
    %v6496 = vunpack.c.l.b16 %v6488
    %v6497 = vunpack.c.l.b16 %v6489
    %v6498 = vunpack.c.l.b16 %v6490
    %v6499 = vunpack.c.l.b16 %v6491
    %v6500 = vpack.c.b16 %v6497, %v6496
    %v6501 = vpack.c.b16 %v6499, %v6498
    %v6505 = vsel %vm1863, %v6433, 0
    %v6508 = vsel %vm1863, %v6434, 0
    %v6511 = vsel %vm1863, %v6435, 0
    %v6514 = vsel %vm1863, %v6436, 0
    %v6517 = vsel %vm1863, %v6437, 0
    %v6520 = vsel %vm1863, %v6438, 0
    %v6523 = vsel %vm1863, %v6439, 0
    %v6526 = vsel %vm1863, %v6440, 0
    %v6529 = vsel %vm1863, %v6441, 0
    %v6532 = vsel %vm1863, %v6442, 0
    %v6535 = vsel %vm1863, %v6443, 0
    %v6538 = vsel %vm1863, %v6444, 0
    %v6541 = vsel %vm1863, %v6445, 0
    %v6544 = vsel %vm1863, %v6446, 0
    %v6547 = vsel %vm1863, %v6447, 0
    %v6550 = vsel %vm1863, %v6448, 0
    %v6553 = vsel %vm1863, %v6449, 0
    %v6556 = vsel %vm1863, %v6450, 0
    %v6559 = vsel %vm1863, %v6451, 0
    %v6562 = vsel %vm1863, %v6452, 0
    %v6565 = vsel %vm1863, %v6453, 0
    %v6568 = vsel %vm1863, %v6454, 0
    %v6571 = vsel %vm1863, %v6455, 0
    %v6574 = vsel %vm1863, %v6456, 0
    %v6577 = vsel %vm1863, %v6457, 0
    %v6580 = vsel %vm1863, %v6458, 0
    %v6583 = vsel %vm1863, %v6459, 0
    %v6586 = vsel %vm1863, %v6460, 0
    %v6589 = vsel %vm1863, %v6461, 0
    %v6592 = vsel %vm1863, %v6462, 0
    %v6595 = vsel %vm1863, %v6463, 0
    %v6598 = vsel %vm1863, %v6464, 0
    %v6601 = vsel %vm1863, %v6465, 0
    %v6604 = vsel %vm1863, %v6466, 0
    %v6607 = vsel %vm1863, %v6467, 0
    %v6610 = vsel %vm1863, %v6468, 0
    %v6613 = vsel %vm1863, %v6469, 0
    %v6616 = vsel %vm1863, %v6470, 0
    %v6619 = vsel %vm1863, %v6471, 0
    %v6622 = vsel %vm1863, %v6472, 0
    %v6625 = vsel %vm1863, %v6473, 0
    %v6628 = vsel %vm1863, %v6474, 0
    %v6631 = vsel %vm1863, %v6475, 0
    %v6634 = vsel %vm1863, %v6476, 0
    %v6637 = vsel %vm1863, %v6477, 0
    %v6640 = vsel %vm1863, %v6478, 0
    %v6643 = vsel %vm1863, %v6479, 0
    %v6646 = vsel %vm1863, %v6480, 0
    %v6649 = vsel %vm1863, %v6481, 0
    %v6652 = vsel %vm1863, %v6482, 0
    %v6655 = vsel %vm1863, %v6483, 0
    %v6658 = vsel %vm1863, %v6484, 0
    %v6661 = vsel %vm1863, %v6485, 0
    %v6664 = vsel %vm1863, %v6486, 0
    %6666 = vmatprep.subr.bf16.mxu0 0
    %6667 = vmatpush1.bf16.msra.mxu0 %v6500
    %6668 = vmatprep.subr.bf16.mxu0 0
    %6669 = vmatpush1.bf16.msra.mxu0 %v6501
    %6670 = vmatprep.subr.bf16.mxu0 0
    %6671 = vmatpush1.bf16.msra.mxu0 0
    %6672 = vmatprep.subr.bf16.mxu0 0
    %6673 = vmatpush1.bf16.msra.mxu0 0
    %6674 = vmatprep.subr.bf16.mxu0 0
    %6675 = vmatpush1.bf16.msra.mxu0 0
    %6676 = vmatprep.subr.bf16.mxu0 0
    %6677 = vmatpush1.bf16.msra.mxu0 0
    %6678 = vmatprep.subr.bf16.mxu0 0
    %6679 = vmatpush1.bf16.msra.mxu0 0
    %6680 = vmatprep.subr.bf16.mxu0 0
    %6681 = vmatpush1.bf16.msra.mxu0 0
    %6682 = vmatprep.subr.bf16.mxu0 0
    %6683 = vmatpush1.bf16.msra.mxu0 0
    %6684 = vmatprep.subr.bf16.mxu0 0
    %6685 = vmatpush1.bf16.msra.mxu0 0
    %6686 = vmatprep.subr.bf16.mxu0 0
    %6687 = vmatpush1.bf16.msra.mxu0 0
    %6688 = vmatprep.subr.bf16.mxu0 0
    %6689 = vmatpush1.bf16.msra.mxu0 0
    %6690 = vmatprep.subr.bf16.mxu0 0
    %6691 = vmatpush1.bf16.msra.mxu0 0
    %6692 = vmatprep.subr.bf16.mxu0 0
    %6693 = vmatpush1.bf16.msra.mxu0 0
    %6694 = vmatprep.subr.bf16.mxu0 0
    %6695 = vmatpush1.bf16.msra.mxu0 0
    %6696 = vmatprep.subr.bf16.mxu0 0
    %6697 = vmatpush1.bf16.msra.mxu0 0
    %6698 = vmatprep.mubr.bf16.mxu0 0
    %6699 = vmatmul.mubr.bf16.gmra.mrb[0].mxu0 %v6505
    %v6700 = vpop.f32.mrb[0].mxu0
    %v6701 = vadd.f32 0.0, %v6700
    %v6702 = vpop.f32.mrb[0].mxu0
    %v6703 = vpop.f32.mrb[0].mxu0
    %v6704 = vadd.f32 0.0, %v6703
    %v6705 = vpop.f32.mrb[0].mxu0
    %6706 = vmatprep.mubr.bf16.mxu0 0
    %6707 = vmatmul.mubr.bf16.gmra.mrb[0].mxu0 %v6508
    %v6708 = vpop.f32.mrb[0].mxu0
    %v6709 = vadd.f32 0.0, %v6708
    %v6710 = vpop.f32.mrb[0].mxu0
    %v6711 = vpop.f32.mrb[0].mxu0
    %v6712 = vadd.f32 0.0, %v6711
    %v6713 = vpop.f32.mrb[0].mxu0
    %6714 = vmatprep.mubr.bf16.mxu0 0
    %6715 = vmatmul.mubr.bf16.gmra.mrb[0].mxu0 %v6511
    %v6716 = vpop.f32.mrb[0].mxu0
    %v6717 = vadd.f32 0.0, %v6716
    %v6718 = vpop.f32.mrb[0].mxu0
    %v6719 = vpop.f32.mrb[0].mxu0
    %v6720 = vadd.f32 0.0, %v6719
    %v6721 = vpop.f32.mrb[0].mxu0
    %6722 = vmatprep.mubr.bf16.mxu0 0
    %6723 = vmatmul.mubr.bf16.gmra.mrb[0].mxu0 %v6514
    %v6724 = vpop.f32.mrb[0].mxu0
    %v6725 = vadd.f32 0.0, %v6724
    %v6726 = vpop.f32.mrb[0].mxu0
    %v6727 = vpop.f32.mrb[0].mxu0
    %v6728 = vadd.f32 0.0, %v6727
    %v6729 = vpop.f32.mrb[0].mxu0
    %6730 = vmatprep.mubr.bf16.mxu0 0
    %6731 = vmatmul.mubr.bf16.gmra.mrb[0].mxu0 %v6517
    %v6732 = vpop.f32.mrb[0].mxu0
    %v6733 = vadd.f32 0.0, %v6732
    %v6734 = vpop.f32.mrb[0].mxu0
    %v6735 = vpop.f32.mrb[0].mxu0
    %v6736 = vadd.f32 0.0, %v6735
    %v6737 = vpop.f32.mrb[0].mxu0
    %6738 = vmatprep.mubr.bf16.mxu0 0
    %6739 = vmatmul.mubr.bf16.gmra.mrb[0].mxu0 %v6520
    %v6740 = vpop.f32.mrb[0].mxu0
    %v6741 = vadd.f32 0.0, %v6740
    %v6742 = vpop.f32.mrb[0].mxu0
    %v6743 = vpop.f32.mrb[0].mxu0
    %v6744 = vadd.f32 0.0, %v6743
    %v6745 = vpop.f32.mrb[0].mxu0
    %6746 = vmatprep.mubr.bf16.mxu0 0
    %6747 = vmatmul.mubr.bf16.gmra.mrb[0].mxu0 %v6523
    %v6748 = vpop.f32.mrb[0].mxu0
    %v6749 = vadd.f32 0.0, %v6748
    %v6750 = vpop.f32.mrb[0].mxu0
    %v6751 = vpop.f32.mrb[0].mxu0
    %v6752 = vadd.f32 0.0, %v6751
    %v6753 = vpop.f32.mrb[0].mxu0
    %6754 = vmatprep.mubr.bf16.mxu0 0
    %6755 = vmatmul.mubr.bf16.gmra.mrb[0].mxu0 %v6526
    %v6756 = vpop.f32.mrb[0].mxu0
    %v6757 = vadd.f32 0.0, %v6756
    %v6758 = vpop.f32.mrb[0].mxu0
    %v6759 = vpop.f32.mrb[0].mxu0
    %v6760 = vadd.f32 0.0, %v6759
    %v6761 = vpop.f32.mrb[0].mxu0
    %6762 = vmatprep.mubr.bf16.mxu0 0
    %6763 = vmatmul.mubr.bf16.gmra.mrb[0].mxu0 %v6529
    %v6764 = vpop.f32.mrb[0].mxu0
    %v6765 = vadd.f32 0.0, %v6764
    %v6766 = vpop.f32.mrb[0].mxu0
    %v6767 = vpop.f32.mrb[0].mxu0
    %v6768 = vadd.f32 0.0, %v6767
    %v6769 = vpop.f32.mrb[0].mxu0
    %6770 = vmatprep.mubr.bf16.mxu0 0
    %6771 = vmatmul.mubr.bf16.gmra.mrb[0].mxu0 %v6532
    %v6772 = vpop.f32.mrb[0].mxu0
    %v6773 = vadd.f32 0.0, %v6772
    %v6774 = vpop.f32.mrb[0].mxu0
    %v6775 = vpop.f32.mrb[0].mxu0
    %v6776 = vadd.f32 0.0, %v6775
    %v6777 = vpop.f32.mrb[0].mxu0
    %6778 = vmatprep.mubr.bf16.mxu0 0
    %6779 = vmatmul.mubr.bf16.gmra.mrb[0].mxu0 %v6535
    %v6780 = vpop.f32.mrb[0].mxu0
    %v6781 = vadd.f32 0.0, %v6780
    %v6782 = vpop.f32.mrb[0].mxu0
    %v6783 = vpop.f32.mrb[0].mxu0
    %v6784 = vadd.f32 0.0, %v6783
    %v6785 = vpop.f32.mrb[0].mxu0
    %6786 = vmatprep.mubr.bf16.mxu0 0
    %6787 = vmatmul.mubr.bf16.gmra.mrb[0].mxu0 %v6538
    %v6788 = vpop.f32.mrb[0].mxu0
    %v6789 = vadd.f32 0.0, %v6788
    %v6790 = vpop.f32.mrb[0].mxu0
    %v6791 = vpop.f32.mrb[0].mxu0
    %v6792 = vadd.f32 0.0, %v6791
    %v6793 = vpop.f32.mrb[0].mxu0
    %6794 = vmatprep.mubr.bf16.mxu0 0
    %6795 = vmatmul.mubr.bf16.gmra.mrb[0].mxu0 %v6541
    %v6796 = vpop.f32.mrb[0].mxu0
    %v6797 = vadd.f32 0.0, %v6796
    %v6798 = vpop.f32.mrb[0].mxu0
    %v6799 = vpop.f32.mrb[0].mxu0
    %v6800 = vadd.f32 0.0, %v6799
    %v6801 = vpop.f32.mrb[0].mxu0
    %6802 = vmatprep.mubr.bf16.mxu0 0
    %6803 = vmatmul.mubr.bf16.gmra.mrb[0].mxu0 %v6544
    %v6804 = vpop.f32.mrb[0].mxu0
    %v6805 = vadd.f32 0.0, %v6804
    %v6806 = vpop.f32.mrb[0].mxu0
    %v6807 = vpop.f32.mrb[0].mxu0
    %v6808 = vadd.f32 0.0, %v6807
    %v6809 = vpop.f32.mrb[0].mxu0
    %6810 = vmatprep.mubr.bf16.mxu0 0
    %6811 = vmatmul.mubr.bf16.gmra.mrb[0].mxu0 %v6547
    %v6812 = vpop.f32.mrb[0].mxu0
    %v6813 = vadd.f32 0.0, %v6812
    %v6814 = vpop.f32.mrb[0].mxu0
    %v6815 = vpop.f32.mrb[0].mxu0
    %v6816 = vadd.f32 0.0, %v6815
    %v6817 = vpop.f32.mrb[0].mxu0
    %6818 = vmatprep.mubr.bf16.mxu0 0
    %6819 = vmatmul.mubr.bf16.gmra.mrb[0].mxu0 %v6550
    %v6820 = vpop.f32.mrb[0].mxu0
    %v6821 = vadd.f32 0.0, %v6820
    %v6822 = vpop.f32.mrb[0].mxu0
    %v6823 = vpop.f32.mrb[0].mxu0
    %v6824 = vadd.f32 0.0, %v6823
    %v6825 = vpop.f32.mrb[0].mxu0
    %6826 = vmatprep.mubr.bf16.mxu0 0
    %6827 = vmatmul.mubr.bf16.gmra.mrb[0].mxu0 %v6553
    %v6828 = vpop.f32.mrb[0].mxu0
    %v6829 = vadd.f32 0.0, %v6828
    %v6830 = vpop.f32.mrb[0].mxu0
    %v6831 = vpop.f32.mrb[0].mxu0
    %v6832 = vadd.f32 0.0, %v6831
    %v6833 = vpop.f32.mrb[0].mxu0
    %6834 = vmatprep.mubr.bf16.mxu0 0
    %6835 = vmatmul.mubr.bf16.gmra.mrb[0].mxu0 %v6556
    %v6836 = vpop.f32.mrb[0].mxu0
    %v6837 = vadd.f32 0.0, %v6836
    %v6838 = vpop.f32.mrb[0].mxu0
    %v6839 = vpop.f32.mrb[0].mxu0
    %v6840 = vadd.f32 0.0, %v6839
    %v6841 = vpop.f32.mrb[0].mxu0
    %6842 = vmatprep.mubr.bf16.mxu0 0
    %6843 = vmatmul.mubr.bf16.gmra.mrb[0].mxu0 %v6559
    %v6844 = vpop.f32.mrb[0].mxu0
    %v6845 = vadd.f32 0.0, %v6844
    %v6846 = vpop.f32.mrb[0].mxu0
    %v6847 = vpop.f32.mrb[0].mxu0
    %v6848 = vadd.f32 0.0, %v6847
    %v6849 = vpop.f32.mrb[0].mxu0
    %6850 = vmatprep.mubr.bf16.mxu0 0
    %6851 = vmatmul.mubr.bf16.gmra.mrb[0].mxu0 %v6562
    %v6852 = vpop.f32.mrb[0].mxu0
    %v6853 = vadd.f32 0.0, %v6852
    %v6854 = vpop.f32.mrb[0].mxu0
    %v6855 = vpop.f32.mrb[0].mxu0
    %v6856 = vadd.f32 0.0, %v6855
    %v6857 = vpop.f32.mrb[0].mxu0
    %6858 = vmatprep.mubr.bf16.mxu0 0
    %6859 = vmatmul.mubr.bf16.gmra.mrb[0].mxu0 %v6565
    %v6860 = vpop.f32.mrb[0].mxu0
    %v6861 = vadd.f32 0.0, %v6860
    %v6862 = vpop.f32.mrb[0].mxu0
    %v6863 = vpop.f32.mrb[0].mxu0
    %v6864 = vadd.f32 0.0, %v6863
    %v6865 = vpop.f32.mrb[0].mxu0
    %6866 = vmatprep.mubr.bf16.mxu0 0
    %6867 = vmatmul.mubr.bf16.gmra.mrb[0].mxu0 %v6568
    %v6868 = vpop.f32.mrb[0].mxu0
    %v6869 = vadd.f32 0.0, %v6868
    %v6870 = vpop.f32.mrb[0].mxu0
    %v6871 = vpop.f32.mrb[0].mxu0
    %v6872 = vadd.f32 0.0, %v6871
    %v6873 = vpop.f32.mrb[0].mxu0
    %6874 = vmatprep.mubr.bf16.mxu0 0
    %6875 = vmatmul.mubr.bf16.gmra.mrb[0].mxu0 %v6571
    %v6876 = vpop.f32.mrb[0].mxu0
    %v6877 = vadd.f32 0.0, %v6876
    %v6878 = vpop.f32.mrb[0].mxu0
    %v6879 = vpop.f32.mrb[0].mxu0
    %v6880 = vadd.f32 0.0, %v6879
    %v6881 = vpop.f32.mrb[0].mxu0
    %6882 = vmatprep.mubr.bf16.mxu0 0
    %6883 = vmatmul.mubr.bf16.gmra.mrb[0].mxu0 %v6574
    %v6884 = vpop.f32.mrb[0].mxu0
    %v6885 = vadd.f32 0.0, %v6884
    %v6886 = vpop.f32.mrb[0].mxu0
    %v6887 = vpop.f32.mrb[0].mxu0
    %v6888 = vadd.f32 0.0, %v6887
    %v6889 = vpop.f32.mrb[0].mxu0
    %6890 = vmatprep.mubr.bf16.mxu0 0
    %6891 = vmatmul.mubr.bf16.gmra.mrb[0].mxu0 %v6577
    %v6892 = vpop.f32.mrb[0].mxu0
    %v6893 = vadd.f32 0.0, %v6892
    %v6894 = vpop.f32.mrb[0].mxu0
    %v6895 = vpop.f32.mrb[0].mxu0
    %v6896 = vadd.f32 0.0, %v6895
    %v6897 = vpop.f32.mrb[0].mxu0
    %6898 = vmatprep.mubr.bf16.mxu0 0
    %6899 = vmatmul.mubr.bf16.gmra.mrb[0].mxu0 %v6580
    %v6900 = vpop.f32.mrb[0].mxu0
    %v6901 = vadd.f32 0.0, %v6900
    %v6902 = vpop.f32.mrb[0].mxu0
    %v6903 = vpop.f32.mrb[0].mxu0
    %v6904 = vadd.f32 0.0, %v6903
    %v6905 = vpop.f32.mrb[0].mxu0
    %6906 = vmatprep.mubr.bf16.mxu0 0
    %6907 = vmatmul.mubr.bf16.gmra.mrb[0].mxu0 %v6583
    %v6908 = vpop.f32.mrb[0].mxu0
    %v6909 = vadd.f32 0.0, %v6908
    %v6910 = vpop.f32.mrb[0].mxu0
    %v6911 = vpop.f32.mrb[0].mxu0
    %v6912 = vadd.f32 0.0, %v6911
    %v6913 = vpop.f32.mrb[0].mxu0
    %6914 = vmatprep.mubr.bf16.mxu0 0
    %6915 = vmatmul.mubr.bf16.gmra.mrb[0].mxu0 %v6586
    %v6916 = vpop.f32.mrb[0].mxu0
    %v6917 = vadd.f32 0.0, %v6916
    %v6918 = vpop.f32.mrb[0].mxu0
    %v6919 = vpop.f32.mrb[0].mxu0
    %v6920 = vadd.f32 0.0, %v6919
    %v6921 = vpop.f32.mrb[0].mxu0
    %6922 = vmatprep.mubr.bf16.mxu0 0
    %6923 = vmatmul.mubr.bf16.gmra.mrb[0].mxu0 %v6589
    %v6924 = vpop.f32.mrb[0].mxu0
    %v6925 = vadd.f32 0.0, %v6924
    %v6926 = vpop.f32.mrb[0].mxu0
    %v6927 = vpop.f32.mrb[0].mxu0
    %v6928 = vadd.f32 0.0, %v6927
    %v6929 = vpop.f32.mrb[0].mxu0
    %6930 = vmatprep.mubr.bf16.mxu0 0
    %6931 = vmatmul.mubr.bf16.gmra.mrb[0].mxu0 %v6592
    %v6932 = vpop.f32.mrb[0].mxu0
    %v6933 = vadd.f32 0.0, %v6932
    %v6934 = vpop.f32.mrb[0].mxu0
    %v6935 = vpop.f32.mrb[0].mxu0
    %v6936 = vadd.f32 0.0, %v6935
    %v6937 = vpop.f32.mrb[0].mxu0
    %6938 = vmatprep.mubr.bf16.mxu0 0
    %6939 = vmatmul.mubr.bf16.gmra.mrb[0].mxu0 %v6595
    %v6940 = vpop.f32.mrb[0].mxu0
    %v6941 = vadd.f32 0.0, %v6940
    %v6942 = vpop.f32.mrb[0].mxu0
    %v6943 = vpop.f32.mrb[0].mxu0
    %v6944 = vadd.f32 0.0, %v6943
    %v6945 = vpop.f32.mrb[0].mxu0
    %6946 = vmatprep.mubr.bf16.mxu0 0
    %6947 = vmatmul.mubr.bf16.gmra.mrb[0].mxu0 %v6598
    %v6948 = vpop.f32.mrb[0].mxu0
    %v6949 = vadd.f32 0.0, %v6948
    %v6950 = vpop.f32.mrb[0].mxu0
    %v6951 = vpop.f32.mrb[0].mxu0
    %v6952 = vadd.f32 0.0, %v6951
    %v6953 = vpop.f32.mrb[0].mxu0
    %6954 = vmatprep.mubr.bf16.mxu0 0
    %6955 = vmatmul.mubr.bf16.gmra.mrb[0].mxu0 %v6601
    %v6956 = vpop.f32.mrb[0].mxu0
    %v6957 = vadd.f32 0.0, %v6956
    %v6958 = vpop.f32.mrb[0].mxu0
    %v6959 = vpop.f32.mrb[0].mxu0
    %v6960 = vadd.f32 0.0, %v6959
    %v6961 = vpop.f32.mrb[0].mxu0
    %6962 = vmatprep.mubr.bf16.mxu0 0
    %6963 = vmatmul.mubr.bf16.gmra.mrb[0].mxu0 %v6604
    %v6964 = vpop.f32.mrb[0].mxu0
    %v6965 = vadd.f32 0.0, %v6964
    %v6966 = vpop.f32.mrb[0].mxu0
    %v6967 = vpop.f32.mrb[0].mxu0
    %v6968 = vadd.f32 0.0, %v6967
    %v6969 = vpop.f32.mrb[0].mxu0
    %6970 = vmatprep.mubr.bf16.mxu0 0
    %6971 = vmatmul.mubr.bf16.gmra.mrb[0].mxu0 %v6607
    %v6972 = vpop.f32.mrb[0].mxu0
    %v6973 = vadd.f32 0.0, %v6972
    %v6974 = vpop.f32.mrb[0].mxu0
    %v6975 = vpop.f32.mrb[0].mxu0
    %v6976 = vadd.f32 0.0, %v6975
    %v6977 = vpop.f32.mrb[0].mxu0
    %6978 = vmatprep.mubr.bf16.mxu0 0
    %6979 = vmatmul.mubr.bf16.gmra.mrb[0].mxu0 %v6610
    %v6980 = vpop.f32.mrb[0].mxu0
    %v6981 = vadd.f32 0.0, %v6980
    %v6982 = vpop.f32.mrb[0].mxu0
    %v6983 = vpop.f32.mrb[0].mxu0
    %v6984 = vadd.f32 0.0, %v6983
    %v6985 = vpop.f32.mrb[0].mxu0
    %6986 = vmatprep.mubr.bf16.mxu0 0
    %6987 = vmatmul.mubr.bf16.gmra.mrb[0].mxu0 %v6613
    %v6988 = vpop.f32.mrb[0].mxu0
    %v6989 = vadd.f32 0.0, %v6988
    %v6990 = vpop.f32.mrb[0].mxu0
    %v6991 = vpop.f32.mrb[0].mxu0
    %v6992 = vadd.f32 0.0, %v6991
    %v6993 = vpop.f32.mrb[0].mxu0
    %6994 = vmatprep.mubr.bf16.mxu0 0
    %6995 = vmatmul.mubr.bf16.gmra.mrb[0].mxu0 %v6616
    %v6996 = vpop.f32.mrb[0].mxu0
    %v6997 = vadd.f32 0.0, %v6996
    %v6998 = vpop.f32.mrb[0].mxu0
    %v6999 = vpop.f32.mrb[0].mxu0
    %v7000 = vadd.f32 0.0, %v6999
    %v7001 = vpop.f32.mrb[0].mxu0
    %7002 = vmatprep.mubr.bf16.mxu0 0
    %7003 = vmatmul.mubr.bf16.gmra.mrb[0].mxu0 %v6619
    %v7004 = vpop.f32.mrb[0].mxu0
    %v7005 = vadd.f32 0.0, %v7004
    %v7006 = vpop.f32.mrb[0].mxu0
    %v7007 = vpop.f32.mrb[0].mxu0
    %v7008 = vadd.f32 0.0, %v7007
    %v7009 = vpop.f32.mrb[0].mxu0
    %7010 = vmatprep.mubr.bf16.mxu0 0
    %7011 = vmatmul.mubr.bf16.gmra.mrb[0].mxu0 %v6622
    %v7012 = vpop.f32.mrb[0].mxu0
    %v7013 = vadd.f32 0.0, %v7012
    %v7014 = vpop.f32.mrb[0].mxu0
    %v7015 = vpop.f32.mrb[0].mxu0
    %v7016 = vadd.f32 0.0, %v7015
    %v7017 = vpop.f32.mrb[0].mxu0
    %7018 = vmatprep.mubr.bf16.mxu0 0
    %7019 = vmatmul.mubr.bf16.gmra.mrb[0].mxu0 %v6625
    %v7020 = vpop.f32.mrb[0].mxu0
    %v7021 = vadd.f32 0.0, %v7020
    %v7022 = vpop.f32.mrb[0].mxu0
    %v7023 = vpop.f32.mrb[0].mxu0
    %v7024 = vadd.f32 0.0, %v7023
    %v7025 = vpop.f32.mrb[0].mxu0
    %7026 = vmatprep.mubr.bf16.mxu0 0
    %7027 = vmatmul.mubr.bf16.gmra.mrb[0].mxu0 %v6628
    %v7028 = vpop.f32.mrb[0].mxu0
    %v7029 = vadd.f32 0.0, %v7028
    %v7030 = vpop.f32.mrb[0].mxu0
    %v7031 = vpop.f32.mrb[0].mxu0
    %v7032 = vadd.f32 0.0, %v7031
    %v7033 = vpop.f32.mrb[0].mxu0
    %7034 = vmatprep.mubr.bf16.mxu0 0
    %7035 = vmatmul.mubr.bf16.gmra.mrb[0].mxu0 %v6631
    %v7036 = vpop.f32.mrb[0].mxu0
    %v7037 = vadd.f32 0.0, %v7036
    %v7038 = vpop.f32.mrb[0].mxu0
    %v7039 = vpop.f32.mrb[0].mxu0
    %v7040 = vadd.f32 0.0, %v7039
    %v7041 = vpop.f32.mrb[0].mxu0
    %7042 = vmatprep.mubr.bf16.mxu0 0
    %7043 = vmatmul.mubr.bf16.gmra.mrb[0].mxu0 %v6634
    %v7044 = vpop.f32.mrb[0].mxu0
    %v7045 = vadd.f32 0.0, %v7044
    %v7046 = vpop.f32.mrb[0].mxu0
    %v7047 = vpop.f32.mrb[0].mxu0
    %v7048 = vadd.f32 0.0, %v7047
    %v7049 = vpop.f32.mrb[0].mxu0
    %7050 = vmatprep.mubr.bf16.mxu0 0
    %7051 = vmatmul.mubr.bf16.gmra.mrb[0].mxu0 %v6637
    %v7052 = vpop.f32.mrb[0].mxu0
    %v7053 = vadd.f32 0.0, %v7052
    %v7054 = vpop.f32.mrb[0].mxu0
    %v7055 = vpop.f32.mrb[0].mxu0
    %v7056 = vadd.f32 0.0, %v7055
    %v7057 = vpop.f32.mrb[0].mxu0
    %7058 = vmatprep.mubr.bf16.mxu0 0
    %7059 = vmatmul.mubr.bf16.gmra.mrb[0].mxu0 %v6640
    %v7060 = vpop.f32.mrb[0].mxu0
    %v7061 = vadd.f32 0.0, %v7060
    %v7062 = vpop.f32.mrb[0].mxu0
    %v7063 = vpop.f32.mrb[0].mxu0
    %v7064 = vadd.f32 0.0, %v7063
    %v7065 = vpop.f32.mrb[0].mxu0
    %7066 = vmatprep.mubr.bf16.mxu0 0
    %7067 = vmatmul.mubr.bf16.gmra.mrb[0].mxu0 %v6643
    %v7068 = vpop.f32.mrb[0].mxu0
    %v7069 = vadd.f32 0.0, %v7068
    %v7070 = vpop.f32.mrb[0].mxu0
    %v7071 = vpop.f32.mrb[0].mxu0
    %v7072 = vadd.f32 0.0, %v7071
    %v7073 = vpop.f32.mrb[0].mxu0
    %7074 = vmatprep.mubr.bf16.mxu0 0
    %7075 = vmatmul.mubr.bf16.gmra.mrb[0].mxu0 %v6646
    %v7076 = vpop.f32.mrb[0].mxu0
    %v7077 = vadd.f32 0.0, %v7076
    %v7078 = vpop.f32.mrb[0].mxu0
    %v7079 = vpop.f32.mrb[0].mxu0
    %v7080 = vadd.f32 0.0, %v7079
    %v7081 = vpop.f32.mrb[0].mxu0
    %7082 = vmatprep.mubr.bf16.mxu0 0
    %7083 = vmatmul.mubr.bf16.gmra.mrb[0].mxu0 %v6649
    %v7084 = vpop.f32.mrb[0].mxu0
    %v7085 = vadd.f32 0.0, %v7084
    %v7086 = vpop.f32.mrb[0].mxu0
    %v7087 = vpop.f32.mrb[0].mxu0
    %v7088 = vadd.f32 0.0, %v7087
    %v7089 = vpop.f32.mrb[0].mxu0
    %7090 = vmatprep.mubr.bf16.mxu0 0
    %7091 = vmatmul.mubr.bf16.gmra.mrb[0].mxu0 %v6652
    %v7092 = vpop.f32.mrb[0].mxu0
    %v7093 = vadd.f32 0.0, %v7092
    %v7094 = vpop.f32.mrb[0].mxu0
    %v7095 = vpop.f32.mrb[0].mxu0
    %v7096 = vadd.f32 0.0, %v7095
    %v7097 = vpop.f32.mrb[0].mxu0
    %7098 = vmatprep.mubr.bf16.mxu0 0
    %7099 = vmatmul.mubr.bf16.gmra.mrb[0].mxu0 %v6655
    %v7100 = vpop.f32.mrb[0].mxu0
    %v7101 = vadd.f32 0.0, %v7100
    %v7102 = vpop.f32.mrb[0].mxu0
    %v7103 = vpop.f32.mrb[0].mxu0
    %v7104 = vadd.f32 0.0, %v7103
    %v7105 = vpop.f32.mrb[0].mxu0
    %7106 = vmatprep.mubr.bf16.mxu0 0
    %7107 = vmatmul.mubr.bf16.gmra.mrb[0].mxu0 %v6658
    %v7108 = vpop.f32.mrb[0].mxu0
    %v7109 = vadd.f32 0.0, %v7108
    %v7110 = vpop.f32.mrb[0].mxu0
    %v7111 = vpop.f32.mrb[0].mxu0
    %v7112 = vadd.f32 0.0, %v7111
    %v7113 = vpop.f32.mrb[0].mxu0
    %7114 = vmatprep.mubr.bf16.mxu0 0
    %7115 = vmatmul.mubr.bf16.gmra.mrb[0].mxu0 %v6661
    %v7116 = vpop.f32.mrb[0].mxu0
    %v7117 = vadd.f32 0.0, %v7116
    %v7118 = vpop.f32.mrb[0].mxu0
    %v7119 = vpop.f32.mrb[0].mxu0
    %v7120 = vadd.f32 0.0, %v7119
    %v7121 = vpop.f32.mrb[0].mxu0
    %7122 = vmatprep.mubr.bf16.mxu0 0
    %7123 = vmatmul.mubr.bf16.gmra.mrb[0].mxu0 %v6664
    %v7124 = vpop.f32.mrb[0].mxu0
    %v7125 = vadd.f32 0.0, %v7124
    %v7126 = vpop.f32.mrb[0].mxu0
    %v7127 = vpop.f32.mrb[0].mxu0
    %v7128 = vadd.f32 0.0, %v7127
    %v7129 = vpop.f32.mrb[0].mxu0
    %7130 = vdwg.mxu0
    %v7131 = vadd.f32 %v6217, %v6701
    %v7132 = vadd.f32 %v6218, %v6704
    %v7133 = vadd.f32 %v6219, %v6709
    %v7134 = vadd.f32 %v6220, %v6712
    %v7135 = vadd.f32 %v6221, %v6717
    %v7136 = vadd.f32 %v6222, %v6720
    %v7137 = vadd.f32 %v6223, %v6725
    %v7138 = vadd.f32 %v6224, %v6728
    %v7139 = vadd.f32 %v6225, %v6733
    %v7140 = vadd.f32 %v6226, %v6736
    %v7141 = vadd.f32 %v6227, %v6741
    %v7142 = vadd.f32 %v6228, %v6744
    %v7143 = vadd.f32 %v6229, %v6749
    %v7144 = vadd.f32 %v6230, %v6752
    %v7145 = vadd.f32 %v6231, %v6757
    %v7146 = vadd.f32 %v6232, %v6760
    %v7147 = vadd.f32 %v6233, %v6765
    %v7148 = vadd.f32 %v6234, %v6768
    %v7149 = vadd.f32 %v6235, %v6773
    %v7150 = vadd.f32 %v6236, %v6776
    %v7151 = vadd.f32 %v6237, %v6781
    %v7152 = vadd.f32 %v6238, %v6784
    %v7153 = vadd.f32 %v6239, %v6789
    %v7154 = vadd.f32 %v6240, %v6792
    %v7155 = vadd.f32 %v6241, %v6797
    %v7156 = vadd.f32 %v6242, %v6800
    %v7157 = vadd.f32 %v6243, %v6805
    %v7158 = vadd.f32 %v6244, %v6808
    %v7159 = vadd.f32 %v6245, %v6813
    %v7160 = vadd.f32 %v6246, %v6816
    %v7161 = vadd.f32 %v6247, %v6821
    %v7162 = vadd.f32 %v6248, %v6824
    %v7163 = vadd.f32 %v6249, %v6829
    %v7164 = vadd.f32 %v6250, %v6832
    %v7165 = vadd.f32 %v6251, %v6837
    %v7166 = vadd.f32 %v6252, %v6840
    %v7167 = vadd.f32 %v6253, %v6845
    %v7168 = vadd.f32 %v6254, %v6848
    %v7169 = vadd.f32 %v6255, %v6853
    %v7170 = vadd.f32 %v6256, %v6856
    %v7171 = vadd.f32 %v6257, %v6861
    %v7172 = vadd.f32 %v6258, %v6864
    %v7173 = vadd.f32 %v6259, %v6869
    %v7174 = vadd.f32 %v6260, %v6872
    %v7175 = vadd.f32 %v6261, %v6877
    %v7176 = vadd.f32 %v6262, %v6880
    %v7177 = vadd.f32 %v6263, %v6885
    %v7178 = vadd.f32 %v6264, %v6888
    %v7179 = vadd.f32 %v6265, %v6893
    %v7180 = vadd.f32 %v6266, %v6896
    %v7181 = vadd.f32 %v6267, %v6901
    %v7182 = vadd.f32 %v6268, %v6904
    %v7183 = vadd.f32 %v6269, %v6909
    %v7184 = vadd.f32 %v6270, %v6912
    %v7185 = vadd.f32 %v6271, %v6917
    %v7186 = vadd.f32 %v6272, %v6920
    %v7187 = vadd.f32 %v6273, %v6925
    %v7188 = vadd.f32 %v6274, %v6928
    %v7189 = vadd.f32 %v6275, %v6933
    %v7190 = vadd.f32 %v6276, %v6936
    %v7191 = vadd.f32 %v6277, %v6941
    %v7192 = vadd.f32 %v6278, %v6944
    %v7193 = vadd.f32 %v6279, %v6949
    %v7194 = vadd.f32 %v6280, %v6952
    %v7195 = vadd.f32 %v6281, %v6957
    %v7196 = vadd.f32 %v6282, %v6960
    %v7197 = vadd.f32 %v6283, %v6965
    %v7198 = vadd.f32 %v6284, %v6968
    %v7199 = vadd.f32 %v6285, %v6973
    %v7200 = vadd.f32 %v6286, %v6976
    %v7201 = vadd.f32 %v6287, %v6981
    %v7202 = vadd.f32 %v6288, %v6984
    %v7203 = vadd.f32 %v6289, %v6989
    %v7204 = vadd.f32 %v6290, %v6992
    %v7205 = vadd.f32 %v6291, %v6997
    %v7206 = vadd.f32 %v6292, %v7000
    %v7207 = vadd.f32 %v6293, %v7005
    %v7208 = vadd.f32 %v6294, %v7008
    %v7209 = vadd.f32 %v6295, %v7013
    %v7210 = vadd.f32 %v6296, %v7016
    %v7211 = vadd.f32 %v6297, %v7021
    %v7212 = vadd.f32 %v6298, %v7024
    %v7213 = vadd.f32 %v6299, %v7029
    %v7214 = vadd.f32 %v6300, %v7032
    %v7215 = vadd.f32 %v6301, %v7037
    %v7216 = vadd.f32 %v6302, %v7040
    %v7217 = vadd.f32 %v6303, %v7045
    %v7218 = vadd.f32 %v6304, %v7048
    %v7219 = vadd.f32 %v6305, %v7053
    %v7220 = vadd.f32 %v6306, %v7056
    %v7221 = vadd.f32 %v6307, %v7061
    %v7222 = vadd.f32 %v6308, %v7064
    %v7223 = vadd.f32 %v6309, %v7069
    %v7224 = vadd.f32 %v6310, %v7072
    %v7225 = vadd.f32 %v6311, %v7077
    %v7226 = vadd.f32 %v6312, %v7080
    %v7227 = vadd.f32 %v6313, %v7085
    %v7228 = vadd.f32 %v6314, %v7088
    %v7229 = vadd.f32 %v6315, %v7093
    %v7230 = vadd.f32 %v6316, %v7096
    %v7231 = vadd.f32 %v6317, %v7101
    %v7232 = vadd.f32 %v6318, %v7104
    %v7233 = vadd.f32 %v6319, %v7109
    %v7234 = vadd.f32 %v6320, %v7112
    %v7235 = vadd.f32 %v6321, %v7117
    %v7236 = vadd.f32 %v6322, %v7120
    %v7237 = vadd.f32 %v6323, %v7125
    %v7238 = vadd.f32 %v6324, %v7128
    %v7239 = vld [vmem:[#allocation2 + $0x37] sm:$0xff]
    %v7240 = vld [vmem:[#allocation2 + $0x3f] sm:$0xff]
    %v7241 = vld [vmem:[#allocation2 + $0x47] sm:$0xff]
    %v7242 = vld [vmem:[#allocation2 + $0x4f] sm:$0xff]
    %v7243 = vld [vmem:[#allocation2 + $0x57] sm:$0xff]
    %v7244 = vld [vmem:[#allocation2 + $0x5f] sm:$0xff]
    %v7245 = vld [vmem:[#allocation2 + $0x67] sm:$0xff]
    %v7246 = vld [vmem:[#allocation2 + $0x6f] sm:$0xff]
    %v7247 = vld [vmem:[#allocation2 + $0x77] sm:$0xff]
    %v7248 = vld [vmem:[#allocation2 + $0x7f] sm:$0xff]
    %v7249 = vld [vmem:[#allocation2 + $0x87] sm:$0xff]
    %v7250 = vld [vmem:[#allocation2 + $0x8f] sm:$0xff]
    %v7251 = vld [vmem:[#allocation2 + $0x97] sm:$0xff]
    %v7252 = vld [vmem:[#allocation2 + $0x9f] sm:$0xff]
    %v7253 = vld [vmem:[#allocation2 + $0xa7] sm:$0xff]
    %v7254 = vld [vmem:[#allocation2 + $0xaf] sm:$0xff]
    %v7255 = vld [vmem:[#allocation2 + $0xb7] sm:$0xff]
    %v7256 = vld [vmem:[#allocation2 + $0xbf] sm:$0xff]
    %v7257 = vld [vmem:[#allocation2 + $0xc7] sm:$0xff]
    %v7258 = vld [vmem:[#allocation2 + $0xcf] sm:$0xff]
    %v7259 = vld [vmem:[#allocation2 + $0xd7] sm:$0xff]
    %v7260 = vld [vmem:[#allocation2 + $0xdf] sm:$0xff]
    %v7261 = vld [vmem:[#allocation2 + $0xe7] sm:$0xff]
    %v7262 = vld [vmem:[#allocation2 + $0xef] sm:$0xff]
    %v7263 = vld [vmem:[#allocation2 + $0xf7] sm:$0xff]
    %v7264 = vld [vmem:[#allocation2 + $0xff] sm:$0xff]
    %v7265 = vld [vmem:[#allocation2 + $0x107] sm:$0xff]
    %v7266 = vld [vmem:[#allocation2 + $0x10f] sm:$0xff]
    %v7267 = vld [vmem:[#allocation2 + $0x117] sm:$0xff]
    %v7268 = vld [vmem:[#allocation2 + $0x11f] sm:$0xff]
    %v7269 = vld [vmem:[#allocation2 + $0x127] sm:$0xff]
    %v7270 = vld [vmem:[#allocation2 + $0x12f] sm:$0xff]
    %v7271 = vld [vmem:[#allocation2 + $0x137] sm:$0xff]
    %v7272 = vld [vmem:[#allocation2 + $0x13f] sm:$0xff]
    %v7273 = vld [vmem:[#allocation2 + $0x147] sm:$0xff]
    %v7274 = vld [vmem:[#allocation2 + $0x14f] sm:$0xff]
    %v7275 = vld [vmem:[#allocation2 + $0x157] sm:$0xff]
    %v7276 = vld [vmem:[#allocation2 + $0x15f] sm:$0xff]
    %v7277 = vld [vmem:[#allocation2 + $0x167] sm:$0xff]
    %v7278 = vld [vmem:[#allocation2 + $0x16f] sm:$0xff]
    %v7279 = vld [vmem:[#allocation2 + $0x177] sm:$0xff]
    %v7280 = vld [vmem:[#allocation2 + $0x17f] sm:$0xff]
    %v7281 = vld [vmem:[#allocation2 + $0x187] sm:$0xff]
    %v7282 = vld [vmem:[#allocation2 + $0x18f] sm:$0xff]
    %v7283 = vld [vmem:[#allocation2 + $0x197] sm:$0xff]
    %v7284 = vld [vmem:[#allocation2 + $0x19f] sm:$0xff]
    %v7285 = vld [vmem:[#allocation2 + $0x1a7] sm:$0xff]
    %v7286 = vld [vmem:[#allocation2 + $0x1af] sm:$0xff]
    %v7287 = vld [vmem:[#allocation2 + $0x1b7] sm:$0xff]
    %v7288 = vld [vmem:[#allocation2 + $0x1bf] sm:$0xff]
    %v7289 = vld [vmem:[#allocation2 + $0x1c7] sm:$0xff]
    %v7290 = vld [vmem:[#allocation2 + $0x1cf] sm:$0xff]
    %v7291 = vld [vmem:[#allocation2 + $0x1d7] sm:$0xff]
    %v7292 = vld [vmem:[#allocation2 + $0x1df] sm:$0xff]
    %v7293 = vld [vmem:[#allocation2 + $0x1e7] sm:$0xff]
    %v7294 = vld [vmem:[#allocation2 + $0x1ef] sm:$0xff]
    %v7295 = vld [vmem:[#allocation2 + $0x1f7] sm:$0xff]
    %v7296 = vld [vmem:[#allocation2 + $0x1ff] sm:$0xff]
    %v7297 = vld [vmem:[#allocation2 + $0x207] sm:$0xff]
    %v7298 = vld [vmem:[#allocation2 + $0x20f] sm:$0xff]
    %v7299 = vld [vmem:[#allocation2 + $0x217] sm:$0xff]
    %v7300 = vld [vmem:[#allocation2 + $0x21f] sm:$0xff]
    %v7301 = vld [vmem:[#allocation2 + $0x227] sm:$0xff]
    %v7302 = vld [vmem:[#allocation2 + $0x22f] sm:$0xff]
    %v7303 = vld [vmem:[#allocation2 + $0x237] sm:$0xff]
    %v7304 = vld [vmem:[#allocation2 + $0x23f] sm:$0xff]
    %v7305 = vld [vmem:[#allocation2 + $0x247] sm:$0xff]
    %v7306 = vld [vmem:[#allocation2 + $0x24f] sm:$0xff]
    %v7307 = vld [vmem:[#allocation2 + $0x257] sm:$0xff]
    %v7308 = vld [vmem:[#allocation2 + $0x25f] sm:$0xff]
    %v7309 = vld [vmem:[#allocation2 + $0x267] sm:$0xff]
    %v7310 = vld [vmem:[#allocation2 + $0x26f] sm:$0xff]
    %v7311 = vld [vmem:[#allocation2 + $0x277] sm:$0xff]
    %v7312 = vld [vmem:[#allocation2 + $0x27f] sm:$0xff]
    %v7313 = vld [vmem:[#allocation2 + $0x287] sm:$0xff]
    %v7314 = vld [vmem:[#allocation2 + $0x28f] sm:$0xff]
    %v7315 = vld [vmem:[#allocation2 + $0x297] sm:$0xff]
    %v7316 = vld [vmem:[#allocation2 + $0x29f] sm:$0xff]
    %v7317 = vld [vmem:[#allocation2 + $0x2a7] sm:$0xff]
    %v7318 = vld [vmem:[#allocation2 + $0x2af] sm:$0xff]
    %v7319 = vld [vmem:[#allocation2 + $0x2b7] sm:$0xff]
    %v7320 = vld [vmem:[#allocation2 + $0x2bf] sm:$0xff]
    %v7321 = vld [vmem:[#allocation2 + $0x2c7] sm:$0xff]
    %v7322 = vld [vmem:[#allocation2 + $0x2cf] sm:$0xff]
    %v7323 = vld [vmem:[#allocation2 + $0x2d7] sm:$0xff]
    %v7324 = vld [vmem:[#allocation2 + $0x2df] sm:$0xff]
    %v7325 = vld [vmem:[#allocation2 + $0x2e7] sm:$0xff]
    %v7326 = vld [vmem:[#allocation2 + $0x2ef] sm:$0xff]
    %v7327 = vld [vmem:[#allocation2 + $0x2f7] sm:$0xff]
    %v7328 = vld [vmem:[#allocation2 + $0x2ff] sm:$0xff]
    %v7329 = vld [vmem:[#allocation2 + $0x307] sm:$0xff]
    %v7330 = vld [vmem:[#allocation2 + $0x30f] sm:$0xff]
    %v7331 = vld [vmem:[#allocation2 + $0x317] sm:$0xff]
    %v7332 = vld [vmem:[#allocation2 + $0x31f] sm:$0xff]
    %v7333 = vld [vmem:[#allocation2 + $0x327] sm:$0xff]
    %v7334 = vld [vmem:[#allocation2 + $0x32f] sm:$0xff]
    %v7335 = vld [vmem:[#allocation2 + $0x337] sm:$0xff]
    %v7336 = vld [vmem:[#allocation2 + $0x33f] sm:$0xff]
    %v7337 = vld [vmem:[#allocation2 + $0x347] sm:$0xff]
    %v7338 = vld [vmem:[#allocation2 + $0x34f] sm:$0xff]
    %v7339 = vld [vmem:[#allocation2 + $0x357] sm:$0xff]
    %v7340 = vld [vmem:[#allocation2 + $0x35f] sm:$0xff]
    %v7341 = vld [vmem:[#allocation2 + $0x367] sm:$0xff]
    %v7342 = vld [vmem:[#allocation2 + $0x36f] sm:$0xff]
    %v7343 = vld [vmem:[#allocation2 + $0x377] sm:$0xff]
    %v7344 = vld [vmem:[#allocation2 + $0x37f] sm:$0xff]
    %v7345 = vld [vmem:[#allocation2 + $0x387] sm:$0xff]
    %v7346 = vld [vmem:[#allocation2 + $0x38f] sm:$0xff]
    %v7347 = vpack.c.bf16 %v7240, %v7239
    %v7348 = vpack.c.bf16 %v7242, %v7241
    %v7349 = vpack.c.bf16 %v7244, %v7243
    %v7350 = vpack.c.bf16 %v7246, %v7245
    %v7351 = vpack.c.bf16 %v7248, %v7247
    %v7352 = vpack.c.bf16 %v7250, %v7249
    %v7353 = vpack.c.bf16 %v7252, %v7251
    %v7354 = vpack.c.bf16 %v7254, %v7253
    %v7355 = vpack.c.bf16 %v7256, %v7255
    %v7356 = vpack.c.bf16 %v7258, %v7257
    %v7357 = vpack.c.bf16 %v7260, %v7259
    %v7358 = vpack.c.bf16 %v7262, %v7261
    %v7359 = vpack.c.bf16 %v7264, %v7263
    %v7360 = vpack.c.bf16 %v7266, %v7265
    %v7361 = vpack.c.bf16 %v7268, %v7267
    %v7362 = vpack.c.bf16 %v7270, %v7269
    %v7363 = vpack.c.bf16 %v7272, %v7271
    %v7364 = vpack.c.bf16 %v7274, %v7273
    %v7365 = vpack.c.bf16 %v7276, %v7275
    %v7366 = vpack.c.bf16 %v7278, %v7277
    %v7367 = vpack.c.bf16 %v7280, %v7279
    %v7368 = vpack.c.bf16 %v7282, %v7281
    %v7369 = vpack.c.bf16 %v7284, %v7283
    %v7370 = vpack.c.bf16 %v7286, %v7285
    %v7371 = vpack.c.bf16 %v7288, %v7287
    %v7372 = vpack.c.bf16 %v7290, %v7289
    %v7373 = vpack.c.bf16 %v7292, %v7291
    %v7374 = vpack.c.bf16 %v7294, %v7293
    %v7375 = vpack.c.bf16 %v7296, %v7295
    %v7376 = vpack.c.bf16 %v7298, %v7297
    %v7377 = vpack.c.bf16 %v7300, %v7299
    %v7378 = vpack.c.bf16 %v7302, %v7301
    %v7379 = vpack.c.bf16 %v7304, %v7303
    %v7380 = vpack.c.bf16 %v7306, %v7305
    %v7381 = vpack.c.bf16 %v7308, %v7307
    %v7382 = vpack.c.bf16 %v7310, %v7309
    %v7383 = vpack.c.bf16 %v7312, %v7311
    %v7384 = vpack.c.bf16 %v7314, %v7313
    %v7385 = vpack.c.bf16 %v7316, %v7315
    %v7386 = vpack.c.bf16 %v7318, %v7317
    %v7387 = vpack.c.bf16 %v7320, %v7319
    %v7388 = vpack.c.bf16 %v7322, %v7321
    %v7389 = vpack.c.bf16 %v7324, %v7323
    %v7390 = vpack.c.bf16 %v7326, %v7325
    %v7391 = vpack.c.bf16 %v7328, %v7327
    %v7392 = vpack.c.bf16 %v7330, %v7329
    %v7393 = vpack.c.bf16 %v7332, %v7331
    %v7394 = vpack.c.bf16 %v7334, %v7333
    %v7395 = vpack.c.bf16 %v7336, %v7335
    %v7396 = vpack.c.bf16 %v7338, %v7337
    %v7397 = vpack.c.bf16 %v7340, %v7339
    %v7398 = vpack.c.bf16 %v7342, %v7341
    %v7399 = vpack.c.bf16 %v7344, %v7343
    %v7400 = vpack.c.bf16 %v7346, %v7345
    %s7401 = scalar_lea.vmem %s4, 96
    %v7402 = vld [vmem:[%s7401] sm:$0xf]
    %v7403 = vld [vmem:[%s7401 + $0x4] sm:$0xf]
    %v7404 = vld [vmem:[%s7401 + $0x8] sm:$0xf]
    %v7405 = vld [vmem:[%s7401 + $0xc] sm:$0xf]
    %v7410 = vunpack.c.l.b16 %v7402
    %v7411 = vunpack.c.l.b16 %v7403
    %v7412 = vunpack.c.l.b16 %v7404
    %v7413 = vunpack.c.l.b16 %v7405
    %v7414 = vpack.c.b16 %v7411, %v7410
    %v7415 = vpack.c.b16 %v7413, %v7412
    %v7419 = vsel %vm1863, %v7347, 0
    %v7422 = vsel %vm1863, %v7348, 0
    %v7425 = vsel %vm1863, %v7349, 0
    %v7428 = vsel %vm1863, %v7350, 0
    %v7431 = vsel %vm1863, %v7351, 0
    %v7434 = vsel %vm1863, %v7352, 0
    %v7437 = vsel %vm1863, %v7353, 0
    %v7440 = vsel %vm1863, %v7354, 0
    %v7443 = vsel %vm1863, %v7355, 0
    %v7446 = vsel %vm1863, %v7356, 0
    %v7449 = vsel %vm1863, %v7357, 0
    %v7452 = vsel %vm1863, %v7358, 0
    %v7455 = vsel %vm1863, %v7359, 0
    %v7458 = vsel %vm1863, %v7360, 0
    %v7461 = vsel %vm1863, %v7361, 0
    %v7464 = vsel %vm1863, %v7362, 0
    %v7467 = vsel %vm1863, %v7363, 0
    %v7470 = vsel %vm1863, %v7364, 0
    %v7473 = vsel %vm1863, %v7365, 0
    %v7476 = vsel %vm1863, %v7366, 0
    %v7479 = vsel %vm1863, %v7367, 0
    %v7482 = vsel %vm1863, %v7368, 0
    %v7485 = vsel %vm1863, %v7369, 0
    %v7488 = vsel %vm1863, %v7370, 0
    %v7491 = vsel %vm1863, %v7371, 0
    %v7494 = vsel %vm1863, %v7372, 0
    %v7497 = vsel %vm1863, %v7373, 0
    %v7500 = vsel %vm1863, %v7374, 0
    %v7503 = vsel %vm1863, %v7375, 0
    %v7506 = vsel %vm1863, %v7376, 0
    %v7509 = vsel %vm1863, %v7377, 0
    %v7512 = vsel %vm1863, %v7378, 0
    %v7515 = vsel %vm1863, %v7379, 0
    %v7518 = vsel %vm1863, %v7380, 0
    %v7521 = vsel %vm1863, %v7381, 0
    %v7524 = vsel %vm1863, %v7382, 0
    %v7527 = vsel %vm1863, %v7383, 0
    %v7530 = vsel %vm1863, %v7384, 0
    %v7533 = vsel %vm1863, %v7385, 0
    %v7536 = vsel %vm1863, %v7386, 0
    %v7539 = vsel %vm1863, %v7387, 0
    %v7542 = vsel %vm1863, %v7388, 0
    %v7545 = vsel %vm1863, %v7389, 0
    %v7548 = vsel %vm1863, %v7390, 0
    %v7551 = vsel %vm1863, %v7391, 0
    %v7554 = vsel %vm1863, %v7392, 0
    %v7557 = vsel %vm1863, %v7393, 0
    %v7560 = vsel %vm1863, %v7394, 0
    %v7563 = vsel %vm1863, %v7395, 0
    %v7566 = vsel %vm1863, %v7396, 0
    %v7569 = vsel %vm1863, %v7397, 0
    %v7572 = vsel %vm1863, %v7398, 0
    %v7575 = vsel %vm1863, %v7399, 0
    %v7578 = vsel %vm1863, %v7400, 0
    %7580 = vmatprep.subr.bf16.mxu0 0
    %7581 = vmatpush1.bf16.msra.mxu0 %v7414
    %7582 = vmatprep.subr.bf16.mxu0 0
    %7583 = vmatpush1.bf16.msra.mxu0 %v7415
    %7584 = vmatprep.subr.bf16.mxu0 0
    %7585 = vmatpush1.bf16.msra.mxu0 0
    %7586 = vmatprep.subr.bf16.mxu0 0
    %7587 = vmatpush1.bf16.msra.mxu0 0
    %7588 = vmatprep.subr.bf16.mxu0 0
    %7589 = vmatpush1.bf16.msra.mxu0 0
    %7590 = vmatprep.subr.bf16.mxu0 0
    %7591 = vmatpush1.bf16.msra.mxu0 0
    %7592 = vmatprep.subr.bf16.mxu0 0
    %7593 = vmatpush1.bf16.msra.mxu0 0
    %7594 = vmatprep.subr.bf16.mxu0 0
    %7595 = vmatpush1.bf16.msra.mxu0 0
    %7596 = vmatprep.subr.bf16.mxu0 0
    %7597 = vmatpush1.bf16.msra.mxu0 0
    %7598 = vmatprep.subr.bf16.mxu0 0
    %7599 = vmatpush1.bf16.msra.mxu0 0
    %7600 = vmatprep.subr.bf16.mxu0 0
    %7601 = vmatpush1.bf16.msra.mxu0 0
    %7602 = vmatprep.subr.bf16.mxu0 0
    %7603 = vmatpush1.bf16.msra.mxu0 0
    %7604 = vmatprep.subr.bf16.mxu0 0
    %7605 = vmatpush1.bf16.msra.mxu0 0
    %7606 = vmatprep.subr.bf16.mxu0 0
    %7607 = vmatpush1.bf16.msra.mxu0 0
    %7608 = vmatprep.subr.bf16.mxu0 0
    %7609 = vmatpush1.bf16.msra.mxu0 0
    %7610 = vmatprep.subr.bf16.mxu0 0
    %7611 = vmatpush1.bf16.msra.mxu0 0
    %7612 = vmatprep.mubr.bf16.mxu0 0
    %7613 = vmatmul.mubr.bf16.gmra.mrb[0].mxu0 %v7419
    %v7614 = vpop.f32.mrb[0].mxu0
    %v7615 = vadd.f32 0.0, %v7614
    %v7616 = vpop.f32.mrb[0].mxu0
    %v7617 = vpop.f32.mrb[0].mxu0
    %v7618 = vadd.f32 0.0, %v7617
    %v7619 = vpop.f32.mrb[0].mxu0
    %7620 = vmatprep.mubr.bf16.mxu0 0
    %7621 = vmatmul.mubr.bf16.gmra.mrb[0].mxu0 %v7422
    %v7622 = vpop.f32.mrb[0].mxu0
    %v7623 = vadd.f32 0.0, %v7622
    %v7624 = vpop.f32.mrb[0].mxu0
    %v7625 = vpop.f32.mrb[0].mxu0
    %v7626 = vadd.f32 0.0, %v7625
    %v7627 = vpop.f32.mrb[0].mxu0
    %7628 = vmatprep.mubr.bf16.mxu0 0
    %7629 = vmatmul.mubr.bf16.gmra.mrb[0].mxu0 %v7425
    %v7630 = vpop.f32.mrb[0].mxu0
    %v7631 = vadd.f32 0.0, %v7630
    %v7632 = vpop.f32.mrb[0].mxu0
    %v7633 = vpop.f32.mrb[0].mxu0
    %v7634 = vadd.f32 0.0, %v7633
    %v7635 = vpop.f32.mrb[0].mxu0
    %7636 = vmatprep.mubr.bf16.mxu0 0
    %7637 = vmatmul.mubr.bf16.gmra.mrb[0].mxu0 %v7428
    %v7638 = vpop.f32.mrb[0].mxu0
    %v7639 = vadd.f32 0.0, %v7638
    %v7640 = vpop.f32.mrb[0].mxu0
    %v7641 = vpop.f32.mrb[0].mxu0
    %v7642 = vadd.f32 0.0, %v7641
    %v7643 = vpop.f32.mrb[0].mxu0
    %7644 = vmatprep.mubr.bf16.mxu0 0
    %7645 = vmatmul.mubr.bf16.gmra.mrb[0].mxu0 %v7431
    %v7646 = vpop.f32.mrb[0].mxu0
    %v7647 = vadd.f32 0.0, %v7646
    %v7648 = vpop.f32.mrb[0].mxu0
    %v7649 = vpop.f32.mrb[0].mxu0
    %v7650 = vadd.f32 0.0, %v7649
    %v7651 = vpop.f32.mrb[0].mxu0
    %7652 = vmatprep.mubr.bf16.mxu0 0
    %7653 = vmatmul.mubr.bf16.gmra.mrb[0].mxu0 %v7434
    %v7654 = vpop.f32.mrb[0].mxu0
    %v7655 = vadd.f32 0.0, %v7654
    %v7656 = vpop.f32.mrb[0].mxu0
    %v7657 = vpop.f32.mrb[0].mxu0
    %v7658 = vadd.f32 0.0, %v7657
    %v7659 = vpop.f32.mrb[0].mxu0
    %7660 = vmatprep.mubr.bf16.mxu0 0
    %7661 = vmatmul.mubr.bf16.gmra.mrb[0].mxu0 %v7437
    %v7662 = vpop.f32.mrb[0].mxu0
    %v7663 = vadd.f32 0.0, %v7662
    %v7664 = vpop.f32.mrb[0].mxu0
    %v7665 = vpop.f32.mrb[0].mxu0
    %v7666 = vadd.f32 0.0, %v7665
    %v7667 = vpop.f32.mrb[0].mxu0
    %7668 = vmatprep.mubr.bf16.mxu0 0
    %7669 = vmatmul.mubr.bf16.gmra.mrb[0].mxu0 %v7440
    %v7670 = vpop.f32.mrb[0].mxu0
    %v7671 = vadd.f32 0.0, %v7670
    %v7672 = vpop.f32.mrb[0].mxu0
    %v7673 = vpop.f32.mrb[0].mxu0
    %v7674 = vadd.f32 0.0, %v7673
    %v7675 = vpop.f32.mrb[0].mxu0
    %7676 = vmatprep.mubr.bf16.mxu0 0
    %7677 = vmatmul.mubr.bf16.gmra.mrb[0].mxu0 %v7443
    %v7678 = vpop.f32.mrb[0].mxu0
    %v7679 = vadd.f32 0.0, %v7678
    %v7680 = vpop.f32.mrb[0].mxu0
    %v7681 = vpop.f32.mrb[0].mxu0
    %v7682 = vadd.f32 0.0, %v7681
    %v7683 = vpop.f32.mrb[0].mxu0
    %7684 = vmatprep.mubr.bf16.mxu0 0
    %7685 = vmatmul.mubr.bf16.gmra.mrb[0].mxu0 %v7446
    %v7686 = vpop.f32.mrb[0].mxu0
    %v7687 = vadd.f32 0.0, %v7686
    %v7688 = vpop.f32.mrb[0].mxu0
    %v7689 = vpop.f32.mrb[0].mxu0
    %v7690 = vadd.f32 0.0, %v7689
    %v7691 = vpop.f32.mrb[0].mxu0
    %7692 = vmatprep.mubr.bf16.mxu0 0
    %7693 = vmatmul.mubr.bf16.gmra.mrb[0].mxu0 %v7449
    %v7694 = vpop.f32.mrb[0].mxu0
    %v7695 = vadd.f32 0.0, %v7694
    %v7696 = vpop.f32.mrb[0].mxu0
    %v7697 = vpop.f32.mrb[0].mxu0
    %v7698 = vadd.f32 0.0, %v7697
    %v7699 = vpop.f32.mrb[0].mxu0
    %7700 = vmatprep.mubr.bf16.mxu0 0
    %7701 = vmatmul.mubr.bf16.gmra.mrb[0].mxu0 %v7452
    %v7702 = vpop.f32.mrb[0].mxu0
    %v7703 = vadd.f32 0.0, %v7702
    %v7704 = vpop.f32.mrb[0].mxu0
    %v7705 = vpop.f32.mrb[0].mxu0
    %v7706 = vadd.f32 0.0, %v7705
    %v7707 = vpop.f32.mrb[0].mxu0
    %7708 = vmatprep.mubr.bf16.mxu0 0
    %7709 = vmatmul.mubr.bf16.gmra.mrb[0].mxu0 %v7455
    %v7710 = vpop.f32.mrb[0].mxu0
    %v7711 = vadd.f32 0.0, %v7710
    %v7712 = vpop.f32.mrb[0].mxu0
    %v7713 = vpop.f32.mrb[0].mxu0
    %v7714 = vadd.f32 0.0, %v7713
    %v7715 = vpop.f32.mrb[0].mxu0
    %7716 = vmatprep.mubr.bf16.mxu0 0
    %7717 = vmatmul.mubr.bf16.gmra.mrb[0].mxu0 %v7458
    %v7718 = vpop.f32.mrb[0].mxu0
    %v7719 = vadd.f32 0.0, %v7718
    %v7720 = vpop.f32.mrb[0].mxu0
    %v7721 = vpop.f32.mrb[0].mxu0
    %v7722 = vadd.f32 0.0, %v7721
    %v7723 = vpop.f32.mrb[0].mxu0
    %7724 = vmatprep.mubr.bf16.mxu0 0
    %7725 = vmatmul.mubr.bf16.gmra.mrb[0].mxu0 %v7461
    %v7726 = vpop.f32.mrb[0].mxu0
    %v7727 = vadd.f32 0.0, %v7726
    %v7728 = vpop.f32.mrb[0].mxu0
    %v7729 = vpop.f32.mrb[0].mxu0
    %v7730 = vadd.f32 0.0, %v7729
    %v7731 = vpop.f32.mrb[0].mxu0
    %7732 = vmatprep.mubr.bf16.mxu0 0
    %7733 = vmatmul.mubr.bf16.gmra.mrb[0].mxu0 %v7464
    %v7734 = vpop.f32.mrb[0].mxu0
    %v7735 = vadd.f32 0.0, %v7734
    %v7736 = vpop.f32.mrb[0].mxu0
    %v7737 = vpop.f32.mrb[0].mxu0
    %v7738 = vadd.f32 0.0, %v7737
    %v7739 = vpop.f32.mrb[0].mxu0
    %7740 = vmatprep.mubr.bf16.mxu0 0
    %7741 = vmatmul.mubr.bf16.gmra.mrb[0].mxu0 %v7467
    %v7742 = vpop.f32.mrb[0].mxu0
    %v7743 = vadd.f32 0.0, %v7742
    %v7744 = vpop.f32.mrb[0].mxu0
    %v7745 = vpop.f32.mrb[0].mxu0
    %v7746 = vadd.f32 0.0, %v7745
    %v7747 = vpop.f32.mrb[0].mxu0
    %7748 = vmatprep.mubr.bf16.mxu0 0
    %7749 = vmatmul.mubr.bf16.gmra.mrb[0].mxu0 %v7470
    %v7750 = vpop.f32.mrb[0].mxu0
    %v7751 = vadd.f32 0.0, %v7750
    %v7752 = vpop.f32.mrb[0].mxu0
    %v7753 = vpop.f32.mrb[0].mxu0
    %v7754 = vadd.f32 0.0, %v7753
    %v7755 = vpop.f32.mrb[0].mxu0
    %7756 = vmatprep.mubr.bf16.mxu0 0
    %7757 = vmatmul.mubr.bf16.gmra.mrb[0].mxu0 %v7473
    %v7758 = vpop.f32.mrb[0].mxu0
    %v7759 = vadd.f32 0.0, %v7758
    %v7760 = vpop.f32.mrb[0].mxu0
    %v7761 = vpop.f32.mrb[0].mxu0
    %v7762 = vadd.f32 0.0, %v7761
    %v7763 = vpop.f32.mrb[0].mxu0
    %7764 = vmatprep.mubr.bf16.mxu0 0
    %7765 = vmatmul.mubr.bf16.gmra.mrb[0].mxu0 %v7476
    %v7766 = vpop.f32.mrb[0].mxu0
    %v7767 = vadd.f32 0.0, %v7766
    %v7768 = vpop.f32.mrb[0].mxu0
    %v7769 = vpop.f32.mrb[0].mxu0
    %v7770 = vadd.f32 0.0, %v7769
    %v7771 = vpop.f32.mrb[0].mxu0
    %7772 = vmatprep.mubr.bf16.mxu0 0
    %7773 = vmatmul.mubr.bf16.gmra.mrb[0].mxu0 %v7479
    %v7774 = vpop.f32.mrb[0].mxu0
    %v7775 = vadd.f32 0.0, %v7774
    %v7776 = vpop.f32.mrb[0].mxu0
    %v7777 = vpop.f32.mrb[0].mxu0
    %v7778 = vadd.f32 0.0, %v7777
    %v7779 = vpop.f32.mrb[0].mxu0
    %7780 = vmatprep.mubr.bf16.mxu0 0
    %7781 = vmatmul.mubr.bf16.gmra.mrb[0].mxu0 %v7482
    %v7782 = vpop.f32.mrb[0].mxu0
    %v7783 = vadd.f32 0.0, %v7782
    %v7784 = vpop.f32.mrb[0].mxu0
    %v7785 = vpop.f32.mrb[0].mxu0
    %v7786 = vadd.f32 0.0, %v7785
    %v7787 = vpop.f32.mrb[0].mxu0
    %7788 = vmatprep.mubr.bf16.mxu0 0
    %7789 = vmatmul.mubr.bf16.gmra.mrb[0].mxu0 %v7485
    %v7790 = vpop.f32.mrb[0].mxu0
    %v7791 = vadd.f32 0.0, %v7790
    %v7792 = vpop.f32.mrb[0].mxu0
    %v7793 = vpop.f32.mrb[0].mxu0
    %v7794 = vadd.f32 0.0, %v7793
    %v7795 = vpop.f32.mrb[0].mxu0
    %7796 = vmatprep.mubr.bf16.mxu0 0
    %7797 = vmatmul.mubr.bf16.gmra.mrb[0].mxu0 %v7488
    %v7798 = vpop.f32.mrb[0].mxu0
    %v7799 = vadd.f32 0.0, %v7798
    %v7800 = vpop.f32.mrb[0].mxu0
    %v7801 = vpop.f32.mrb[0].mxu0
    %v7802 = vadd.f32 0.0, %v7801
    %v7803 = vpop.f32.mrb[0].mxu0
    %7804 = vmatprep.mubr.bf16.mxu0 0
    %7805 = vmatmul.mubr.bf16.gmra.mrb[0].mxu0 %v7491
    %v7806 = vpop.f32.mrb[0].mxu0
    %v7807 = vadd.f32 0.0, %v7806
    %v7808 = vpop.f32.mrb[0].mxu0
    %v7809 = vpop.f32.mrb[0].mxu0
    %v7810 = vadd.f32 0.0, %v7809
    %v7811 = vpop.f32.mrb[0].mxu0
    %7812 = vmatprep.mubr.bf16.mxu0 0
    %7813 = vmatmul.mubr.bf16.gmra.mrb[0].mxu0 %v7494
    %v7814 = vpop.f32.mrb[0].mxu0
    %v7815 = vadd.f32 0.0, %v7814
    %v7816 = vpop.f32.mrb[0].mxu0
    %v7817 = vpop.f32.mrb[0].mxu0
    %v7818 = vadd.f32 0.0, %v7817
    %v7819 = vpop.f32.mrb[0].mxu0
    %7820 = vmatprep.mubr.bf16.mxu0 0
    %7821 = vmatmul.mubr.bf16.gmra.mrb[0].mxu0 %v7497
    %v7822 = vpop.f32.mrb[0].mxu0
    %v7823 = vadd.f32 0.0, %v7822
    %v7824 = vpop.f32.mrb[0].mxu0
    %v7825 = vpop.f32.mrb[0].mxu0
    %v7826 = vadd.f32 0.0, %v7825
    %v7827 = vpop.f32.mrb[0].mxu0
    %7828 = vmatprep.mubr.bf16.mxu0 0
    %7829 = vmatmul.mubr.bf16.gmra.mrb[0].mxu0 %v7500
    %v7830 = vpop.f32.mrb[0].mxu0
    %v7831 = vadd.f32 0.0, %v7830
    %v7832 = vpop.f32.mrb[0].mxu0
    %v7833 = vpop.f32.mrb[0].mxu0
    %v7834 = vadd.f32 0.0, %v7833
    %v7835 = vpop.f32.mrb[0].mxu0
    %7836 = vmatprep.mubr.bf16.mxu0 0
    %7837 = vmatmul.mubr.bf16.gmra.mrb[0].mxu0 %v7503
    %v7838 = vpop.f32.mrb[0].mxu0
    %v7839 = vadd.f32 0.0, %v7838
    %v7840 = vpop.f32.mrb[0].mxu0
    %v7841 = vpop.f32.mrb[0].mxu0
    %v7842 = vadd.f32 0.0, %v7841
    %v7843 = vpop.f32.mrb[0].mxu0
    %7844 = vmatprep.mubr.bf16.mxu0 0
    %7845 = vmatmul.mubr.bf16.gmra.mrb[0].mxu0 %v7506
    %v7846 = vpop.f32.mrb[0].mxu0
    %v7847 = vadd.f32 0.0, %v7846
    %v7848 = vpop.f32.mrb[0].mxu0
    %v7849 = vpop.f32.mrb[0].mxu0
    %v7850 = vadd.f32 0.0, %v7849
    %v7851 = vpop.f32.mrb[0].mxu0
    %7852 = vmatprep.mubr.bf16.mxu0 0
    %7853 = vmatmul.mubr.bf16.gmra.mrb[0].mxu0 %v7509
    %v7854 = vpop.f32.mrb[0].mxu0
    %v7855 = vadd.f32 0.0, %v7854
    %v7856 = vpop.f32.mrb[0].mxu0
    %v7857 = vpop.f32.mrb[0].mxu0
    %v7858 = vadd.f32 0.0, %v7857
    %v7859 = vpop.f32.mrb[0].mxu0
    %7860 = vmatprep.mubr.bf16.mxu0 0
    %7861 = vmatmul.mubr.bf16.gmra.mrb[0].mxu0 %v7512
    %v7862 = vpop.f32.mrb[0].mxu0
    %v7863 = vadd.f32 0.0, %v7862
    %v7864 = vpop.f32.mrb[0].mxu0
    %v7865 = vpop.f32.mrb[0].mxu0
    %v7866 = vadd.f32 0.0, %v7865
    %v7867 = vpop.f32.mrb[0].mxu0
    %7868 = vmatprep.mubr.bf16.mxu0 0
    %7869 = vmatmul.mubr.bf16.gmra.mrb[0].mxu0 %v7515
    %v7870 = vpop.f32.mrb[0].mxu0
    %v7871 = vadd.f32 0.0, %v7870
    %v7872 = vpop.f32.mrb[0].mxu0
    %v7873 = vpop.f32.mrb[0].mxu0
    %v7874 = vadd.f32 0.0, %v7873
    %v7875 = vpop.f32.mrb[0].mxu0
    %7876 = vmatprep.mubr.bf16.mxu0 0
    %7877 = vmatmul.mubr.bf16.gmra.mrb[0].mxu0 %v7518
    %v7878 = vpop.f32.mrb[0].mxu0
    %v7879 = vadd.f32 0.0, %v7878
    %v7880 = vpop.f32.mrb[0].mxu0
    %v7881 = vpop.f32.mrb[0].mxu0
    %v7882 = vadd.f32 0.0, %v7881
    %v7883 = vpop.f32.mrb[0].mxu0
    %7884 = vmatprep.mubr.bf16.mxu0 0
    %7885 = vmatmul.mubr.bf16.gmra.mrb[0].mxu0 %v7521
    %v7886 = vpop.f32.mrb[0].mxu0
    %v7887 = vadd.f32 0.0, %v7886
    %v7888 = vpop.f32.mrb[0].mxu0
    %v7889 = vpop.f32.mrb[0].mxu0
    %v7890 = vadd.f32 0.0, %v7889
    %v7891 = vpop.f32.mrb[0].mxu0
    %7892 = vmatprep.mubr.bf16.mxu0 0
    %7893 = vmatmul.mubr.bf16.gmra.mrb[0].mxu0 %v7524
    %v7894 = vpop.f32.mrb[0].mxu0
    %v7895 = vadd.f32 0.0, %v7894
    %v7896 = vpop.f32.mrb[0].mxu0
    %v7897 = vpop.f32.mrb[0].mxu0
    %v7898 = vadd.f32 0.0, %v7897
    %v7899 = vpop.f32.mrb[0].mxu0
    %7900 = vmatprep.mubr.bf16.mxu0 0
    %7901 = vmatmul.mubr.bf16.gmra.mrb[0].mxu0 %v7527
    %v7902 = vpop.f32.mrb[0].mxu0
    %v7903 = vadd.f32 0.0, %v7902
    %v7904 = vpop.f32.mrb[0].mxu0
    %v7905 = vpop.f32.mrb[0].mxu0
    %v7906 = vadd.f32 0.0, %v7905
    %v7907 = vpop.f32.mrb[0].mxu0
    %7908 = vmatprep.mubr.bf16.mxu0 0
    %7909 = vmatmul.mubr.bf16.gmra.mrb[0].mxu0 %v7530
    %v7910 = vpop.f32.mrb[0].mxu0
    %v7911 = vadd.f32 0.0, %v7910
    %v7912 = vpop.f32.mrb[0].mxu0
    %v7913 = vpop.f32.mrb[0].mxu0
    %v7914 = vadd.f32 0.0, %v7913
    %v7915 = vpop.f32.mrb[0].mxu0
    %7916 = vmatprep.mubr.bf16.mxu0 0
    %7917 = vmatmul.mubr.bf16.gmra.mrb[0].mxu0 %v7533
    %v7918 = vpop.f32.mrb[0].mxu0
    %v7919 = vadd.f32 0.0, %v7918
    %v7920 = vpop.f32.mrb[0].mxu0
    %v7921 = vpop.f32.mrb[0].mxu0
    %v7922 = vadd.f32 0.0, %v7921
    %v7923 = vpop.f32.mrb[0].mxu0
    %7924 = vmatprep.mubr.bf16.mxu0 0
    %7925 = vmatmul.mubr.bf16.gmra.mrb[0].mxu0 %v7536
    %v7926 = vpop.f32.mrb[0].mxu0
    %v7927 = vadd.f32 0.0, %v7926
    %v7928 = vpop.f32.mrb[0].mxu0
    %v7929 = vpop.f32.mrb[0].mxu0
    %v7930 = vadd.f32 0.0, %v7929
    %v7931 = vpop.f32.mrb[0].mxu0
    %7932 = vmatprep.mubr.bf16.mxu0 0
    %7933 = vmatmul.mubr.bf16.gmra.mrb[0].mxu0 %v7539
    %v7934 = vpop.f32.mrb[0].mxu0
    %v7935 = vadd.f32 0.0, %v7934
    %v7936 = vpop.f32.mrb[0].mxu0
    %v7937 = vpop.f32.mrb[0].mxu0
    %v7938 = vadd.f32 0.0, %v7937
    %v7939 = vpop.f32.mrb[0].mxu0
    %7940 = vmatprep.mubr.bf16.mxu0 0
    %7941 = vmatmul.mubr.bf16.gmra.mrb[0].mxu0 %v7542
    %v7942 = vpop.f32.mrb[0].mxu0
    %v7943 = vadd.f32 0.0, %v7942
    %v7944 = vpop.f32.mrb[0].mxu0
    %v7945 = vpop.f32.mrb[0].mxu0
    %v7946 = vadd.f32 0.0, %v7945
    %v7947 = vpop.f32.mrb[0].mxu0
    %7948 = vmatprep.mubr.bf16.mxu0 0
    %7949 = vmatmul.mubr.bf16.gmra.mrb[0].mxu0 %v7545
    %v7950 = vpop.f32.mrb[0].mxu0
    %v7951 = vadd.f32 0.0, %v7950
    %v7952 = vpop.f32.mrb[0].mxu0
    %v7953 = vpop.f32.mrb[0].mxu0
    %v7954 = vadd.f32 0.0, %v7953
    %v7955 = vpop.f32.mrb[0].mxu0
    %7956 = vmatprep.mubr.bf16.mxu0 0
    %7957 = vmatmul.mubr.bf16.gmra.mrb[0].mxu0 %v7548
    %v7958 = vpop.f32.mrb[0].mxu0
    %v7959 = vadd.f32 0.0, %v7958
    %v7960 = vpop.f32.mrb[0].mxu0
    %v7961 = vpop.f32.mrb[0].mxu0
    %v7962 = vadd.f32 0.0, %v7961
    %v7963 = vpop.f32.mrb[0].mxu0
    %7964 = vmatprep.mubr.bf16.mxu0 0
    %7965 = vmatmul.mubr.bf16.gmra.mrb[0].mxu0 %v7551
    %v7966 = vpop.f32.mrb[0].mxu0
    %v7967 = vadd.f32 0.0, %v7966
    %v7968 = vpop.f32.mrb[0].mxu0
    %v7969 = vpop.f32.mrb[0].mxu0
    %v7970 = vadd.f32 0.0, %v7969
    %v7971 = vpop.f32.mrb[0].mxu0
    %7972 = vmatprep.mubr.bf16.mxu0 0
    %7973 = vmatmul.mubr.bf16.gmra.mrb[0].mxu0 %v7554
    %v7974 = vpop.f32.mrb[0].mxu0
    %v7975 = vadd.f32 0.0, %v7974
    %v7976 = vpop.f32.mrb[0].mxu0
    %v7977 = vpop.f32.mrb[0].mxu0
    %v7978 = vadd.f32 0.0, %v7977
    %v7979 = vpop.f32.mrb[0].mxu0
    %7980 = vmatprep.mubr.bf16.mxu0 0
    %7981 = vmatmul.mubr.bf16.gmra.mrb[0].mxu0 %v7557
    %v7982 = vpop.f32.mrb[0].mxu0
    %v7983 = vadd.f32 0.0, %v7982
    %v7984 = vpop.f32.mrb[0].mxu0
    %v7985 = vpop.f32.mrb[0].mxu0
    %v7986 = vadd.f32 0.0, %v7985
    %v7987 = vpop.f32.mrb[0].mxu0
    %7988 = vmatprep.mubr.bf16.mxu0 0
    %7989 = vmatmul.mubr.bf16.gmra.mrb[0].mxu0 %v7560
    %v7990 = vpop.f32.mrb[0].mxu0
    %v7991 = vadd.f32 0.0, %v7990
    %v7992 = vpop.f32.mrb[0].mxu0
    %v7993 = vpop.f32.mrb[0].mxu0
    %v7994 = vadd.f32 0.0, %v7993
    %v7995 = vpop.f32.mrb[0].mxu0
    %7996 = vmatprep.mubr.bf16.mxu0 0
    %7997 = vmatmul.mubr.bf16.gmra.mrb[0].mxu0 %v7563
    %v7998 = vpop.f32.mrb[0].mxu0
    %v7999 = vadd.f32 0.0, %v7998
    %v8000 = vpop.f32.mrb[0].mxu0
    %v8001 = vpop.f32.mrb[0].mxu0
    %v8002 = vadd.f32 0.0, %v8001
    %v8003 = vpop.f32.mrb[0].mxu0
    %8004 = vmatprep.mubr.bf16.mxu0 0
    %8005 = vmatmul.mubr.bf16.gmra.mrb[0].mxu0 %v7566
    %v8006 = vpop.f32.mrb[0].mxu0
    %v8007 = vadd.f32 0.0, %v8006
    %v8008 = vpop.f32.mrb[0].mxu0
    %v8009 = vpop.f32.mrb[0].mxu0
    %v8010 = vadd.f32 0.0, %v8009
    %v8011 = vpop.f32.mrb[0].mxu0
    %8012 = vmatprep.mubr.bf16.mxu0 0
    %8013 = vmatmul.mubr.bf16.gmra.mrb[0].mxu0 %v7569
    %v8014 = vpop.f32.mrb[0].mxu0
    %v8015 = vadd.f32 0.0, %v8014
    %v8016 = vpop.f32.mrb[0].mxu0
    %v8017 = vpop.f32.mrb[0].mxu0
    %v8018 = vadd.f32 0.0, %v8017
    %v8019 = vpop.f32.mrb[0].mxu0
    %8020 = vmatprep.mubr.bf16.mxu0 0
    %8021 = vmatmul.mubr.bf16.gmra.mrb[0].mxu0 %v7572
    %v8022 = vpop.f32.mrb[0].mxu0
    %v8023 = vadd.f32 0.0, %v8022
    %v8024 = vpop.f32.mrb[0].mxu0
    %v8025 = vpop.f32.mrb[0].mxu0
    %v8026 = vadd.f32 0.0, %v8025
    %v8027 = vpop.f32.mrb[0].mxu0
    %8028 = vmatprep.mubr.bf16.mxu0 0
    %8029 = vmatmul.mubr.bf16.gmra.mrb[0].mxu0 %v7575
    %v8030 = vpop.f32.mrb[0].mxu0
    %v8031 = vadd.f32 0.0, %v8030
    %v8032 = vpop.f32.mrb[0].mxu0
    %v8033 = vpop.f32.mrb[0].mxu0
    %v8034 = vadd.f32 0.0, %v8033
    %v8035 = vpop.f32.mrb[0].mxu0
    %8036 = vmatprep.mubr.bf16.mxu0 0
    %8037 = vmatmul.mubr.bf16.gmra.mrb[0].mxu0 %v7578
    %v8038 = vpop.f32.mrb[0].mxu0
    %v8039 = vadd.f32 0.0, %v8038
    %v8040 = vpop.f32.mrb[0].mxu0
    %v8041 = vpop.f32.mrb[0].mxu0
    %v8042 = vadd.f32 0.0, %v8041
    %v8043 = vpop.f32.mrb[0].mxu0
    %8044 = vdwg.mxu0
    %v8045 = vadd.f32 %v7131, %v7615
    %v8046 = vadd.f32 %v7132, %v7618
    %v8047 = vadd.f32 %v7133, %v7623
    %v8048 = vadd.f32 %v7134, %v7626
    %v8049 = vadd.f32 %v7135, %v7631
    %v8050 = vadd.f32 %v7136, %v7634
    %v8051 = vadd.f32 %v7137, %v7639
    %v8052 = vadd.f32 %v7138, %v7642
    %v8053 = vadd.f32 %v7139, %v7647
    %v8054 = vadd.f32 %v7140, %v7650
    %v8055 = vadd.f32 %v7141, %v7655
    %v8056 = vadd.f32 %v7142, %v7658
    %v8057 = vadd.f32 %v7143, %v7663
    %v8058 = vadd.f32 %v7144, %v7666
    %v8059 = vadd.f32 %v7145, %v7671
    %v8060 = vadd.f32 %v7146, %v7674
    %v8061 = vadd.f32 %v7147, %v7679
    %v8062 = vadd.f32 %v7148, %v7682
    %v8063 = vadd.f32 %v7149, %v7687
    %v8064 = vadd.f32 %v7150, %v7690
    %v8065 = vadd.f32 %v7151, %v7695
    %v8066 = vadd.f32 %v7152, %v7698
    %v8067 = vadd.f32 %v7153, %v7703
    %v8068 = vadd.f32 %v7154, %v7706
    %v8069 = vadd.f32 %v7155, %v7711
    %v8070 = vadd.f32 %v7156, %v7714
    %v8071 = vadd.f32 %v7157, %v7719
    %v8072 = vadd.f32 %v7158, %v7722
    %v8073 = vadd.f32 %v7159, %v7727
    %v8074 = vadd.f32 %v7160, %v7730
    %v8075 = vadd.f32 %v7161, %v7735
    %v8076 = vadd.f32 %v7162, %v7738
    %v8077 = vadd.f32 %v7163, %v7743
    %v8078 = vadd.f32 %v7164, %v7746
    %v8079 = vadd.f32 %v7165, %v7751
    %v8080 = vadd.f32 %v7166, %v7754
    %v8081 = vadd.f32 %v7167, %v7759
    %v8082 = vadd.f32 %v7168, %v7762
    %v8083 = vadd.f32 %v7169, %v7767
    %v8084 = vadd.f32 %v7170, %v7770
    %v8085 = vadd.f32 %v7171, %v7775
    %v8086 = vadd.f32 %v7172, %v7778
    %v8087 = vadd.f32 %v7173, %v7783
    %v8088 = vadd.f32 %v7174, %v7786
    %v8089 = vadd.f32 %v7175, %v7791
    %v8090 = vadd.f32 %v7176, %v7794
    %v8091 = vadd.f32 %v7177, %v7799
    %v8092 = vadd.f32 %v7178, %v7802
    %v8093 = vadd.f32 %v7179, %v7807
    %v8094 = vadd.f32 %v7180, %v7810
    %v8095 = vadd.f32 %v7181, %v7815
    %v8096 = vadd.f32 %v7182, %v7818
    %v8097 = vadd.f32 %v7183, %v7823
    %v8098 = vadd.f32 %v7184, %v7826
    %v8099 = vadd.f32 %v7185, %v7831
    %v8100 = vadd.f32 %v7186, %v7834
    %v8101 = vadd.f32 %v7187, %v7839
    %v8102 = vadd.f32 %v7188, %v7842
    %v8103 = vadd.f32 %v7189, %v7847
    %v8104 = vadd.f32 %v7190, %v7850
    %v8105 = vadd.f32 %v7191, %v7855
    %v8106 = vadd.f32 %v7192, %v7858
    %v8107 = vadd.f32 %v7193, %v7863
    %v8108 = vadd.f32 %v7194, %v7866
    %v8109 = vadd.f32 %v7195, %v7871
    %v8110 = vadd.f32 %v7196, %v7874
    %v8111 = vadd.f32 %v7197, %v7879
    %v8112 = vadd.f32 %v7198, %v7882
    %v8113 = vadd.f32 %v7199, %v7887
    %v8114 = vadd.f32 %v7200, %v7890
    %v8115 = vadd.f32 %v7201, %v7895
    %v8116 = vadd.f32 %v7202, %v7898
    %v8117 = vadd.f32 %v7203, %v7903
    %v8118 = vadd.f32 %v7204, %v7906
    %v8119 = vadd.f32 %v7205, %v7911
    %v8120 = vadd.f32 %v7206, %v7914
    %v8121 = vadd.f32 %v7207, %v7919
    %v8122 = vadd.f32 %v7208, %v7922
    %v8123 = vadd.f32 %v7209, %v7927
    %v8124 = vadd.f32 %v7210, %v7930
    %v8125 = vadd.f32 %v7211, %v7935
    %v8126 = vadd.f32 %v7212, %v7938
    %v8127 = vadd.f32 %v7213, %v7943
    %v8128 = vadd.f32 %v7214, %v7946
    %v8129 = vadd.f32 %v7215, %v7951
    %v8130 = vadd.f32 %v7216, %v7954
    %v8131 = vadd.f32 %v7217, %v7959
    %v8132 = vadd.f32 %v7218, %v7962
    %v8133 = vadd.f32 %v7219, %v7967
    %v8134 = vadd.f32 %v7220, %v7970
    %v8135 = vadd.f32 %v7221, %v7975
    %v8136 = vadd.f32 %v7222, %v7978
    %v8137 = vadd.f32 %v7223, %v7983
    %v8138 = vadd.f32 %v7224, %v7986
    %v8139 = vadd.f32 %v7225, %v7991
    %v8140 = vadd.f32 %v7226, %v7994
    %v8141 = vadd.f32 %v7227, %v7999
    %v8142 = vadd.f32 %v7228, %v8002
    %v8143 = vadd.f32 %v7229, %v8007
    %v8144 = vadd.f32 %v7230, %v8010
    %v8145 = vadd.f32 %v7231, %v8015
    %v8146 = vadd.f32 %v7232, %v8018
    %v8147 = vadd.f32 %v7233, %v8023
    %v8148 = vadd.f32 %v7234, %v8026
    %v8149 = vadd.f32 %v7235, %v8031
    %v8150 = vadd.f32 %v7236, %v8034
    %v8151 = vadd.f32 %v7237, %v8039
    %v8152 = vadd.f32 %v7238, %v8042
    %v8153 = vld [vmem:[#allocation2 + $0x38] sm:$0xff]
    %v8154 = vld [vmem:[#allocation2 + $0x40] sm:$0xff]
    %v8155 = vld [vmem:[#allocation2 + $0x48] sm:$0xff]
    %v8156 = vld [vmem:[#allocation2 + $0x50] sm:$0xff]
    %v8157 = vld [vmem:[#allocation2 + $0x58] sm:$0xff]
    %v8158 = vld [vmem:[#allocation2 + $0x60] sm:$0xff]
    %v8159 = vld [vmem:[#allocation2 + $0x68] sm:$0xff]
    %v8160 = vld [vmem:[#allocation2 + $0x70] sm:$0xff]
    %v8161 = vld [vmem:[#allocation2 + $0x78] sm:$0xff]
    %v8162 = vld [vmem:[#allocation2 + $0x80] sm:$0xff]
    %v8163 = vld [vmem:[#allocation2 + $0x88] sm:$0xff]
    %v8164 = vld [vmem:[#allocation2 + $0x90] sm:$0xff]
    %v8165 = vld [vmem:[#allocation2 + $0x98] sm:$0xff]
    %v8166 = vld [vmem:[#allocation2 + $0xa0] sm:$0xff]
    %v8167 = vld [vmem:[#allocation2 + $0xa8] sm:$0xff]
    %v8168 = vld [vmem:[#allocation2 + $0xb0] sm:$0xff]
    %v8169 = vld [vmem:[#allocation2 + $0xb8] sm:$0xff]
    %v8170 = vld [vmem:[#allocation2 + $0xc0] sm:$0xff]
    %v8171 = vld [vmem:[#allocation2 + $0xc8] sm:$0xff]
    %v8172 = vld [vmem:[#allocation2 + $0xd0] sm:$0xff]
    %v8173 = vld [vmem:[#allocation2 + $0xd8] sm:$0xff]
    %v8174 = vld [vmem:[#allocation2 + $0xe0] sm:$0xff]
    %v8175 = vld [vmem:[#allocation2 + $0xe8] sm:$0xff]
    %v8176 = vld [vmem:[#allocation2 + $0xf0] sm:$0xff]
    %v8177 = vld [vmem:[#allocation2 + $0xf8] sm:$0xff]
    %v8178 = vld [vmem:[#allocation2 + $0x100] sm:$0xff]
    %v8179 = vld [vmem:[#allocation2 + $0x108] sm:$0xff]
    %v8180 = vld [vmem:[#allocation2 + $0x110] sm:$0xff]
    %v8181 = vld [vmem:[#allocation2 + $0x118] sm:$0xff]
    %v8182 = vld [vmem:[#allocation2 + $0x120] sm:$0xff]
    %v8183 = vld [vmem:[#allocation2 + $0x128] sm:$0xff]
    %v8184 = vld [vmem:[#allocation2 + $0x130] sm:$0xff]
    %v8185 = vld [vmem:[#allocation2 + $0x138] sm:$0xff]
    %v8186 = vld [vmem:[#allocation2 + $0x140] sm:$0xff]
    %v8187 = vld [vmem:[#allocation2 + $0x148] sm:$0xff]
    %v8188 = vld [vmem:[#allocation2 + $0x150] sm:$0xff]
    %v8189 = vld [vmem:[#allocation2 + $0x158] sm:$0xff]
    %v8190 = vld [vmem:[#allocation2 + $0x160] sm:$0xff]
    %v8191 = vld [vmem:[#allocation2 + $0x168] sm:$0xff]
    %v8192 = vld [vmem:[#allocation2 + $0x170] sm:$0xff]
    %v8193 = vld [vmem:[#allocation2 + $0x178] sm:$0xff]
    %v8194 = vld [vmem:[#allocation2 + $0x180] sm:$0xff]
    %v8195 = vld [vmem:[#allocation2 + $0x188] sm:$0xff]
    %v8196 = vld [vmem:[#allocation2 + $0x190] sm:$0xff]
    %v8197 = vld [vmem:[#allocation2 + $0x198] sm:$0xff]
    %v8198 = vld [vmem:[#allocation2 + $0x1a0] sm:$0xff]
    %v8199 = vld [vmem:[#allocation2 + $0x1a8] sm:$0xff]
    %v8200 = vld [vmem:[#allocation2 + $0x1b0] sm:$0xff]
    %v8201 = vld [vmem:[#allocation2 + $0x1b8] sm:$0xff]
    %v8202 = vld [vmem:[#allocation2 + $0x1c0] sm:$0xff]
    %v8203 = vld [vmem:[#allocation2 + $0x1c8] sm:$0xff]
    %v8204 = vld [vmem:[#allocation2 + $0x1d0] sm:$0xff]
    %v8205 = vld [vmem:[#allocation2 + $0x1d8] sm:$0xff]
    %v8206 = vld [vmem:[#allocation2 + $0x1e0] sm:$0xff]
    %v8207 = vld [vmem:[#allocation2 + $0x1e8] sm:$0xff]
    %v8208 = vld [vmem:[#allocation2 + $0x1f0] sm:$0xff]
    %v8209 = vld [vmem:[#allocation2 + $0x1f8] sm:$0xff]
    %v8210 = vld [vmem:[#allocation2 + $0x200] sm:$0xff]
    %v8211 = vld [vmem:[#allocation2 + $0x208] sm:$0xff]
    %v8212 = vld [vmem:[#allocation2 + $0x210] sm:$0xff]
    %v8213 = vld [vmem:[#allocation2 + $0x218] sm:$0xff]
    %v8214 = vld [vmem:[#allocation2 + $0x220] sm:$0xff]
    %v8215 = vld [vmem:[#allocation2 + $0x228] sm:$0xff]
    %v8216 = vld [vmem:[#allocation2 + $0x230] sm:$0xff]
    %v8217 = vld [vmem:[#allocation2 + $0x238] sm:$0xff]
    %v8218 = vld [vmem:[#allocation2 + $0x240] sm:$0xff]
    %v8219 = vld [vmem:[#allocation2 + $0x248] sm:$0xff]
    %v8220 = vld [vmem:[#allocation2 + $0x250] sm:$0xff]
    %v8221 = vld [vmem:[#allocation2 + $0x258] sm:$0xff]
    %v8222 = vld [vmem:[#allocation2 + $0x260] sm:$0xff]
    %v8223 = vld [vmem:[#allocation2 + $0x268] sm:$0xff]
    %v8224 = vld [vmem:[#allocation2 + $0x270] sm:$0xff]
    %v8225 = vld [vmem:[#allocation2 + $0x278] sm:$0xff]
    %v8226 = vld [vmem:[#allocation2 + $0x280] sm:$0xff]
    %v8227 = vld [vmem:[#allocation2 + $0x288] sm:$0xff]
    %v8228 = vld [vmem:[#allocation2 + $0x290] sm:$0xff]
    %v8229 = vld [vmem:[#allocation2 + $0x298] sm:$0xff]
    %v8230 = vld [vmem:[#allocation2 + $0x2a0] sm:$0xff]
    %v8231 = vld [vmem:[#allocation2 + $0x2a8] sm:$0xff]
    %v8232 = vld [vmem:[#allocation2 + $0x2b0] sm:$0xff]
    %v8233 = vld [vmem:[#allocation2 + $0x2b8] sm:$0xff]
    %v8234 = vld [vmem:[#allocation2 + $0x2c0] sm:$0xff]
    %v8235 = vld [vmem:[#allocation2 + $0x2c8] sm:$0xff]
    %v8236 = vld [vmem:[#allocation2 + $0x2d0] sm:$0xff]
    %v8237 = vld [vmem:[#allocation2 + $0x2d8] sm:$0xff]
    %v8238 = vld [vmem:[#allocation2 + $0x2e0] sm:$0xff]
    %v8239 = vld [vmem:[#allocation2 + $0x2e8] sm:$0xff]
    %v8240 = vld [vmem:[#allocation2 + $0x2f0] sm:$0xff]
    %v8241 = vld [vmem:[#allocation2 + $0x2f8] sm:$0xff]
    %v8242 = vld [vmem:[#allocation2 + $0x300] sm:$0xff]
    %v8243 = vld [vmem:[#allocation2 + $0x308] sm:$0xff]
    %v8244 = vld [vmem:[#allocation2 + $0x310] sm:$0xff]
    %v8245 = vld [vmem:[#allocation2 + $0x318] sm:$0xff]
    %v8246 = vld [vmem:[#allocation2 + $0x320] sm:$0xff]
    %v8247 = vld [vmem:[#allocation2 + $0x328] sm:$0xff]
    %v8248 = vld [vmem:[#allocation2 + $0x330] sm:$0xff]
    %v8249 = vld [vmem:[#allocation2 + $0x338] sm:$0xff]
    %v8250 = vld [vmem:[#allocation2 + $0x340] sm:$0xff]
    %v8251 = vld [vmem:[#allocation2 + $0x348] sm:$0xff]
    %v8252 = vld [vmem:[#allocation2 + $0x350] sm:$0xff]
    %v8253 = vld [vmem:[#allocation2 + $0x358] sm:$0xff]
    %v8254 = vld [vmem:[#allocation2 + $0x360] sm:$0xff]
    %v8255 = vld [vmem:[#allocation2 + $0x368] sm:$0xff]
    %v8256 = vld [vmem:[#allocation2 + $0x370] sm:$0xff]
    %v8257 = vld [vmem:[#allocation2 + $0x378] sm:$0xff]
    %v8258 = vld [vmem:[#allocation2 + $0x380] sm:$0xff]
    %v8259 = vld [vmem:[#allocation2 + $0x388] sm:$0xff]
    %v8260 = vld [vmem:[#allocation2 + $0x390] sm:$0xff]
    %v8261 = vpack.c.bf16 %v8154, %v8153
    %v8262 = vpack.c.bf16 %v8156, %v8155
    %v8263 = vpack.c.bf16 %v8158, %v8157
    %v8264 = vpack.c.bf16 %v8160, %v8159
    %v8265 = vpack.c.bf16 %v8162, %v8161
    %v8266 = vpack.c.bf16 %v8164, %v8163
    %v8267 = vpack.c.bf16 %v8166, %v8165
    %v8268 = vpack.c.bf16 %v8168, %v8167
    %v8269 = vpack.c.bf16 %v8170, %v8169
    %v8270 = vpack.c.bf16 %v8172, %v8171
    %v8271 = vpack.c.bf16 %v8174, %v8173
    %v8272 = vpack.c.bf16 %v8176, %v8175
    %v8273 = vpack.c.bf16 %v8178, %v8177
    %v8274 = vpack.c.bf16 %v8180, %v8179
    %v8275 = vpack.c.bf16 %v8182, %v8181
    %v8276 = vpack.c.bf16 %v8184, %v8183
    %v8277 = vpack.c.bf16 %v8186, %v8185
    %v8278 = vpack.c.bf16 %v8188, %v8187
    %v8279 = vpack.c.bf16 %v8190, %v8189
    %v8280 = vpack.c.bf16 %v8192, %v8191
    %v8281 = vpack.c.bf16 %v8194, %v8193
    %v8282 = vpack.c.bf16 %v8196, %v8195
    %v8283 = vpack.c.bf16 %v8198, %v8197
    %v8284 = vpack.c.bf16 %v8200, %v8199
    %v8285 = vpack.c.bf16 %v8202, %v8201
    %v8286 = vpack.c.bf16 %v8204, %v8203
    %v8287 = vpack.c.bf16 %v8206, %v8205
    %v8288 = vpack.c.bf16 %v8208, %v8207
    %v8289 = vpack.c.bf16 %v8210, %v8209
    %v8290 = vpack.c.bf16 %v8212, %v8211
    %v8291 = vpack.c.bf16 %v8214, %v8213
    %v8292 = vpack.c.bf16 %v8216, %v8215
    %v8293 = vpack.c.bf16 %v8218, %v8217
    %v8294 = vpack.c.bf16 %v8220, %v8219
    %v8295 = vpack.c.bf16 %v8222, %v8221
    %v8296 = vpack.c.bf16 %v8224, %v8223
    %v8297 = vpack.c.bf16 %v8226, %v8225
    %v8298 = vpack.c.bf16 %v8228, %v8227
    %v8299 = vpack.c.bf16 %v8230, %v8229
    %v8300 = vpack.c.bf16 %v8232, %v8231
    %v8301 = vpack.c.bf16 %v8234, %v8233
    %v8302 = vpack.c.bf16 %v8236, %v8235
    %v8303 = vpack.c.bf16 %v8238, %v8237
    %v8304 = vpack.c.bf16 %v8240, %v8239
    %v8305 = vpack.c.bf16 %v8242, %v8241
    %v8306 = vpack.c.bf16 %v8244, %v8243
    %v8307 = vpack.c.bf16 %v8246, %v8245
    %v8308 = vpack.c.bf16 %v8248, %v8247
    %v8309 = vpack.c.bf16 %v8250, %v8249
    %v8310 = vpack.c.bf16 %v8252, %v8251
    %v8311 = vpack.c.bf16 %v8254, %v8253
    %v8312 = vpack.c.bf16 %v8256, %v8255
    %v8313 = vpack.c.bf16 %v8258, %v8257
    %v8314 = vpack.c.bf16 %v8260, %v8259
    %s8315 = scalar_lea.vmem %s4, 112
    %v8316 = vld [vmem:[%s8315] sm:$0xf]
    %v8317 = vld [vmem:[%s8315 + $0x4] sm:$0xf]
    %v8318 = vld [vmem:[%s8315 + $0x8] sm:$0xf]
    %v8319 = vld [vmem:[%s8315 + $0xc] sm:$0xf]
    %v8324 = vunpack.c.l.b16 %v8316
    %v8325 = vunpack.c.l.b16 %v8317
    %v8326 = vunpack.c.l.b16 %v8318
    %v8327 = vunpack.c.l.b16 %v8319
    %v8328 = vpack.c.b16 %v8325, %v8324
    %v8329 = vpack.c.b16 %v8327, %v8326
    %v8333 = vsel %vm1863, %v8261, 0
    %v8336 = vsel %vm1863, %v8262, 0
    %v8339 = vsel %vm1863, %v8263, 0
    %v8342 = vsel %vm1863, %v8264, 0
    %v8345 = vsel %vm1863, %v8265, 0
    %v8348 = vsel %vm1863, %v8266, 0
    %v8351 = vsel %vm1863, %v8267, 0
    %v8354 = vsel %vm1863, %v8268, 0
    %v8357 = vsel %vm1863, %v8269, 0
    %v8360 = vsel %vm1863, %v8270, 0
    %v8363 = vsel %vm1863, %v8271, 0
    %v8366 = vsel %vm1863, %v8272, 0
    %v8369 = vsel %vm1863, %v8273, 0
    %v8372 = vsel %vm1863, %v8274, 0
    %v8375 = vsel %vm1863, %v8275, 0
    %v8378 = vsel %vm1863, %v8276, 0
    %v8381 = vsel %vm1863, %v8277, 0
    %v8384 = vsel %vm1863, %v8278, 0
    %v8387 = vsel %vm1863, %v8279, 0
    %v8390 = vsel %vm1863, %v8280, 0
    %v8393 = vsel %vm1863, %v8281, 0
    %v8396 = vsel %vm1863, %v8282, 0
    %v8399 = vsel %vm1863, %v8283, 0
    %v8402 = vsel %vm1863, %v8284, 0
    %v8405 = vsel %vm1863, %v8285, 0
    %v8408 = vsel %vm1863, %v8286, 0
    %v8411 = vsel %vm1863, %v8287, 0
    %v8414 = vsel %vm1863, %v8288, 0
    %v8417 = vsel %vm1863, %v8289, 0
    %v8420 = vsel %vm1863, %v8290, 0
    %v8423 = vsel %vm1863, %v8291, 0
    %v8426 = vsel %vm1863, %v8292, 0
    %v8429 = vsel %vm1863, %v8293, 0
    %v8432 = vsel %vm1863, %v8294, 0
    %v8435 = vsel %vm1863, %v8295, 0
    %v8438 = vsel %vm1863, %v8296, 0
    %v8441 = vsel %vm1863, %v8297, 0
    %v8444 = vsel %vm1863, %v8298, 0
    %v8447 = vsel %vm1863, %v8299, 0
    %v8450 = vsel %vm1863, %v8300, 0
    %v8453 = vsel %vm1863, %v8301, 0
    %v8456 = vsel %vm1863, %v8302, 0
    %v8459 = vsel %vm1863, %v8303, 0
    %v8462 = vsel %vm1863, %v8304, 0
    %v8465 = vsel %vm1863, %v8305, 0
    %v8468 = vsel %vm1863, %v8306, 0
    %v8471 = vsel %vm1863, %v8307, 0
    %v8474 = vsel %vm1863, %v8308, 0
    %v8477 = vsel %vm1863, %v8309, 0
    %v8480 = vsel %vm1863, %v8310, 0
    %v8483 = vsel %vm1863, %v8311, 0
    %v8486 = vsel %vm1863, %v8312, 0
    %v8489 = vsel %vm1863, %v8313, 0
    %v8492 = vsel %vm1863, %v8314, 0
    %8494 = vmatprep.subr.bf16.mxu0 0
    %8495 = vmatpush1.bf16.msra.mxu0 %v8328
    %8496 = vmatprep.subr.bf16.mxu0 0
    %8497 = vmatpush1.bf16.msra.mxu0 %v8329
    %8498 = vmatprep.subr.bf16.mxu0 0
    %8499 = vmatpush1.bf16.msra.mxu0 0
    %8500 = vmatprep.subr.bf16.mxu0 0
    %8501 = vmatpush1.bf16.msra.mxu0 0
    %8502 = vmatprep.subr.bf16.mxu0 0
    %8503 = vmatpush1.bf16.msra.mxu0 0
    %8504 = vmatprep.subr.bf16.mxu0 0
    %8505 = vmatpush1.bf16.msra.mxu0 0
    %8506 = vmatprep.subr.bf16.mxu0 0
    %8507 = vmatpush1.bf16.msra.mxu0 0
    %8508 = vmatprep.subr.bf16.mxu0 0
    %8509 = vmatpush1.bf16.msra.mxu0 0
    %8510 = vmatprep.subr.bf16.mxu0 0
    %8511 = vmatpush1.bf16.msra.mxu0 0
    %8512 = vmatprep.subr.bf16.mxu0 0
    %8513 = vmatpush1.bf16.msra.mxu0 0
    %8514 = vmatprep.subr.bf16.mxu0 0
    %8515 = vmatpush1.bf16.msra.mxu0 0
    %8516 = vmatprep.subr.bf16.mxu0 0
    %8517 = vmatpush1.bf16.msra.mxu0 0
    %8518 = vmatprep.subr.bf16.mxu0 0
    %8519 = vmatpush1.bf16.msra.mxu0 0
    %8520 = vmatprep.subr.bf16.mxu0 0
    %8521 = vmatpush1.bf16.msra.mxu0 0
    %8522 = vmatprep.subr.bf16.mxu0 0
    %8523 = vmatpush1.bf16.msra.mxu0 0
    %8524 = vmatprep.subr.bf16.mxu0 0
    %8525 = vmatpush1.bf16.msra.mxu0 0
    %8526 = vmatprep.mubr.bf16.mxu0 0
    %8527 = vmatmul.mubr.bf16.gmra.mrb[0].mxu0 %v8333
    %v8528 = vpop.f32.mrb[0].mxu0
    %v8529 = vadd.f32 0.0, %v8528
    %v8530 = vpop.f32.mrb[0].mxu0
    %v8531 = vpop.f32.mrb[0].mxu0
    %v8532 = vadd.f32 0.0, %v8531
    %v8533 = vpop.f32.mrb[0].mxu0
    %8534 = vmatprep.mubr.bf16.mxu0 0
    %8535 = vmatmul.mubr.bf16.gmra.mrb[0].mxu0 %v8336
    %v8536 = vpop.f32.mrb[0].mxu0
    %v8537 = vadd.f32 0.0, %v8536
    %v8538 = vpop.f32.mrb[0].mxu0
    %v8539 = vpop.f32.mrb[0].mxu0
    %v8540 = vadd.f32 0.0, %v8539
    %v8541 = vpop.f32.mrb[0].mxu0
    %8542 = vmatprep.mubr.bf16.mxu0 0
    %8543 = vmatmul.mubr.bf16.gmra.mrb[0].mxu0 %v8339
    %v8544 = vpop.f32.mrb[0].mxu0
    %v8545 = vadd.f32 0.0, %v8544
    %v8546 = vpop.f32.mrb[0].mxu0
    %v8547 = vpop.f32.mrb[0].mxu0
    %v8548 = vadd.f32 0.0, %v8547
    %v8549 = vpop.f32.mrb[0].mxu0
    %8550 = vmatprep.mubr.bf16.mxu0 0
    %8551 = vmatmul.mubr.bf16.gmra.mrb[0].mxu0 %v8342
    %v8552 = vpop.f32.mrb[0].mxu0
    %v8553 = vadd.f32 0.0, %v8552
    %v8554 = vpop.f32.mrb[0].mxu0
    %v8555 = vpop.f32.mrb[0].mxu0
    %v8556 = vadd.f32 0.0, %v8555
    %v8557 = vpop.f32.mrb[0].mxu0
    %8558 = vmatprep.mubr.bf16.mxu0 0
    %8559 = vmatmul.mubr.bf16.gmra.mrb[0].mxu0 %v8345
    %v8560 = vpop.f32.mrb[0].mxu0
    %v8561 = vadd.f32 0.0, %v8560
    %v8562 = vpop.f32.mrb[0].mxu0
    %v8563 = vpop.f32.mrb[0].mxu0
    %v8564 = vadd.f32 0.0, %v8563
    %v8565 = vpop.f32.mrb[0].mxu0
    %8566 = vmatprep.mubr.bf16.mxu0 0
    %8567 = vmatmul.mubr.bf16.gmra.mrb[0].mxu0 %v8348
    %v8568 = vpop.f32.mrb[0].mxu0
    %v8569 = vadd.f32 0.0, %v8568
    %v8570 = vpop.f32.mrb[0].mxu0
    %v8571 = vpop.f32.mrb[0].mxu0
    %v8572 = vadd.f32 0.0, %v8571
    %v8573 = vpop.f32.mrb[0].mxu0
    %8574 = vmatprep.mubr.bf16.mxu0 0
    %8575 = vmatmul.mubr.bf16.gmra.mrb[0].mxu0 %v8351
    %v8576 = vpop.f32.mrb[0].mxu0
    %v8577 = vadd.f32 0.0, %v8576
    %v8578 = vpop.f32.mrb[0].mxu0
    %v8579 = vpop.f32.mrb[0].mxu0
    %v8580 = vadd.f32 0.0, %v8579
    %v8581 = vpop.f32.mrb[0].mxu0
    %8582 = vmatprep.mubr.bf16.mxu0 0
    %8583 = vmatmul.mubr.bf16.gmra.mrb[0].mxu0 %v8354
    %v8584 = vpop.f32.mrb[0].mxu0
    %v8585 = vadd.f32 0.0, %v8584
    %v8586 = vpop.f32.mrb[0].mxu0
    %v8587 = vpop.f32.mrb[0].mxu0
    %v8588 = vadd.f32 0.0, %v8587
    %v8589 = vpop.f32.mrb[0].mxu0
    %8590 = vmatprep.mubr.bf16.mxu0 0
    %8591 = vmatmul.mubr.bf16.gmra.mrb[0].mxu0 %v8357
    %v8592 = vpop.f32.mrb[0].mxu0
    %v8593 = vadd.f32 0.0, %v8592
    %v8594 = vpop.f32.mrb[0].mxu0
    %v8595 = vpop.f32.mrb[0].mxu0
    %v8596 = vadd.f32 0.0, %v8595
    %v8597 = vpop.f32.mrb[0].mxu0
    %8598 = vmatprep.mubr.bf16.mxu0 0
    %8599 = vmatmul.mubr.bf16.gmra.mrb[0].mxu0 %v8360
    %v8600 = vpop.f32.mrb[0].mxu0
    %v8601 = vadd.f32 0.0, %v8600
    %v8602 = vpop.f32.mrb[0].mxu0
    %v8603 = vpop.f32.mrb[0].mxu0
    %v8604 = vadd.f32 0.0, %v8603
    %v8605 = vpop.f32.mrb[0].mxu0
    %8606 = vmatprep.mubr.bf16.mxu0 0
    %8607 = vmatmul.mubr.bf16.gmra.mrb[0].mxu0 %v8363
    %v8608 = vpop.f32.mrb[0].mxu0
    %v8609 = vadd.f32 0.0, %v8608
    %v8610 = vpop.f32.mrb[0].mxu0
    %v8611 = vpop.f32.mrb[0].mxu0
    %v8612 = vadd.f32 0.0, %v8611
    %v8613 = vpop.f32.mrb[0].mxu0
    %8614 = vmatprep.mubr.bf16.mxu0 0
    %8615 = vmatmul.mubr.bf16.gmra.mrb[0].mxu0 %v8366
    %v8616 = vpop.f32.mrb[0].mxu0
    %v8617 = vadd.f32 0.0, %v8616
    %v8618 = vpop.f32.mrb[0].mxu0
    %v8619 = vpop.f32.mrb[0].mxu0
    %v8620 = vadd.f32 0.0, %v8619
    %v8621 = vpop.f32.mrb[0].mxu0
    %8622 = vmatprep.mubr.bf16.mxu0 0
    %8623 = vmatmul.mubr.bf16.gmra.mrb[0].mxu0 %v8369
    %v8624 = vpop.f32.mrb[0].mxu0
    %v8625 = vadd.f32 0.0, %v8624
    %v8626 = vpop.f32.mrb[0].mxu0
    %v8627 = vpop.f32.mrb[0].mxu0
    %v8628 = vadd.f32 0.0, %v8627
    %v8629 = vpop.f32.mrb[0].mxu0
    %8630 = vmatprep.mubr.bf16.mxu0 0
    %8631 = vmatmul.mubr.bf16.gmra.mrb[0].mxu0 %v8372
    %v8632 = vpop.f32.mrb[0].mxu0
    %v8633 = vadd.f32 0.0, %v8632
    %v8634 = vpop.f32.mrb[0].mxu0
    %v8635 = vpop.f32.mrb[0].mxu0
    %v8636 = vadd.f32 0.0, %v8635
    %v8637 = vpop.f32.mrb[0].mxu0
    %8638 = vmatprep.mubr.bf16.mxu0 0
    %8639 = vmatmul.mubr.bf16.gmra.mrb[0].mxu0 %v8375
    %v8640 = vpop.f32.mrb[0].mxu0
    %v8641 = vadd.f32 0.0, %v8640
    %v8642 = vpop.f32.mrb[0].mxu0
    %v8643 = vpop.f32.mrb[0].mxu0
    %v8644 = vadd.f32 0.0, %v8643
    %v8645 = vpop.f32.mrb[0].mxu0
    %8646 = vmatprep.mubr.bf16.mxu0 0
    %8647 = vmatmul.mubr.bf16.gmra.mrb[0].mxu0 %v8378
    %v8648 = vpop.f32.mrb[0].mxu0
    %v8649 = vadd.f32 0.0, %v8648
    %v8650 = vpop.f32.mrb[0].mxu0
    %v8651 = vpop.f32.mrb[0].mxu0
    %v8652 = vadd.f32 0.0, %v8651
    %v8653 = vpop.f32.mrb[0].mxu0
    %8654 = vmatprep.mubr.bf16.mxu0 0
    %8655 = vmatmul.mubr.bf16.gmra.mrb[0].mxu0 %v8381
    %v8656 = vpop.f32.mrb[0].mxu0
    %v8657 = vadd.f32 0.0, %v8656
    %v8658 = vpop.f32.mrb[0].mxu0
    %v8659 = vpop.f32.mrb[0].mxu0
    %v8660 = vadd.f32 0.0, %v8659
    %v8661 = vpop.f32.mrb[0].mxu0
    %8662 = vmatprep.mubr.bf16.mxu0 0
    %8663 = vmatmul.mubr.bf16.gmra.mrb[0].mxu0 %v8384
    %v8664 = vpop.f32.mrb[0].mxu0
    %v8665 = vadd.f32 0.0, %v8664
    %v8666 = vpop.f32.mrb[0].mxu0
    %v8667 = vpop.f32.mrb[0].mxu0
    %v8668 = vadd.f32 0.0, %v8667
    %v8669 = vpop.f32.mrb[0].mxu0
    %8670 = vmatprep.mubr.bf16.mxu0 0
    %8671 = vmatmul.mubr.bf16.gmra.mrb[0].mxu0 %v8387
    %v8672 = vpop.f32.mrb[0].mxu0
    %v8673 = vadd.f32 0.0, %v8672
    %v8674 = vpop.f32.mrb[0].mxu0
    %v8675 = vpop.f32.mrb[0].mxu0
    %v8676 = vadd.f32 0.0, %v8675
    %v8677 = vpop.f32.mrb[0].mxu0
    %8678 = vmatprep.mubr.bf16.mxu0 0
    %8679 = vmatmul.mubr.bf16.gmra.mrb[0].mxu0 %v8390
    %v8680 = vpop.f32.mrb[0].mxu0
    %v8681 = vadd.f32 0.0, %v8680
    %v8682 = vpop.f32.mrb[0].mxu0
    %v8683 = vpop.f32.mrb[0].mxu0
    %v8684 = vadd.f32 0.0, %v8683
    %v8685 = vpop.f32.mrb[0].mxu0
    %8686 = vmatprep.mubr.bf16.mxu0 0
    %8687 = vmatmul.mubr.bf16.gmra.mrb[0].mxu0 %v8393
    %v8688 = vpop.f32.mrb[0].mxu0
    %v8689 = vadd.f32 0.0, %v8688
    %v8690 = vpop.f32.mrb[0].mxu0
    %v8691 = vpop.f32.mrb[0].mxu0
    %v8692 = vadd.f32 0.0, %v8691
    %v8693 = vpop.f32.mrb[0].mxu0
    %8694 = vmatprep.mubr.bf16.mxu0 0
    %8695 = vmatmul.mubr.bf16.gmra.mrb[0].mxu0 %v8396
    %v8696 = vpop.f32.mrb[0].mxu0
    %v8697 = vadd.f32 0.0, %v8696
    %v8698 = vpop.f32.mrb[0].mxu0
    %v8699 = vpop.f32.mrb[0].mxu0
    %v8700 = vadd.f32 0.0, %v8699
    %v8701 = vpop.f32.mrb[0].mxu0
    %8702 = vmatprep.mubr.bf16.mxu0 0
    %8703 = vmatmul.mubr.bf16.gmra.mrb[0].mxu0 %v8399
    %v8704 = vpop.f32.mrb[0].mxu0
    %v8705 = vadd.f32 0.0, %v8704
    %v8706 = vpop.f32.mrb[0].mxu0
    %v8707 = vpop.f32.mrb[0].mxu0
    %v8708 = vadd.f32 0.0, %v8707
    %v8709 = vpop.f32.mrb[0].mxu0
    %8710 = vmatprep.mubr.bf16.mxu0 0
    %8711 = vmatmul.mubr.bf16.gmra.mrb[0].mxu0 %v8402
    %v8712 = vpop.f32.mrb[0].mxu0
    %v8713 = vadd.f32 0.0, %v8712
    %v8714 = vpop.f32.mrb[0].mxu0
    %v8715 = vpop.f32.mrb[0].mxu0
    %v8716 = vadd.f32 0.0, %v8715
    %v8717 = vpop.f32.mrb[0].mxu0
    %8718 = vmatprep.mubr.bf16.mxu0 0
    %8719 = vmatmul.mubr.bf16.gmra.mrb[0].mxu0 %v8405
    %v8720 = vpop.f32.mrb[0].mxu0
    %v8721 = vadd.f32 0.0, %v8720
    %v8722 = vpop.f32.mrb[0].mxu0
    %v8723 = vpop.f32.mrb[0].mxu0
    %v8724 = vadd.f32 0.0, %v8723
    %v8725 = vpop.f32.mrb[0].mxu0
    %8726 = vmatprep.mubr.bf16.mxu0 0
    %8727 = vmatmul.mubr.bf16.gmra.mrb[0].mxu0 %v8408
    %v8728 = vpop.f32.mrb[0].mxu0
    %v8729 = vadd.f32 0.0, %v8728
    %v8730 = vpop.f32.mrb[0].mxu0
    %v8731 = vpop.f32.mrb[0].mxu0
    %v8732 = vadd.f32 0.0, %v8731
    %v8733 = vpop.f32.mrb[0].mxu0
    %8734 = vmatprep.mubr.bf16.mxu0 0
    %8735 = vmatmul.mubr.bf16.gmra.mrb[0].mxu0 %v8411
    %v8736 = vpop.f32.mrb[0].mxu0
    %v8737 = vadd.f32 0.0, %v8736
    %v8738 = vpop.f32.mrb[0].mxu0
    %v8739 = vpop.f32.mrb[0].mxu0
    %v8740 = vadd.f32 0.0, %v8739
    %v8741 = vpop.f32.mrb[0].mxu0
    %8742 = vmatprep.mubr.bf16.mxu0 0
    %8743 = vmatmul.mubr.bf16.gmra.mrb[0].mxu0 %v8414
    %v8744 = vpop.f32.mrb[0].mxu0
    %v8745 = vadd.f32 0.0, %v8744
    %v8746 = vpop.f32.mrb[0].mxu0
    %v8747 = vpop.f32.mrb[0].mxu0
    %v8748 = vadd.f32 0.0, %v8747
    %v8749 = vpop.f32.mrb[0].mxu0
    %8750 = vmatprep.mubr.bf16.mxu0 0
    %8751 = vmatmul.mubr.bf16.gmra.mrb[0].mxu0 %v8417
    %v8752 = vpop.f32.mrb[0].mxu0
    %v8753 = vadd.f32 0.0, %v8752
    %v8754 = vpop.f32.mrb[0].mxu0
    %v8755 = vpop.f32.mrb[0].mxu0
    %v8756 = vadd.f32 0.0, %v8755
    %v8757 = vpop.f32.mrb[0].mxu0
    %8758 = vmatprep.mubr.bf16.mxu0 0
    %8759 = vmatmul.mubr.bf16.gmra.mrb[0].mxu0 %v8420
    %v8760 = vpop.f32.mrb[0].mxu0
    %v8761 = vadd.f32 0.0, %v8760
    %v8762 = vpop.f32.mrb[0].mxu0
    %v8763 = vpop.f32.mrb[0].mxu0
    %v8764 = vadd.f32 0.0, %v8763
    %v8765 = vpop.f32.mrb[0].mxu0
    %8766 = vmatprep.mubr.bf16.mxu0 0
    %8767 = vmatmul.mubr.bf16.gmra.mrb[0].mxu0 %v8423
    %v8768 = vpop.f32.mrb[0].mxu0
    %v8769 = vadd.f32 0.0, %v8768
    %v8770 = vpop.f32.mrb[0].mxu0
    %v8771 = vpop.f32.mrb[0].mxu0
    %v8772 = vadd.f32 0.0, %v8771
    %v8773 = vpop.f32.mrb[0].mxu0
    %8774 = vmatprep.mubr.bf16.mxu0 0
    %8775 = vmatmul.mubr.bf16.gmra.mrb[0].mxu0 %v8426
    %v8776 = vpop.f32.mrb[0].mxu0
    %v8777 = vadd.f32 0.0, %v8776
    %v8778 = vpop.f32.mrb[0].mxu0
    %v8779 = vpop.f32.mrb[0].mxu0
    %v8780 = vadd.f32 0.0, %v8779
    %v8781 = vpop.f32.mrb[0].mxu0
    %8782 = vmatprep.mubr.bf16.mxu0 0
    %8783 = vmatmul.mubr.bf16.gmra.mrb[0].mxu0 %v8429
    %v8784 = vpop.f32.mrb[0].mxu0
    %v8785 = vadd.f32 0.0, %v8784
    %v8786 = vpop.f32.mrb[0].mxu0
    %v8787 = vpop.f32.mrb[0].mxu0
    %v8788 = vadd.f32 0.0, %v8787
    %v8789 = vpop.f32.mrb[0].mxu0
    %8790 = vmatprep.mubr.bf16.mxu0 0
    %8791 = vmatmul.mubr.bf16.gmra.mrb[0].mxu0 %v8432
    %v8792 = vpop.f32.mrb[0].mxu0
    %v8793 = vadd.f32 0.0, %v8792
    %v8794 = vpop.f32.mrb[0].mxu0
    %v8795 = vpop.f32.mrb[0].mxu0
    %v8796 = vadd.f32 0.0, %v8795
    %v8797 = vpop.f32.mrb[0].mxu0
    %8798 = vmatprep.mubr.bf16.mxu0 0
    %8799 = vmatmul.mubr.bf16.gmra.mrb[0].mxu0 %v8435
    %v8800 = vpop.f32.mrb[0].mxu0
    %v8801 = vadd.f32 0.0, %v8800
    %v8802 = vpop.f32.mrb[0].mxu0
    %v8803 = vpop.f32.mrb[0].mxu0
    %v8804 = vadd.f32 0.0, %v8803
    %v8805 = vpop.f32.mrb[0].mxu0
    %8806 = vmatprep.mubr.bf16.mxu0 0
    %8807 = vmatmul.mubr.bf16.gmra.mrb[0].mxu0 %v8438
    %v8808 = vpop.f32.mrb[0].mxu0
    %v8809 = vadd.f32 0.0, %v8808
    %v8810 = vpop.f32.mrb[0].mxu0
    %v8811 = vpop.f32.mrb[0].mxu0
    %v8812 = vadd.f32 0.0, %v8811
    %v8813 = vpop.f32.mrb[0].mxu0
    %8814 = vmatprep.mubr.bf16.mxu0 0
    %8815 = vmatmul.mubr.bf16.gmra.mrb[0].mxu0 %v8441
    %v8816 = vpop.f32.mrb[0].mxu0
    %v8817 = vadd.f32 0.0, %v8816
    %v8818 = vpop.f32.mrb[0].mxu0
    %v8819 = vpop.f32.mrb[0].mxu0
    %v8820 = vadd.f32 0.0, %v8819
    %v8821 = vpop.f32.mrb[0].mxu0
    %8822 = vmatprep.mubr.bf16.mxu0 0
    %8823 = vmatmul.mubr.bf16.gmra.mrb[0].mxu0 %v8444
    %v8824 = vpop.f32.mrb[0].mxu0
    %v8825 = vadd.f32 0.0, %v8824
    %v8826 = vpop.f32.mrb[0].mxu0
    %v8827 = vpop.f32.mrb[0].mxu0
    %v8828 = vadd.f32 0.0, %v8827
    %v8829 = vpop.f32.mrb[0].mxu0
    %8830 = vmatprep.mubr.bf16.mxu0 0
    %8831 = vmatmul.mubr.bf16.gmra.mrb[0].mxu0 %v8447
    %v8832 = vpop.f32.mrb[0].mxu0
    %v8833 = vadd.f32 0.0, %v8832
    %v8834 = vpop.f32.mrb[0].mxu0
    %v8835 = vpop.f32.mrb[0].mxu0
    %v8836 = vadd.f32 0.0, %v8835
    %v8837 = vpop.f32.mrb[0].mxu0
    %8838 = vmatprep.mubr.bf16.mxu0 0
    %8839 = vmatmul.mubr.bf16.gmra.mrb[0].mxu0 %v8450
    %v8840 = vpop.f32.mrb[0].mxu0
    %v8841 = vadd.f32 0.0, %v8840
    %v8842 = vpop.f32.mrb[0].mxu0
    %v8843 = vpop.f32.mrb[0].mxu0
    %v8844 = vadd.f32 0.0, %v8843
    %v8845 = vpop.f32.mrb[0].mxu0
    %8846 = vmatprep.mubr.bf16.mxu0 0
    %8847 = vmatmul.mubr.bf16.gmra.mrb[0].mxu0 %v8453
    %v8848 = vpop.f32.mrb[0].mxu0
    %v8849 = vadd.f32 0.0, %v8848
    %v8850 = vpop.f32.mrb[0].mxu0
    %v8851 = vpop.f32.mrb[0].mxu0
    %v8852 = vadd.f32 0.0, %v8851
    %v8853 = vpop.f32.mrb[0].mxu0
    %8854 = vmatprep.mubr.bf16.mxu0 0
    %8855 = vmatmul.mubr.bf16.gmra.mrb[0].mxu0 %v8456
    %v8856 = vpop.f32.mrb[0].mxu0
    %v8857 = vadd.f32 0.0, %v8856
    %v8858 = vpop.f32.mrb[0].mxu0
    %v8859 = vpop.f32.mrb[0].mxu0
    %v8860 = vadd.f32 0.0, %v8859
    %v8861 = vpop.f32.mrb[0].mxu0
    %8862 = vmatprep.mubr.bf16.mxu0 0
    %8863 = vmatmul.mubr.bf16.gmra.mrb[0].mxu0 %v8459
    %v8864 = vpop.f32.mrb[0].mxu0
    %v8865 = vadd.f32 0.0, %v8864
    %v8866 = vpop.f32.mrb[0].mxu0
    %v8867 = vpop.f32.mrb[0].mxu0
    %v8868 = vadd.f32 0.0, %v8867
    %v8869 = vpop.f32.mrb[0].mxu0
    %8870 = vmatprep.mubr.bf16.mxu0 0
    %8871 = vmatmul.mubr.bf16.gmra.mrb[0].mxu0 %v8462
    %v8872 = vpop.f32.mrb[0].mxu0
    %v8873 = vadd.f32 0.0, %v8872
    %v8874 = vpop.f32.mrb[0].mxu0
    %v8875 = vpop.f32.mrb[0].mxu0
    %v8876 = vadd.f32 0.0, %v8875
    %v8877 = vpop.f32.mrb[0].mxu0
    %8878 = vmatprep.mubr.bf16.mxu0 0
    %8879 = vmatmul.mubr.bf16.gmra.mrb[0].mxu0 %v8465
    %v8880 = vpop.f32.mrb[0].mxu0
    %v8881 = vadd.f32 0.0, %v8880
    %v8882 = vpop.f32.mrb[0].mxu0
    %v8883 = vpop.f32.mrb[0].mxu0
    %v8884 = vadd.f32 0.0, %v8883
    %v8885 = vpop.f32.mrb[0].mxu0
    %8886 = vmatprep.mubr.bf16.mxu0 0
    %8887 = vmatmul.mubr.bf16.gmra.mrb[0].mxu0 %v8468
    %v8888 = vpop.f32.mrb[0].mxu0
    %v8889 = vadd.f32 0.0, %v8888
    %v8890 = vpop.f32.mrb[0].mxu0
    %v8891 = vpop.f32.mrb[0].mxu0
    %v8892 = vadd.f32 0.0, %v8891
    %v8893 = vpop.f32.mrb[0].mxu0
    %8894 = vmatprep.mubr.bf16.mxu0 0
    %8895 = vmatmul.mubr.bf16.gmra.mrb[0].mxu0 %v8471
    %v8896 = vpop.f32.mrb[0].mxu0
    %v8897 = vadd.f32 0.0, %v8896
    %v8898 = vpop.f32.mrb[0].mxu0
    %v8899 = vpop.f32.mrb[0].mxu0
    %v8900 = vadd.f32 0.0, %v8899
    %v8901 = vpop.f32.mrb[0].mxu0
    %8902 = vmatprep.mubr.bf16.mxu0 0
    %8903 = vmatmul.mubr.bf16.gmra.mrb[0].mxu0 %v8474
    %v8904 = vpop.f32.mrb[0].mxu0
    %v8905 = vadd.f32 0.0, %v8904
    %v8906 = vpop.f32.mrb[0].mxu0
    %v8907 = vpop.f32.mrb[0].mxu0
    %v8908 = vadd.f32 0.0, %v8907
    %v8909 = vpop.f32.mrb[0].mxu0
    %8910 = vmatprep.mubr.bf16.mxu0 0
    %8911 = vmatmul.mubr.bf16.gmra.mrb[0].mxu0 %v8477
    %v8912 = vpop.f32.mrb[0].mxu0
    %v8913 = vadd.f32 0.0, %v8912
    %v8914 = vpop.f32.mrb[0].mxu0
    %v8915 = vpop.f32.mrb[0].mxu0
    %v8916 = vadd.f32 0.0, %v8915
    %v8917 = vpop.f32.mrb[0].mxu0
    %8918 = vmatprep.mubr.bf16.mxu0 0
    %8919 = vmatmul.mubr.bf16.gmra.mrb[0].mxu0 %v8480
    %v8920 = vpop.f32.mrb[0].mxu0
    %v8921 = vadd.f32 0.0, %v8920
    %v8922 = vpop.f32.mrb[0].mxu0
    %v8923 = vpop.f32.mrb[0].mxu0
    %v8924 = vadd.f32 0.0, %v8923
    %v8925 = vpop.f32.mrb[0].mxu0
    %8926 = vmatprep.mubr.bf16.mxu0 0
    %8927 = vmatmul.mubr.bf16.gmra.mrb[0].mxu0 %v8483
    %v8928 = vpop.f32.mrb[0].mxu0
    %v8929 = vadd.f32 0.0, %v8928
    %v8930 = vpop.f32.mrb[0].mxu0
    %v8931 = vpop.f32.mrb[0].mxu0
    %v8932 = vadd.f32 0.0, %v8931
    %v8933 = vpop.f32.mrb[0].mxu0
    %8934 = vmatprep.mubr.bf16.mxu0 0
    %8935 = vmatmul.mubr.bf16.gmra.mrb[0].mxu0 %v8486
    %v8936 = vpop.f32.mrb[0].mxu0
    %v8937 = vadd.f32 0.0, %v8936
    %v8938 = vpop.f32.mrb[0].mxu0
    %v8939 = vpop.f32.mrb[0].mxu0
    %v8940 = vadd.f32 0.0, %v8939
    %v8941 = vpop.f32.mrb[0].mxu0
    %8942 = vmatprep.mubr.bf16.mxu0 0
    %8943 = vmatmul.mubr.bf16.gmra.mrb[0].mxu0 %v8489
    %v8944 = vpop.f32.mrb[0].mxu0
    %v8945 = vadd.f32 0.0, %v8944
    %v8946 = vpop.f32.mrb[0].mxu0
    %v8947 = vpop.f32.mrb[0].mxu0
    %v8948 = vadd.f32 0.0, %v8947
    %v8949 = vpop.f32.mrb[0].mxu0
    %8950 = vmatprep.mubr.bf16.mxu0 0
    %8951 = vmatmul.mubr.bf16.gmra.mrb[0].mxu0 %v8492
    %v8952 = vpop.f32.mrb[0].mxu0
    %v8953 = vadd.f32 0.0, %v8952
    %v8954 = vpop.f32.mrb[0].mxu0
    %v8955 = vpop.f32.mrb[0].mxu0
    %v8956 = vadd.f32 0.0, %v8955
    %v8957 = vpop.f32.mrb[0].mxu0
    %8958 = vdwg.mxu0
    %v8959 = vadd.f32 %v8045, %v8529
    %v8960 = vadd.f32 %v8046, %v8532
    %v8961 = vadd.f32 %v8047, %v8537
    %v8962 = vadd.f32 %v8048, %v8540
    %v8963 = vadd.f32 %v8049, %v8545
    %v8964 = vadd.f32 %v8050, %v8548
    %v8965 = vadd.f32 %v8051, %v8553
    %v8966 = vadd.f32 %v8052, %v8556
    %v8967 = vadd.f32 %v8053, %v8561
    %v8968 = vadd.f32 %v8054, %v8564
    %v8969 = vadd.f32 %v8055, %v8569
    %v8970 = vadd.f32 %v8056, %v8572
    %v8971 = vadd.f32 %v8057, %v8577
    %v8972 = vadd.f32 %v8058, %v8580
    %v8973 = vadd.f32 %v8059, %v8585
    %v8974 = vadd.f32 %v8060, %v8588
    %v8975 = vadd.f32 %v8061, %v8593
    %v8976 = vadd.f32 %v8062, %v8596
    %v8977 = vadd.f32 %v8063, %v8601
    %v8978 = vadd.f32 %v8064, %v8604
    %v8979 = vadd.f32 %v8065, %v8609
    %v8980 = vadd.f32 %v8066, %v8612
    %v8981 = vadd.f32 %v8067, %v8617
    %v8982 = vadd.f32 %v8068, %v8620
    %v8983 = vadd.f32 %v8069, %v8625
    %v8984 = vadd.f32 %v8070, %v8628
    %v8985 = vadd.f32 %v8071, %v8633
    %v8986 = vadd.f32 %v8072, %v8636
    %v8987 = vadd.f32 %v8073, %v8641
    %v8988 = vadd.f32 %v8074, %v8644
    %v8989 = vadd.f32 %v8075, %v8649
    %v8990 = vadd.f32 %v8076, %v8652
    %v8991 = vadd.f32 %v8077, %v8657
    %v8992 = vadd.f32 %v8078, %v8660
    %v8993 = vadd.f32 %v8079, %v8665
    %v8994 = vadd.f32 %v8080, %v8668
    %v8995 = vadd.f32 %v8081, %v8673
    %v8996 = vadd.f32 %v8082, %v8676
    %v8997 = vadd.f32 %v8083, %v8681
    %v8998 = vadd.f32 %v8084, %v8684
    %v8999 = vadd.f32 %v8085, %v8689
    %v9000 = vadd.f32 %v8086, %v8692
    %v9001 = vadd.f32 %v8087, %v8697
    %v9002 = vadd.f32 %v8088, %v8700
    %v9003 = vadd.f32 %v8089, %v8705
    %v9004 = vadd.f32 %v8090, %v8708
    %v9005 = vadd.f32 %v8091, %v8713
    %v9006 = vadd.f32 %v8092, %v8716
    %v9007 = vadd.f32 %v8093, %v8721
    %v9008 = vadd.f32 %v8094, %v8724
    %v9009 = vadd.f32 %v8095, %v8729
    %v9010 = vadd.f32 %v8096, %v8732
    %v9011 = vadd.f32 %v8097, %v8737
    %v9012 = vadd.f32 %v8098, %v8740
    %v9013 = vadd.f32 %v8099, %v8745
    %v9014 = vadd.f32 %v8100, %v8748
    %v9015 = vadd.f32 %v8101, %v8753
    %v9016 = vadd.f32 %v8102, %v8756
    %v9017 = vadd.f32 %v8103, %v8761
    %v9018 = vadd.f32 %v8104, %v8764
    %v9019 = vadd.f32 %v8105, %v8769
    %v9020 = vadd.f32 %v8106, %v8772
    %v9021 = vadd.f32 %v8107, %v8777
    %v9022 = vadd.f32 %v8108, %v8780
    %v9023 = vadd.f32 %v8109, %v8785
    %v9024 = vadd.f32 %v8110, %v8788
    %v9025 = vadd.f32 %v8111, %v8793
    %v9026 = vadd.f32 %v8112, %v8796
    %v9027 = vadd.f32 %v8113, %v8801
    %v9028 = vadd.f32 %v8114, %v8804
    %v9029 = vadd.f32 %v8115, %v8809
    %v9030 = vadd.f32 %v8116, %v8812
    %v9031 = vadd.f32 %v8117, %v8817
    %v9032 = vadd.f32 %v8118, %v8820
    %v9033 = vadd.f32 %v8119, %v8825
    %v9034 = vadd.f32 %v8120, %v8828
    %v9035 = vadd.f32 %v8121, %v8833
    %v9036 = vadd.f32 %v8122, %v8836
    %v9037 = vadd.f32 %v8123, %v8841
    %v9038 = vadd.f32 %v8124, %v8844
    %v9039 = vadd.f32 %v8125, %v8849
    %v9040 = vadd.f32 %v8126, %v8852
    %v9041 = vadd.f32 %v8127, %v8857
    %v9042 = vadd.f32 %v8128, %v8860
    %v9043 = vadd.f32 %v8129, %v8865
    %v9044 = vadd.f32 %v8130, %v8868
    %v9045 = vadd.f32 %v8131, %v8873
    %v9046 = vadd.f32 %v8132, %v8876
    %v9047 = vadd.f32 %v8133, %v8881
    %v9048 = vadd.f32 %v8134, %v8884
    %v9049 = vadd.f32 %v8135, %v8889
    %v9050 = vadd.f32 %v8136, %v8892
    %v9051 = vadd.f32 %v8137, %v8897
    %v9052 = vadd.f32 %v8138, %v8900
    %v9053 = vadd.f32 %v8139, %v8905
    %v9054 = vadd.f32 %v8140, %v8908
    %v9055 = vadd.f32 %v8141, %v8913
    %v9056 = vadd.f32 %v8142, %v8916
    %v9057 = vadd.f32 %v8143, %v8921
    %v9058 = vadd.f32 %v8144, %v8924
    %v9059 = vadd.f32 %v8145, %v8929
    %v9060 = vadd.f32 %v8146, %v8932
    %v9061 = vadd.f32 %v8147, %v8937
    %v9062 = vadd.f32 %v8148, %v8940
    %v9063 = vadd.f32 %v8149, %v8945
    %v9064 = vadd.f32 %v8150, %v8948
    %v9065 = vadd.f32 %v8151, %v8953
    %v9066 = vadd.f32 %v8152, %v8956
    %v9067 = vld [vmem:[#allocation2 + $0x39] sm:$0xff]
    %v9068 = vld [vmem:[#allocation2 + $0x41] sm:$0xff]
    %v9069 = vld [vmem:[#allocation2 + $0x49] sm:$0xff]
    %v9070 = vld [vmem:[#allocation2 + $0x51] sm:$0xff]
    %v9071 = vld [vmem:[#allocation2 + $0x59] sm:$0xff]
    %v9072 = vld [vmem:[#allocation2 + $0x61] sm:$0xff]
    %v9073 = vld [vmem:[#allocation2 + $0x69] sm:$0xff]
    %v9074 = vld [vmem:[#allocation2 + $0x71] sm:$0xff]
    %v9075 = vld [vmem:[#allocation2 + $0x79] sm:$0xff]
    %v9076 = vld [vmem:[#allocation2 + $0x81] sm:$0xff]
    %v9077 = vld [vmem:[#allocation2 + $0x89] sm:$0xff]
    %v9078 = vld [vmem:[#allocation2 + $0x91] sm:$0xff]
    %v9079 = vld [vmem:[#allocation2 + $0x99] sm:$0xff]
    %v9080 = vld [vmem:[#allocation2 + $0xa1] sm:$0xff]
    %v9081 = vld [vmem:[#allocation2 + $0xa9] sm:$0xff]
    %v9082 = vld [vmem:[#allocation2 + $0xb1] sm:$0xff]
    %v9083 = vld [vmem:[#allocation2 + $0xb9] sm:$0xff]
    %v9084 = vld [vmem:[#allocation2 + $0xc1] sm:$0xff]
    %v9085 = vld [vmem:[#allocation2 + $0xc9] sm:$0xff]
    %v9086 = vld [vmem:[#allocation2 + $0xd1] sm:$0xff]
    %v9087 = vld [vmem:[#allocation2 + $0xd9] sm:$0xff]
    %v9088 = vld [vmem:[#allocation2 + $0xe1] sm:$0xff]
    %v9089 = vld [vmem:[#allocation2 + $0xe9] sm:$0xff]
    %v9090 = vld [vmem:[#allocation2 + $0xf1] sm:$0xff]
    %v9091 = vld [vmem:[#allocation2 + $0xf9] sm:$0xff]
    %v9092 = vld [vmem:[#allocation2 + $0x101] sm:$0xff]
    %v9093 = vld [vmem:[#allocation2 + $0x109] sm:$0xff]
    %v9094 = vld [vmem:[#allocation2 + $0x111] sm:$0xff]
    %v9095 = vld [vmem:[#allocation2 + $0x119] sm:$0xff]
    %v9096 = vld [vmem:[#allocation2 + $0x121] sm:$0xff]
    %v9097 = vld [vmem:[#allocation2 + $0x129] sm:$0xff]
    %v9098 = vld [vmem:[#allocation2 + $0x131] sm:$0xff]
    %v9099 = vld [vmem:[#allocation2 + $0x139] sm:$0xff]
    %v9100 = vld [vmem:[#allocation2 + $0x141] sm:$0xff]
    %v9101 = vld [vmem:[#allocation2 + $0x149] sm:$0xff]
    %v9102 = vld [vmem:[#allocation2 + $0x151] sm:$0xff]
    %v9103 = vld [vmem:[#allocation2 + $0x159] sm:$0xff]
    %v9104 = vld [vmem:[#allocation2 + $0x161] sm:$0xff]
    %v9105 = vld [vmem:[#allocation2 + $0x169] sm:$0xff]
    %v9106 = vld [vmem:[#allocation2 + $0x171] sm:$0xff]
    %v9107 = vld [vmem:[#allocation2 + $0x179] sm:$0xff]
    %v9108 = vld [vmem:[#allocation2 + $0x181] sm:$0xff]
    %v9109 = vld [vmem:[#allocation2 + $0x189] sm:$0xff]
    %v9110 = vld [vmem:[#allocation2 + $0x191] sm:$0xff]
    %v9111 = vld [vmem:[#allocation2 + $0x199] sm:$0xff]
    %v9112 = vld [vmem:[#allocation2 + $0x1a1] sm:$0xff]
    %v9113 = vld [vmem:[#allocation2 + $0x1a9] sm:$0xff]
    %v9114 = vld [vmem:[#allocation2 + $0x1b1] sm:$0xff]
    %v9115 = vld [vmem:[#allocation2 + $0x1b9] sm:$0xff]
    %v9116 = vld [vmem:[#allocation2 + $0x1c1] sm:$0xff]
    %v9117 = vld [vmem:[#allocation2 + $0x1c9] sm:$0xff]
    %v9118 = vld [vmem:[#allocation2 + $0x1d1] sm:$0xff]
    %v9119 = vld [vmem:[#allocation2 + $0x1d9] sm:$0xff]
    %v9120 = vld [vmem:[#allocation2 + $0x1e1] sm:$0xff]
    %v9121 = vld [vmem:[#allocation2 + $0x1e9] sm:$0xff]
    %v9122 = vld [vmem:[#allocation2 + $0x1f1] sm:$0xff]
    %v9123 = vld [vmem:[#allocation2 + $0x1f9] sm:$0xff]
    %v9124 = vld [vmem:[#allocation2 + $0x201] sm:$0xff]
    %v9125 = vld [vmem:[#allocation2 + $0x209] sm:$0xff]
    %v9126 = vld [vmem:[#allocation2 + $0x211] sm:$0xff]
    %v9127 = vld [vmem:[#allocation2 + $0x219] sm:$0xff]
    %v9128 = vld [vmem:[#allocation2 + $0x221] sm:$0xff]
    %v9129 = vld [vmem:[#allocation2 + $0x229] sm:$0xff]
    %v9130 = vld [vmem:[#allocation2 + $0x231] sm:$0xff]
    %v9131 = vld [vmem:[#allocation2 + $0x239] sm:$0xff]
    %v9132 = vld [vmem:[#allocation2 + $0x241] sm:$0xff]
    %v9133 = vld [vmem:[#allocation2 + $0x249] sm:$0xff]
    %v9134 = vld [vmem:[#allocation2 + $0x251] sm:$0xff]
    %v9135 = vld [vmem:[#allocation2 + $0x259] sm:$0xff]
    %v9136 = vld [vmem:[#allocation2 + $0x261] sm:$0xff]
    %v9137 = vld [vmem:[#allocation2 + $0x269] sm:$0xff]
    %v9138 = vld [vmem:[#allocation2 + $0x271] sm:$0xff]
    %v9139 = vld [vmem:[#allocation2 + $0x279] sm:$0xff]
    %v9140 = vld [vmem:[#allocation2 + $0x281] sm:$0xff]
    %v9141 = vld [vmem:[#allocation2 + $0x289] sm:$0xff]
    %v9142 = vld [vmem:[#allocation2 + $0x291] sm:$0xff]
    %v9143 = vld [vmem:[#allocation2 + $0x299] sm:$0xff]
    %v9144 = vld [vmem:[#allocation2 + $0x2a1] sm:$0xff]
    %v9145 = vld [vmem:[#allocation2 + $0x2a9] sm:$0xff]
    %v9146 = vld [vmem:[#allocation2 + $0x2b1] sm:$0xff]
    %v9147 = vld [vmem:[#allocation2 + $0x2b9] sm:$0xff]
    %v9148 = vld [vmem:[#allocation2 + $0x2c1] sm:$0xff]
    %v9149 = vld [vmem:[#allocation2 + $0x2c9] sm:$0xff]
    %v9150 = vld [vmem:[#allocation2 + $0x2d1] sm:$0xff]
    %v9151 = vld [vmem:[#allocation2 + $0x2d9] sm:$0xff]
    %v9152 = vld [vmem:[#allocation2 + $0x2e1] sm:$0xff]
    %v9153 = vld [vmem:[#allocation2 + $0x2e9] sm:$0xff]
    %v9154 = vld [vmem:[#allocation2 + $0x2f1] sm:$0xff]
    %v9155 = vld [vmem:[#allocation2 + $0x2f9] sm:$0xff]
    %v9156 = vld [vmem:[#allocation2 + $0x301] sm:$0xff]
    %v9157 = vld [vmem:[#allocation2 + $0x309] sm:$0xff]
    %v9158 = vld [vmem:[#allocation2 + $0x311] sm:$0xff]
    %v9159 = vld [vmem:[#allocation2 + $0x319] sm:$0xff]
    %v9160 = vld [vmem:[#allocation2 + $0x321] sm:$0xff]
    %v9161 = vld [vmem:[#allocation2 + $0x329] sm:$0xff]
    %v9162 = vld [vmem:[#allocation2 + $0x331] sm:$0xff]
    %v9163 = vld [vmem:[#allocation2 + $0x339] sm:$0xff]
    %v9164 = vld [vmem:[#allocation2 + $0x341] sm:$0xff]
    %v9165 = vld [vmem:[#allocation2 + $0x349] sm:$0xff]
    %v9166 = vld [vmem:[#allocation2 + $0x351] sm:$0xff]
    %v9167 = vld [vmem:[#allocation2 + $0x359] sm:$0xff]
    %v9168 = vld [vmem:[#allocation2 + $0x361] sm:$0xff]
    %v9169 = vld [vmem:[#allocation2 + $0x369] sm:$0xff]
    %v9170 = vld [vmem:[#allocation2 + $0x371] sm:$0xff]
    %v9171 = vld [vmem:[#allocation2 + $0x379] sm:$0xff]
    %v9172 = vld [vmem:[#allocation2 + $0x381] sm:$0xff]
    %v9173 = vld [vmem:[#allocation2 + $0x389] sm:$0xff]
    %v9174 = vld [vmem:[#allocation2 + $0x391] sm:$0xff]
    %v9175 = vpack.c.bf16 %v9068, %v9067
    %v9176 = vpack.c.bf16 %v9070, %v9069
    %v9177 = vpack.c.bf16 %v9072, %v9071
    %v9178 = vpack.c.bf16 %v9074, %v9073
    %v9179 = vpack.c.bf16 %v9076, %v9075
    %v9180 = vpack.c.bf16 %v9078, %v9077
    %v9181 = vpack.c.bf16 %v9080, %v9079
    %v9182 = vpack.c.bf16 %v9082, %v9081
    %v9183 = vpack.c.bf16 %v9084, %v9083
    %v9184 = vpack.c.bf16 %v9086, %v9085
    %v9185 = vpack.c.bf16 %v9088, %v9087
    %v9186 = vpack.c.bf16 %v9090, %v9089
    %v9187 = vpack.c.bf16 %v9092, %v9091
    %v9188 = vpack.c.bf16 %v9094, %v9093
    %v9189 = vpack.c.bf16 %v9096, %v9095
    %v9190 = vpack.c.bf16 %v9098, %v9097
    %v9191 = vpack.c.bf16 %v9100, %v9099
    %v9192 = vpack.c.bf16 %v9102, %v9101
    %v9193 = vpack.c.bf16 %v9104, %v9103
    %v9194 = vpack.c.bf16 %v9106, %v9105
    %v9195 = vpack.c.bf16 %v9108, %v9107
    %v9196 = vpack.c.bf16 %v9110, %v9109
    %v9197 = vpack.c.bf16 %v9112, %v9111
    %v9198 = vpack.c.bf16 %v9114, %v9113
    %v9199 = vpack.c.bf16 %v9116, %v9115
    %v9200 = vpack.c.bf16 %v9118, %v9117
    %v9201 = vpack.c.bf16 %v9120, %v9119
    %v9202 = vpack.c.bf16 %v9122, %v9121
    %v9203 = vpack.c.bf16 %v9124, %v9123
    %v9204 = vpack.c.bf16 %v9126, %v9125
    %v9205 = vpack.c.bf16 %v9128, %v9127
    %v9206 = vpack.c.bf16 %v9130, %v9129
    %v9207 = vpack.c.bf16 %v9132, %v9131
    %v9208 = vpack.c.bf16 %v9134, %v9133
    %v9209 = vpack.c.bf16 %v9136, %v9135
    %v9210 = vpack.c.bf16 %v9138, %v9137
    %v9211 = vpack.c.bf16 %v9140, %v9139
    %v9212 = vpack.c.bf16 %v9142, %v9141
    %v9213 = vpack.c.bf16 %v9144, %v9143
    %v9214 = vpack.c.bf16 %v9146, %v9145
    %v9215 = vpack.c.bf16 %v9148, %v9147
    %v9216 = vpack.c.bf16 %v9150, %v9149
    %v9217 = vpack.c.bf16 %v9152, %v9151
    %v9218 = vpack.c.bf16 %v9154, %v9153
    %v9219 = vpack.c.bf16 %v9156, %v9155
    %v9220 = vpack.c.bf16 %v9158, %v9157
    %v9221 = vpack.c.bf16 %v9160, %v9159
    %v9222 = vpack.c.bf16 %v9162, %v9161
    %v9223 = vpack.c.bf16 %v9164, %v9163
    %v9224 = vpack.c.bf16 %v9166, %v9165
    %v9225 = vpack.c.bf16 %v9168, %v9167
    %v9226 = vpack.c.bf16 %v9170, %v9169
    %v9227 = vpack.c.bf16 %v9172, %v9171
    %v9228 = vpack.c.bf16 %v9174, %v9173
    %s9229 = scalar_lea.vmem %s4, 128
    %v9230 = vld [vmem:[%s9229] sm:$0xf]
    %v9231 = vld [vmem:[%s9229 + $0x4] sm:$0xf]
    %v9232 = vld [vmem:[%s9229 + $0x8] sm:$0xf]
    %v9233 = vld [vmem:[%s9229 + $0xc] sm:$0xf]
    %v9238 = vunpack.c.l.b16 %v9230
    %v9239 = vunpack.c.l.b16 %v9231
    %v9240 = vunpack.c.l.b16 %v9232
    %v9241 = vunpack.c.l.b16 %v9233
    %v9242 = vpack.c.b16 %v9239, %v9238
    %v9243 = vpack.c.b16 %v9241, %v9240
    %v9247 = vsel %vm1863, %v9175, 0
    %v9250 = vsel %vm1863, %v9176, 0
    %v9253 = vsel %vm1863, %v9177, 0
    %v9256 = vsel %vm1863, %v9178, 0
    %v9259 = vsel %vm1863, %v9179, 0
    %v9262 = vsel %vm1863, %v9180, 0
    %v9265 = vsel %vm1863, %v9181, 0
    %v9268 = vsel %vm1863, %v9182, 0
    %v9271 = vsel %vm1863, %v9183, 0
    %v9274 = vsel %vm1863, %v9184, 0
    %v9277 = vsel %vm1863, %v9185, 0
    %v9280 = vsel %vm1863, %v9186, 0
    %v9283 = vsel %vm1863, %v9187, 0
    %v9286 = vsel %vm1863, %v9188, 0
    %v9289 = vsel %vm1863, %v9189, 0
    %v9292 = vsel %vm1863, %v9190, 0
    %v9295 = vsel %vm1863, %v9191, 0
    %v9298 = vsel %vm1863, %v9192, 0
    %v9301 = vsel %vm1863, %v9193, 0
    %v9304 = vsel %vm1863, %v9194, 0
    %v9307 = vsel %vm1863, %v9195, 0
    %v9310 = vsel %vm1863, %v9196, 0
    %v9313 = vsel %vm1863, %v9197, 0
    %v9316 = vsel %vm1863, %v9198, 0
    %v9319 = vsel %vm1863, %v9199, 0
    %v9322 = vsel %vm1863, %v9200, 0
    %v9325 = vsel %vm1863, %v9201, 0
    %v9328 = vsel %vm1863, %v9202, 0
    %v9331 = vsel %vm1863, %v9203, 0
    %v9334 = vsel %vm1863, %v9204, 0
    %v9337 = vsel %vm1863, %v9205, 0
    %v9340 = vsel %vm1863, %v9206, 0
    %v9343 = vsel %vm1863, %v9207, 0
    %v9346 = vsel %vm1863, %v9208, 0
    %v9349 = vsel %vm1863, %v9209, 0
    %v9352 = vsel %vm1863, %v9210, 0
    %v9355 = vsel %vm1863, %v9211, 0
    %v9358 = vsel %vm1863, %v9212, 0
    %v9361 = vsel %vm1863, %v9213, 0
    %v9364 = vsel %vm1863, %v9214, 0
    %v9367 = vsel %vm1863, %v9215, 0
    %v9370 = vsel %vm1863, %v9216, 0
    %v9373 = vsel %vm1863, %v9217, 0
    %v9376 = vsel %vm1863, %v9218, 0
    %v9379 = vsel %vm1863, %v9219, 0
    %v9382 = vsel %vm1863, %v9220, 0
    %v9385 = vsel %vm1863, %v9221, 0
    %v9388 = vsel %vm1863, %v9222, 0
    %v9391 = vsel %vm1863, %v9223, 0
    %v9394 = vsel %vm1863, %v9224, 0
    %v9397 = vsel %vm1863, %v9225, 0
    %v9400 = vsel %vm1863, %v9226, 0
    %v9403 = vsel %vm1863, %v9227, 0
    %v9406 = vsel %vm1863, %v9228, 0
    %9408 = vmatprep.subr.bf16.mxu0 0
    %9409 = vmatpush1.bf16.msra.mxu0 %v9242
    %9410 = vmatprep.subr.bf16.mxu0 0
    %9411 = vmatpush1.bf16.msra.mxu0 %v9243
    %9412 = vmatprep.subr.bf16.mxu0 0
    %9413 = vmatpush1.bf16.msra.mxu0 0
    %9414 = vmatprep.subr.bf16.mxu0 0
    %9415 = vmatpush1.bf16.msra.mxu0 0
    %9416 = vmatprep.subr.bf16.mxu0 0
    %9417 = vmatpush1.bf16.msra.mxu0 0
    %9418 = vmatprep.subr.bf16.mxu0 0
    %9419 = vmatpush1.bf16.msra.mxu0 0
    %9420 = vmatprep.subr.bf16.mxu0 0
    %9421 = vmatpush1.bf16.msra.mxu0 0
    %9422 = vmatprep.subr.bf16.mxu0 0
    %9423 = vmatpush1.bf16.msra.mxu0 0
    %9424 = vmatprep.subr.bf16.mxu0 0
    %9425 = vmatpush1.bf16.msra.mxu0 0
    %9426 = vmatprep.subr.bf16.mxu0 0
    %9427 = vmatpush1.bf16.msra.mxu0 0
    %9428 = vmatprep.subr.bf16.mxu0 0
    %9429 = vmatpush1.bf16.msra.mxu0 0
    %9430 = vmatprep.subr.bf16.mxu0 0
    %9431 = vmatpush1.bf16.msra.mxu0 0
    %9432 = vmatprep.subr.bf16.mxu0 0
    %9433 = vmatpush1.bf16.msra.mxu0 0
    %9434 = vmatprep.subr.bf16.mxu0 0
    %9435 = vmatpush1.bf16.msra.mxu0 0
    %9436 = vmatprep.subr.bf16.mxu0 0
    %9437 = vmatpush1.bf16.msra.mxu0 0
    %9438 = vmatprep.subr.bf16.mxu0 0
    %9439 = vmatpush1.bf16.msra.mxu0 0
    %9440 = vmatprep.mubr.bf16.mxu0 0
    %9441 = vmatmul.mubr.bf16.gmra.mrb[0].mxu0 %v9247
    %v9442 = vpop.f32.mrb[0].mxu0
    %v9443 = vadd.f32 0.0, %v9442
    %v9444 = vpop.f32.mrb[0].mxu0
    %v9445 = vpop.f32.mrb[0].mxu0
    %v9446 = vadd.f32 0.0, %v9445
    %v9447 = vpop.f32.mrb[0].mxu0
    %9448 = vmatprep.mubr.bf16.mxu0 0
    %9449 = vmatmul.mubr.bf16.gmra.mrb[0].mxu0 %v9250
    %v9450 = vpop.f32.mrb[0].mxu0
    %v9451 = vadd.f32 0.0, %v9450
    %v9452 = vpop.f32.mrb[0].mxu0
    %v9453 = vpop.f32.mrb[0].mxu0
    %v9454 = vadd.f32 0.0, %v9453
    %v9455 = vpop.f32.mrb[0].mxu0
    %9456 = vmatprep.mubr.bf16.mxu0 0
    %9457 = vmatmul.mubr.bf16.gmra.mrb[0].mxu0 %v9253
    %v9458 = vpop.f32.mrb[0].mxu0
    %v9459 = vadd.f32 0.0, %v9458
    %v9460 = vpop.f32.mrb[0].mxu0
    %v9461 = vpop.f32.mrb[0].mxu0
    %v9462 = vadd.f32 0.0, %v9461
    %v9463 = vpop.f32.mrb[0].mxu0
    %9464 = vmatprep.mubr.bf16.mxu0 0
    %9465 = vmatmul.mubr.bf16.gmra.mrb[0].mxu0 %v9256
    %v9466 = vpop.f32.mrb[0].mxu0
    %v9467 = vadd.f32 0.0, %v9466
    %v9468 = vpop.f32.mrb[0].mxu0
    %v9469 = vpop.f32.mrb[0].mxu0
    %v9470 = vadd.f32 0.0, %v9469
    %v9471 = vpop.f32.mrb[0].mxu0
    %9472 = vmatprep.mubr.bf16.mxu0 0
    %9473 = vmatmul.mubr.bf16.gmra.mrb[0].mxu0 %v9259
    %v9474 = vpop.f32.mrb[0].mxu0
    %v9475 = vadd.f32 0.0, %v9474
    %v9476 = vpop.f32.mrb[0].mxu0
    %v9477 = vpop.f32.mrb[0].mxu0
    %v9478 = vadd.f32 0.0, %v9477
    %v9479 = vpop.f32.mrb[0].mxu0
    %9480 = vmatprep.mubr.bf16.mxu0 0
    %9481 = vmatmul.mubr.bf16.gmra.mrb[0].mxu0 %v9262
    %v9482 = vpop.f32.mrb[0].mxu0
    %v9483 = vadd.f32 0.0, %v9482
    %v9484 = vpop.f32.mrb[0].mxu0
    %v9485 = vpop.f32.mrb[0].mxu0
    %v9486 = vadd.f32 0.0, %v9485
    %v9487 = vpop.f32.mrb[0].mxu0
    %9488 = vmatprep.mubr.bf16.mxu0 0
    %9489 = vmatmul.mubr.bf16.gmra.mrb[0].mxu0 %v9265
    %v9490 = vpop.f32.mrb[0].mxu0
    %v9491 = vadd.f32 0.0, %v9490
    %v9492 = vpop.f32.mrb[0].mxu0
    %v9493 = vpop.f32.mrb[0].mxu0
    %v9494 = vadd.f32 0.0, %v9493
    %v9495 = vpop.f32.mrb[0].mxu0
    %9496 = vmatprep.mubr.bf16.mxu0 0
    %9497 = vmatmul.mubr.bf16.gmra.mrb[0].mxu0 %v9268
    %v9498 = vpop.f32.mrb[0].mxu0
    %v9499 = vadd.f32 0.0, %v9498
    %v9500 = vpop.f32.mrb[0].mxu0
    %v9501 = vpop.f32.mrb[0].mxu0
    %v9502 = vadd.f32 0.0, %v9501
    %v9503 = vpop.f32.mrb[0].mxu0
    %9504 = vmatprep.mubr.bf16.mxu0 0
    %9505 = vmatmul.mubr.bf16.gmra.mrb[0].mxu0 %v9271
    %v9506 = vpop.f32.mrb[0].mxu0
    %v9507 = vadd.f32 0.0, %v9506
    %v9508 = vpop.f32.mrb[0].mxu0
    %v9509 = vpop.f32.mrb[0].mxu0
    %v9510 = vadd.f32 0.0, %v9509
    %v9511 = vpop.f32.mrb[0].mxu0
    %9512 = vmatprep.mubr.bf16.mxu0 0
    %9513 = vmatmul.mubr.bf16.gmra.mrb[0].mxu0 %v9274
    %v9514 = vpop.f32.mrb[0].mxu0
    %v9515 = vadd.f32 0.0, %v9514
    %v9516 = vpop.f32.mrb[0].mxu0
    %v9517 = vpop.f32.mrb[0].mxu0
    %v9518 = vadd.f32 0.0, %v9517
    %v9519 = vpop.f32.mrb[0].mxu0
    %9520 = vmatprep.mubr.bf16.mxu0 0
    %9521 = vmatmul.mubr.bf16.gmra.mrb[0].mxu0 %v9277
    %v9522 = vpop.f32.mrb[0].mxu0
    %v9523 = vadd.f32 0.0, %v9522
    %v9524 = vpop.f32.mrb[0].mxu0
    %v9525 = vpop.f32.mrb[0].mxu0
    %v9526 = vadd.f32 0.0, %v9525
    %v9527 = vpop.f32.mrb[0].mxu0
    %9528 = vmatprep.mubr.bf16.mxu0 0
    %9529 = vmatmul.mubr.bf16.gmra.mrb[0].mxu0 %v9280
    %v9530 = vpop.f32.mrb[0].mxu0
    %v9531 = vadd.f32 0.0, %v9530
    %v9532 = vpop.f32.mrb[0].mxu0
    %v9533 = vpop.f32.mrb[0].mxu0
    %v9534 = vadd.f32 0.0, %v9533
    %v9535 = vpop.f32.mrb[0].mxu0
    %9536 = vmatprep.mubr.bf16.mxu0 0
    %9537 = vmatmul.mubr.bf16.gmra.mrb[0].mxu0 %v9283
    %v9538 = vpop.f32.mrb[0].mxu0
    %v9539 = vadd.f32 0.0, %v9538
    %v9540 = vpop.f32.mrb[0].mxu0
    %v9541 = vpop.f32.mrb[0].mxu0
    %v9542 = vadd.f32 0.0, %v9541
    %v9543 = vpop.f32.mrb[0].mxu0
    %9544 = vmatprep.mubr.bf16.mxu0 0
    %9545 = vmatmul.mubr.bf16.gmra.mrb[0].mxu0 %v9286
    %v9546 = vpop.f32.mrb[0].mxu0
    %v9547 = vadd.f32 0.0, %v9546
    %v9548 = vpop.f32.mrb[0].mxu0
    %v9549 = vpop.f32.mrb[0].mxu0
    %v9550 = vadd.f32 0.0, %v9549
    %v9551 = vpop.f32.mrb[0].mxu0
    %9552 = vmatprep.mubr.bf16.mxu0 0
    %9553 = vmatmul.mubr.bf16.gmra.mrb[0].mxu0 %v9289
    %v9554 = vpop.f32.mrb[0].mxu0
    %v9555 = vadd.f32 0.0, %v9554
    %v9556 = vpop.f32.mrb[0].mxu0
    %v9557 = vpop.f32.mrb[0].mxu0
    %v9558 = vadd.f32 0.0, %v9557
    %v9559 = vpop.f32.mrb[0].mxu0
    %9560 = vmatprep.mubr.bf16.mxu0 0
    %9561 = vmatmul.mubr.bf16.gmra.mrb[0].mxu0 %v9292
    %v9562 = vpop.f32.mrb[0].mxu0
    %v9563 = vadd.f32 0.0, %v9562
    %v9564 = vpop.f32.mrb[0].mxu0
    %v9565 = vpop.f32.mrb[0].mxu0
    %v9566 = vadd.f32 0.0, %v9565
    %v9567 = vpop.f32.mrb[0].mxu0
    %9568 = vmatprep.mubr.bf16.mxu0 0
    %9569 = vmatmul.mubr.bf16.gmra.mrb[0].mxu0 %v9295
    %v9570 = vpop.f32.mrb[0].mxu0
    %v9571 = vadd.f32 0.0, %v9570
    %v9572 = vpop.f32.mrb[0].mxu0
    %v9573 = vpop.f32.mrb[0].mxu0
    %v9574 = vadd.f32 0.0, %v9573
    %v9575 = vpop.f32.mrb[0].mxu0
    %9576 = vmatprep.mubr.bf16.mxu0 0
    %9577 = vmatmul.mubr.bf16.gmra.mrb[0].mxu0 %v9298
    %v9578 = vpop.f32.mrb[0].mxu0
    %v9579 = vadd.f32 0.0, %v9578
    %v9580 = vpop.f32.mrb[0].mxu0
    %v9581 = vpop.f32.mrb[0].mxu0
    %v9582 = vadd.f32 0.0, %v9581
    %v9583 = vpop.f32.mrb[0].mxu0
    %9584 = vmatprep.mubr.bf16.mxu0 0
    %9585 = vmatmul.mubr.bf16.gmra.mrb[0].mxu0 %v9301
    %v9586 = vpop.f32.mrb[0].mxu0
    %v9587 = vadd.f32 0.0, %v9586
    %v9588 = vpop.f32.mrb[0].mxu0
    %v9589 = vpop.f32.mrb[0].mxu0
    %v9590 = vadd.f32 0.0, %v9589
    %v9591 = vpop.f32.mrb[0].mxu0
    %9592 = vmatprep.mubr.bf16.mxu0 0
    %9593 = vmatmul.mubr.bf16.gmra.mrb[0].mxu0 %v9304
    %v9594 = vpop.f32.mrb[0].mxu0
    %v9595 = vadd.f32 0.0, %v9594
    %v9596 = vpop.f32.mrb[0].mxu0
    %v9597 = vpop.f32.mrb[0].mxu0
    %v9598 = vadd.f32 0.0, %v9597
    %v9599 = vpop.f32.mrb[0].mxu0
    %9600 = vmatprep.mubr.bf16.mxu0 0
    %9601 = vmatmul.mubr.bf16.gmra.mrb[0].mxu0 %v9307
    %v9602 = vpop.f32.mrb[0].mxu0
    %v9603 = vadd.f32 0.0, %v9602
    %v9604 = vpop.f32.mrb[0].mxu0
    %v9605 = vpop.f32.mrb[0].mxu0
    %v9606 = vadd.f32 0.0, %v9605
    %v9607 = vpop.f32.mrb[0].mxu0
    %9608 = vmatprep.mubr.bf16.mxu0 0
    %9609 = vmatmul.mubr.bf16.gmra.mrb[0].mxu0 %v9310
    %v9610 = vpop.f32.mrb[0].mxu0
    %v9611 = vadd.f32 0.0, %v9610
    %v9612 = vpop.f32.mrb[0].mxu0
    %v9613 = vpop.f32.mrb[0].mxu0
    %v9614 = vadd.f32 0.0, %v9613
    %v9615 = vpop.f32.mrb[0].mxu0
    %9616 = vmatprep.mubr.bf16.mxu0 0
    %9617 = vmatmul.mubr.bf16.gmra.mrb[0].mxu0 %v9313
    %v9618 = vpop.f32.mrb[0].mxu0
    %v9619 = vadd.f32 0.0, %v9618
    %v9620 = vpop.f32.mrb[0].mxu0
    %v9621 = vpop.f32.mrb[0].mxu0
    %v9622 = vadd.f32 0.0, %v9621
    %v9623 = vpop.f32.mrb[0].mxu0
    %9624 = vmatprep.mubr.bf16.mxu0 0
    %9625 = vmatmul.mubr.bf16.gmra.mrb[0].mxu0 %v9316
    %v9626 = vpop.f32.mrb[0].mxu0
    %v9627 = vadd.f32 0.0, %v9626
    %v9628 = vpop.f32.mrb[0].mxu0
    %v9629 = vpop.f32.mrb[0].mxu0
    %v9630 = vadd.f32 0.0, %v9629
    %v9631 = vpop.f32.mrb[0].mxu0
    %9632 = vmatprep.mubr.bf16.mxu0 0
    %9633 = vmatmul.mubr.bf16.gmra.mrb[0].mxu0 %v9319
    %v9634 = vpop.f32.mrb[0].mxu0
    %v9635 = vadd.f32 0.0, %v9634
    %v9636 = vpop.f32.mrb[0].mxu0
    %v9637 = vpop.f32.mrb[0].mxu0
    %v9638 = vadd.f32 0.0, %v9637
    %v9639 = vpop.f32.mrb[0].mxu0
    %9640 = vmatprep.mubr.bf16.mxu0 0
    %9641 = vmatmul.mubr.bf16.gmra.mrb[0].mxu0 %v9322
    %v9642 = vpop.f32.mrb[0].mxu0
    %v9643 = vadd.f32 0.0, %v9642
    %v9644 = vpop.f32.mrb[0].mxu0
    %v9645 = vpop.f32.mrb[0].mxu0
    %v9646 = vadd.f32 0.0, %v9645
    %v9647 = vpop.f32.mrb[0].mxu0
    %9648 = vmatprep.mubr.bf16.mxu0 0
    %9649 = vmatmul.mubr.bf16.gmra.mrb[0].mxu0 %v9325
    %v9650 = vpop.f32.mrb[0].mxu0
    %v9651 = vadd.f32 0.0, %v9650
    %v9652 = vpop.f32.mrb[0].mxu0
    %v9653 = vpop.f32.mrb[0].mxu0
    %v9654 = vadd.f32 0.0, %v9653
    %v9655 = vpop.f32.mrb[0].mxu0
    %9656 = vmatprep.mubr.bf16.mxu0 0
    %9657 = vmatmul.mubr.bf16.gmra.mrb[0].mxu0 %v9328
    %v9658 = vpop.f32.mrb[0].mxu0
    %v9659 = vadd.f32 0.0, %v9658
    %v9660 = vpop.f32.mrb[0].mxu0
    %v9661 = vpop.f32.mrb[0].mxu0
    %v9662 = vadd.f32 0.0, %v9661
    %v9663 = vpop.f32.mrb[0].mxu0
    %9664 = vmatprep.mubr.bf16.mxu0 0
    %9665 = vmatmul.mubr.bf16.gmra.mrb[0].mxu0 %v9331
    %v9666 = vpop.f32.mrb[0].mxu0
    %v9667 = vadd.f32 0.0, %v9666
    %v9668 = vpop.f32.mrb[0].mxu0
    %v9669 = vpop.f32.mrb[0].mxu0
    %v9670 = vadd.f32 0.0, %v9669
    %v9671 = vpop.f32.mrb[0].mxu0
    %9672 = vmatprep.mubr.bf16.mxu0 0
    %9673 = vmatmul.mubr.bf16.gmra.mrb[0].mxu0 %v9334
    %v9674 = vpop.f32.mrb[0].mxu0
    %v9675 = vadd.f32 0.0, %v9674
    %v9676 = vpop.f32.mrb[0].mxu0
    %v9677 = vpop.f32.mrb[0].mxu0
    %v9678 = vadd.f32 0.0, %v9677
    %v9679 = vpop.f32.mrb[0].mxu0
    %9680 = vmatprep.mubr.bf16.mxu0 0
    %9681 = vmatmul.mubr.bf16.gmra.mrb[0].mxu0 %v9337
    %v9682 = vpop.f32.mrb[0].mxu0
    %v9683 = vadd.f32 0.0, %v9682
    %v9684 = vpop.f32.mrb[0].mxu0
    %v9685 = vpop.f32.mrb[0].mxu0
    %v9686 = vadd.f32 0.0, %v9685
    %v9687 = vpop.f32.mrb[0].mxu0
    %9688 = vmatprep.mubr.bf16.mxu0 0
    %9689 = vmatmul.mubr.bf16.gmra.mrb[0].mxu0 %v9340
    %v9690 = vpop.f32.mrb[0].mxu0
    %v9691 = vadd.f32 0.0, %v9690
    %v9692 = vpop.f32.mrb[0].mxu0
    %v9693 = vpop.f32.mrb[0].mxu0
    %v9694 = vadd.f32 0.0, %v9693
    %v9695 = vpop.f32.mrb[0].mxu0
    %9696 = vmatprep.mubr.bf16.mxu0 0
    %9697 = vmatmul.mubr.bf16.gmra.mrb[0].mxu0 %v9343
    %v9698 = vpop.f32.mrb[0].mxu0
    %v9699 = vadd.f32 0.0, %v9698
    %v9700 = vpop.f32.mrb[0].mxu0
    %v9701 = vpop.f32.mrb[0].mxu0
    %v9702 = vadd.f32 0.0, %v9701
    %v9703 = vpop.f32.mrb[0].mxu0
    %9704 = vmatprep.mubr.bf16.mxu0 0
    %9705 = vmatmul.mubr.bf16.gmra.mrb[0].mxu0 %v9346
    %v9706 = vpop.f32.mrb[0].mxu0
    %v9707 = vadd.f32 0.0, %v9706
    %v9708 = vpop.f32.mrb[0].mxu0
    %v9709 = vpop.f32.mrb[0].mxu0
    %v9710 = vadd.f32 0.0, %v9709
    %v9711 = vpop.f32.mrb[0].mxu0
    %9712 = vmatprep.mubr.bf16.mxu0 0
    %9713 = vmatmul.mubr.bf16.gmra.mrb[0].mxu0 %v9349
    %v9714 = vpop.f32.mrb[0].mxu0
    %v9715 = vadd.f32 0.0, %v9714
    %v9716 = vpop.f32.mrb[0].mxu0
    %v9717 = vpop.f32.mrb[0].mxu0
    %v9718 = vadd.f32 0.0, %v9717
    %v9719 = vpop.f32.mrb[0].mxu0
    %9720 = vmatprep.mubr.bf16.mxu0 0
    %9721 = vmatmul.mubr.bf16.gmra.mrb[0].mxu0 %v9352
    %v9722 = vpop.f32.mrb[0].mxu0
    %v9723 = vadd.f32 0.0, %v9722
    %v9724 = vpop.f32.mrb[0].mxu0
    %v9725 = vpop.f32.mrb[0].mxu0
    %v9726 = vadd.f32 0.0, %v9725
    %v9727 = vpop.f32.mrb[0].mxu0
    %9728 = vmatprep.mubr.bf16.mxu0 0
    %9729 = vmatmul.mubr.bf16.gmra.mrb[0].mxu0 %v9355
    %v9730 = vpop.f32.mrb[0].mxu0
    %v9731 = vadd.f32 0.0, %v9730
    %v9732 = vpop.f32.mrb[0].mxu0
    %v9733 = vpop.f32.mrb[0].mxu0
    %v9734 = vadd.f32 0.0, %v9733
    %v9735 = vpop.f32.mrb[0].mxu0
    %9736 = vmatprep.mubr.bf16.mxu0 0
    %9737 = vmatmul.mubr.bf16.gmra.mrb[0].mxu0 %v9358
    %v9738 = vpop.f32.mrb[0].mxu0
    %v9739 = vadd.f32 0.0, %v9738
    %v9740 = vpop.f32.mrb[0].mxu0
    %v9741 = vpop.f32.mrb[0].mxu0
    %v9742 = vadd.f32 0.0, %v9741
    %v9743 = vpop.f32.mrb[0].mxu0
    %9744 = vmatprep.mubr.bf16.mxu0 0
    %9745 = vmatmul.mubr.bf16.gmra.mrb[0].mxu0 %v9361
    %v9746 = vpop.f32.mrb[0].mxu0
    %v9747 = vadd.f32 0.0, %v9746
    %v9748 = vpop.f32.mrb[0].mxu0
    %v9749 = vpop.f32.mrb[0].mxu0
    %v9750 = vadd.f32 0.0, %v9749
    %v9751 = vpop.f32.mrb[0].mxu0
    %9752 = vmatprep.mubr.bf16.mxu0 0
    %9753 = vmatmul.mubr.bf16.gmra.mrb[0].mxu0 %v9364
    %v9754 = vpop.f32.mrb[0].mxu0
    %v9755 = vadd.f32 0.0, %v9754
    %v9756 = vpop.f32.mrb[0].mxu0
    %v9757 = vpop.f32.mrb[0].mxu0
    %v9758 = vadd.f32 0.0, %v9757
    %v9759 = vpop.f32.mrb[0].mxu0
    %9760 = vmatprep.mubr.bf16.mxu0 0
    %9761 = vmatmul.mubr.bf16.gmra.mrb[0].mxu0 %v9367
    %v9762 = vpop.f32.mrb[0].mxu0
    %v9763 = vadd.f32 0.0, %v9762
    %v9764 = vpop.f32.mrb[0].mxu0
    %v9765 = vpop.f32.mrb[0].mxu0
    %v9766 = vadd.f32 0.0, %v9765
    %v9767 = vpop.f32.mrb[0].mxu0
    %9768 = vmatprep.mubr.bf16.mxu0 0
    %9769 = vmatmul.mubr.bf16.gmra.mrb[0].mxu0 %v9370
    %v9770 = vpop.f32.mrb[0].mxu0
    %v9771 = vadd.f32 0.0, %v9770
    %v9772 = vpop.f32.mrb[0].mxu0
    %v9773 = vpop.f32.mrb[0].mxu0
    %v9774 = vadd.f32 0.0, %v9773
    %v9775 = vpop.f32.mrb[0].mxu0
    %9776 = vmatprep.mubr.bf16.mxu0 0
    %9777 = vmatmul.mubr.bf16.gmra.mrb[0].mxu0 %v9373
    %v9778 = vpop.f32.mrb[0].mxu0
    %v9779 = vadd.f32 0.0, %v9778
    %v9780 = vpop.f32.mrb[0].mxu0
    %v9781 = vpop.f32.mrb[0].mxu0
    %v9782 = vadd.f32 0.0, %v9781
    %v9783 = vpop.f32.mrb[0].mxu0
    %9784 = vmatprep.mubr.bf16.mxu0 0
    %9785 = vmatmul.mubr.bf16.gmra.mrb[0].mxu0 %v9376
    %v9786 = vpop.f32.mrb[0].mxu0
    %v9787 = vadd.f32 0.0, %v9786
    %v9788 = vpop.f32.mrb[0].mxu0
    %v9789 = vpop.f32.mrb[0].mxu0
    %v9790 = vadd.f32 0.0, %v9789
    %v9791 = vpop.f32.mrb[0].mxu0
    %9792 = vmatprep.mubr.bf16.mxu0 0
    %9793 = vmatmul.mubr.bf16.gmra.mrb[0].mxu0 %v9379
    %v9794 = vpop.f32.mrb[0].mxu0
    %v9795 = vadd.f32 0.0, %v9794
    %v9796 = vpop.f32.mrb[0].mxu0
    %v9797 = vpop.f32.mrb[0].mxu0
    %v9798 = vadd.f32 0.0, %v9797
    %v9799 = vpop.f32.mrb[0].mxu0
    %9800 = vmatprep.mubr.bf16.mxu0 0
    %9801 = vmatmul.mubr.bf16.gmra.mrb[0].mxu0 %v9382
    %v9802 = vpop.f32.mrb[0].mxu0
    %v9803 = vadd.f32 0.0, %v9802
    %v9804 = vpop.f32.mrb[0].mxu0
    %v9805 = vpop.f32.mrb[0].mxu0
    %v9806 = vadd.f32 0.0, %v9805
    %v9807 = vpop.f32.mrb[0].mxu0
    %9808 = vmatprep.mubr.bf16.mxu0 0
    %9809 = vmatmul.mubr.bf16.gmra.mrb[0].mxu0 %v9385
    %v9810 = vpop.f32.mrb[0].mxu0
    %v9811 = vadd.f32 0.0, %v9810
    %v9812 = vpop.f32.mrb[0].mxu0
    %v9813 = vpop.f32.mrb[0].mxu0
    %v9814 = vadd.f32 0.0, %v9813
    %v9815 = vpop.f32.mrb[0].mxu0
    %9816 = vmatprep.mubr.bf16.mxu0 0
    %9817 = vmatmul.mubr.bf16.gmra.mrb[0].mxu0 %v9388
    %v9818 = vpop.f32.mrb[0].mxu0
    %v9819 = vadd.f32 0.0, %v9818
    %v9820 = vpop.f32.mrb[0].mxu0
    %v9821 = vpop.f32.mrb[0].mxu0
    %v9822 = vadd.f32 0.0, %v9821
    %v9823 = vpop.f32.mrb[0].mxu0
    %9824 = vmatprep.mubr.bf16.mxu0 0
    %9825 = vmatmul.mubr.bf16.gmra.mrb[0].mxu0 %v9391
    %v9826 = vpop.f32.mrb[0].mxu0
    %v9827 = vadd.f32 0.0, %v9826
    %v9828 = vpop.f32.mrb[0].mxu0
    %v9829 = vpop.f32.mrb[0].mxu0
    %v9830 = vadd.f32 0.0, %v9829
    %v9831 = vpop.f32.mrb[0].mxu0
    %9832 = vmatprep.mubr.bf16.mxu0 0
    %9833 = vmatmul.mubr.bf16.gmra.mrb[0].mxu0 %v9394
    %v9834 = vpop.f32.mrb[0].mxu0
    %v9835 = vadd.f32 0.0, %v9834
    %v9836 = vpop.f32.mrb[0].mxu0
    %v9837 = vpop.f32.mrb[0].mxu0
    %v9838 = vadd.f32 0.0, %v9837
    %v9839 = vpop.f32.mrb[0].mxu0
    %9840 = vmatprep.mubr.bf16.mxu0 0
    %9841 = vmatmul.mubr.bf16.gmra.mrb[0].mxu0 %v9397
    %v9842 = vpop.f32.mrb[0].mxu0
    %v9843 = vadd.f32 0.0, %v9842
    %v9844 = vpop.f32.mrb[0].mxu0
    %v9845 = vpop.f32.mrb[0].mxu0
    %v9846 = vadd.f32 0.0, %v9845
    %v9847 = vpop.f32.mrb[0].mxu0
    %9848 = vmatprep.mubr.bf16.mxu0 0
    %9849 = vmatmul.mubr.bf16.gmra.mrb[0].mxu0 %v9400
    %v9850 = vpop.f32.mrb[0].mxu0
    %v9851 = vadd.f32 0.0, %v9850
    %v9852 = vpop.f32.mrb[0].mxu0
    %v9853 = vpop.f32.mrb[0].mxu0
    %v9854 = vadd.f32 0.0, %v9853
    %v9855 = vpop.f32.mrb[0].mxu0
    %9856 = vmatprep.mubr.bf16.mxu0 0
    %9857 = vmatmul.mubr.bf16.gmra.mrb[0].mxu0 %v9403
    %v9858 = vpop.f32.mrb[0].mxu0
    %v9859 = vadd.f32 0.0, %v9858
    %v9860 = vpop.f32.mrb[0].mxu0
    %v9861 = vpop.f32.mrb[0].mxu0
    %v9862 = vadd.f32 0.0, %v9861
    %v9863 = vpop.f32.mrb[0].mxu0
    %9864 = vmatprep.mubr.bf16.mxu0 0
    %9865 = vmatmul.mubr.bf16.gmra.mrb[0].mxu0 %v9406
    %v9866 = vpop.f32.mrb[0].mxu0
    %v9867 = vadd.f32 0.0, %v9866
    %v9868 = vpop.f32.mrb[0].mxu0
    %v9869 = vpop.f32.mrb[0].mxu0
    %v9870 = vadd.f32 0.0, %v9869
    %v9871 = vpop.f32.mrb[0].mxu0
    %9872 = vdwg.mxu0
    %v9873 = vadd.f32 %v8959, %v9443
    %v9874 = vadd.f32 %v8960, %v9446
    %v9875 = vadd.f32 %v8961, %v9451
    %v9876 = vadd.f32 %v8962, %v9454
    %v9877 = vadd.f32 %v8963, %v9459
    %v9878 = vadd.f32 %v8964, %v9462
    %v9879 = vadd.f32 %v8965, %v9467
    %v9880 = vadd.f32 %v8966, %v9470
    %v9881 = vadd.f32 %v8967, %v9475
    %v9882 = vadd.f32 %v8968, %v9478
    %v9883 = vadd.f32 %v8969, %v9483
    %v9884 = vadd.f32 %v8970, %v9486
    %v9885 = vadd.f32 %v8971, %v9491
    %v9886 = vadd.f32 %v8972, %v9494
    %v9887 = vadd.f32 %v8973, %v9499
    %v9888 = vadd.f32 %v8974, %v9502
    %v9889 = vadd.f32 %v8975, %v9507
    %v9890 = vadd.f32 %v8976, %v9510
    %v9891 = vadd.f32 %v8977, %v9515
    %v9892 = vadd.f32 %v8978, %v9518
    %v9893 = vadd.f32 %v8979, %v9523
    %v9894 = vadd.f32 %v8980, %v9526
    %v9895 = vadd.f32 %v8981, %v9531
    %v9896 = vadd.f32 %v8982, %v9534
    %v9897 = vadd.f32 %v8983, %v9539
    %v9898 = vadd.f32 %v8984, %v9542
    %v9899 = vadd.f32 %v8985, %v9547
    %v9900 = vadd.f32 %v8986, %v9550
    %v9901 = vadd.f32 %v8987, %v9555
    %v9902 = vadd.f32 %v8988, %v9558
    %v9903 = vadd.f32 %v8989, %v9563
    %v9904 = vadd.f32 %v8990, %v9566
    %v9905 = vadd.f32 %v8991, %v9571
    %v9906 = vadd.f32 %v8992, %v9574
    %v9907 = vadd.f32 %v8993, %v9579
    %v9908 = vadd.f32 %v8994, %v9582
    %v9909 = vadd.f32 %v8995, %v9587
    %v9910 = vadd.f32 %v8996, %v9590
    %v9911 = vadd.f32 %v8997, %v9595
    %v9912 = vadd.f32 %v8998, %v9598
    %v9913 = vadd.f32 %v8999, %v9603
    %v9914 = vadd.f32 %v9000, %v9606
    %v9915 = vadd.f32 %v9001, %v9611
    %v9916 = vadd.f32 %v9002, %v9614
    %v9917 = vadd.f32 %v9003, %v9619
    %v9918 = vadd.f32 %v9004, %v9622
    %v9919 = vadd.f32 %v9005, %v9627
    %v9920 = vadd.f32 %v9006, %v9630
    %v9921 = vadd.f32 %v9007, %v9635
    %v9922 = vadd.f32 %v9008, %v9638
    %v9923 = vadd.f32 %v9009, %v9643
    %v9924 = vadd.f32 %v9010, %v9646
    %v9925 = vadd.f32 %v9011, %v9651
    %v9926 = vadd.f32 %v9012, %v9654
    %v9927 = vadd.f32 %v9013, %v9659
    %v9928 = vadd.f32 %v9014, %v9662
    %v9929 = vadd.f32 %v9015, %v9667
    %v9930 = vadd.f32 %v9016, %v9670
    %v9931 = vadd.f32 %v9017, %v9675
    %v9932 = vadd.f32 %v9018, %v9678
    %v9933 = vadd.f32 %v9019, %v9683
    %v9934 = vadd.f32 %v9020, %v9686
    %v9935 = vadd.f32 %v9021, %v9691
    %v9936 = vadd.f32 %v9022, %v9694
    %v9937 = vadd.f32 %v9023, %v9699
    %v9938 = vadd.f32 %v9024, %v9702
    %v9939 = vadd.f32 %v9025, %v9707
    %v9940 = vadd.f32 %v9026, %v9710
    %v9941 = vadd.f32 %v9027, %v9715
    %v9942 = vadd.f32 %v9028, %v9718
    %v9943 = vadd.f32 %v9029, %v9723
    %v9944 = vadd.f32 %v9030, %v9726
    %v9945 = vadd.f32 %v9031, %v9731
    %v9946 = vadd.f32 %v9032, %v9734
    %v9947 = vadd.f32 %v9033, %v9739
    %v9948 = vadd.f32 %v9034, %v9742
    %v9949 = vadd.f32 %v9035, %v9747
    %v9950 = vadd.f32 %v9036, %v9750
    %v9951 = vadd.f32 %v9037, %v9755
    %v9952 = vadd.f32 %v9038, %v9758
    %v9953 = vadd.f32 %v9039, %v9763
    %v9954 = vadd.f32 %v9040, %v9766
    %v9955 = vadd.f32 %v9041, %v9771
    %v9956 = vadd.f32 %v9042, %v9774
    %v9957 = vadd.f32 %v9043, %v9779
    %v9958 = vadd.f32 %v9044, %v9782
    %v9959 = vadd.f32 %v9045, %v9787
    %v9960 = vadd.f32 %v9046, %v9790
    %v9961 = vadd.f32 %v9047, %v9795
    %v9962 = vadd.f32 %v9048, %v9798
    %v9963 = vadd.f32 %v9049, %v9803
    %v9964 = vadd.f32 %v9050, %v9806
    %v9965 = vadd.f32 %v9051, %v9811
    %v9966 = vadd.f32 %v9052, %v9814
    %v9967 = vadd.f32 %v9053, %v9819
    %v9968 = vadd.f32 %v9054, %v9822
    %v9969 = vadd.f32 %v9055, %v9827
    %v9970 = vadd.f32 %v9056, %v9830
    %v9971 = vadd.f32 %v9057, %v9835
    %v9972 = vadd.f32 %v9058, %v9838
    %v9973 = vadd.f32 %v9059, %v9843
    %v9974 = vadd.f32 %v9060, %v9846
    %v9975 = vadd.f32 %v9061, %v9851
    %v9976 = vadd.f32 %v9062, %v9854
    %v9977 = vadd.f32 %v9063, %v9859
    %v9978 = vadd.f32 %v9064, %v9862
    %v9979 = vadd.f32 %v9065, %v9867
    %v9980 = vadd.f32 %v9066, %v9870
    %v9981 = vld [vmem:[%s5] sm:$0x1]
    %v9983 = vlaneseq
    %v9984 = vshrl.u32 %v9983, 7
    %v9985 = vsub.s32 0, %v9984
    %v9986 = vrot.slane %v9981, %v9985
    %v9988 = vadd.f32 %v9873, %v9986
    %v9989 = vadd.f32 %v9874, %v9986
    %v9990 = vadd.f32 %v9875, %v9986
    %v9991 = vadd.f32 %v9876, %v9986
    %v9992 = vadd.f32 %v9877, %v9986
    %v9993 = vadd.f32 %v9878, %v9986
    %v9994 = vadd.f32 %v9879, %v9986
    %v9995 = vadd.f32 %v9880, %v9986
    %v9996 = vadd.f32 %v9881, %v9986
    %v9997 = vadd.f32 %v9882, %v9986
    %v9998 = vadd.f32 %v9883, %v9986
    %v9999 = vadd.f32 %v9884, %v9986
    %v10000 = vadd.f32 %v9885, %v9986
    %v10001 = vadd.f32 %v9886, %v9986
    %v10002 = vadd.f32 %v9887, %v9986
    %v10003 = vadd.f32 %v9888, %v9986
    %v10004 = vadd.f32 %v9889, %v9986
    %v10005 = vadd.f32 %v9890, %v9986
    %v10006 = vadd.f32 %v9891, %v9986
    %v10007 = vadd.f32 %v9892, %v9986
    %v10008 = vadd.f32 %v9893, %v9986
    %v10009 = vadd.f32 %v9894, %v9986
    %v10010 = vadd.f32 %v9895, %v9986
    %v10011 = vadd.f32 %v9896, %v9986
    %v10012 = vadd.f32 %v9897, %v9986
    %v10013 = vadd.f32 %v9898, %v9986
    %v10014 = vadd.f32 %v9899, %v9986
    %v10015 = vadd.f32 %v9900, %v9986
    %v10016 = vadd.f32 %v9901, %v9986
    %v10017 = vadd.f32 %v9902, %v9986
    %v10018 = vadd.f32 %v9903, %v9986
    %v10019 = vadd.f32 %v9904, %v9986
    %v10020 = vadd.f32 %v9905, %v9986
    %v10021 = vadd.f32 %v9906, %v9986
    %v10022 = vadd.f32 %v9907, %v9986
    %v10023 = vadd.f32 %v9908, %v9986
    %v10024 = vadd.f32 %v9909, %v9986
    %v10025 = vadd.f32 %v9910, %v9986
    %v10026 = vadd.f32 %v9911, %v9986
    %v10027 = vadd.f32 %v9912, %v9986
    %v10028 = vadd.f32 %v9913, %v9986
    %v10029 = vadd.f32 %v9914, %v9986
    %v10030 = vadd.f32 %v9915, %v9986
    %v10031 = vadd.f32 %v9916, %v9986
    %v10032 = vadd.f32 %v9917, %v9986
    %v10033 = vadd.f32 %v9918, %v9986
    %v10034 = vadd.f32 %v9919, %v9986
    %v10035 = vadd.f32 %v9920, %v9986
    %v10036 = vadd.f32 %v9921, %v9986
    %v10037 = vadd.f32 %v9922, %v9986
    %v10038 = vadd.f32 %v9923, %v9986
    %v10039 = vadd.f32 %v9924, %v9986
    %v10040 = vadd.f32 %v9925, %v9986
    %v10041 = vadd.f32 %v9926, %v9986
    %v10042 = vadd.f32 %v9927, %v9986
    %v10043 = vadd.f32 %v9928, %v9986
    %v10044 = vadd.f32 %v9929, %v9986
    %v10045 = vadd.f32 %v9930, %v9986
    %v10046 = vadd.f32 %v9931, %v9986
    %v10047 = vadd.f32 %v9932, %v9986
    %v10048 = vadd.f32 %v9933, %v9986
    %v10049 = vadd.f32 %v9934, %v9986
    %v10050 = vadd.f32 %v9935, %v9986
    %v10051 = vadd.f32 %v9936, %v9986
    %v10052 = vadd.f32 %v9937, %v9986
    %v10053 = vadd.f32 %v9938, %v9986
    %v10054 = vadd.f32 %v9939, %v9986
    %v10055 = vadd.f32 %v9940, %v9986
    %v10056 = vadd.f32 %v9941, %v9986
    %v10057 = vadd.f32 %v9942, %v9986
    %v10058 = vadd.f32 %v9943, %v9986
    %v10059 = vadd.f32 %v9944, %v9986
    %v10060 = vadd.f32 %v9945, %v9986
    %v10061 = vadd.f32 %v9946, %v9986
    %v10062 = vadd.f32 %v9947, %v9986
    %v10063 = vadd.f32 %v9948, %v9986
    %v10064 = vadd.f32 %v9949, %v9986
    %v10065 = vadd.f32 %v9950, %v9986
    %v10066 = vadd.f32 %v9951, %v9986
    %v10067 = vadd.f32 %v9952, %v9986
    %v10068 = vadd.f32 %v9953, %v9986
    %v10069 = vadd.f32 %v9954, %v9986
    %v10070 = vadd.f32 %v9955, %v9986
    %v10071 = vadd.f32 %v9956, %v9986
    %v10072 = vadd.f32 %v9957, %v9986
    %v10073 = vadd.f32 %v9958, %v9986
    %v10074 = vadd.f32 %v9959, %v9986
    %v10075 = vadd.f32 %v9960, %v9986
    %v10076 = vadd.f32 %v9961, %v9986
    %v10077 = vadd.f32 %v9962, %v9986
    %v10078 = vadd.f32 %v9963, %v9986
    %v10079 = vadd.f32 %v9964, %v9986
    %v10080 = vadd.f32 %v9965, %v9986
    %v10081 = vadd.f32 %v9966, %v9986
    %v10082 = vadd.f32 %v9967, %v9986
    %v10083 = vadd.f32 %v9968, %v9986
    %v10084 = vadd.f32 %v9969, %v9986
    %v10085 = vadd.f32 %v9970, %v9986
    %v10086 = vadd.f32 %v9971, %v9986
    %v10087 = vadd.f32 %v9972, %v9986
    %v10088 = vadd.f32 %v9973, %v9986
    %v10089 = vadd.f32 %v9974, %v9986
    %v10090 = vadd.f32 %v9975, %v9986
    %v10091 = vadd.f32 %v9976, %v9986
    %v10092 = vadd.f32 %v9977, %v9986
    %v10093 = vadd.f32 %v9978, %v9986
    %v10094 = vadd.f32 %v9979, %v9986
    %v10095 = vadd.f32 %v9980, %v9986
    %v10096 = vmax.f32 %v9988, 0.0
    %v10097 = vmax.f32 %v9989, 0.0
    %v10098 = vmax.f32 %v9990, 0.0
    %v10099 = vmax.f32 %v9991, 0.0
    %v10100 = vmax.f32 %v9992, 0.0
    %v10101 = vmax.f32 %v9993, 0.0
    %v10102 = vmax.f32 %v9994, 0.0
    %v10103 = vmax.f32 %v9995, 0.0
    %v10104 = vmax.f32 %v9996, 0.0
    %v10105 = vmax.f32 %v9997, 0.0
    %v10106 = vmax.f32 %v9998, 0.0
    %v10107 = vmax.f32 %v9999, 0.0
    %v10108 = vmax.f32 %v10000, 0.0
    %v10109 = vmax.f32 %v10001, 0.0
    %v10110 = vmax.f32 %v10002, 0.0
    %v10111 = vmax.f32 %v10003, 0.0
    %v10112 = vmax.f32 %v10004, 0.0
    %v10113 = vmax.f32 %v10005, 0.0
    %v10114 = vmax.f32 %v10006, 0.0
    %v10115 = vmax.f32 %v10007, 0.0
    %v10116 = vmax.f32 %v10008, 0.0
    %v10117 = vmax.f32 %v10009, 0.0
    %v10118 = vmax.f32 %v10010, 0.0
    %v10119 = vmax.f32 %v10011, 0.0
    %v10120 = vmax.f32 %v10012, 0.0
    %v10121 = vmax.f32 %v10013, 0.0
    %v10122 = vmax.f32 %v10014, 0.0
    %v10123 = vmax.f32 %v10015, 0.0
    %v10124 = vmax.f32 %v10016, 0.0
    %v10125 = vmax.f32 %v10017, 0.0
    %v10126 = vmax.f32 %v10018, 0.0
    %v10127 = vmax.f32 %v10019, 0.0
    %v10128 = vmax.f32 %v10020, 0.0
    %v10129 = vmax.f32 %v10021, 0.0
    %v10130 = vmax.f32 %v10022, 0.0
    %v10131 = vmax.f32 %v10023, 0.0
    %v10132 = vmax.f32 %v10024, 0.0
    %v10133 = vmax.f32 %v10025, 0.0
    %v10134 = vmax.f32 %v10026, 0.0
    %v10135 = vmax.f32 %v10027, 0.0
    %v10136 = vmax.f32 %v10028, 0.0
    %v10137 = vmax.f32 %v10029, 0.0
    %v10138 = vmax.f32 %v10030, 0.0
    %v10139 = vmax.f32 %v10031, 0.0
    %v10140 = vmax.f32 %v10032, 0.0
    %v10141 = vmax.f32 %v10033, 0.0
    %v10142 = vmax.f32 %v10034, 0.0
    %v10143 = vmax.f32 %v10035, 0.0
    %v10144 = vmax.f32 %v10036, 0.0
    %v10145 = vmax.f32 %v10037, 0.0
    %v10146 = vmax.f32 %v10038, 0.0
    %v10147 = vmax.f32 %v10039, 0.0
    %v10148 = vmax.f32 %v10040, 0.0
    %v10149 = vmax.f32 %v10041, 0.0
    %v10150 = vmax.f32 %v10042, 0.0
    %v10151 = vmax.f32 %v10043, 0.0
    %v10152 = vmax.f32 %v10044, 0.0
    %v10153 = vmax.f32 %v10045, 0.0
    %v10154 = vmax.f32 %v10046, 0.0
    %v10155 = vmax.f32 %v10047, 0.0
    %v10156 = vmax.f32 %v10048, 0.0
    %v10157 = vmax.f32 %v10049, 0.0
    %v10158 = vmax.f32 %v10050, 0.0
    %v10159 = vmax.f32 %v10051, 0.0
    %v10160 = vmax.f32 %v10052, 0.0
    %v10161 = vmax.f32 %v10053, 0.0
    %v10162 = vmax.f32 %v10054, 0.0
    %v10163 = vmax.f32 %v10055, 0.0
    %v10164 = vmax.f32 %v10056, 0.0
    %v10165 = vmax.f32 %v10057, 0.0
    %v10166 = vmax.f32 %v10058, 0.0
    %v10167 = vmax.f32 %v10059, 0.0
    %v10168 = vmax.f32 %v10060, 0.0
    %v10169 = vmax.f32 %v10061, 0.0
    %v10170 = vmax.f32 %v10062, 0.0
    %v10171 = vmax.f32 %v10063, 0.0
    %v10172 = vmax.f32 %v10064, 0.0
    %v10173 = vmax.f32 %v10065, 0.0
    %v10174 = vmax.f32 %v10066, 0.0
    %v10175 = vmax.f32 %v10067, 0.0
    %v10176 = vmax.f32 %v10068, 0.0
    %v10177 = vmax.f32 %v10069, 0.0
    %v10178 = vmax.f32 %v10070, 0.0
    %v10179 = vmax.f32 %v10071, 0.0
    %v10180 = vmax.f32 %v10072, 0.0
    %v10181 = vmax.f32 %v10073, 0.0
    %v10182 = vmax.f32 %v10074, 0.0
    %v10183 = vmax.f32 %v10075, 0.0
    %v10184 = vmax.f32 %v10076, 0.0
    %v10185 = vmax.f32 %v10077, 0.0
    %v10186 = vmax.f32 %v10078, 0.0
    %v10187 = vmax.f32 %v10079, 0.0
    %v10188 = vmax.f32 %v10080, 0.0
    %v10189 = vmax.f32 %v10081, 0.0
    %v10190 = vmax.f32 %v10082, 0.0
    %v10191 = vmax.f32 %v10083, 0.0
    %v10192 = vmax.f32 %v10084, 0.0
    %v10193 = vmax.f32 %v10085, 0.0
    %v10194 = vmax.f32 %v10086, 0.0
    %v10195 = vmax.f32 %v10087, 0.0
    %v10196 = vmax.f32 %v10088, 0.0
    %v10197 = vmax.f32 %v10089, 0.0
    %v10198 = vmax.f32 %v10090, 0.0
    %v10199 = vmax.f32 %v10091, 0.0
    %v10200 = vmax.f32 %v10092, 0.0
    %v10201 = vmax.f32 %v10093, 0.0
    %v10202 = vmax.f32 %v10094, 0.0
    %v10203 = vmax.f32 %v10095, 0.0
    %v10204 = vpack.c.bf16 %v10097, %v10096
    %v10205 = vpack.c.bf16 %v10099, %v10098
    %v10206 = vpack.c.bf16 %v10101, %v10100
    %v10207 = vpack.c.bf16 %v10103, %v10102
    %v10208 = vpack.c.bf16 %v10105, %v10104
    %v10209 = vpack.c.bf16 %v10107, %v10106
    %v10210 = vpack.c.bf16 %v10109, %v10108
    %v10211 = vpack.c.bf16 %v10111, %v10110
    %v10212 = vpack.c.bf16 %v10113, %v10112
    %v10213 = vpack.c.bf16 %v10115, %v10114
    %v10214 = vpack.c.bf16 %v10117, %v10116
    %v10215 = vpack.c.bf16 %v10119, %v10118
    %v10216 = vpack.c.bf16 %v10121, %v10120
    %v10217 = vpack.c.bf16 %v10123, %v10122
    %v10218 = vpack.c.bf16 %v10125, %v10124
    %v10219 = vpack.c.bf16 %v10127, %v10126
    %v10220 = vpack.c.bf16 %v10129, %v10128
    %v10221 = vpack.c.bf16 %v10131, %v10130
    %v10222 = vpack.c.bf16 %v10133, %v10132
    %v10223 = vpack.c.bf16 %v10135, %v10134
    %v10224 = vpack.c.bf16 %v10137, %v10136
    %v10225 = vpack.c.bf16 %v10139, %v10138
    %v10226 = vpack.c.bf16 %v10141, %v10140
    %v10227 = vpack.c.bf16 %v10143, %v10142
    %v10228 = vpack.c.bf16 %v10145, %v10144
    %v10229 = vpack.c.bf16 %v10147, %v10146
    %v10230 = vpack.c.bf16 %v10149, %v10148
    %v10231 = vpack.c.bf16 %v10151, %v10150
    %v10232 = vpack.c.bf16 %v10153, %v10152
    %v10233 = vpack.c.bf16 %v10155, %v10154
    %v10234 = vpack.c.bf16 %v10157, %v10156
    %v10235 = vpack.c.bf16 %v10159, %v10158
    %v10236 = vpack.c.bf16 %v10161, %v10160
    %v10237 = vpack.c.bf16 %v10163, %v10162
    %v10238 = vpack.c.bf16 %v10165, %v10164
    %v10239 = vpack.c.bf16 %v10167, %v10166
    %v10240 = vpack.c.bf16 %v10169, %v10168
    %v10241 = vpack.c.bf16 %v10171, %v10170
    %v10242 = vpack.c.bf16 %v10173, %v10172
    %v10243 = vpack.c.bf16 %v10175, %v10174
    %v10244 = vpack.c.bf16 %v10177, %v10176
    %v10245 = vpack.c.bf16 %v10179, %v10178
    %v10246 = vpack.c.bf16 %v10181, %v10180
    %v10247 = vpack.c.bf16 %v10183, %v10182
    %v10248 = vpack.c.bf16 %v10185, %v10184
    %v10249 = vpack.c.bf16 %v10187, %v10186
    %v10250 = vpack.c.bf16 %v10189, %v10188
    %v10251 = vpack.c.bf16 %v10191, %v10190
    %v10252 = vpack.c.bf16 %v10193, %v10192
    %v10253 = vpack.c.bf16 %v10195, %v10194
    %v10254 = vpack.c.bf16 %v10197, %v10196
    %v10255 = vpack.c.bf16 %v10199, %v10198
    %v10256 = vpack.c.bf16 %v10201, %v10200
    %v10257 = vpack.c.bf16 %v10203, %v10202
    %v10258 = vld [vmem:[%s6] sm:$0xf]
    %v10259 = vld [vmem:[%s6 + $0x4] sm:$0xf]
    %v10260 = vld [vmem:[%s6 + $0x8] sm:$0xf]
    %v10261 = vld [vmem:[%s6 + $0xc] sm:$0xf]
    %v10262 = vld [vmem:[%s7] sm:$0x1]
    %v10264 = vlaneseq
    %v10265 = vshrl.u32 %v10264, 7
    %v10266 = vsub.s32 0, %v10265
    %v10267 = vrot.slane %v10262, %v10266
    %v10273 = vunpack.c.l.b16 %v10258
    %v10274 = vunpack.c.l.b16 %v10259
    %v10275 = vunpack.c.l.b16 %v10260
    %v10276 = vunpack.c.l.b16 %v10261
    %v10277 = vpack.c.b16 %v10274, %v10273
    %v10278 = vpack.c.b16 %v10276, %v10275
    %v10282 = vsel %vm1863, %v10204, 0
    %v10285 = vsel %vm1863, %v10205, 0
    %v10288 = vsel %vm1863, %v10206, 0
    %v10291 = vsel %vm1863, %v10207, 0
    %v10294 = vsel %vm1863, %v10208, 0
    %v10297 = vsel %vm1863, %v10209, 0
    %v10300 = vsel %vm1863, %v10210, 0
    %v10303 = vsel %vm1863, %v10211, 0
    %v10306 = vsel %vm1863, %v10212, 0
    %v10309 = vsel %vm1863, %v10213, 0
    %v10312 = vsel %vm1863, %v10214, 0
    %v10315 = vsel %vm1863, %v10215, 0
    %v10318 = vsel %vm1863, %v10216, 0
    %v10321 = vsel %vm1863, %v10217, 0
    %v10324 = vsel %vm1863, %v10218, 0
    %v10327 = vsel %vm1863, %v10219, 0
    %v10330 = vsel %vm1863, %v10220, 0
    %v10333 = vsel %vm1863, %v10221, 0
    %v10336 = vsel %vm1863, %v10222, 0
    %v10339 = vsel %vm1863, %v10223, 0
    %v10342 = vsel %vm1863, %v10224, 0
    %v10345 = vsel %vm1863, %v10225, 0
    %v10348 = vsel %vm1863, %v10226, 0
    %v10351 = vsel %vm1863, %v10227, 0
    %v10354 = vsel %vm1863, %v10228, 0
    %v10357 = vsel %vm1863, %v10229, 0
    %v10360 = vsel %vm1863, %v10230, 0
    %v10363 = vsel %vm1863, %v10231, 0
    %v10366 = vsel %vm1863, %v10232, 0
    %v10369 = vsel %vm1863, %v10233, 0
    %v10372 = vsel %vm1863, %v10234, 0
    %v10375 = vsel %vm1863, %v10235, 0
    %v10378 = vsel %vm1863, %v10236, 0
    %v10381 = vsel %vm1863, %v10237, 0
    %v10384 = vsel %vm1863, %v10238, 0
    %v10387 = vsel %vm1863, %v10239, 0
    %v10390 = vsel %vm1863, %v10240, 0
    %v10393 = vsel %vm1863, %v10241, 0
    %v10396 = vsel %vm1863, %v10242, 0
    %v10399 = vsel %vm1863, %v10243, 0
    %v10402 = vsel %vm1863, %v10244, 0
    %v10405 = vsel %vm1863, %v10245, 0
    %v10408 = vsel %vm1863, %v10246, 0
    %v10411 = vsel %vm1863, %v10247, 0
    %v10414 = vsel %vm1863, %v10248, 0
    %v10417 = vsel %vm1863, %v10249, 0
    %v10420 = vsel %vm1863, %v10250, 0
    %v10423 = vsel %vm1863, %v10251, 0
    %v10426 = vsel %vm1863, %v10252, 0
    %v10429 = vsel %vm1863, %v10253, 0
    %v10432 = vsel %vm1863, %v10254, 0
    %v10435 = vsel %vm1863, %v10255, 0
    %v10438 = vsel %vm1863, %v10256, 0
    %v10441 = vsel %vm1863, %v10257, 0
    %10443 = vmatprep.subr.bf16.mxu0 0
    %10444 = vmatpush1.bf16.msra.mxu0 %v10277
    %10445 = vmatprep.subr.bf16.mxu0 0
    %10446 = vmatpush1.bf16.msra.mxu0 %v10278
    %10447 = vmatprep.subr.bf16.mxu0 0
    %10448 = vmatpush1.bf16.msra.mxu0 0
    %10449 = vmatprep.subr.bf16.mxu0 0
    %10450 = vmatpush1.bf16.msra.mxu0 0
    %10451 = vmatprep.subr.bf16.mxu0 0
    %10452 = vmatpush1.bf16.msra.mxu0 0
    %10453 = vmatprep.subr.bf16.mxu0 0
    %10454 = vmatpush1.bf16.msra.mxu0 0
    %10455 = vmatprep.subr.bf16.mxu0 0
    %10456 = vmatpush1.bf16.msra.mxu0 0
    %10457 = vmatprep.subr.bf16.mxu0 0
    %10458 = vmatpush1.bf16.msra.mxu0 0
    %10459 = vmatprep.subr.bf16.mxu0 0
    %10460 = vmatpush1.bf16.msra.mxu0 0
    %10461 = vmatprep.subr.bf16.mxu0 0
    %10462 = vmatpush1.bf16.msra.mxu0 0
    %10463 = vmatprep.subr.bf16.mxu0 0
    %10464 = vmatpush1.bf16.msra.mxu0 0
    %10465 = vmatprep.subr.bf16.mxu0 0
    %10466 = vmatpush1.bf16.msra.mxu0 0
    %10467 = vmatprep.subr.bf16.mxu0 0
    %10468 = vmatpush1.bf16.msra.mxu0 0
    %10469 = vmatprep.subr.bf16.mxu0 0
    %10470 = vmatpush1.bf16.msra.mxu0 0
    %10471 = vmatprep.subr.bf16.mxu0 0
    %10472 = vmatpush1.bf16.msra.mxu0 0
    %10473 = vmatprep.subr.bf16.mxu0 0
    %10474 = vmatpush1.bf16.msra.mxu0 0
    %10475 = vmatprep.mubr.bf16.mxu0 0
    %10476 = vmatmul.mubr.bf16.gmra.mrb[0].mxu0 %v10282
    %v10477 = vpop.f32.mrb[0].mxu0
    %v10478 = vadd.f32 %v10267, %v10477
    %v10479 = vpop.f32.mrb[0].mxu0
    %v10480 = vpop.f32.mrb[0].mxu0
    %v10481 = vadd.f32 %v10267, %v10480
    %v10482 = vpop.f32.mrb[0].mxu0
    %10483 = vmatprep.mubr.bf16.mxu0 0
    %10484 = vmatmul.mubr.bf16.gmra.mrb[0].mxu0 %v10285
    %v10485 = vpop.f32.mrb[0].mxu0
    %v10486 = vadd.f32 %v10267, %v10485
    %v10487 = vpop.f32.mrb[0].mxu0
    %v10488 = vpop.f32.mrb[0].mxu0
    %v10489 = vadd.f32 %v10267, %v10488
    %v10490 = vpop.f32.mrb[0].mxu0
    %10491 = vmatprep.mubr.bf16.mxu0 0
    %10492 = vmatmul.mubr.bf16.gmra.mrb[0].mxu0 %v10288
    %v10493 = vpop.f32.mrb[0].mxu0
    %v10494 = vadd.f32 %v10267, %v10493
    %v10495 = vpop.f32.mrb[0].mxu0
    %v10496 = vpop.f32.mrb[0].mxu0
    %v10497 = vadd.f32 %v10267, %v10496
    %v10498 = vpop.f32.mrb[0].mxu0
    %10499 = vmatprep.mubr.bf16.mxu0 0
    %10500 = vmatmul.mubr.bf16.gmra.mrb[0].mxu0 %v10291
    %v10501 = vpop.f32.mrb[0].mxu0
    %v10502 = vadd.f32 %v10267, %v10501
    %v10503 = vpop.f32.mrb[0].mxu0
    %v10504 = vpop.f32.mrb[0].mxu0
    %v10505 = vadd.f32 %v10267, %v10504
    %v10506 = vpop.f32.mrb[0].mxu0
    %10507 = vmatprep.mubr.bf16.mxu0 0
    %10508 = vmatmul.mubr.bf16.gmra.mrb[0].mxu0 %v10294
    %v10509 = vpop.f32.mrb[0].mxu0
    %v10510 = vadd.f32 %v10267, %v10509
    %v10511 = vpop.f32.mrb[0].mxu0
    %v10512 = vpop.f32.mrb[0].mxu0
    %v10513 = vadd.f32 %v10267, %v10512
    %v10514 = vpop.f32.mrb[0].mxu0
    %10515 = vmatprep.mubr.bf16.mxu0 0
    %10516 = vmatmul.mubr.bf16.gmra.mrb[0].mxu0 %v10297
    %v10517 = vpop.f32.mrb[0].mxu0
    %v10518 = vadd.f32 %v10267, %v10517
    %v10519 = vpop.f32.mrb[0].mxu0
    %v10520 = vpop.f32.mrb[0].mxu0
    %v10521 = vadd.f32 %v10267, %v10520
    %v10522 = vpop.f32.mrb[0].mxu0
    %10523 = vmatprep.mubr.bf16.mxu0 0
    %10524 = vmatmul.mubr.bf16.gmra.mrb[0].mxu0 %v10300
    %v10525 = vpop.f32.mrb[0].mxu0
    %v10526 = vadd.f32 %v10267, %v10525
    %v10527 = vpop.f32.mrb[0].mxu0
    %v10528 = vpop.f32.mrb[0].mxu0
    %v10529 = vadd.f32 %v10267, %v10528
    %v10530 = vpop.f32.mrb[0].mxu0
    %10531 = vmatprep.mubr.bf16.mxu0 0
    %10532 = vmatmul.mubr.bf16.gmra.mrb[0].mxu0 %v10303
    %v10533 = vpop.f32.mrb[0].mxu0
    %v10534 = vadd.f32 %v10267, %v10533
    %v10535 = vpop.f32.mrb[0].mxu0
    %v10536 = vpop.f32.mrb[0].mxu0
    %v10537 = vadd.f32 %v10267, %v10536
    %v10538 = vpop.f32.mrb[0].mxu0
    %10539 = vmatprep.mubr.bf16.mxu0 0
    %10540 = vmatmul.mubr.bf16.gmra.mrb[0].mxu0 %v10306
    %v10541 = vpop.f32.mrb[0].mxu0
    %v10542 = vadd.f32 %v10267, %v10541
    %v10543 = vpop.f32.mrb[0].mxu0
    %v10544 = vpop.f32.mrb[0].mxu0
    %v10545 = vadd.f32 %v10267, %v10544
    %v10546 = vpop.f32.mrb[0].mxu0
    %10547 = vmatprep.mubr.bf16.mxu0 0
    %10548 = vmatmul.mubr.bf16.gmra.mrb[0].mxu0 %v10309
    %v10549 = vpop.f32.mrb[0].mxu0
    %v10550 = vadd.f32 %v10267, %v10549
    %v10551 = vpop.f32.mrb[0].mxu0
    %v10552 = vpop.f32.mrb[0].mxu0
    %v10553 = vadd.f32 %v10267, %v10552
    %v10554 = vpop.f32.mrb[0].mxu0
    %10555 = vmatprep.mubr.bf16.mxu0 0
    %10556 = vmatmul.mubr.bf16.gmra.mrb[0].mxu0 %v10312
    %v10557 = vpop.f32.mrb[0].mxu0
    %v10558 = vadd.f32 %v10267, %v10557
    %v10559 = vpop.f32.mrb[0].mxu0
    %v10560 = vpop.f32.mrb[0].mxu0
    %v10561 = vadd.f32 %v10267, %v10560
    %v10562 = vpop.f32.mrb[0].mxu0
    %10563 = vmatprep.mubr.bf16.mxu0 0
    %10564 = vmatmul.mubr.bf16.gmra.mrb[0].mxu0 %v10315
    %v10565 = vpop.f32.mrb[0].mxu0
    %v10566 = vadd.f32 %v10267, %v10565
    %v10567 = vpop.f32.mrb[0].mxu0
    %v10568 = vpop.f32.mrb[0].mxu0
    %v10569 = vadd.f32 %v10267, %v10568
    %v10570 = vpop.f32.mrb[0].mxu0
    %10571 = vmatprep.mubr.bf16.mxu0 0
    %10572 = vmatmul.mubr.bf16.gmra.mrb[0].mxu0 %v10318
    %v10573 = vpop.f32.mrb[0].mxu0
    %v10574 = vadd.f32 %v10267, %v10573
    %v10575 = vpop.f32.mrb[0].mxu0
    %v10576 = vpop.f32.mrb[0].mxu0
    %v10577 = vadd.f32 %v10267, %v10576
    %v10578 = vpop.f32.mrb[0].mxu0
    %10579 = vmatprep.mubr.bf16.mxu0 0
    %10580 = vmatmul.mubr.bf16.gmra.mrb[0].mxu0 %v10321
    %v10581 = vpop.f32.mrb[0].mxu0
    %v10582 = vadd.f32 %v10267, %v10581
    %v10583 = vpop.f32.mrb[0].mxu0
    %v10584 = vpop.f32.mrb[0].mxu0
    %v10585 = vadd.f32 %v10267, %v10584
    %v10586 = vpop.f32.mrb[0].mxu0
    %10587 = vmatprep.mubr.bf16.mxu0 0
    %10588 = vmatmul.mubr.bf16.gmra.mrb[0].mxu0 %v10324
    %v10589 = vpop.f32.mrb[0].mxu0
    %v10590 = vadd.f32 %v10267, %v10589
    %v10591 = vpop.f32.mrb[0].mxu0
    %v10592 = vpop.f32.mrb[0].mxu0
    %v10593 = vadd.f32 %v10267, %v10592
    %v10594 = vpop.f32.mrb[0].mxu0
    %10595 = vmatprep.mubr.bf16.mxu0 0
    %10596 = vmatmul.mubr.bf16.gmra.mrb[0].mxu0 %v10327
    %v10597 = vpop.f32.mrb[0].mxu0
    %v10598 = vadd.f32 %v10267, %v10597
    %v10599 = vpop.f32.mrb[0].mxu0
    %v10600 = vpop.f32.mrb[0].mxu0
    %v10601 = vadd.f32 %v10267, %v10600
    %v10602 = vpop.f32.mrb[0].mxu0
    %10603 = vmatprep.mubr.bf16.mxu0 0
    %10604 = vmatmul.mubr.bf16.gmra.mrb[0].mxu0 %v10330
    %v10605 = vpop.f32.mrb[0].mxu0
    %v10606 = vadd.f32 %v10267, %v10605
    %v10607 = vpop.f32.mrb[0].mxu0
    %v10608 = vpop.f32.mrb[0].mxu0
    %v10609 = vadd.f32 %v10267, %v10608
    %v10610 = vpop.f32.mrb[0].mxu0
    %10611 = vmatprep.mubr.bf16.mxu0 0
    %10612 = vmatmul.mubr.bf16.gmra.mrb[0].mxu0 %v10333
    %v10613 = vpop.f32.mrb[0].mxu0
    %v10614 = vadd.f32 %v10267, %v10613
    %v10615 = vpop.f32.mrb[0].mxu0
    %v10616 = vpop.f32.mrb[0].mxu0
    %v10617 = vadd.f32 %v10267, %v10616
    %v10618 = vpop.f32.mrb[0].mxu0
    %10619 = vmatprep.mubr.bf16.mxu0 0
    %10620 = vmatmul.mubr.bf16.gmra.mrb[0].mxu0 %v10336
    %v10621 = vpop.f32.mrb[0].mxu0
    %v10622 = vadd.f32 %v10267, %v10621
    %v10623 = vpop.f32.mrb[0].mxu0
    %v10624 = vpop.f32.mrb[0].mxu0
    %v10625 = vadd.f32 %v10267, %v10624
    %v10626 = vpop.f32.mrb[0].mxu0
    %10627 = vmatprep.mubr.bf16.mxu0 0
    %10628 = vmatmul.mubr.bf16.gmra.mrb[0].mxu0 %v10339
    %v10629 = vpop.f32.mrb[0].mxu0
    %v10630 = vadd.f32 %v10267, %v10629
    %v10631 = vpop.f32.mrb[0].mxu0
    %v10632 = vpop.f32.mrb[0].mxu0
    %v10633 = vadd.f32 %v10267, %v10632
    %v10634 = vpop.f32.mrb[0].mxu0
    %10635 = vmatprep.mubr.bf16.mxu0 0
    %10636 = vmatmul.mubr.bf16.gmra.mrb[0].mxu0 %v10342
    %v10637 = vpop.f32.mrb[0].mxu0
    %v10638 = vadd.f32 %v10267, %v10637
    %v10639 = vpop.f32.mrb[0].mxu0
    %v10640 = vpop.f32.mrb[0].mxu0
    %v10641 = vadd.f32 %v10267, %v10640
    %v10642 = vpop.f32.mrb[0].mxu0
    %10643 = vmatprep.mubr.bf16.mxu0 0
    %10644 = vmatmul.mubr.bf16.gmra.mrb[0].mxu0 %v10345
    %v10645 = vpop.f32.mrb[0].mxu0
    %v10646 = vadd.f32 %v10267, %v10645
    %v10647 = vpop.f32.mrb[0].mxu0
    %v10648 = vpop.f32.mrb[0].mxu0
    %v10649 = vadd.f32 %v10267, %v10648
    %v10650 = vpop.f32.mrb[0].mxu0
    %10651 = vmatprep.mubr.bf16.mxu0 0
    %10652 = vmatmul.mubr.bf16.gmra.mrb[0].mxu0 %v10348
    %v10653 = vpop.f32.mrb[0].mxu0
    %v10654 = vadd.f32 %v10267, %v10653
    %v10655 = vpop.f32.mrb[0].mxu0
    %v10656 = vpop.f32.mrb[0].mxu0
    %v10657 = vadd.f32 %v10267, %v10656
    %v10658 = vpop.f32.mrb[0].mxu0
    %10659 = vmatprep.mubr.bf16.mxu0 0
    %10660 = vmatmul.mubr.bf16.gmra.mrb[0].mxu0 %v10351
    %v10661 = vpop.f32.mrb[0].mxu0
    %v10662 = vadd.f32 %v10267, %v10661
    %v10663 = vpop.f32.mrb[0].mxu0
    %v10664 = vpop.f32.mrb[0].mxu0
    %v10665 = vadd.f32 %v10267, %v10664
    %v10666 = vpop.f32.mrb[0].mxu0
    %10667 = vmatprep.mubr.bf16.mxu0 0
    %10668 = vmatmul.mubr.bf16.gmra.mrb[0].mxu0 %v10354
    %v10669 = vpop.f32.mrb[0].mxu0
    %v10670 = vadd.f32 %v10267, %v10669
    %v10671 = vpop.f32.mrb[0].mxu0
    %v10672 = vpop.f32.mrb[0].mxu0
    %v10673 = vadd.f32 %v10267, %v10672
    %v10674 = vpop.f32.mrb[0].mxu0
    %10675 = vmatprep.mubr.bf16.mxu0 0
    %10676 = vmatmul.mubr.bf16.gmra.mrb[0].mxu0 %v10357
    %v10677 = vpop.f32.mrb[0].mxu0
    %v10678 = vadd.f32 %v10267, %v10677
    %v10679 = vpop.f32.mrb[0].mxu0
    %v10680 = vpop.f32.mrb[0].mxu0
    %v10681 = vadd.f32 %v10267, %v10680
    %v10682 = vpop.f32.mrb[0].mxu0
    %10683 = vmatprep.mubr.bf16.mxu0 0
    %10684 = vmatmul.mubr.bf16.gmra.mrb[0].mxu0 %v10360
    %v10685 = vpop.f32.mrb[0].mxu0
    %v10686 = vadd.f32 %v10267, %v10685
    %v10687 = vpop.f32.mrb[0].mxu0
    %v10688 = vpop.f32.mrb[0].mxu0
    %v10689 = vadd.f32 %v10267, %v10688
    %v10690 = vpop.f32.mrb[0].mxu0
    %10691 = vmatprep.mubr.bf16.mxu0 0
    %10692 = vmatmul.mubr.bf16.gmra.mrb[0].mxu0 %v10363
    %v10693 = vpop.f32.mrb[0].mxu0
    %v10694 = vadd.f32 %v10267, %v10693
    %v10695 = vpop.f32.mrb[0].mxu0
    %v10696 = vpop.f32.mrb[0].mxu0
    %v10697 = vadd.f32 %v10267, %v10696
    %v10698 = vpop.f32.mrb[0].mxu0
    %10699 = vmatprep.mubr.bf16.mxu0 0
    %10700 = vmatmul.mubr.bf16.gmra.mrb[0].mxu0 %v10366
    %v10701 = vpop.f32.mrb[0].mxu0
    %v10702 = vadd.f32 %v10267, %v10701
    %v10703 = vpop.f32.mrb[0].mxu0
    %v10704 = vpop.f32.mrb[0].mxu0
    %v10705 = vadd.f32 %v10267, %v10704
    %v10706 = vpop.f32.mrb[0].mxu0
    %10707 = vmatprep.mubr.bf16.mxu0 0
    %10708 = vmatmul.mubr.bf16.gmra.mrb[0].mxu0 %v10369
    %v10709 = vpop.f32.mrb[0].mxu0
    %v10710 = vadd.f32 %v10267, %v10709
    %v10711 = vpop.f32.mrb[0].mxu0
    %v10712 = vpop.f32.mrb[0].mxu0
    %v10713 = vadd.f32 %v10267, %v10712
    %v10714 = vpop.f32.mrb[0].mxu0
    %10715 = vmatprep.mubr.bf16.mxu0 0
    %10716 = vmatmul.mubr.bf16.gmra.mrb[0].mxu0 %v10372
    %v10717 = vpop.f32.mrb[0].mxu0
    %v10718 = vadd.f32 %v10267, %v10717
    %v10719 = vpop.f32.mrb[0].mxu0
    %v10720 = vpop.f32.mrb[0].mxu0
    %v10721 = vadd.f32 %v10267, %v10720
    %v10722 = vpop.f32.mrb[0].mxu0
    %10723 = vmatprep.mubr.bf16.mxu0 0
    %10724 = vmatmul.mubr.bf16.gmra.mrb[0].mxu0 %v10375
    %v10725 = vpop.f32.mrb[0].mxu0
    %v10726 = vadd.f32 %v10267, %v10725
    %v10727 = vpop.f32.mrb[0].mxu0
    %v10728 = vpop.f32.mrb[0].mxu0
    %v10729 = vadd.f32 %v10267, %v10728
    %v10730 = vpop.f32.mrb[0].mxu0
    %10731 = vmatprep.mubr.bf16.mxu0 0
    %10732 = vmatmul.mubr.bf16.gmra.mrb[0].mxu0 %v10378
    %v10733 = vpop.f32.mrb[0].mxu0
    %v10734 = vadd.f32 %v10267, %v10733
    %v10735 = vpop.f32.mrb[0].mxu0
    %v10736 = vpop.f32.mrb[0].mxu0
    %v10737 = vadd.f32 %v10267, %v10736
    %v10738 = vpop.f32.mrb[0].mxu0
    %10739 = vmatprep.mubr.bf16.mxu0 0
    %10740 = vmatmul.mubr.bf16.gmra.mrb[0].mxu0 %v10381
    %v10741 = vpop.f32.mrb[0].mxu0
    %v10742 = vadd.f32 %v10267, %v10741
    %v10743 = vpop.f32.mrb[0].mxu0
    %v10744 = vpop.f32.mrb[0].mxu0
    %v10745 = vadd.f32 %v10267, %v10744
    %v10746 = vpop.f32.mrb[0].mxu0
    %10747 = vmatprep.mubr.bf16.mxu0 0
    %10748 = vmatmul.mubr.bf16.gmra.mrb[0].mxu0 %v10384
    %v10749 = vpop.f32.mrb[0].mxu0
    %v10750 = vadd.f32 %v10267, %v10749
    %v10751 = vpop.f32.mrb[0].mxu0
    %v10752 = vpop.f32.mrb[0].mxu0
    %v10753 = vadd.f32 %v10267, %v10752
    %v10754 = vpop.f32.mrb[0].mxu0
    %10755 = vmatprep.mubr.bf16.mxu0 0
    %10756 = vmatmul.mubr.bf16.gmra.mrb[0].mxu0 %v10387
    %v10757 = vpop.f32.mrb[0].mxu0
    %v10758 = vadd.f32 %v10267, %v10757
    %v10759 = vpop.f32.mrb[0].mxu0
    %v10760 = vpop.f32.mrb[0].mxu0
    %v10761 = vadd.f32 %v10267, %v10760
    %v10762 = vpop.f32.mrb[0].mxu0
    %10763 = vmatprep.mubr.bf16.mxu0 0
    %10764 = vmatmul.mubr.bf16.gmra.mrb[0].mxu0 %v10390
    %v10765 = vpop.f32.mrb[0].mxu0
    %v10766 = vadd.f32 %v10267, %v10765
    %v10767 = vpop.f32.mrb[0].mxu0
    %v10768 = vpop.f32.mrb[0].mxu0
    %v10769 = vadd.f32 %v10267, %v10768
    %v10770 = vpop.f32.mrb[0].mxu0
    %10771 = vmatprep.mubr.bf16.mxu0 0
    %10772 = vmatmul.mubr.bf16.gmra.mrb[0].mxu0 %v10393
    %v10773 = vpop.f32.mrb[0].mxu0
    %v10774 = vadd.f32 %v10267, %v10773
    %v10775 = vpop.f32.mrb[0].mxu0
    %v10776 = vpop.f32.mrb[0].mxu0
    %v10777 = vadd.f32 %v10267, %v10776
    %v10778 = vpop.f32.mrb[0].mxu0
    %10779 = vmatprep.mubr.bf16.mxu0 0
    %10780 = vmatmul.mubr.bf16.gmra.mrb[0].mxu0 %v10396
    %v10781 = vpop.f32.mrb[0].mxu0
    %v10782 = vadd.f32 %v10267, %v10781
    %v10783 = vpop.f32.mrb[0].mxu0
    %v10784 = vpop.f32.mrb[0].mxu0
    %v10785 = vadd.f32 %v10267, %v10784
    %v10786 = vpop.f32.mrb[0].mxu0
    %10787 = vmatprep.mubr.bf16.mxu0 0
    %10788 = vmatmul.mubr.bf16.gmra.mrb[0].mxu0 %v10399
    %v10789 = vpop.f32.mrb[0].mxu0
    %v10790 = vadd.f32 %v10267, %v10789
    %v10791 = vpop.f32.mrb[0].mxu0
    %v10792 = vpop.f32.mrb[0].mxu0
    %v10793 = vadd.f32 %v10267, %v10792
    %v10794 = vpop.f32.mrb[0].mxu0
    %10795 = vmatprep.mubr.bf16.mxu0 0
    %10796 = vmatmul.mubr.bf16.gmra.mrb[0].mxu0 %v10402
    %v10797 = vpop.f32.mrb[0].mxu0
    %v10798 = vadd.f32 %v10267, %v10797
    %v10799 = vpop.f32.mrb[0].mxu0
    %v10800 = vpop.f32.mrb[0].mxu0
    %v10801 = vadd.f32 %v10267, %v10800
    %v10802 = vpop.f32.mrb[0].mxu0
    %10803 = vmatprep.mubr.bf16.mxu0 0
    %10804 = vmatmul.mubr.bf16.gmra.mrb[0].mxu0 %v10405
    %v10805 = vpop.f32.mrb[0].mxu0
    %v10806 = vadd.f32 %v10267, %v10805
    %v10807 = vpop.f32.mrb[0].mxu0
    %v10808 = vpop.f32.mrb[0].mxu0
    %v10809 = vadd.f32 %v10267, %v10808
    %v10810 = vpop.f32.mrb[0].mxu0
    %10811 = vmatprep.mubr.bf16.mxu0 0
    %10812 = vmatmul.mubr.bf16.gmra.mrb[0].mxu0 %v10408
    %v10813 = vpop.f32.mrb[0].mxu0
    %v10814 = vadd.f32 %v10267, %v10813
    %v10815 = vpop.f32.mrb[0].mxu0
    %v10816 = vpop.f32.mrb[0].mxu0
    %v10817 = vadd.f32 %v10267, %v10816
    %v10818 = vpop.f32.mrb[0].mxu0
    %10819 = vmatprep.mubr.bf16.mxu0 0
    %10820 = vmatmul.mubr.bf16.gmra.mrb[0].mxu0 %v10411
    %v10821 = vpop.f32.mrb[0].mxu0
    %v10822 = vadd.f32 %v10267, %v10821
    %v10823 = vpop.f32.mrb[0].mxu0
    %v10824 = vpop.f32.mrb[0].mxu0
    %v10825 = vadd.f32 %v10267, %v10824
    %v10826 = vpop.f32.mrb[0].mxu0
    %10827 = vmatprep.mubr.bf16.mxu0 0
    %10828 = vmatmul.mubr.bf16.gmra.mrb[0].mxu0 %v10414
    %v10829 = vpop.f32.mrb[0].mxu0
    %v10830 = vadd.f32 %v10267, %v10829
    %v10831 = vpop.f32.mrb[0].mxu0
    %v10832 = vpop.f32.mrb[0].mxu0
    %v10833 = vadd.f32 %v10267, %v10832
    %v10834 = vpop.f32.mrb[0].mxu0
    %10835 = vmatprep.mubr.bf16.mxu0 0
    %10836 = vmatmul.mubr.bf16.gmra.mrb[0].mxu0 %v10417
    %v10837 = vpop.f32.mrb[0].mxu0
    %v10838 = vadd.f32 %v10267, %v10837
    %v10839 = vpop.f32.mrb[0].mxu0
    %v10840 = vpop.f32.mrb[0].mxu0
    %v10841 = vadd.f32 %v10267, %v10840
    %v10842 = vpop.f32.mrb[0].mxu0
    %10843 = vmatprep.mubr.bf16.mxu0 0
    %10844 = vmatmul.mubr.bf16.gmra.mrb[0].mxu0 %v10420
    %v10845 = vpop.f32.mrb[0].mxu0
    %v10846 = vadd.f32 %v10267, %v10845
    %v10847 = vpop.f32.mrb[0].mxu0
    %v10848 = vpop.f32.mrb[0].mxu0
    %v10849 = vadd.f32 %v10267, %v10848
    %v10850 = vpop.f32.mrb[0].mxu0
    %10851 = vmatprep.mubr.bf16.mxu0 0
    %10852 = vmatmul.mubr.bf16.gmra.mrb[0].mxu0 %v10423
    %v10853 = vpop.f32.mrb[0].mxu0
    %v10854 = vadd.f32 %v10267, %v10853
    %v10855 = vpop.f32.mrb[0].mxu0
    %v10856 = vpop.f32.mrb[0].mxu0
    %v10857 = vadd.f32 %v10267, %v10856
    %v10858 = vpop.f32.mrb[0].mxu0
    %10859 = vmatprep.mubr.bf16.mxu0 0
    %10860 = vmatmul.mubr.bf16.gmra.mrb[0].mxu0 %v10426
    %v10861 = vpop.f32.mrb[0].mxu0
    %v10862 = vadd.f32 %v10267, %v10861
    %v10863 = vpop.f32.mrb[0].mxu0
    %v10864 = vpop.f32.mrb[0].mxu0
    %v10865 = vadd.f32 %v10267, %v10864
    %v10866 = vpop.f32.mrb[0].mxu0
    %10867 = vmatprep.mubr.bf16.mxu0 0
    %10868 = vmatmul.mubr.bf16.gmra.mrb[0].mxu0 %v10429
    %v10869 = vpop.f32.mrb[0].mxu0
    %v10870 = vadd.f32 %v10267, %v10869
    %v10871 = vpop.f32.mrb[0].mxu0
    %v10872 = vpop.f32.mrb[0].mxu0
    %v10873 = vadd.f32 %v10267, %v10872
    %v10874 = vpop.f32.mrb[0].mxu0
    %10875 = vmatprep.mubr.bf16.mxu0 0
    %10876 = vmatmul.mubr.bf16.gmra.mrb[0].mxu0 %v10432
    %v10877 = vpop.f32.mrb[0].mxu0
    %v10878 = vadd.f32 %v10267, %v10877
    %v10879 = vpop.f32.mrb[0].mxu0
    %v10880 = vpop.f32.mrb[0].mxu0
    %v10881 = vadd.f32 %v10267, %v10880
    %v10882 = vpop.f32.mrb[0].mxu0
    %10883 = vmatprep.mubr.bf16.mxu0 0
    %10884 = vmatmul.mubr.bf16.gmra.mrb[0].mxu0 %v10435
    %v10885 = vpop.f32.mrb[0].mxu0
    %v10886 = vadd.f32 %v10267, %v10885
    %v10887 = vpop.f32.mrb[0].mxu0
    %v10888 = vpop.f32.mrb[0].mxu0
    %v10889 = vadd.f32 %v10267, %v10888
    %v10890 = vpop.f32.mrb[0].mxu0
    %10891 = vmatprep.mubr.bf16.mxu0 0
    %10892 = vmatmul.mubr.bf16.gmra.mrb[0].mxu0 %v10438
    %v10893 = vpop.f32.mrb[0].mxu0
    %v10894 = vadd.f32 %v10267, %v10893
    %v10895 = vpop.f32.mrb[0].mxu0
    %v10896 = vpop.f32.mrb[0].mxu0
    %v10897 = vadd.f32 %v10267, %v10896
    %v10898 = vpop.f32.mrb[0].mxu0
    %10899 = vmatprep.mubr.bf16.mxu0 0
    %10900 = vmatmul.mubr.bf16.gmra.mrb[0].mxu0 %v10441
    %v10901 = vpop.f32.mrb[0].mxu0
    %v10902 = vadd.f32 %v10267, %v10901
    %v10903 = vpop.f32.mrb[0].mxu0
    %v10904 = vpop.f32.mrb[0].mxu0
    %v10905 = vadd.f32 %v10267, %v10904
    %v10906 = vpop.f32.mrb[0].mxu0
    %10907 = vdwg.mxu0
    %v10908 = vunpack.c.l.bf16 %v31
    %v10909 = vunpack.c.l.bf16 %v32
    %v10910 = vunpack.c.l.bf16 %v33
    %v10911 = vunpack.c.l.bf16 %v34
    %v10912 = vunpack.c.l.bf16 %v35
    %v10913 = vunpack.c.l.bf16 %v36
    %v10914 = vunpack.c.l.bf16 %v37
    %v10915 = vunpack.c.l.bf16 %v38
    %v10916 = vunpack.c.l.bf16 %v39
    %v10917 = vunpack.c.l.bf16 %v40
    %v10918 = vunpack.c.l.bf16 %v41
    %v10919 = vunpack.c.l.bf16 %v42
    %v10920 = vunpack.c.l.bf16 %v43
    %v10921 = vunpack.c.l.bf16 %v44
    %v10922 = vunpack.c.l.bf16 %v45
    %v10923 = vunpack.c.l.bf16 %v46
    %v10924 = vunpack.c.l.bf16 %v47
    %v10925 = vunpack.c.l.bf16 %v48
    %v10926 = vunpack.c.l.bf16 %v49
    %v10927 = vunpack.c.l.bf16 %v50
    %v10928 = vunpack.c.l.bf16 %v51
    %v10929 = vunpack.c.l.bf16 %v52
    %v10930 = vunpack.c.l.bf16 %v53
    %v10931 = vunpack.c.l.bf16 %v54
    %v10932 = vunpack.c.l.bf16 %v55
    %v10933 = vunpack.c.l.bf16 %v56
    %v10934 = vunpack.c.l.bf16 %v57
    %v10935 = vunpack.c.l.bf16 %v58
    %v10936 = vunpack.c.l.bf16 %v59
    %v10937 = vunpack.c.l.bf16 %v60
    %v10938 = vunpack.c.l.bf16 %v61
    %v10939 = vunpack.c.l.bf16 %v62
    %v10940 = vunpack.c.l.bf16 %v63
    %v10941 = vunpack.c.l.bf16 %v64
    %v10942 = vunpack.c.l.bf16 %v65
    %v10943 = vunpack.c.l.bf16 %v66
    %v10944 = vunpack.c.l.bf16 %v67
    %v10945 = vunpack.c.l.bf16 %v68
    %v10946 = vunpack.c.l.bf16 %v69
    %v10947 = vunpack.c.l.bf16 %v70
    %v10948 = vunpack.c.l.bf16 %v71
    %v10949 = vunpack.c.l.bf16 %v72
    %v10950 = vunpack.c.l.bf16 %v73
    %v10951 = vunpack.c.l.bf16 %v74
    %v10952 = vunpack.c.l.bf16 %v75
    %v10953 = vunpack.c.l.bf16 %v76
    %v10954 = vunpack.c.l.bf16 %v77
    %v10955 = vunpack.c.l.bf16 %v78
    %v10956 = vunpack.c.l.bf16 %v79
    %v10957 = vunpack.c.l.bf16 %v80
    %v10958 = vunpack.c.l.bf16 %v81
    %v10959 = vunpack.c.l.bf16 %v82
    %v10960 = vunpack.c.l.bf16 %v83
    %v10961 = vunpack.c.l.bf16 %v84
    %v10962 = vunpack.c.l.bf16 %v85
    %v10963 = vunpack.c.l.bf16 %v86
    %v10964 = vunpack.c.l.bf16 %v87
    %v10965 = vunpack.c.l.bf16 %v88
    %v10966 = vunpack.c.l.bf16 %v89
    %v10967 = vunpack.c.l.bf16 %v90
    %v10968 = vunpack.c.l.bf16 %v91
    %v10969 = vunpack.c.l.bf16 %v92
    %v10970 = vunpack.c.l.bf16 %v93
    %v10971 = vunpack.c.l.bf16 %v94
    %v10972 = vunpack.c.l.bf16 %v95
    %v10973 = vunpack.c.l.bf16 %v96
    %v10974 = vunpack.c.l.bf16 %v97
    %v10975 = vunpack.c.l.bf16 %v98
    %v10976 = vunpack.c.l.bf16 %v99
    %v10977 = vunpack.c.l.bf16 %v100
    %v10978 = vunpack.c.l.bf16 %v101
    %v10979 = vunpack.c.l.bf16 %v102
    %v10980 = vunpack.c.l.bf16 %v103
    %v10981 = vunpack.c.l.bf16 %v104
    %v10982 = vunpack.c.l.bf16 %v105
    %v10983 = vunpack.c.l.bf16 %v106
    %v10984 = vunpack.c.l.bf16 %v107
    %v10985 = vunpack.c.l.bf16 %v108
    %v10986 = vunpack.c.l.bf16 %v109
    %v10987 = vunpack.c.l.bf16 %v110
    %v10988 = vunpack.c.l.bf16 %v111
    %v10989 = vunpack.c.l.bf16 %v112
    %v10990 = vunpack.c.l.bf16 %v113
    %v10991 = vunpack.c.l.bf16 %v114
    %v10992 = vunpack.c.l.bf16 %v115
    %v10993 = vunpack.c.l.bf16 %v116
    %v10994 = vunpack.c.l.bf16 %v117
    %v10995 = vunpack.c.l.bf16 %v118
    %v10996 = vunpack.c.l.bf16 %v119
    %v10997 = vunpack.c.l.bf16 %v120
    %v10998 = vunpack.c.l.bf16 %v121
    %v10999 = vunpack.c.l.bf16 %v122
    %v11000 = vunpack.c.l.bf16 %v123
    %v11001 = vunpack.c.l.bf16 %v124
    %v11002 = vunpack.c.l.bf16 %v125
    %v11003 = vunpack.c.l.bf16 %v126
    %v11004 = vunpack.c.l.bf16 %v127
    %v11005 = vunpack.c.l.bf16 %v128
    %v11006 = vunpack.c.l.bf16 %v129
    %v11007 = vunpack.c.l.bf16 %v130
    %v11008 = vunpack.c.l.bf16 %v131
    %v11009 = vunpack.c.l.bf16 %v132
    %v11010 = vunpack.c.l.bf16 %v133
    %v11011 = vunpack.c.l.bf16 %v134
    %v11012 = vunpack.c.l.bf16 %v135
    %v11013 = vunpack.c.l.bf16 %v136
    %v11014 = vunpack.c.l.bf16 %v137
    %v11015 = vunpack.c.l.bf16 %v138
    %v11016 = vadd.f32 %v10478, %v10908
    %v11017 = vadd.f32 %v10481, %v10909
    %v11018 = vadd.f32 %v10486, %v10910
    %v11019 = vadd.f32 %v10489, %v10911
    %v11020 = vadd.f32 %v10494, %v10912
    %v11021 = vadd.f32 %v10497, %v10913
    %v11022 = vadd.f32 %v10502, %v10914
    %v11023 = vadd.f32 %v10505, %v10915
    %v11024 = vadd.f32 %v10510, %v10916
    %v11025 = vadd.f32 %v10513, %v10917
    %v11026 = vadd.f32 %v10518, %v10918
    %v11027 = vadd.f32 %v10521, %v10919
    %v11028 = vadd.f32 %v10526, %v10920
    %v11029 = vadd.f32 %v10529, %v10921
    %v11030 = vadd.f32 %v10534, %v10922
    %v11031 = vadd.f32 %v10537, %v10923
    %v11032 = vadd.f32 %v10542, %v10924
    %v11033 = vadd.f32 %v10545, %v10925
    %v11034 = vadd.f32 %v10550, %v10926
    %v11035 = vadd.f32 %v10553, %v10927
    %v11036 = vadd.f32 %v10558, %v10928
    %v11037 = vadd.f32 %v10561, %v10929
    %v11038 = vadd.f32 %v10566, %v10930
    %v11039 = vadd.f32 %v10569, %v10931
    %v11040 = vadd.f32 %v10574, %v10932
    %v11041 = vadd.f32 %v10577, %v10933
    %v11042 = vadd.f32 %v10582, %v10934
    %v11043 = vadd.f32 %v10585, %v10935
    %v11044 = vadd.f32 %v10590, %v10936
    %v11045 = vadd.f32 %v10593, %v10937
    %v11046 = vadd.f32 %v10598, %v10938
    %v11047 = vadd.f32 %v10601, %v10939
    %v11048 = vadd.f32 %v10606, %v10940
    %v11049 = vadd.f32 %v10609, %v10941
    %v11050 = vadd.f32 %v10614, %v10942
    %v11051 = vadd.f32 %v10617, %v10943
    %v11052 = vadd.f32 %v10622, %v10944
    %v11053 = vadd.f32 %v10625, %v10945
    %v11054 = vadd.f32 %v10630, %v10946
    %v11055 = vadd.f32 %v10633, %v10947
    %v11056 = vadd.f32 %v10638, %v10948
    %v11057 = vadd.f32 %v10641, %v10949
    %v11058 = vadd.f32 %v10646, %v10950
    %v11059 = vadd.f32 %v10649, %v10951
    %v11060 = vadd.f32 %v10654, %v10952
    %v11061 = vadd.f32 %v10657, %v10953
    %v11062 = vadd.f32 %v10662, %v10954
    %v11063 = vadd.f32 %v10665, %v10955
    %v11064 = vadd.f32 %v10670, %v10956
    %v11065 = vadd.f32 %v10673, %v10957
    %v11066 = vadd.f32 %v10678, %v10958
    %v11067 = vadd.f32 %v10681, %v10959
    %v11068 = vadd.f32 %v10686, %v10960
    %v11069 = vadd.f32 %v10689, %v10961
    %v11070 = vadd.f32 %v10694, %v10962
    %v11071 = vadd.f32 %v10697, %v10963
    %v11072 = vadd.f32 %v10702, %v10964
    %v11073 = vadd.f32 %v10705, %v10965
    %v11074 = vadd.f32 %v10710, %v10966
    %v11075 = vadd.f32 %v10713, %v10967
    %v11076 = vadd.f32 %v10718, %v10968
    %v11077 = vadd.f32 %v10721, %v10969
    %v11078 = vadd.f32 %v10726, %v10970
    %v11079 = vadd.f32 %v10729, %v10971
    %v11080 = vadd.f32 %v10734, %v10972
    %v11081 = vadd.f32 %v10737, %v10973
    %v11082 = vadd.f32 %v10742, %v10974
    %v11083 = vadd.f32 %v10745, %v10975
    %v11084 = vadd.f32 %v10750, %v10976
    %v11085 = vadd.f32 %v10753, %v10977
    %v11086 = vadd.f32 %v10758, %v10978
    %v11087 = vadd.f32 %v10761, %v10979
    %v11088 = vadd.f32 %v10766, %v10980
    %v11089 = vadd.f32 %v10769, %v10981
    %v11090 = vadd.f32 %v10774, %v10982
    %v11091 = vadd.f32 %v10777, %v10983
    %v11092 = vadd.f32 %v10782, %v10984
    %v11093 = vadd.f32 %v10785, %v10985
    %v11094 = vadd.f32 %v10790, %v10986
    %v11095 = vadd.f32 %v10793, %v10987
    %v11096 = vadd.f32 %v10798, %v10988
    %v11097 = vadd.f32 %v10801, %v10989
    %v11098 = vadd.f32 %v10806, %v10990
    %v11099 = vadd.f32 %v10809, %v10991
    %v11100 = vadd.f32 %v10814, %v10992
    %v11101 = vadd.f32 %v10817, %v10993
    %v11102 = vadd.f32 %v10822, %v10994
    %v11103 = vadd.f32 %v10825, %v10995
    %v11104 = vadd.f32 %v10830, %v10996
    %v11105 = vadd.f32 %v10833, %v10997
    %v11106 = vadd.f32 %v10838, %v10998
    %v11107 = vadd.f32 %v10841, %v10999
    %v11108 = vadd.f32 %v10846, %v11000
    %v11109 = vadd.f32 %v10849, %v11001
    %v11110 = vadd.f32 %v10854, %v11002
    %v11111 = vadd.f32 %v10857, %v11003
    %v11112 = vadd.f32 %v10862, %v11004
    %v11113 = vadd.f32 %v10865, %v11005
    %v11114 = vadd.f32 %v10870, %v11006
    %v11115 = vadd.f32 %v10873, %v11007
    %v11116 = vadd.f32 %v10878, %v11008
    %v11117 = vadd.f32 %v10881, %v11009
    %v11118 = vadd.f32 %v10886, %v11010
    %v11119 = vadd.f32 %v10889, %v11011
    %v11120 = vadd.f32 %v10894, %v11012
    %v11121 = vadd.f32 %v10897, %v11013
    %v11122 = vadd.f32 %v10902, %v11014
    %v11123 = vadd.f32 %v10905, %v11015
    %v11124 = vmax.f32 %v11016, 0.0
    %v11125 = vmax.f32 %v11017, 0.0
    %v11126 = vmax.f32 %v11018, 0.0
    %v11127 = vmax.f32 %v11019, 0.0
    %v11128 = vmax.f32 %v11020, 0.0
    %v11129 = vmax.f32 %v11021, 0.0
    %v11130 = vmax.f32 %v11022, 0.0
    %v11131 = vmax.f32 %v11023, 0.0
    %v11132 = vmax.f32 %v11024, 0.0
    %v11133 = vmax.f32 %v11025, 0.0
    %v11134 = vmax.f32 %v11026, 0.0
    %v11135 = vmax.f32 %v11027, 0.0
    %v11136 = vmax.f32 %v11028, 0.0
    %v11137 = vmax.f32 %v11029, 0.0
    %v11138 = vmax.f32 %v11030, 0.0
    %v11139 = vmax.f32 %v11031, 0.0
    %v11140 = vmax.f32 %v11032, 0.0
    %v11141 = vmax.f32 %v11033, 0.0
    %v11142 = vmax.f32 %v11034, 0.0
    %v11143 = vmax.f32 %v11035, 0.0
    %v11144 = vmax.f32 %v11036, 0.0
    %v11145 = vmax.f32 %v11037, 0.0
    %v11146 = vmax.f32 %v11038, 0.0
    %v11147 = vmax.f32 %v11039, 0.0
    %v11148 = vmax.f32 %v11040, 0.0
    %v11149 = vmax.f32 %v11041, 0.0
    %v11150 = vmax.f32 %v11042, 0.0
    %v11151 = vmax.f32 %v11043, 0.0
    %v11152 = vmax.f32 %v11044, 0.0
    %v11153 = vmax.f32 %v11045, 0.0
    %v11154 = vmax.f32 %v11046, 0.0
    %v11155 = vmax.f32 %v11047, 0.0
    %v11156 = vmax.f32 %v11048, 0.0
    %v11157 = vmax.f32 %v11049, 0.0
    %v11158 = vmax.f32 %v11050, 0.0
    %v11159 = vmax.f32 %v11051, 0.0
    %v11160 = vmax.f32 %v11052, 0.0
    %v11161 = vmax.f32 %v11053, 0.0
    %v11162 = vmax.f32 %v11054, 0.0
    %v11163 = vmax.f32 %v11055, 0.0
    %v11164 = vmax.f32 %v11056, 0.0
    %v11165 = vmax.f32 %v11057, 0.0
    %v11166 = vmax.f32 %v11058, 0.0
    %v11167 = vmax.f32 %v11059, 0.0
    %v11168 = vmax.f32 %v11060, 0.0
    %v11169 = vmax.f32 %v11061, 0.0
    %v11170 = vmax.f32 %v11062, 0.0
    %v11171 = vmax.f32 %v11063, 0.0
    %v11172 = vmax.f32 %v11064, 0.0
    %v11173 = vmax.f32 %v11065, 0.0
    %v11174 = vmax.f32 %v11066, 0.0
    %v11175 = vmax.f32 %v11067, 0.0
    %v11176 = vmax.f32 %v11068, 0.0
    %v11177 = vmax.f32 %v11069, 0.0
    %v11178 = vmax.f32 %v11070, 0.0
    %v11179 = vmax.f32 %v11071, 0.0
    %v11180 = vmax.f32 %v11072, 0.0
    %v11181 = vmax.f32 %v11073, 0.0
    %v11182 = vmax.f32 %v11074, 0.0
    %v11183 = vmax.f32 %v11075, 0.0
    %v11184 = vmax.f32 %v11076, 0.0
    %v11185 = vmax.f32 %v11077, 0.0
    %v11186 = vmax.f32 %v11078, 0.0
    %v11187 = vmax.f32 %v11079, 0.0
    %v11188 = vmax.f32 %v11080, 0.0
    %v11189 = vmax.f32 %v11081, 0.0
    %v11190 = vmax.f32 %v11082, 0.0
    %v11191 = vmax.f32 %v11083, 0.0
    %v11192 = vmax.f32 %v11084, 0.0
    %v11193 = vmax.f32 %v11085, 0.0
    %v11194 = vmax.f32 %v11086, 0.0
    %v11195 = vmax.f32 %v11087, 0.0
    %v11196 = vmax.f32 %v11088, 0.0
    %v11197 = vmax.f32 %v11089, 0.0
    %v11198 = vmax.f32 %v11090, 0.0
    %v11199 = vmax.f32 %v11091, 0.0
    %v11200 = vmax.f32 %v11092, 0.0
    %v11201 = vmax.f32 %v11093, 0.0
    %v11202 = vmax.f32 %v11094, 0.0
    %v11203 = vmax.f32 %v11095, 0.0
    %v11204 = vmax.f32 %v11096, 0.0
    %v11205 = vmax.f32 %v11097, 0.0
    %v11206 = vmax.f32 %v11098, 0.0
    %v11207 = vmax.f32 %v11099, 0.0
    %v11208 = vmax.f32 %v11100, 0.0
    %v11209 = vmax.f32 %v11101, 0.0
    %v11210 = vmax.f32 %v11102, 0.0
    %v11211 = vmax.f32 %v11103, 0.0
    %v11212 = vmax.f32 %v11104, 0.0
    %v11213 = vmax.f32 %v11105, 0.0
    %v11214 = vmax.f32 %v11106, 0.0
    %v11215 = vmax.f32 %v11107, 0.0
    %v11216 = vmax.f32 %v11108, 0.0
    %v11217 = vmax.f32 %v11109, 0.0
    %v11218 = vmax.f32 %v11110, 0.0
    %v11219 = vmax.f32 %v11111, 0.0
    %v11220 = vmax.f32 %v11112, 0.0
    %v11221 = vmax.f32 %v11113, 0.0
    %v11222 = vmax.f32 %v11114, 0.0
    %v11223 = vmax.f32 %v11115, 0.0
    %v11224 = vmax.f32 %v11116, 0.0
    %v11225 = vmax.f32 %v11117, 0.0
    %v11226 = vmax.f32 %v11118, 0.0
    %v11227 = vmax.f32 %v11119, 0.0
    %v11228 = vmax.f32 %v11120, 0.0
    %v11229 = vmax.f32 %v11121, 0.0
    %v11230 = vmax.f32 %v11122, 0.0
    %v11231 = vmax.f32 %v11123, 0.0
    %11232 = vst [vmem:[#allocation3] sm:$0xff] %v11124
    %11233 = vst [vmem:[#allocation3 + $0x8] sm:$0xff] %v11125
    %11234 = vst [vmem:[#allocation3 + $0x10] sm:$0xff] %v11126
    %11235 = vst [vmem:[#allocation3 + $0x18] sm:$0xff] %v11127
    %11236 = vst [vmem:[#allocation3 + $0x20] sm:$0xff] %v11128
    %11237 = vst [vmem:[#allocation3 + $0x28] sm:$0xff] %v11129
    %11238 = vst [vmem:[#allocation3 + $0x30] sm:$0xff] %v11130
    %11239 = vst [vmem:[#allocation3 + $0x38] sm:$0xff] %v11131
    %11240 = vst [vmem:[#allocation3 + $0x40] sm:$0xff] %v11132
    %11241 = vst [vmem:[#allocation3 + $0x48] sm:$0xff] %v11133
    %11242 = vst [vmem:[#allocation3 + $0x50] sm:$0xff] %v11134
    %11243 = vst [vmem:[#allocation3 + $0x58] sm:$0xff] %v11135
    %11244 = vst [vmem:[#allocation3 + $0x60] sm:$0xff] %v11136
    %11245 = vst [vmem:[#allocation3 + $0x68] sm:$0xff] %v11137
    %11246 = vst [vmem:[#allocation3 + $0x70] sm:$0xff] %v11138
    %11247 = vst [vmem:[#allocation3 + $0x78] sm:$0xff] %v11139
    %11248 = vst [vmem:[#allocation3 + $0x80] sm:$0xff] %v11140
    %11249 = vst [vmem:[#allocation3 + $0x88] sm:$0xff] %v11141
    %11250 = vst [vmem:[#allocation3 + $0x90] sm:$0xff] %v11142
    %11251 = vst [vmem:[#allocation3 + $0x98] sm:$0xff] %v11143
    %11252 = vst [vmem:[#allocation3 + $0xa0] sm:$0xff] %v11144
    %11253 = vst [vmem:[#allocation3 + $0xa8] sm:$0xff] %v11145
    %11254 = vst [vmem:[#allocation3 + $0xb0] sm:$0xff] %v11146
    %11255 = vst [vmem:[#allocation3 + $0xb8] sm:$0xff] %v11147
    %11256 = vst [vmem:[#allocation3 + $0xc0] sm:$0xff] %v11148
    %11257 = vst [vmem:[#allocation3 + $0xc8] sm:$0xff] %v11149
    %11258 = vst [vmem:[#allocation3 + $0xd0] sm:$0xff] %v11150
    %11259 = vst [vmem:[#allocation3 + $0xd8] sm:$0xff] %v11151
    %11260 = vst [vmem:[#allocation3 + $0xe0] sm:$0xff] %v11152
    %11261 = vst [vmem:[#allocation3 + $0xe8] sm:$0xff] %v11153
    %11262 = vst [vmem:[#allocation3 + $0xf0] sm:$0xff] %v11154
    %11263 = vst [vmem:[#allocation3 + $0xf8] sm:$0xff] %v11155
    %11264 = vst [vmem:[#allocation3 + $0x100] sm:$0xff] %v11156
    %11265 = vst [vmem:[#allocation3 + $0x108] sm:$0xff] %v11157
    %11266 = vst [vmem:[#allocation3 + $0x110] sm:$0xff] %v11158
    %11267 = vst [vmem:[#allocation3 + $0x118] sm:$0xff] %v11159
    %11268 = vst [vmem:[#allocation3 + $0x120] sm:$0xff] %v11160
    %11269 = vst [vmem:[#allocation3 + $0x128] sm:$0xff] %v11161
    %11270 = vst [vmem:[#allocation3 + $0x130] sm:$0xff] %v11162
    %11271 = vst [vmem:[#allocation3 + $0x138] sm:$0xff] %v11163
    %11272 = vst [vmem:[#allocation3 + $0x140] sm:$0xff] %v11164
    %11273 = vst [vmem:[#allocation3 + $0x148] sm:$0xff] %v11165
    %11274 = vst [vmem:[#allocation3 + $0x150] sm:$0xff] %v11166
    %11275 = vst [vmem:[#allocation3 + $0x158] sm:$0xff] %v11167
    %11276 = vst [vmem:[#allocation3 + $0x160] sm:$0xff] %v11168
    %11277 = vst [vmem:[#allocation3 + $0x168] sm:$0xff] %v11169
    %11278 = vst [vmem:[#allocation3 + $0x170] sm:$0xff] %v11170
    %11279 = vst [vmem:[#allocation3 + $0x178] sm:$0xff] %v11171
    %11280 = vst [vmem:[#allocation3 + $0x180] sm:$0xff] %v11172
    %11281 = vst [vmem:[#allocation3 + $0x188] sm:$0xff] %v11173
    %11282 = vst [vmem:[#allocation3 + $0x190] sm:$0xff] %v11174
    %11283 = vst [vmem:[#allocation3 + $0x198] sm:$0xff] %v11175
    %11284 = vst [vmem:[#allocation3 + $0x1a0] sm:$0xff] %v11176
    %11285 = vst [vmem:[#allocation3 + $0x1a8] sm:$0xff] %v11177
    %11286 = vst [vmem:[#allocation3 + $0x1b0] sm:$0xff] %v11178
    %11287 = vst [vmem:[#allocation3 + $0x1b8] sm:$0xff] %v11179
    %11288 = vst [vmem:[#allocation3 + $0x1c0] sm:$0xff] %v11180
    %11289 = vst [vmem:[#allocation3 + $0x1c8] sm:$0xff] %v11181
    %11290 = vst [vmem:[#allocation3 + $0x1d0] sm:$0xff] %v11182
    %11291 = vst [vmem:[#allocation3 + $0x1d8] sm:$0xff] %v11183
    %11292 = vst [vmem:[#allocation3 + $0x1e0] sm:$0xff] %v11184
    %11293 = vst [vmem:[#allocation3 + $0x1e8] sm:$0xff] %v11185
    %11294 = vst [vmem:[#allocation3 + $0x1f0] sm:$0xff] %v11186
    %11295 = vst [vmem:[#allocation3 + $0x1f8] sm:$0xff] %v11187
    %11296 = vst [vmem:[#allocation3 + $0x200] sm:$0xff] %v11188
    %11297 = vst [vmem:[#allocation3 + $0x208] sm:$0xff] %v11189
    %11298 = vst [vmem:[#allocation3 + $0x210] sm:$0xff] %v11190
    %11299 = vst [vmem:[#allocation3 + $0x218] sm:$0xff] %v11191
    %11300 = vst [vmem:[#allocation3 + $0x220] sm:$0xff] %v11192
    %11301 = vst [vmem:[#allocation3 + $0x228] sm:$0xff] %v11193
    %11302 = vst [vmem:[#allocation3 + $0x230] sm:$0xff] %v11194
    %11303 = vst [vmem:[#allocation3 + $0x238] sm:$0xff] %v11195
    %11304 = vst [vmem:[#allocation3 + $0x240] sm:$0xff] %v11196
    %11305 = vst [vmem:[#allocation3 + $0x248] sm:$0xff] %v11197
    %11306 = vst [vmem:[#allocation3 + $0x250] sm:$0xff] %v11198
    %11307 = vst [vmem:[#allocation3 + $0x258] sm:$0xff] %v11199
    %11308 = vst [vmem:[#allocation3 + $0x260] sm:$0xff] %v11200
    %11309 = vst [vmem:[#allocation3 + $0x268] sm:$0xff] %v11201
    %11310 = vst [vmem:[#allocation3 + $0x270] sm:$0xff] %v11202
    %11311 = vst [vmem:[#allocation3 + $0x278] sm:$0xff] %v11203
    %11312 = vst [vmem:[#allocation3 + $0x280] sm:$0xff] %v11204
    %11313 = vst [vmem:[#allocation3 + $0x288] sm:$0xff] %v11205
    %11314 = vst [vmem:[#allocation3 + $0x290] sm:$0xff] %v11206
    %11315 = vst [vmem:[#allocation3 + $0x298] sm:$0xff] %v11207
    %11316 = vst [vmem:[#allocation3 + $0x2a0] sm:$0xff] %v11208
    %11317 = vst [vmem:[#allocation3 + $0x2a8] sm:$0xff] %v11209
    %11318 = vst [vmem:[#allocation3 + $0x2b0] sm:$0xff] %v11210
    %11319 = vst [vmem:[#allocation3 + $0x2b8] sm:$0xff] %v11211
    %11320 = vst [vmem:[#allocation3 + $0x2c0] sm:$0xff] %v11212
    %11321 = vst [vmem:[#allocation3 + $0x2c8] sm:$0xff] %v11213
    %11322 = vst [vmem:[#allocation3 + $0x2d0] sm:$0xff] %v11214
    %11323 = vst [vmem:[#allocation3 + $0x2d8] sm:$0xff] %v11215
    %11324 = vst [vmem:[#allocation3 + $0x2e0] sm:$0xff] %v11216
    %11325 = vst [vmem:[#allocation3 + $0x2e8] sm:$0xff] %v11217
    %11326 = vst [vmem:[#allocation3 + $0x2f0] sm:$0xff] %v11218
    %11327 = vst [vmem:[#allocation3 + $0x2f8] sm:$0xff] %v11219
    %11328 = vst [vmem:[#allocation3 + $0x300] sm:$0xff] %v11220
    %11329 = vst [vmem:[#allocation3 + $0x308] sm:$0xff] %v11221
    %11330 = vst [vmem:[#allocation3 + $0x310] sm:$0xff] %v11222
    %11331 = vst [vmem:[#allocation3 + $0x318] sm:$0xff] %v11223
    %11332 = vst [vmem:[#allocation3 + $0x320] sm:$0xff] %v11224
    %11333 = vst [vmem:[#allocation3 + $0x328] sm:$0xff] %v11225
    %11334 = vst [vmem:[#allocation3 + $0x330] sm:$0xff] %v11226
    %11335 = vst [vmem:[#allocation3 + $0x338] sm:$0xff] %v11227
    %11336 = vst [vmem:[#allocation3 + $0x340] sm:$0xff] %v11228
    %11337 = vst [vmem:[#allocation3 + $0x348] sm:$0xff] %v11229
    %11338 = vst [vmem:[#allocation3 + $0x350] sm:$0xff] %v11230
    %11339 = vst [vmem:[#allocation3 + $0x358] sm:$0xff] %v11231
    // Predicated region
    $region34: #{tpu_custom_call.1} parent=1 // pred_check
      _
    $region35: #{tpu_custom_call.1} parent=1 // pred_check_branch
      %11341 = sbr.rel (0) target = $region37
    $region36: #{tpu_custom_call.1} parent=1 // pred_region
      %s11343 = ssub.s32 13824, 13824
      %11344 = vsyncadd [#allocation4], %s11343
      %s11345 = sshll.u32 [#allocation3], 4
      %s11346 = int_to_ptr.vmem [resolvable:$true] %s11345
      %11351 = dma.vmem_to_hbm [thread:$0]  %s11346, 13824, %s8, [#allocation4], 128, 128, 8
    $region37: #{tpu_custom_call.1} parent=1 // pred_fallthru
      _
    // Predicated region
    $region38: #{tpu_custom_call.1} parent=1 // pred_check
      _
    $region39: #{tpu_custom_call.1} parent=1 // pred_check_branch
      %11353 = sbr.rel (0) target = $region41
    $region40: #{tpu_custom_call.1} parent=1 // pred_region
      %11354 = dma.done [#allocation4], 13824
    $region41: #{tpu_custom_call.1} parent=1 // pred_fallthru
      _
    %11355 = vsyncpa [#allocation4], 1

</llo_original>
